<compile_context>
chip_gen: v6e
topology: v6e:2x2x1
jax: 0.10.0
libtpu: 0.0.40
codegen_flags: <defaults>
</compile_context>

<pallas_src>
import functools

import jax
import jax.numpy as jnp
from jax.experimental import pallas as pl
from jax.experimental.pallas import tpu as pltpu


_DISP_SCALE = 1.0 / 8.6437


def _round_up(x, m):
    return (x + m - 1) // m * m


# ---------------------------------------------------------------------------
# Fused Pallas kernel: encoder conv+ReLU -> (VMEM feat scratch) -> decoder conv
# ---------------------------------------------------------------------------
def _fused_depth_kernel(x_ref, we_ref, be_ref, wd_ref, bd_ref, o_ref, feat_ref,
                        *, H, W, th, NT, wfp, cin, cf):
    R2 = th + 2  # feature rows needed: output rows + 1 halo row on each side

    # -- encoder: feat = relu(conv3x3(x) + b_enc) on the (R2, wfp) halo grid.
    #    Channel contraction runs on the MXU; the 9 taps are accumulated from
    #    shifted reads of the VMEM input slab (in-kernel "im2col", no HBM copy).
    acc = jnp.zeros((R2 * wfp, cf), jnp.float32) + be_ref[...]      # bias folded into init
    for k1 in range(3):
        for k2 in range(3):
            xs = x_ref[k1:k1 + R2, k2:k2 + wfp, :]                  # (R2, wfp, cin)
            acc = acc + jnp.dot(xs.reshape(R2 * wfp, cin),          # wfp % 8 == 0 -> tile-aligned reshape
                                we_ref[k1 * 3 + k2],
                                preferred_element_type=jnp.float32)
    feat = jnp.maximum(acc, 0.0).reshape(R2, wfp, cf)

    # -- zero halo features outside the valid image so the decoder sees the same
    #    zero padding as a SAME conv would (relu(bias) != 0 outside the image).
    ti = pl.program_id(0) % NT
    row0 = ti * th - 1                                              # global row of feat local row 0
    rows = jax.lax.broadcasted_iota(jnp.int32, (R2, 1, 1), 0) + row0
    cols = jax.lax.broadcasted_iota(jnp.int32, (1, wfp, 1), 1) - 1
    valid = (rows >= 0) & (rows < H) & (cols >= 0) & (cols < W)
    feat_ref[...] = jnp.where(valid, feat, 0.0)                     # VMEM-resident features

    # -- decoder: disp = sigmoid(conv3x3(feat) + b_dec) / 8.6437.  Cout == 1, so
    #    keep it off the MXU (elementwise mul + lane reduce) and write a
    #    lane-dense (th, W) tile with W mapped to lanes.
    acc2 = jnp.zeros((th, W), jnp.float32) + bd_ref[0, 0]
    for k1 in range(3):
        for k2 in range(3):
            fs = feat_ref[k1:k1 + th, k2:k2 + W, :]                 # (th, W, cf)
            acc2 = acc2 + jnp.sum(fs * wd_ref[k1 * 3 + k2], axis=-1)
    o_ref[...] = (jax.nn.sigmoid(acc2) * _DISP_SCALE).astype(o_ref.dtype)


# ---------------------------------------------------------------------------
# Row-tile selection: keep the per-step VMEM footprint (double-buffered input
# slab + feature scratch, including lane/sublane padding) under a conservative
# budget so it fits the default scoped VMEM on v5e/v6e and v7x's 64 MiB part.
# ---------------------------------------------------------------------------
def _pick_row_tile(H, W, cf, budget_bytes=20 * 1024 * 1024):
    wfp = _round_up(W + 2, 8)
    x_row = 2 * _round_up(wfp + 2, 8) * 128 * 4      # input slab rows (C pads to 128 lanes), x2 buffers
    f_row = wfp * _round_up(cf, 128) * 4             # feat scratch rows (cf pads to 128 lanes)
    th = max(8, int(budget_bytes // (x_row + f_row)))
    return min(H, th)


# ---------------------------------------------------------------------------
# Wrapper (ManyDepthModelWrapper.forward semantics)
# ---------------------------------------------------------------------------
def load_and_preprocess_intrinsics(resize_width, resize_height):
    # Deterministic stand-in for the intrinsics JSON of the torch module.
    K = jnp.eye(4)
    K = K.at[0, :].multiply(resize_width // 4)
    K = K.at[1, :].multiply(resize_height // 4)
    invK = jnp.linalg.pinv(K)[None]
    return K[None], invK


def many_depth_forward(params, encoder_dict, input_image_nchw, *, row_tile=None):
    B, C, H, W = input_image_nchw.shape
    cf = params["enc_w"].shape[-1]

    # Wrapper-level constants of the torch module.  With lookup_images = 0 and a
    # zero pose the matching branch is degenerate, so these are dead inputs here.
    zero_pose = jnp.zeros((1, 1, 4, 4), jnp.float32)
    K, invK = load_and_preprocess_intrinsics(encoder_dict["width"], encoder_dict["height"])
    lookup_images = input_image_nchw[:, None] * 0.0
    del zero_pose, K, invK, lookup_images

    x = jnp.transpose(input_image_nchw, (0, 2, 3, 1)).astype(jnp.float32)   # NCHW -> NHWC

    th = row_tile if row_tile is not None else _pick_row_tile(H, W, cf)
    NT = -(-H // th)               # cdiv, no divisibility requirement on H
    Hp = NT * th
    wfp = _round_up(W + 2, 8)      # feature halo width, padded so in-kernel reshapes stay tile-aligned
    wxp = wfp + 2                  # input slab width (2-col halo for the encoder conv)

    # Overlapping row slabs with a 2-row halo (a few % duplication instead of the
    # 9x im2col expansion + feature-map HBM round trip of the unfused version).
    xp = jnp.pad(x, ((0, 0), (2, 2 + Hp - H), (2, wfp - W), (0, 0)))
    slabs = jnp.stack([xp[:, t * th:t * th + th + 4] for t in range(NT)], axis=1)
    slabs = slabs.reshape(B * NT, th + 4, wxp, C)

    kernel = functools.partial(_fused_depth_kernel, H=H, W=W, th=th, NT=NT,
                               wfp=wfp, cin=C, cf=cf)
    out = pl.pallas_call(
        kernel,
        out_shape=jax.ShapeDtypeStruct((B * NT, th, W), jnp.float32),
        grid_spec=pltpu.PrefetchScalarGridSpec(
            num_scalar_prefetch=0,
            grid=(B * NT,),                                  # >= 2 parallel steps -> both v7x TCs
            in_specs=[
                pl.BlockSpec((None, th + 4, wxp, C), lambda t: (t, 0, 0, 0)),   # input row slab
                pl.BlockSpec((9, C, cf), lambda t: (0, 0, 0)),                  # encoder taps (tap, Cin, Cf)
                pl.BlockSpec((1, cf), lambda t: (0, 0)),                        # encoder bias
                pl.BlockSpec((9, 1, cf), lambda t: (0, 0, 0)),                  # decoder taps (tap, 1, Cf)
                pl.BlockSpec((1, 1), lambda t: (0, 0)),                         # decoder bias (scalar)
            ],
            out_specs=pl.BlockSpec((None, th, W), lambda t: (t, 0, 0)),         # lane-dense (th, W)
            scratch_shapes=[pltpu.VMEM((th + 2, wfp, cf), jnp.float32)],        # resident feature slab
        ),
        compiler_params=pltpu.CompilerParams(
            dimension_semantics=("parallel",)),
    )(slabs, params["enc_w"], params["enc_b"], params["dec_w"], params["dec_b"])

    disp = out.reshape(B, Hp, W)[:, :H, :]
    return disp[:, None, :, :]     # back to NCHW: (B, 1, H, W)


# ---------------------------------------------------------------------------
# Parameters (torch OIHW layout -> kernel tap layout) and pure-JAX reference
# ---------------------------------------------------------------------------
def init_params(key, c_in=3, c_feat=32):
    k1, k2, k3, k4 = jax.random.split(key, 4)
    raw = {
        "enc_w": 0.1 * jax.random.normal(k1, (c_feat, c_in, 3, 3), jnp.float32),
        "enc_b": 0.01 * jax.random.normal(k2, (c_feat,), jnp.float32),
        "dec_w": 0.1 * jax.random.normal(k3, (1, c_feat, 3, 3), jnp.float32),
        "dec_b": 0.01 * jax.random.normal(k4, (1,), jnp.float32),
    }
    params = {
        "enc_w": jnp.transpose(raw["enc_w"], (2, 3, 1, 0)).reshape(9, c_in, c_feat),
        "enc_b": raw["enc_b"].reshape(1, c_feat),
        "dec_w": jnp.transpose(raw["dec_w"], (2, 3, 0, 1)).reshape(9, 1, c_feat),
        "dec_b": raw["dec_b"].reshape(1, 1),
    }
    return params, raw


def reference_forward(raw, x_nchw):
    """Plain-JAX reference of the same synthetic encoder/decoder forward."""
    x = jnp.transpose(x_nchw, (0, 2, 3, 1))
    f = jax.lax.conv_general_dilated(
        x, jnp.transpose(raw["enc_w"], (2, 3, 1, 0)), (1, 1), "SAME",
        dimension_numbers=("NHWC", "HWIO", "NHWC"),
        precision=jax.lax.Precision.HIGHEST) + raw["enc_b"]
    f = jnp.maximum(f, 0.0)
    d = jax.lax.conv_general_dilated(
        f, jnp.transpose(raw["dec_w"], (2, 3, 1, 0)), (1, 1), "SAME",
        dimension_numbers=("NHWC", "HWIO", "NHWC"),
        precision=jax.lax.Precision.HIGHEST) + raw["dec_b"]
    disp = jax.nn.sigmoid(d) * _DISP_SCALE
    return jnp.transpose(disp, (0, 3, 1, 2))


if __name__ == "__main__":
    key = jax.random.PRNGKey(0)
    k_img, k_par = jax.random.split(key)

    B, C, H, W = 2, 3, 16, 16
    encoder_dict = {"width": W, "height": H,
                    "min_depth_bin": 0.1, "max_depth_bin": 10.0}

    input_image = jax.random.uniform(k_img, (B, C, H, W), jnp.float32)
    params, raw = init_params(k_par, c_in=C, c_feat=32)

    disp = jax.block_until_ready(many_depth_forward(params, encoder_dict, input_image))

    assert disp.shape == (B, 1, H, W)
    assert disp.dtype == jnp.float32
    assert bool(jnp.all(jnp.isfinite(disp)))

    ref = jax.block_until_ready(reference_forward(raw, input_image))
    max_err = float(jnp.max(jnp.abs(disp - ref)))
    assert max_err < 3e-3, f"mismatch vs reference: max|err| = {max_err}"

    print("KERNEL_OK")
</pallas_src>

<mosaic_0001>
module attributes {stable_mosaic.version = 11 : i64} {
  func.func @_fused_depth_kernel(%arg0: i32, %arg1: memref<1x20x26x3xf32, #tpu.memory_space<vmem>>, %arg2: memref<9x3x32xf32, #tpu.memory_space<vmem>>, %arg3: memref<1x32xf32, #tpu.memory_space<vmem>>, %arg4: memref<9x1x32xf32, #tpu.memory_space<vmem>>, %arg5: memref<1x1xf32, #tpu.memory_space<vmem>>, %arg6: memref<1x16x16xf32, #tpu.memory_space<vmem>>, %arg7: memref<18x24x32xf32, #tpu.memory_space<vmem>>) attributes {dimension_semantics = [#tpu.dimension_semantics<parallel>], iteration_bounds = array<i64: 2>, scalar_prefetch = 0 : i64, scratch_operands = 1 : i64, tpu.core_type = #tpu.core_type<tc>, window_params = [{transform_indices = @transform_0, window_bounds = array<i64: 1, 20, 26, 3>}, {pipeline_mode = #tpu.pipeline_mode<synchronous>, transform_indices = @transform_1, window_bounds = array<i64: 9, 3, 32>}, {pipeline_mode = #tpu.pipeline_mode<synchronous>, transform_indices = @transform_2, window_bounds = array<i64: 1, 32>}, {pipeline_mode = #tpu.pipeline_mode<synchronous>, transform_indices = @transform_3, window_bounds = array<i64: 9, 1, 32>}, {pipeline_mode = #tpu.pipeline_mode<synchronous>, transform_indices = @transform_4, window_bounds = array<i64: 1, 1>}, {transform_indices = @transform_5, window_bounds = array<i64: 1, 16, 16>}]} {
    %cst = arith.constant 0.000000e+00 : f32
    %0 = vector.broadcast %cst : f32 to vector<432x32xf32>
    %c0 = arith.constant 0 : index
    %c0_0 = arith.constant 0 : index
    %1 = vector.load %arg3[%c0, %c0_0] : memref<1x32xf32, #tpu.memory_space<vmem>>, vector<1x32xf32>
    %2 = vector.broadcast %1 : vector<1x32xf32> to vector<432x32xf32>
    %3 = arith.addf %0, %2 : vector<432x32xf32>
    %c0_1 = arith.constant 0 : index
    %c0_2 = arith.constant 0 : index
    %c0_3 = arith.constant 0 : index
    %c0_4 = arith.constant 0 : index
    %4 = vector.load %arg1[%c0_1, %c0_2, %c0_3, %c0_4] : memref<1x20x26x3xf32, #tpu.memory_space<vmem>>, vector<1x18x24x3xf32>
    %5 = vector.shape_cast %4 : vector<1x18x24x3xf32> to vector<18x24x3xf32>
    %6 = vector.shape_cast %5 : vector<18x24x3xf32> to vector<432x3xf32>
    %c0_5 = arith.constant 0 : index
    %c0_6 = arith.constant 0 : index
    %c0_7 = arith.constant 0 : index
    %7 = vector.load %arg2[%c0_5, %c0_6, %c0_7] : memref<9x3x32xf32, #tpu.memory_space<vmem>>, vector<1x3x32xf32>
    %8 = vector.shape_cast %7 : vector<1x3x32xf32> to vector<3x32xf32>
    %cst_8 = arith.constant dense<0.000000e+00> : vector<432x32xf32>
    %9 = tpu.matmul %6, %8, %cst_8 {dimension_numbers = #tpu.dot_dimension_numbers<[1], [0], [0], [1], [0, 0, 1, 1], [], []>} : vector<432x3xf32>, vector<3x32xf32>, vector<432x32xf32> -> vector<432x32xf32>
    %10 = arith.addf %3, %9 : vector<432x32xf32>
    %c0_9 = arith.constant 0 : index
    %c0_10 = arith.constant 0 : index
    %c1 = arith.constant 1 : index
    %c0_11 = arith.constant 0 : index
    %11 = vector.load %arg1[%c0_9, %c0_10, %c1, %c0_11] : memref<1x20x26x3xf32, #tpu.memory_space<vmem>>, vector<1x18x24x3xf32>
    %12 = vector.shape_cast %11 : vector<1x18x24x3xf32> to vector<18x24x3xf32>
    %13 = vector.shape_cast %12 : vector<18x24x3xf32> to vector<432x3xf32>
    %c1_12 = arith.constant 1 : index
    %c0_13 = arith.constant 0 : index
    %c0_14 = arith.constant 0 : index
    %14 = vector.load %arg2[%c1_12, %c0_13, %c0_14] : memref<9x3x32xf32, #tpu.memory_space<vmem>>, vector<1x3x32xf32>
    %15 = vector.shape_cast %14 : vector<1x3x32xf32> to vector<3x32xf32>
    %cst_15 = arith.constant dense<0.000000e+00> : vector<432x32xf32>
    %16 = tpu.matmul %13, %15, %cst_15 {dimension_numbers = #tpu.dot_dimension_numbers<[1], [0], [0], [1], [0, 0, 1, 1], [], []>} : vector<432x3xf32>, vector<3x32xf32>, vector<432x32xf32> -> vector<432x32xf32>
    %17 = arith.addf %10, %16 : vector<432x32xf32>
    %c0_16 = arith.constant 0 : index
    %c0_17 = arith.constant 0 : index
    %c2 = arith.constant 2 : index
    %c0_18 = arith.constant 0 : index
    %18 = vector.load %arg1[%c0_16, %c0_17, %c2, %c0_18] : memref<1x20x26x3xf32, #tpu.memory_space<vmem>>, vector<1x18x24x3xf32>
    %19 = vector.shape_cast %18 : vector<1x18x24x3xf32> to vector<18x24x3xf32>
    %20 = vector.shape_cast %19 : vector<18x24x3xf32> to vector<432x3xf32>
    %c2_19 = arith.constant 2 : index
    %c0_20 = arith.constant 0 : index
    %c0_21 = arith.constant 0 : index
    %21 = vector.load %arg2[%c2_19, %c0_20, %c0_21] : memref<9x3x32xf32, #tpu.memory_space<vmem>>, vector<1x3x32xf32>
    %22 = vector.shape_cast %21 : vector<1x3x32xf32> to vector<3x32xf32>
    %cst_22 = arith.constant dense<0.000000e+00> : vector<432x32xf32>
    %23 = tpu.matmul %20, %22, %cst_22 {dimension_numbers = #tpu.dot_dimension_numbers<[1], [0], [0], [1], [0, 0, 1, 1], [], []>} : vector<432x3xf32>, vector<3x32xf32>, vector<432x32xf32> -> vector<432x32xf32>
    %24 = arith.addf %17, %23 : vector<432x32xf32>
    %c0_23 = arith.constant 0 : index
    %c1_24 = arith.constant 1 : index
    %c0_25 = arith.constant 0 : index
    %c0_26 = arith.constant 0 : index
    %25 = vector.load %arg1[%c0_23, %c1_24, %c0_25, %c0_26] : memref<1x20x26x3xf32, #tpu.memory_space<vmem>>, vector<1x18x24x3xf32>
    %26 = vector.shape_cast %25 : vector<1x18x24x3xf32> to vector<18x24x3xf32>
    %27 = vector.shape_cast %26 : vector<18x24x3xf32> to vector<432x3xf32>
    %c3 = arith.constant 3 : index
    %c0_27 = arith.constant 0 : index
    %c0_28 = arith.constant 0 : index
    %28 = vector.load %arg2[%c3, %c0_27, %c0_28] : memref<9x3x32xf32, #tpu.memory_space<vmem>>, vector<1x3x32xf32>
    %29 = vector.shape_cast %28 : vector<1x3x32xf32> to vector<3x32xf32>
    %cst_29 = arith.constant dense<0.000000e+00> : vector<432x32xf32>
    %30 = tpu.matmul %27, %29, %cst_29 {dimension_numbers = #tpu.dot_dimension_numbers<[1], [0], [0], [1], [0, 0, 1, 1], [], []>} : vector<432x3xf32>, vector<3x32xf32>, vector<432x32xf32> -> vector<432x32xf32>
    %31 = arith.addf %24, %30 : vector<432x32xf32>
    %c0_30 = arith.constant 0 : index
    %c1_31 = arith.constant 1 : index
    %c1_32 = arith.constant 1 : index
    %c0_33 = arith.constant 0 : index
    %32 = vector.load %arg1[%c0_30, %c1_31, %c1_32, %c0_33] : memref<1x20x26x3xf32, #tpu.memory_space<vmem>>, vector<1x18x24x3xf32>
    %33 = vector.shape_cast %32 : vector<1x18x24x3xf32> to vector<18x24x3xf32>
    %34 = vector.shape_cast %33 : vector<18x24x3xf32> to vector<432x3xf32>
    %c4 = arith.constant 4 : index
    %c0_34 = arith.constant 0 : index
    %c0_35 = arith.constant 0 : index
    %35 = vector.load %arg2[%c4, %c0_34, %c0_35] : memref<9x3x32xf32, #tpu.memory_space<vmem>>, vector<1x3x32xf32>
    %36 = vector.shape_cast %35 : vector<1x3x32xf32> to vector<3x32xf32>
    %cst_36 = arith.constant dense<0.000000e+00> : vector<432x32xf32>
    %37 = tpu.matmul %34, %36, %cst_36 {dimension_numbers = #tpu.dot_dimension_numbers<[1], [0], [0], [1], [0, 0, 1, 1], [], []>} : vector<432x3xf32>, vector<3x32xf32>, vector<432x32xf32> -> vector<432x32xf32>
    %38 = arith.addf %31, %37 : vector<432x32xf32>
    %c0_37 = arith.constant 0 : index
    %c1_38 = arith.constant 1 : index
    %c2_39 = arith.constant 2 : index
    %c0_40 = arith.constant 0 : index
    %39 = vector.load %arg1[%c0_37, %c1_38, %c2_39, %c0_40] : memref<1x20x26x3xf32, #tpu.memory_space<vmem>>, vector<1x18x24x3xf32>
    %40 = vector.shape_cast %39 : vector<1x18x24x3xf32> to vector<18x24x3xf32>
    %41 = vector.shape_cast %40 : vector<18x24x3xf32> to vector<432x3xf32>
    %c5 = arith.constant 5 : index
    %c0_41 = arith.constant 0 : index
    %c0_42 = arith.constant 0 : index
    %42 = vector.load %arg2[%c5, %c0_41, %c0_42] : memref<9x3x32xf32, #tpu.memory_space<vmem>>, vector<1x3x32xf32>
    %43 = vector.shape_cast %42 : vector<1x3x32xf32> to vector<3x32xf32>
    %cst_43 = arith.constant dense<0.000000e+00> : vector<432x32xf32>
    %44 = tpu.matmul %41, %43, %cst_43 {dimension_numbers = #tpu.dot_dimension_numbers<[1], [0], [0], [1], [0, 0, 1, 1], [], []>} : vector<432x3xf32>, vector<3x32xf32>, vector<432x32xf32> -> vector<432x32xf32>
    %45 = arith.addf %38, %44 : vector<432x32xf32>
    %c0_44 = arith.constant 0 : index
    %c2_45 = arith.constant 2 : index
    %c0_46 = arith.constant 0 : index
    %c0_47 = arith.constant 0 : index
    %46 = vector.load %arg1[%c0_44, %c2_45, %c0_46, %c0_47] : memref<1x20x26x3xf32, #tpu.memory_space<vmem>>, vector<1x18x24x3xf32>
    %47 = vector.shape_cast %46 : vector<1x18x24x3xf32> to vector<18x24x3xf32>
    %48 = vector.shape_cast %47 : vector<18x24x3xf32> to vector<432x3xf32>
    %c6 = arith.constant 6 : index
    %c0_48 = arith.constant 0 : index
    %c0_49 = arith.constant 0 : index
    %49 = vector.load %arg2[%c6, %c0_48, %c0_49] : memref<9x3x32xf32, #tpu.memory_space<vmem>>, vector<1x3x32xf32>
    %50 = vector.shape_cast %49 : vector<1x3x32xf32> to vector<3x32xf32>
    %cst_50 = arith.constant dense<0.000000e+00> : vector<432x32xf32>
    %51 = tpu.matmul %48, %50, %cst_50 {dimension_numbers = #tpu.dot_dimension_numbers<[1], [0], [0], [1], [0, 0, 1, 1], [], []>} : vector<432x3xf32>, vector<3x32xf32>, vector<432x32xf32> -> vector<432x32xf32>
    %52 = arith.addf %45, %51 : vector<432x32xf32>
    %c0_51 = arith.constant 0 : index
    %c2_52 = arith.constant 2 : index
    %c1_53 = arith.constant 1 : index
    %c0_54 = arith.constant 0 : index
    %53 = vector.load %arg1[%c0_51, %c2_52, %c1_53, %c0_54] : memref<1x20x26x3xf32, #tpu.memory_space<vmem>>, vector<1x18x24x3xf32>
    %54 = vector.shape_cast %53 : vector<1x18x24x3xf32> to vector<18x24x3xf32>
    %55 = vector.shape_cast %54 : vector<18x24x3xf32> to vector<432x3xf32>
    %c7 = arith.constant 7 : index
    %c0_55 = arith.constant 0 : index
    %c0_56 = arith.constant 0 : index
    %56 = vector.load %arg2[%c7, %c0_55, %c0_56] : memref<9x3x32xf32, #tpu.memory_space<vmem>>, vector<1x3x32xf32>
    %57 = vector.shape_cast %56 : vector<1x3x32xf32> to vector<3x32xf32>
    %cst_57 = arith.constant dense<0.000000e+00> : vector<432x32xf32>
    %58 = tpu.matmul %55, %57, %cst_57 {dimension_numbers = #tpu.dot_dimension_numbers<[1], [0], [0], [1], [0, 0, 1, 1], [], []>} : vector<432x3xf32>, vector<3x32xf32>, vector<432x32xf32> -> vector<432x32xf32>
    %59 = arith.addf %52, %58 : vector<432x32xf32>
    %c0_58 = arith.constant 0 : index
    %c2_59 = arith.constant 2 : index
    %c2_60 = arith.constant 2 : index
    %c0_61 = arith.constant 0 : index
    %60 = vector.load %arg1[%c0_58, %c2_59, %c2_60, %c0_61] : memref<1x20x26x3xf32, #tpu.memory_space<vmem>>, vector<1x18x24x3xf32>
    %61 = vector.shape_cast %60 : vector<1x18x24x3xf32> to vector<18x24x3xf32>
    %62 = vector.shape_cast %61 : vector<18x24x3xf32> to vector<432x3xf32>
    %c8 = arith.constant 8 : index
    %c0_62 = arith.constant 0 : index
    %c0_63 = arith.constant 0 : index
    %63 = vector.load %arg2[%c8, %c0_62, %c0_63] : memref<9x3x32xf32, #tpu.memory_space<vmem>>, vector<1x3x32xf32>
    %64 = vector.shape_cast %63 : vector<1x3x32xf32> to vector<3x32xf32>
    %cst_64 = arith.constant dense<0.000000e+00> : vector<432x32xf32>
    %65 = tpu.matmul %62, %64, %cst_64 {dimension_numbers = #tpu.dot_dimension_numbers<[1], [0], [0], [1], [0, 0, 1, 1], [], []>} : vector<432x3xf32>, vector<3x32xf32>, vector<432x32xf32> -> vector<432x32xf32>
    %66 = arith.addf %59, %65 : vector<432x32xf32>
    %cst_65 = arith.constant 0.000000e+00 : f32
    %67 = vector.broadcast %cst_65 : f32 to vector<432x32xf32>
    %68 = arith.maximumf %66, %67 : vector<432x32xf32>
    %69 = vector.shape_cast %68 : vector<432x32xf32> to vector<18x24x32xf32>
    %c1_i32 = arith.constant 1 : i32
    %c0_i32 = arith.constant 0 : i32
    %70 = arith.cmpi eq, %c1_i32, %c0_i32 : i32
    %c1_i32_66 = arith.constant 1 : i32
    %71 = arith.select %70, %c1_i32_66, %c1_i32 : i32
    %72 = arith.remsi %arg0, %71 : i32
    %c0_i32_67 = arith.constant 0 : i32
    %73 = arith.cmpi ne, %72, %c0_i32_67 : i32
    %c0_i32_68 = arith.constant 0 : i32
    %74 = arith.cmpi slt, %72, %c0_i32_68 : i32
    %c0_i32_69 = arith.constant 0 : i32
    %75 = arith.cmpi slt, %71, %c0_i32_69 : i32
    %76 = arith.xori %74, %75 : i1
    %77 = arith.andi %76, %73 : i1
    %78 = arith.addi %72, %71 : i32
    %79 = arith.select %77, %78, %72 : i32
    %c16_i32 = arith.constant 16 : i32
    %80 = arith.muli %79, %c16_i32 : i32
    %c1_i32_70 = arith.constant 1 : i32
    %81 = arith.subi %80, %c1_i32_70 : i32
    %82 = tpu.iota {dimensions = array<i32: 0>} : vector<18x1x1xi32>
    %83 = vector.broadcast %81 : i32 to vector<18x1x1xi32>
    %84 = arith.addi %82, %83 : vector<18x1x1xi32>
    %85 = tpu.iota {dimensions = array<i32: 1>} : vector<1x24x1xi32>
    %c1_i32_71 = arith.constant 1 : i32
    %86 = vector.broadcast %c1_i32_71 : i32 to vector<1x24x1xi32>
    %87 = arith.subi %85, %86 : vector<1x24x1xi32>
    %c0_i32_72 = arith.constant 0 : i32
    %88 = vector.broadcast %c0_i32_72 : i32 to vector<18x1x1xi32>
    %89 = arith.cmpi sge, %84, %88 : vector<18x1x1xi32>
    %c16_i32_73 = arith.constant 16 : i32
    %90 = vector.broadcast %c16_i32_73 : i32 to vector<18x1x1xi32>
    %91 = arith.cmpi slt, %84, %90 : vector<18x1x1xi32>
    %92 = arith.andi %89, %91 : vector<18x1x1xi1>
    %c0_i32_74 = arith.constant 0 : i32
    %93 = vector.broadcast %c0_i32_74 : i32 to vector<1x24x1xi32>
    %94 = arith.cmpi sge, %87, %93 : vector<1x24x1xi32>
    %95 = vector.broadcast %92 : vector<18x1x1xi1> to vector<18x24x1xi1>
    %96 = vector.broadcast %94 : vector<1x24x1xi1> to vector<18x24x1xi1>
    %97 = arith.andi %95, %96 : vector<18x24x1xi1>
    %c16_i32_75 = arith.constant 16 : i32
    %98 = vector.broadcast %c16_i32_75 : i32 to vector<1x24x1xi32>
    %99 = arith.cmpi slt, %87, %98 : vector<1x24x1xi32>
    %100 = vector.broadcast %99 : vector<1x24x1xi1> to vector<18x24x1xi1>
    %101 = arith.andi %97, %100 : vector<18x24x1xi1>
    %cst_76 = arith.constant 0.000000e+00 : f32
    %102 = vector.shape_cast %101 : vector<18x24x1xi1> to vector<18x24x1xi1>
    %103 = vector.broadcast %102 : vector<18x24x1xi1> to vector<18x24x32xi1>
    %104 = vector.broadcast %cst_76 : f32 to vector<18x24x32xf32>
    %105 = arith.select %103, %69, %104 : vector<18x24x32xi1>, vector<18x24x32xf32>
    %c0_77 = arith.constant 0 : index
    %c0_78 = arith.constant 0 : index
    %c0_79 = arith.constant 0 : index
    %106 = vector.load %arg7[%c0_77, %c0_78, %c0_79] : memref<18x24x32xf32, #tpu.memory_space<vmem>>, vector<18x24x32xf32>
    tpu.vector_store %arg7[%c0_77, %c0_78, %c0_79], %105 {strides = array<i32>} : memref<18x24x32xf32, #tpu.memory_space<vmem>>, vector<18x24x32xf32>,
    %cst_80 = arith.constant 0.000000e+00 : f32
    %107 = vector.broadcast %cst_80 : f32 to vector<16x16xf32>
    %c0_81 = arith.constant 0 : index
    %c0_82 = arith.constant 0 : index
    %108 = vector.load %arg5[%c0_81, %c0_82] : memref<1x1xf32, #tpu.memory_space<vmem>>, vector<1x1xf32>
    %109 = vector.extract %108[0, 0] : f32 from vector<1x1xf32>
    %110 = vector.broadcast %109 : f32 to vector<16x16xf32>
    %111 = arith.addf %107, %110 : vector<16x16xf32>
    %c0_83 = arith.constant 0 : index
    %c0_84 = arith.constant 0 : index
    %c0_85 = arith.constant 0 : index
    %112 = vector.load %arg7[%c0_83, %c0_84, %c0_85] : memref<18x24x32xf32, #tpu.memory_space<vmem>>, vector<16x16x32xf32>
    %c0_86 = arith.constant 0 : index
    %c0_87 = arith.constant 0 : index
    %c0_88 = arith.constant 0 : index
    %113 = vector.load %arg4[%c0_86, %c0_87, %c0_88] : memref<9x1x32xf32, #tpu.memory_space<vmem>>, vector<1x1x32xf32>
    %114 = vector.shape_cast %113 : vector<1x1x32xf32> to vector<1x32xf32>
    %115 = vector.shape_cast %114 : vector<1x32xf32> to vector<1x1x32xf32>
    %116 = vector.broadcast %115 : vector<1x1x32xf32> to vector<16x16x32xf32>
    %117 = arith.mulf %112, %116 : vector<16x16x32xf32>
    %cst_89 = arith.constant dense<0.000000e+00> : vector<16x16xf32>
    %118 = vector.multi_reduction <add>, %117, %cst_89 [2] : vector<16x16x32xf32> to vector<16x16xf32>
    %119 = arith.addf %111, %118 : vector<16x16xf32>
    %c0_90 = arith.constant 0 : index
    %c1_91 = arith.constant 1 : index
    %c0_92 = arith.constant 0 : index
    %120 = vector.load %arg7[%c0_90, %c1_91, %c0_92] : memref<18x24x32xf32, #tpu.memory_space<vmem>>, vector<16x16x32xf32>
    %c1_93 = arith.constant 1 : index
    %c0_94 = arith.constant 0 : index
    %c0_95 = arith.constant 0 : index
    %121 = vector.load %arg4[%c1_93, %c0_94, %c0_95] : memref<9x1x32xf32, #tpu.memory_space<vmem>>, vector<1x1x32xf32>
    %122 = vector.shape_cast %121 : vector<1x1x32xf32> to vector<1x32xf32>
    %123 = vector.shape_cast %122 : vector<1x32xf32> to vector<1x1x32xf32>
    %124 = vector.broadcast %123 : vector<1x1x32xf32> to vector<16x16x32xf32>
    %125 = arith.mulf %120, %124 : vector<16x16x32xf32>
    %cst_96 = arith.constant dense<0.000000e+00> : vector<16x16xf32>
    %126 = vector.multi_reduction <add>, %125, %cst_96 [2] : vector<16x16x32xf32> to vector<16x16xf32>
    %127 = arith.addf %119, %126 : vector<16x16xf32>
    %c0_97 = arith.constant 0 : index
    %c2_98 = arith.constant 2 : index
    %c0_99 = arith.constant 0 : index
    %128 = vector.load %arg7[%c0_97, %c2_98, %c0_99] : memref<18x24x32xf32, #tpu.memory_space<vmem>>, vector<16x16x32xf32>
    %c2_100 = arith.constant 2 : index
    %c0_101 = arith.constant 0 : index
    %c0_102 = arith.constant 0 : index
    %129 = vector.load %arg4[%c2_100, %c0_101, %c0_102] : memref<9x1x32xf32, #tpu.memory_space<vmem>>, vector<1x1x32xf32>
    %130 = vector.shape_cast %129 : vector<1x1x32xf32> to vector<1x32xf32>
    %131 = vector.shape_cast %130 : vector<1x32xf32> to vector<1x1x32xf32>
    %132 = vector.broadcast %131 : vector<1x1x32xf32> to vector<16x16x32xf32>
    %133 = arith.mulf %128, %132 : vector<16x16x32xf32>
    %cst_103 = arith.constant dense<0.000000e+00> : vector<16x16xf32>
    %134 = vector.multi_reduction <add>, %133, %cst_103 [2] : vector<16x16x32xf32> to vector<16x16xf32>
    %135 = arith.addf %127, %134 : vector<16x16xf32>
    %c1_104 = arith.constant 1 : index
    %c0_105 = arith.constant 0 : index
    %c0_106 = arith.constant 0 : index
    %136 = vector.load %arg7[%c1_104, %c0_105, %c0_106] : memref<18x24x32xf32, #tpu.memory_space<vmem>>, vector<16x16x32xf32>
    %c3_107 = arith.constant 3 : index
    %c0_108 = arith.constant 0 : index
    %c0_109 = arith.constant 0 : index
    %137 = vector.load %arg4[%c3_107, %c0_108, %c0_109] : memref<9x1x32xf32, #tpu.memory_space<vmem>>, vector<1x1x32xf32>
    %138 = vector.shape_cast %137 : vector<1x1x32xf32> to vector<1x32xf32>
    %139 = vector.shape_cast %138 : vector<1x32xf32> to vector<1x1x32xf32>
    %140 = vector.broadcast %139 : vector<1x1x32xf32> to vector<16x16x32xf32>
    %141 = arith.mulf %136, %140 : vector<16x16x32xf32>
    %cst_110 = arith.constant dense<0.000000e+00> : vector<16x16xf32>
    %142 = vector.multi_reduction <add>, %141, %cst_110 [2] : vector<16x16x32xf32> to vector<16x16xf32>
    %143 = arith.addf %135, %142 : vector<16x16xf32>
    %c1_111 = arith.constant 1 : index
    %c1_112 = arith.constant 1 : index
    %c0_113 = arith.constant 0 : index
    %144 = vector.load %arg7[%c1_111, %c1_112, %c0_113] : memref<18x24x32xf32, #tpu.memory_space<vmem>>, vector<16x16x32xf32>
    %c4_114 = arith.constant 4 : index
    %c0_115 = arith.constant 0 : index
    %c0_116 = arith.constant 0 : index
    %145 = vector.load %arg4[%c4_114, %c0_115, %c0_116] : memref<9x1x32xf32, #tpu.memory_space<vmem>>, vector<1x1x32xf32>
    %146 = vector.shape_cast %145 : vector<1x1x32xf32> to vector<1x32xf32>
    %147 = vector.shape_cast %146 : vector<1x32xf32> to vector<1x1x32xf32>
    %148 = vector.broadcast %147 : vector<1x1x32xf32> to vector<16x16x32xf32>
    %149 = arith.mulf %144, %148 : vector<16x16x32xf32>
    %cst_117 = arith.constant dense<0.000000e+00> : vector<16x16xf32>
    %150 = vector.multi_reduction <add>, %149, %cst_117 [2] : vector<16x16x32xf32> to vector<16x16xf32>
    %151 = arith.addf %143, %150 : vector<16x16xf32>
    %c1_118 = arith.constant 1 : index
    %c2_119 = arith.constant 2 : index
    %c0_120 = arith.constant 0 : index
    %152 = vector.load %arg7[%c1_118, %c2_119, %c0_120] : memref<18x24x32xf32, #tpu.memory_space<vmem>>, vector<16x16x32xf32>
    %c5_121 = arith.constant 5 : index
    %c0_122 = arith.constant 0 : index
    %c0_123 = arith.constant 0 : index
    %153 = vector.load %arg4[%c5_121, %c0_122, %c0_123] : memref<9x1x32xf32, #tpu.memory_space<vmem>>, vector<1x1x32xf32>
    %154 = vector.shape_cast %153 : vector<1x1x32xf32> to vector<1x32xf32>
    %155 = vector.shape_cast %154 : vector<1x32xf32> to vector<1x1x32xf32>
    %156 = vector.broadcast %155 : vector<1x1x32xf32> to vector<16x16x32xf32>
    %157 = arith.mulf %152, %156 : vector<16x16x32xf32>
    %cst_124 = arith.constant dense<0.000000e+00> : vector<16x16xf32>
    %158 = vector.multi_reduction <add>, %157, %cst_124 [2] : vector<16x16x32xf32> to vector<16x16xf32>
    %159 = arith.addf %151, %158 : vector<16x16xf32>
    %c2_125 = arith.constant 2 : index
    %c0_126 = arith.constant 0 : index
    %c0_127 = arith.constant 0 : index
    %160 = vector.load %arg7[%c2_125, %c0_126, %c0_127] : memref<18x24x32xf32, #tpu.memory_space<vmem>>, vector<16x16x32xf32>
    %c6_128 = arith.constant 6 : index
    %c0_129 = arith.constant 0 : index
    %c0_130 = arith.constant 0 : index
    %161 = vector.load %arg4[%c6_128, %c0_129, %c0_130] : memref<9x1x32xf32, #tpu.memory_space<vmem>>, vector<1x1x32xf32>
    %162 = vector.shape_cast %161 : vector<1x1x32xf32> to vector<1x32xf32>
    %163 = vector.shape_cast %162 : vector<1x32xf32> to vector<1x1x32xf32>
    %164 = vector.broadcast %163 : vector<1x1x32xf32> to vector<16x16x32xf32>
    %165 = arith.mulf %160, %164 : vector<16x16x32xf32>
    %cst_131 = arith.constant dense<0.000000e+00> : vector<16x16xf32>
    %166 = vector.multi_reduction <add>, %165, %cst_131 [2] : vector<16x16x32xf32> to vector<16x16xf32>
    %167 = arith.addf %159, %166 : vector<16x16xf32>
    %c2_132 = arith.constant 2 : index
    %c1_133 = arith.constant 1 : index
    %c0_134 = arith.constant 0 : index
    %168 = vector.load %arg7[%c2_132, %c1_133, %c0_134] : memref<18x24x32xf32, #tpu.memory_space<vmem>>, vector<16x16x32xf32>
    %c7_135 = arith.constant 7 : index
    %c0_136 = arith.constant 0 : index
    %c0_137 = arith.constant 0 : index
    %169 = vector.load %arg4[%c7_135, %c0_136, %c0_137] : memref<9x1x32xf32, #tpu.memory_space<vmem>>, vector<1x1x32xf32>
    %170 = vector.shape_cast %169 : vector<1x1x32xf32> to vector<1x32xf32>
    %171 = vector.shape_cast %170 : vector<1x32xf32> to vector<1x1x32xf32>
    %172 = vector.broadcast %171 : vector<1x1x32xf32> to vector<16x16x32xf32>
    %173 = arith.mulf %168, %172 : vector<16x16x32xf32>
    %cst_138 = arith.constant dense<0.000000e+00> : vector<16x16xf32>
    %174 = vector.multi_reduction <add>, %173, %cst_138 [2] : vector<16x16x32xf32> to vector<16x16xf32>
    %175 = arith.addf %167, %174 : vector<16x16xf32>
    %c2_139 = arith.constant 2 : index
    %c2_140 = arith.constant 2 : index
    %c0_141 = arith.constant 0 : index
    %176 = vector.load %arg7[%c2_139, %c2_140, %c0_141] : memref<18x24x32xf32, #tpu.memory_space<vmem>>, vector<16x16x32xf32>
    %c8_142 = arith.constant 8 : index
    %c0_143 = arith.constant 0 : index
    %c0_144 = arith.constant 0 : index
    %177 = vector.load %arg4[%c8_142, %c0_143, %c0_144] : memref<9x1x32xf32, #tpu.memory_space<vmem>>, vector<1x1x32xf32>
    %178 = vector.shape_cast %177 : vector<1x1x32xf32> to vector<1x32xf32>
    %179 = vector.shape_cast %178 : vector<1x32xf32> to vector<1x1x32xf32>
    %180 = vector.broadcast %179 : vector<1x1x32xf32> to vector<16x16x32xf32>
    %181 = arith.mulf %176, %180 : vector<16x16x32xf32>
    %cst_145 = arith.constant dense<0.000000e+00> : vector<16x16xf32>
    %182 = vector.multi_reduction <add>, %181, %cst_145 [2] : vector<16x16x32xf32> to vector<16x16xf32>
    %183 = arith.addf %175, %182 : vector<16x16xf32>
    %184 = arith.negf %183 : vector<16x16xf32>
    %185 = math.exp %184 : vector<16x16xf32>
    %cst_146 = arith.constant 1.000000e+00 : f32
    %186 = vector.broadcast %cst_146 : f32 to vector<16x16xf32>
    %187 = arith.addf %186, %185 : vector<16x16xf32>
    %188 = arith.divf %186, %187 : vector<16x16xf32>
    %cst_147 = arith.constant 0.1156912 : f32
    %189 = vector.broadcast %cst_147 : f32 to vector<16x16xf32>
    %190 = arith.mulf %188, %189 : vector<16x16xf32>
    %c0_148 = arith.constant 0 : index
    %c0_149 = arith.constant 0 : index
    %c0_150 = arith.constant 0 : index
    %191 = vector.load %arg6[%c0_148, %c0_149, %c0_150] : memref<1x16x16xf32, #tpu.memory_space<vmem>>, vector<1x16x16xf32>
    %192 = vector.shape_cast %191 : vector<1x16x16xf32> to vector<16x16xf32>
    %193 = vector.shape_cast %190 : vector<16x16xf32> to vector<1x16x16xf32>
    tpu.vector_store %arg6[%c0_148, %c0_149, %c0_150], %193 {strides = array<i32>} : memref<1x16x16xf32, #tpu.memory_space<vmem>>, vector<1x16x16xf32>,
    return
  }
  func.func @transform_0(%arg0: i32) -> (i32, i32, i32, i32) {
    %c0_i32 = arith.constant 0 : i32
    %c0_i32_0 = arith.constant 0 : i32
    %c0_i32_1 = arith.constant 0 : i32
    %c0_i32_2 = arith.constant 0 : i32
    return %arg0, %c0_i32, %c0_i32_0, %c0_i32_1 : i32, i32, i32, i32
  }
  func.func @transform_1(%arg0: i32) -> (i32, i32, i32) {
    %c0_i32 = arith.constant 0 : i32
    %c0_i32_0 = arith.constant 0 : i32
    %c0_i32_1 = arith.constant 0 : i32
    %c0_i32_2 = arith.constant 0 : i32
    return %c0_i32, %c0_i32_0, %c0_i32_1 : i32, i32, i32
  }
  func.func @transform_2(%arg0: i32) -> (i32, i32) {
    %c0_i32 = arith.constant 0 : i32
    %c0_i32_0 = arith.constant 0 : i32
    %c0_i32_1 = arith.constant 0 : i32
    return %c0_i32, %c0_i32_0 : i32, i32
  }
  func.func @transform_3(%arg0: i32) -> (i32, i32, i32) {
    %c0_i32 = arith.constant 0 : i32
    %c0_i32_0 = arith.constant 0 : i32
    %c0_i32_1 = arith.constant 0 : i32
    %c0_i32_2 = arith.constant 0 : i32
    return %c0_i32, %c0_i32_0, %c0_i32_1 : i32, i32, i32
  }
  func.func @transform_4(%arg0: i32) -> (i32, i32) {
    %c0_i32 = arith.constant 0 : i32
    %c0_i32_0 = arith.constant 0 : i32
    %c0_i32_1 = arith.constant 0 : i32
    return %c0_i32, %c0_i32_0 : i32, i32
  }
  func.func @transform_5(%arg0: i32) -> (i32, i32, i32) {
    %c0_i32 = arith.constant 0 : i32
    %c0_i32_0 = arith.constant 0 : i32
    %c0_i32_1 = arith.constant 0 : i32
    return %arg0, %c0_i32, %c0_i32_0 : i32, i32, i32
  }
}

</mosaic_0001>

<llo_original>
// kernel: tpu_custom_call.1
$region0: #{tpu_custom_call.1}
  #allocation0 [shape = 'u32[]', space=smem, size = 0x4, offset = 0x4, fixed_abs, tag = 'smem constant byte address 0x4 - core index']
  #allocation1 [shape = 'u32[144,128]{1,0:T(1,128)}', space=vmem, size = 0x12000, scoped, tag = 'internal scratch']
  #allocation2 [shape = 'f32[18,24,32]{2,1,0:T(8,128)}', space=vmem, size = 0x36000, scoped, tag = 'scratch operand']
  #allocation3 [shape = 'f32[1,1]{1,0:T(1,128)S(1)}', space=vmem, size = 0x200, scoped, tag = 'scoped memory for tpu_custom_call.1']
  %s0 = inlined_call_operand.vmem [shape: f32[2,20,26,3], index: 0, kind: input, shape index: {}]
  %s1 = inlined_call_operand.vmem [shape: f32[9,3,32], index: 1, kind: input, shape index: {}]
  %s2 = inlined_call_operand.vmem [shape: f32[1,32], index: 2, kind: input, shape index: {}]
  %s3 = inlined_call_operand.vmem [shape: f32[9,1,32], index: 3, kind: input, shape index: {}]
  %s4 = inlined_call_operand.<no memory space> [shape: f32[1,1], index: 4, kind: input, shape index: {}]
  %s5 = inlined_call_operand.hbm [shape: f32[2,16,16], index: 5, kind: output, shape index: {}]
  %s6 = sld [smem:[#allocation0]]
  $region53: #{tpu_custom_call.1} parent=0
    _
  %s8 = ssub.s32 1, %s6
  %s9 = scalar_select 0, %s8, %s6
  %v10 = vstv %s4
  %11 = vst [vmem:[#allocation3] sm:$0x1] %v10
  $region1: #{tpu_custom_call.1} parent=0
    #allocation4 [shape = 'u8[16384]{0}', space=vmem, size = 0x4000, scoped, tag = 'output window, operand 0']
    #allocation5 [shape = 's32[2]{0}', space=sflag, size = 0x8, scoped, tag = 'scoped memory for tpu_custom_call.1']
    %12 = vsyncpa [#allocation5], 0
    %s13 = scalar_lea.sflag [#allocation5], 1
    %14 = vsyncpa %s13, 0
    loop: start=0, step=1, limit=4
    $region2: #{tpu_custom_call.1} parent=1 // loop_pre_header
      _
    $region3: #{tpu_custom_call.1} parent=1 // loop_header
      %s16 = sphi 0, %s20
      %p17 = scmp.ge.s32.totalorder %s16, 4
      %s26 = sphi 0, %s28
      %s29 = sphi 0, %s26
      %s30 = sphi 0, %s29
      %s46 = sphi 0, %s30
      %s50 = sphi 0, %s50
      %s52 = sphi 0, %s50
      %s53 = sphi 0, %s52
      %s67 = sphi 0, %s53
      %s71 = sphi 0, %s71
      %s73 = sphi 0, %s71
      %s74 = sphi 0, %s73
      %s88 = sphi 0, %s74
      %s92 = sphi 0, %s92
      %s94 = sphi 0, %s92
      %s95 = sphi 0, %s94
      %s109 = sphi 0, %s95
      %s113 = sphi 0, %s113
      %s115 = sphi 0, %s113
      %s116 = sphi 0, %s115
      %s130 = sphi 0, %s116
      %s136 = sphi 0, %s138
      %s139 = sphi 0, %s136
      %s140 = sphi 0, %s139
      %s156 = sphi 0, %s140
    $region4: #{tpu_custom_call.1} parent=1 // loop_header_branch
      %19 = sbr.rel (%p17) target = $region8
    $region5: #{tpu_custom_call.1} parent=1 // loop_body
      %s21 = ssub.s32 %s16, 1
      %s22 = ssub.s32 %s16, 2
      %s23 = sadd.s32 %s16, 1
      %s24 = ssub.s32 %s16, %s23
      %p25 = scmp.eq.s32.totalorder %s24, 0
      %s27 = sadd.s32 %s26, 1
      %s28 = scalar_select %p25, %s26, %s27
      %p31 = pneg %p25
      %p32 = scmp.eq.s32.totalorder %s16, 1
      %p33 = por %p31, %p32
      %p34 = scmp.ne.s32.totalorder %s26, %s29
      %p35 = scmp.eq.s32.totalorder %s16, 0
      %p36 = por %p34, %p35
      %p37 = scmp.ne.s32.totalorder %s26, %s29
      %p38 = scmp.eq.s32.totalorder %s21, 1
      %p39 = por %p37, %p38
      %p40 = scmp.ne.s32.totalorder %s29, %s30
      %p41 = scmp.eq.s32.totalorder %s21, 0
      %p42 = por %p40, %p41
      %p43 = scmp.ne.s32.totalorder %s29, %s30
      %p44 = scmp.eq.s32.totalorder %s22, 1
      %p45 = por %p43, %p44
      %p47 = scmp.ne.s32.totalorder %s30, %s46
      %p48 = scmp.eq.s32.totalorder %s22, 0
      %p49 = por %p47, %p48
      %s51 = sadd.s32 %s50, 1
      %p54 = scmp.eq.s32.totalorder %s16, 1
      %p55 = scmp.ne.s32.totalorder %s50, %s52
      %p56 = scmp.eq.s32.totalorder %s16, 0
      %p57 = por %p55, %p56
      %p58 = scmp.ne.s32.totalorder %s50, %s52
      %p59 = scmp.eq.s32.totalorder %s21, 1
      %p60 = por %p58, %p59
      %p61 = scmp.ne.s32.totalorder %s52, %s53
      %p62 = scmp.eq.s32.totalorder %s21, 0
      %p63 = por %p61, %p62
      %p64 = scmp.ne.s32.totalorder %s52, %s53
      %p65 = scmp.eq.s32.totalorder %s22, 1
      %p66 = por %p64, %p65
      %p68 = scmp.ne.s32.totalorder %s53, %s67
      %p69 = scmp.eq.s32.totalorder %s22, 0
      %p70 = por %p68, %p69
      %s72 = sadd.s32 %s71, 1
      %p75 = scmp.eq.s32.totalorder %s16, 1
      %p76 = scmp.ne.s32.totalorder %s71, %s73
      %p77 = scmp.eq.s32.totalorder %s16, 0
      %p78 = por %p76, %p77
      %p79 = scmp.ne.s32.totalorder %s71, %s73
      %p80 = scmp.eq.s32.totalorder %s21, 1
      %p81 = por %p79, %p80
      %p82 = scmp.ne.s32.totalorder %s73, %s74
      %p83 = scmp.eq.s32.totalorder %s21, 0
      %p84 = por %p82, %p83
      %p85 = scmp.ne.s32.totalorder %s73, %s74
      %p86 = scmp.eq.s32.totalorder %s22, 1
      %p87 = por %p85, %p86
      %p89 = scmp.ne.s32.totalorder %s74, %s88
      %p90 = scmp.eq.s32.totalorder %s22, 0
      %p91 = por %p89, %p90
      %s93 = sadd.s32 %s92, 1
      %p96 = scmp.eq.s32.totalorder %s16, 1
      %p97 = scmp.ne.s32.totalorder %s92, %s94
      %p98 = scmp.eq.s32.totalorder %s16, 0
      %p99 = por %p97, %p98
      %p100 = scmp.ne.s32.totalorder %s92, %s94
      %p101 = scmp.eq.s32.totalorder %s21, 1
      %p102 = por %p100, %p101
      %p103 = scmp.ne.s32.totalorder %s94, %s95
      %p104 = scmp.eq.s32.totalorder %s21, 0
      %p105 = por %p103, %p104
      %p106 = scmp.ne.s32.totalorder %s94, %s95
      %p107 = scmp.eq.s32.totalorder %s22, 1
      %p108 = por %p106, %p107
      %p110 = scmp.ne.s32.totalorder %s95, %s109
      %p111 = scmp.eq.s32.totalorder %s22, 0
      %p112 = por %p110, %p111
      %s114 = sadd.s32 %s113, 1
      %p117 = scmp.eq.s32.totalorder %s16, 1
      %p118 = scmp.ne.s32.totalorder %s113, %s115
      %p119 = scmp.eq.s32.totalorder %s16, 0
      %p120 = por %p118, %p119
      %p121 = scmp.ne.s32.totalorder %s113, %s115
      %p122 = scmp.eq.s32.totalorder %s21, 1
      %p123 = por %p121, %p122
      %p124 = scmp.ne.s32.totalorder %s115, %s116
      %p125 = scmp.eq.s32.totalorder %s21, 0
      %p126 = por %p124, %p125
      %p127 = scmp.ne.s32.totalorder %s115, %s116
      %p128 = scmp.eq.s32.totalorder %s22, 1
      %p129 = por %p127, %p128
      %p131 = scmp.ne.s32.totalorder %s116, %s130
      %p132 = scmp.eq.s32.totalorder %s22, 0
      %p133 = por %p131, %p132
      %s134 = ssub.s32 %s16, %s23
      %p135 = scmp.eq.s32.totalorder %s134, 0
      %s137 = sadd.s32 %s136, 1
      %s138 = scalar_select %p135, %s136, %s137
      %p141 = pneg %p135
      %p142 = scmp.eq.s32.totalorder %s16, 1
      %p143 = por %p141, %p142
      %p144 = scmp.ne.s32.totalorder %s136, %s139
      %p145 = scmp.eq.s32.totalorder %s16, 0
      %p146 = por %p144, %p145
      %p147 = scmp.ne.s32.totalorder %s136, %s139
      %p148 = scmp.eq.s32.totalorder %s21, 1
      %p149 = por %p147, %p148
      %p150 = scmp.ne.s32.totalorder %s139, %s140
      %p151 = scmp.eq.s32.totalorder %s21, 0
      %p152 = por %p150, %p151
      %p153 = scmp.ne.s32.totalorder %s139, %s140
      %p154 = scmp.eq.s32.totalorder %s22, 1
      %p155 = por %p153, %p154
      %p157 = scmp.ne.s32.totalorder %s140, %s156
      %p158 = scmp.eq.s32.totalorder %s22, 0
      %p159 = por %p157, %p158
      %p160 = scmp.le.s32.totalorder 1, %s16
      %p161 = scmp.lt.s32.totalorder %s16, 3
      %p162 = pnand %p160, %p161
      %p163 = pneg %p162
      // Predicated region
      $region9: #{tpu_custom_call.1} parent=5 // pred_check
        _
      $region10: #{tpu_custom_call.1} parent=5 // pred_check_branch
        %165 = sbr.rel (%p162) target = $region12
      $region11: #{tpu_custom_call.1} parent=5 // pred_region
        %s166 = ssub.s32 %s16, 1
        // Predicated region
        $region13: #{tpu_custom_call.1} parent=11 // pred_check
          %p167 = pneg %p63
        $region14: #{tpu_custom_call.1} parent=11 // pred_check_branch
          %169 = sbr.rel (%p167) target = $region16
        $region15: #{tpu_custom_call.1} parent=11 // pred_region
          _
        $region16: #{tpu_custom_call.1} parent=11 // pred_fallthru
          _
        // Predicated region
        $region17: #{tpu_custom_call.1} parent=11 // pred_check
          %p170 = pneg %p84
        $region18: #{tpu_custom_call.1} parent=11 // pred_check_branch
          %172 = sbr.rel (%p170) target = $region20
        $region19: #{tpu_custom_call.1} parent=11 // pred_region
          _
        $region20: #{tpu_custom_call.1} parent=11 // pred_fallthru
          _
        // Predicated region
        $region21: #{tpu_custom_call.1} parent=11 // pred_check
          %p173 = pneg %p105
        $region22: #{tpu_custom_call.1} parent=11 // pred_check_branch
          %175 = sbr.rel (%p173) target = $region24
        $region23: #{tpu_custom_call.1} parent=11 // pred_region
          _
        $region24: #{tpu_custom_call.1} parent=11 // pred_fallthru
          _
        // Predicated region
        $region25: #{tpu_custom_call.1} parent=11 // pred_check
          %p176 = pneg %p126
        $region26: #{tpu_custom_call.1} parent=11 // pred_check_branch
          %178 = sbr.rel (%p176) target = $region28
        $region27: #{tpu_custom_call.1} parent=11 // pred_region
          _
        $region28: #{tpu_custom_call.1} parent=11 // pred_fallthru
          _
      $region12: #{tpu_custom_call.1} parent=5 // pred_fallthru
        _
      %p179 = scmp.lt.s32.totalorder %s16, 2
      // Predicated region
      $region29: #{tpu_custom_call.1} parent=5 // pred_check
        %p180 = pneg %p179
      $region30: #{tpu_custom_call.1} parent=5 // pred_check_branch
        %182 = sbr.rel (%p180) target = $region32
      $region31: #{tpu_custom_call.1} parent=5 // pred_region
        // Predicated region
        $region33: #{tpu_custom_call.1} parent=31 // pred_check
          %p183 = pneg %p36
        $region34: #{tpu_custom_call.1} parent=31 // pred_check_branch
          %185 = sbr.rel (%p183) target = $region36
        $region35: #{tpu_custom_call.1} parent=31 // pred_region
          %p186 = scmp.lt.s32.totalorder %s16, 1
          %s187 = scalar_select %p186, %s16, 1
          %s188 = smul.addr %s187, 80
          %s189 = smul.addr %s188, 8
          %s190 = scalar_lea.vmem %s0, %s189
        $region36: #{tpu_custom_call.1} parent=31 // pred_fallthru
          _
      $region32: #{tpu_custom_call.1} parent=5 // pred_fallthru
        _
      %p191 = scmp.le.s32.totalorder 1, %s16
      %p192 = scmp.lt.s32.totalorder %s16, 3
      %p193 = pnand %p191, %p192
      %p194 = pneg %p193
      // Predicated region
      $region37: #{tpu_custom_call.1} parent=5 // pred_check
        _
      $region38: #{tpu_custom_call.1} parent=5 // pred_check_branch
        %196 = sbr.rel (%p193) target = $region40
      $region39: #{tpu_custom_call.1} parent=5 // pred_region
        %s197 = ssub.s32 %s16, 1
        %p198 = scmp.lt.s32.totalorder %s21, 1
        %s199 = scalar_select %p198, %s21, 1
        %s200 = smul.addr %s199, 80
        %s201 = smul.addr %s200, 8
        %s202 = scalar_lea.vmem %s0, %s201
        %p203 = pneg %p42
        %p204 = pneg %p39
        %p205 = pneg %p63
        %p206 = pneg %p60
        %p207 = pneg %p84
        %p208 = pneg %p81
        %p209 = pneg %p105
        %p210 = pneg %p102
        %p211 = pneg %p126
        %p212 = pneg %p123
        %p213 = pneg %p152
        %p214 = pneg %p149
        %s215 = sand.u32 %s139, 1
        %s216 = scalar_lea.sflag [#allocation5], %s215
        %s217 = sand.u32 %s139, 1
        %s218 = smul.addr %s217, 16
        %s219 = scalar_lea.vmem [#allocation4], %s218
        %p220 = scmp.lt.s32.totalorder %s21, 1
        %s221 = scalar_select %p220, %s21, 1
        %s222 = smul.addr %s221, 80
        %s223 = smul.addr %s222, 8
        %s224 = scalar_lea.vmem %s0, %s223
        %v225 = vld [vmem:[%s2] sm:$0x1]
        %v227 = vlaneseq
        %v228 = vshrl.u32 %v227, 7
        %v229 = vsub.s32 0, %v228
        %v230 = vrot.slane %v225, %v229
        %v232 = vadd.f32 %v230, 0.0
        %v233 = vld [vmem:[%s224] sm:$0xff]
        %v234 = vld [vmem:[%s224 + $0x8] sm:$0xff]
        %v235 = vld [vmem:[%s224 + $0x10] sm:$0xff]
        %v236 = vld [vmem:[%s224 + $0x20] sm:$0xff]
        %v237 = vld [vmem:[%s224 + $0x28] sm:$0xff]
        %v238 = vld [vmem:[%s224 + $0x30] sm:$0xff]
        %v239 = vld [vmem:[%s224 + $0x40] sm:$0xff]
        %v240 = vld [vmem:[%s224 + $0x48] sm:$0xff]
        %v241 = vld [vmem:[%s224 + $0x50] sm:$0xff]
        %v242 = vld [vmem:[%s224 + $0x60] sm:$0xff]
        %v243 = vld [vmem:[%s224 + $0x68] sm:$0xff]
        %v244 = vld [vmem:[%s224 + $0x70] sm:$0xff]
        %v245 = vld [vmem:[%s224 + $0x80] sm:$0xff]
        %v246 = vld [vmem:[%s224 + $0x88] sm:$0xff]
        %v247 = vld [vmem:[%s224 + $0x90] sm:$0xff]
        %v248 = vld [vmem:[%s224 + $0xa0] sm:$0xff]
        %v249 = vld [vmem:[%s224 + $0xa8] sm:$0xff]
        %v250 = vld [vmem:[%s224 + $0xb0] sm:$0xff]
        %v251 = vld [vmem:[%s224 + $0xc0] sm:$0xff]
        %v252 = vld [vmem:[%s224 + $0xc8] sm:$0xff]
        %v253 = vld [vmem:[%s224 + $0xd0] sm:$0xff]
        %v254 = vld [vmem:[%s224 + $0xe0] sm:$0xff]
        %v255 = vld [vmem:[%s224 + $0xe8] sm:$0xff]
        %v256 = vld [vmem:[%s224 + $0xf0] sm:$0xff]
        %v257 = vld [vmem:[%s224 + $0x100] sm:$0xff]
        %v258 = vld [vmem:[%s224 + $0x108] sm:$0xff]
        %v259 = vld [vmem:[%s224 + $0x110] sm:$0xff]
        %v260 = vld [vmem:[%s224 + $0x120] sm:$0xff]
        %v261 = vld [vmem:[%s224 + $0x128] sm:$0xff]
        %v262 = vld [vmem:[%s224 + $0x130] sm:$0xff]
        %v263 = vld [vmem:[%s224 + $0x140] sm:$0xff]
        %v264 = vld [vmem:[%s224 + $0x148] sm:$0xff]
        %v265 = vld [vmem:[%s224 + $0x150] sm:$0xff]
        %v266 = vld [vmem:[%s224 + $0x160] sm:$0xff]
        %v267 = vld [vmem:[%s224 + $0x168] sm:$0xff]
        %v268 = vld [vmem:[%s224 + $0x170] sm:$0xff]
        %v269 = vld [vmem:[%s224 + $0x180] sm:$0xff]
        %v270 = vld [vmem:[%s224 + $0x188] sm:$0xff]
        %v271 = vld [vmem:[%s224 + $0x190] sm:$0xff]
        %v272 = vld [vmem:[%s224 + $0x1a0] sm:$0xff]
        %v273 = vld [vmem:[%s224 + $0x1a8] sm:$0xff]
        %v274 = vld [vmem:[%s224 + $0x1b0] sm:$0xff]
        %v275 = vld [vmem:[%s224 + $0x1c0] sm:$0xff]
        %v276 = vld [vmem:[%s224 + $0x1c8] sm:$0xff]
        %v277 = vld [vmem:[%s224 + $0x1d0] sm:$0xff]
        %v278 = vld [vmem:[%s224 + $0x1e0] sm:$0xff]
        %v279 = vld [vmem:[%s224 + $0x1e8] sm:$0xff]
        %v280 = vld [vmem:[%s224 + $0x1f0] sm:$0xff]
        %v281 = vld [vmem:[%s224 + $0x200] sm:$0xff]
        %v282 = vld [vmem:[%s224 + $0x208] sm:$0xff]
        %v283 = vld [vmem:[%s224 + $0x210] sm:$0xff]
        %v284 = vld [vmem:[%s224 + $0x220] sm:$0xff]
        %v285 = vld [vmem:[%s224 + $0x228] sm:$0xff]
        %v286 = vld [vmem:[%s224 + $0x230] sm:$0xff]
        %v287 = vld [vmem:[%s1] sm:$0x7]
        %vm288 = vcmask 23552
        %v290 = vsel %vm288, %v233, 0
        %v293 = vsel %vm288, %v234, 0
        %v296 = vsel %vm288, %v235, 0
        %v299 = vsel %vm288, %v236, 0
        %v302 = vsel %vm288, %v237, 0
        %v305 = vsel %vm288, %v238, 0
        %v308 = vsel %vm288, %v239, 0
        %v311 = vsel %vm288, %v240, 0
        %v314 = vsel %vm288, %v241, 0
        %v317 = vsel %vm288, %v242, 0
        %v320 = vsel %vm288, %v243, 0
        %v323 = vsel %vm288, %v244, 0
        %v326 = vsel %vm288, %v245, 0
        %v329 = vsel %vm288, %v246, 0
        %v332 = vsel %vm288, %v247, 0
        %v335 = vsel %vm288, %v248, 0
        %v338 = vsel %vm288, %v249, 0
        %v341 = vsel %vm288, %v250, 0
        %v344 = vsel %vm288, %v251, 0
        %v347 = vsel %vm288, %v252, 0
        %v350 = vsel %vm288, %v253, 0
        %v353 = vsel %vm288, %v254, 0
        %v356 = vsel %vm288, %v255, 0
        %v359 = vsel %vm288, %v256, 0
        %v362 = vsel %vm288, %v257, 0
        %v365 = vsel %vm288, %v258, 0
        %v368 = vsel %vm288, %v259, 0
        %v371 = vsel %vm288, %v260, 0
        %v374 = vsel %vm288, %v261, 0
        %v377 = vsel %vm288, %v262, 0
        %v380 = vsel %vm288, %v263, 0
        %v383 = vsel %vm288, %v264, 0
        %v386 = vsel %vm288, %v265, 0
        %v389 = vsel %vm288, %v266, 0
        %v392 = vsel %vm288, %v267, 0
        %v395 = vsel %vm288, %v268, 0
        %v398 = vsel %vm288, %v269, 0
        %v401 = vsel %vm288, %v270, 0
        %v404 = vsel %vm288, %v271, 0
        %v407 = vsel %vm288, %v272, 0
        %v410 = vsel %vm288, %v273, 0
        %v413 = vsel %vm288, %v274, 0
        %v416 = vsel %vm288, %v275, 0
        %v419 = vsel %vm288, %v276, 0
        %v422 = vsel %vm288, %v277, 0
        %v425 = vsel %vm288, %v278, 0
        %v428 = vsel %vm288, %v279, 0
        %v431 = vsel %vm288, %v280, 0
        %v434 = vsel %vm288, %v281, 0
        %v437 = vsel %vm288, %v282, 0
        %v440 = vsel %vm288, %v283, 0
        %v443 = vsel %vm288, %v284, 0
        %v446 = vsel %vm288, %v285, 0
        %v449 = vsel %vm288, %v286, 0
        %vm451 = vcmask 1042432
        %v453 = vsel %vm451, %v287, 0
        %455 = vmatprep.subr.mxu0 0.0
        %456 = vmatpush1.msra.mxu0 0.0
        %457 = vmatprep.subr.mxu0 0.0
        %458 = vmatpush1.msra.mxu0 0.0
        %459 = vmatprep.subr.mxu0 0.0
        %460 = vmatpush1.msra.mxu0 0.0
        %461 = vmatprep.subr.mxu0 0.0
        %462 = vmatpush1.msra.mxu0 0.0
        %463 = vmatprep.subr.mxu0 0.0
        %464 = vmatpush1.msra.mxu0 0.0
        %465 = vmatprep.subr.mxu0 0.0
        %466 = vmatpush1.msra.mxu0 0.0
        %467 = vmatprep.subr.mxu0 0.0
        %468 = vmatpush1.msra.mxu0 0.0
        %469 = vmatprep.subr.mxu0 0.0
        %470 = vmatpush1.msra.mxu0 0.0
        %471 = vmatprep.subr.mxu0 0.0
        %472 = vmatpush1.msra.mxu0 0.0
        %473 = vmatprep.subr.mxu0 0.0
        %474 = vmatpush1.msra.mxu0 0.0
        %475 = vmatprep.subr.mxu0 0.0
        %476 = vmatpush1.msra.mxu0 0.0
        %477 = vmatprep.subr.mxu0 0.0
        %478 = vmatpush1.msra.mxu0 0.0
        %479 = vmatprep.subr.mxu0 0.0
        %480 = vmatpush1.msra.mxu0 0.0
        %481 = vmatprep.subr.mxu0 0.0
        %482 = vmatpush1.msra.mxu0 0.0
        %483 = vmatprep.subr.mxu0 0.0
        %484 = vmatpush1.msra.mxu0 0.0
        %485 = vmatprep.subr.mxu0 0.0
        %486 = vmatpush1.msra.mxu0 %v453
        %487 = vmatprep.subr.mxu0 0.0
        %488 = vmatpush2.msra.mxu0 0.0
        %489 = vmatprep.subr.mxu0 0.0
        %490 = vmatpush2.msra.mxu0 0.0
        %491 = vmatprep.subr.mxu0 0.0
        %492 = vmatpush2.msra.mxu0 0.0
        %493 = vmatprep.subr.mxu0 0.0
        %494 = vmatpush2.msra.mxu0 0.0
        %495 = vmatprep.subr.mxu0 0.0
        %496 = vmatpush2.msra.mxu0 0.0
        %497 = vmatprep.subr.mxu0 0.0
        %498 = vmatpush2.msra.mxu0 0.0
        %499 = vmatprep.subr.mxu0 0.0
        %500 = vmatpush2.msra.mxu0 0.0
        %501 = vmatprep.subr.mxu0 0.0
        %502 = vmatpush2.msra.mxu0 0.0
        %503 = vmatprep.subr.mxu0 0.0
        %504 = vmatpush2.msra.mxu0 0.0
        %505 = vmatprep.subr.mxu0 0.0
        %506 = vmatpush2.msra.mxu0 0.0
        %507 = vmatprep.subr.mxu0 0.0
        %508 = vmatpush2.msra.mxu0 0.0
        %509 = vmatprep.subr.mxu0 0.0
        %510 = vmatpush2.msra.mxu0 0.0
        %511 = vmatprep.subr.mxu0 0.0
        %512 = vmatpush2.msra.mxu0 0.0
        %513 = vmatprep.subr.mxu0 0.0
        %514 = vmatpush2.msra.mxu0 0.0
        %515 = vmatprep.subr.mxu0 0.0
        %516 = vmatpush2.msra.mxu0 0.0
        %517 = vmatprep.subr.mxu0 0.0
        %518 = vmatpush2.msra.mxu0 0.0
        %519 = vmatprep.mubr.f32.mxu0 0.0
        %520 = vmatmul.mubr.f32.gmra.mxu0 %v290
        %v521 = vpop.f32.mrf.mxu0
        %v522 = vadd.f32 0.0, %v521
        %v523 = vpop.f32.mrf.mxu0
        %524 = vmatprep.mubr.f32.mxu0 0.0
        %525 = vmatmul.mubr.f32.gmra.mxu0 %v293
        %v526 = vpop.f32.mrf.mxu0
        %v527 = vadd.f32 0.0, %v526
        %v528 = vpop.f32.mrf.mxu0
        %529 = vmatprep.mubr.f32.mxu0 0.0
        %530 = vmatmul.mubr.f32.gmra.mxu0 %v296
        %v531 = vpop.f32.mrf.mxu0
        %v532 = vadd.f32 0.0, %v531
        %v533 = vpop.f32.mrf.mxu0
        %534 = vmatprep.mubr.f32.mxu0 0.0
        %535 = vmatmul.mubr.f32.gmra.mxu0 %v299
        %v536 = vpop.f32.mrf.mxu0
        %v537 = vadd.f32 0.0, %v536
        %v538 = vpop.f32.mrf.mxu0
        %539 = vmatprep.mubr.f32.mxu0 0.0
        %540 = vmatmul.mubr.f32.gmra.mxu0 %v302
        %v541 = vpop.f32.mrf.mxu0
        %v542 = vadd.f32 0.0, %v541
        %v543 = vpop.f32.mrf.mxu0
        %544 = vmatprep.mubr.f32.mxu0 0.0
        %545 = vmatmul.mubr.f32.gmra.mxu0 %v305
        %v546 = vpop.f32.mrf.mxu0
        %v547 = vadd.f32 0.0, %v546
        %v548 = vpop.f32.mrf.mxu0
        %549 = vmatprep.mubr.f32.mxu0 0.0
        %550 = vmatmul.mubr.f32.gmra.mxu0 %v308
        %v551 = vpop.f32.mrf.mxu0
        %v552 = vadd.f32 0.0, %v551
        %v553 = vpop.f32.mrf.mxu0
        %554 = vmatprep.mubr.f32.mxu0 0.0
        %555 = vmatmul.mubr.f32.gmra.mxu0 %v311
        %v556 = vpop.f32.mrf.mxu0
        %v557 = vadd.f32 0.0, %v556
        %v558 = vpop.f32.mrf.mxu0
        %559 = vmatprep.mubr.f32.mxu0 0.0
        %560 = vmatmul.mubr.f32.gmra.mxu0 %v314
        %v561 = vpop.f32.mrf.mxu0
        %v562 = vadd.f32 0.0, %v561
        %v563 = vpop.f32.mrf.mxu0
        %564 = vmatprep.mubr.f32.mxu0 0.0
        %565 = vmatmul.mubr.f32.gmra.mxu0 %v317
        %v566 = vpop.f32.mrf.mxu0
        %v567 = vadd.f32 0.0, %v566
        %v568 = vpop.f32.mrf.mxu0
        %569 = vmatprep.mubr.f32.mxu0 0.0
        %570 = vmatmul.mubr.f32.gmra.mxu0 %v320
        %v571 = vpop.f32.mrf.mxu0
        %v572 = vadd.f32 0.0, %v571
        %v573 = vpop.f32.mrf.mxu0
        %574 = vmatprep.mubr.f32.mxu0 0.0
        %575 = vmatmul.mubr.f32.gmra.mxu0 %v323
        %v576 = vpop.f32.mrf.mxu0
        %v577 = vadd.f32 0.0, %v576
        %v578 = vpop.f32.mrf.mxu0
        %579 = vmatprep.mubr.f32.mxu0 0.0
        %580 = vmatmul.mubr.f32.gmra.mxu0 %v326
        %v581 = vpop.f32.mrf.mxu0
        %v582 = vadd.f32 0.0, %v581
        %v583 = vpop.f32.mrf.mxu0
        %584 = vmatprep.mubr.f32.mxu0 0.0
        %585 = vmatmul.mubr.f32.gmra.mxu0 %v329
        %v586 = vpop.f32.mrf.mxu0
        %v587 = vadd.f32 0.0, %v586
        %v588 = vpop.f32.mrf.mxu0
        %589 = vmatprep.mubr.f32.mxu0 0.0
        %590 = vmatmul.mubr.f32.gmra.mxu0 %v332
        %v591 = vpop.f32.mrf.mxu0
        %v592 = vadd.f32 0.0, %v591
        %v593 = vpop.f32.mrf.mxu0
        %594 = vmatprep.mubr.f32.mxu0 0.0
        %595 = vmatmul.mubr.f32.gmra.mxu0 %v335
        %v596 = vpop.f32.mrf.mxu0
        %v597 = vadd.f32 0.0, %v596
        %v598 = vpop.f32.mrf.mxu0
        %599 = vmatprep.mubr.f32.mxu0 0.0
        %600 = vmatmul.mubr.f32.gmra.mxu0 %v338
        %v601 = vpop.f32.mrf.mxu0
        %v602 = vadd.f32 0.0, %v601
        %v603 = vpop.f32.mrf.mxu0
        %604 = vmatprep.mubr.f32.mxu0 0.0
        %605 = vmatmul.mubr.f32.gmra.mxu0 %v341
        %v606 = vpop.f32.mrf.mxu0
        %v607 = vadd.f32 0.0, %v606
        %v608 = vpop.f32.mrf.mxu0
        %609 = vmatprep.mubr.f32.mxu0 0.0
        %610 = vmatmul.mubr.f32.gmra.mxu0 %v344
        %v611 = vpop.f32.mrf.mxu0
        %v612 = vadd.f32 0.0, %v611
        %v613 = vpop.f32.mrf.mxu0
        %614 = vmatprep.mubr.f32.mxu0 0.0
        %615 = vmatmul.mubr.f32.gmra.mxu0 %v347
        %v616 = vpop.f32.mrf.mxu0
        %v617 = vadd.f32 0.0, %v616
        %v618 = vpop.f32.mrf.mxu0
        %619 = vmatprep.mubr.f32.mxu0 0.0
        %620 = vmatmul.mubr.f32.gmra.mxu0 %v350
        %v621 = vpop.f32.mrf.mxu0
        %v622 = vadd.f32 0.0, %v621
        %v623 = vpop.f32.mrf.mxu0
        %624 = vmatprep.mubr.f32.mxu0 0.0
        %625 = vmatmul.mubr.f32.gmra.mxu0 %v353
        %v626 = vpop.f32.mrf.mxu0
        %v627 = vadd.f32 0.0, %v626
        %v628 = vpop.f32.mrf.mxu0
        %629 = vmatprep.mubr.f32.mxu0 0.0
        %630 = vmatmul.mubr.f32.gmra.mxu0 %v356
        %v631 = vpop.f32.mrf.mxu0
        %v632 = vadd.f32 0.0, %v631
        %v633 = vpop.f32.mrf.mxu0
        %634 = vmatprep.mubr.f32.mxu0 0.0
        %635 = vmatmul.mubr.f32.gmra.mxu0 %v359
        %v636 = vpop.f32.mrf.mxu0
        %v637 = vadd.f32 0.0, %v636
        %v638 = vpop.f32.mrf.mxu0
        %639 = vmatprep.mubr.f32.mxu0 0.0
        %640 = vmatmul.mubr.f32.gmra.mxu0 %v362
        %v641 = vpop.f32.mrf.mxu0
        %v642 = vadd.f32 0.0, %v641
        %v643 = vpop.f32.mrf.mxu0
        %644 = vmatprep.mubr.f32.mxu0 0.0
        %645 = vmatmul.mubr.f32.gmra.mxu0 %v365
        %v646 = vpop.f32.mrf.mxu0
        %v647 = vadd.f32 0.0, %v646
        %v648 = vpop.f32.mrf.mxu0
        %649 = vmatprep.mubr.f32.mxu0 0.0
        %650 = vmatmul.mubr.f32.gmra.mxu0 %v368
        %v651 = vpop.f32.mrf.mxu0
        %v652 = vadd.f32 0.0, %v651
        %v653 = vpop.f32.mrf.mxu0
        %654 = vmatprep.mubr.f32.mxu0 0.0
        %655 = vmatmul.mubr.f32.gmra.mxu0 %v371
        %v656 = vpop.f32.mrf.mxu0
        %v657 = vadd.f32 0.0, %v656
        %v658 = vpop.f32.mrf.mxu0
        %659 = vmatprep.mubr.f32.mxu0 0.0
        %660 = vmatmul.mubr.f32.gmra.mxu0 %v374
        %v661 = vpop.f32.mrf.mxu0
        %v662 = vadd.f32 0.0, %v661
        %v663 = vpop.f32.mrf.mxu0
        %664 = vmatprep.mubr.f32.mxu0 0.0
        %665 = vmatmul.mubr.f32.gmra.mxu0 %v377
        %v666 = vpop.f32.mrf.mxu0
        %v667 = vadd.f32 0.0, %v666
        %v668 = vpop.f32.mrf.mxu0
        %669 = vmatprep.mubr.f32.mxu0 0.0
        %670 = vmatmul.mubr.f32.gmra.mxu0 %v380
        %v671 = vpop.f32.mrf.mxu0
        %v672 = vadd.f32 0.0, %v671
        %v673 = vpop.f32.mrf.mxu0
        %674 = vmatprep.mubr.f32.mxu0 0.0
        %675 = vmatmul.mubr.f32.gmra.mxu0 %v383
        %v676 = vpop.f32.mrf.mxu0
        %v677 = vadd.f32 0.0, %v676
        %v678 = vpop.f32.mrf.mxu0
        %679 = vmatprep.mubr.f32.mxu0 0.0
        %680 = vmatmul.mubr.f32.gmra.mxu0 %v386
        %v681 = vpop.f32.mrf.mxu0
        %v682 = vadd.f32 0.0, %v681
        %v683 = vpop.f32.mrf.mxu0
        %684 = vmatprep.mubr.f32.mxu0 0.0
        %685 = vmatmul.mubr.f32.gmra.mxu0 %v389
        %v686 = vpop.f32.mrf.mxu0
        %v687 = vadd.f32 0.0, %v686
        %v688 = vpop.f32.mrf.mxu0
        %689 = vmatprep.mubr.f32.mxu0 0.0
        %690 = vmatmul.mubr.f32.gmra.mxu0 %v392
        %v691 = vpop.f32.mrf.mxu0
        %v692 = vadd.f32 0.0, %v691
        %v693 = vpop.f32.mrf.mxu0
        %694 = vmatprep.mubr.f32.mxu0 0.0
        %695 = vmatmul.mubr.f32.gmra.mxu0 %v395
        %v696 = vpop.f32.mrf.mxu0
        %v697 = vadd.f32 0.0, %v696
        %v698 = vpop.f32.mrf.mxu0
        %699 = vmatprep.mubr.f32.mxu0 0.0
        %700 = vmatmul.mubr.f32.gmra.mxu0 %v398
        %v701 = vpop.f32.mrf.mxu0
        %v702 = vadd.f32 0.0, %v701
        %v703 = vpop.f32.mrf.mxu0
        %704 = vmatprep.mubr.f32.mxu0 0.0
        %705 = vmatmul.mubr.f32.gmra.mxu0 %v401
        %v706 = vpop.f32.mrf.mxu0
        %v707 = vadd.f32 0.0, %v706
        %v708 = vpop.f32.mrf.mxu0
        %709 = vmatprep.mubr.f32.mxu0 0.0
        %710 = vmatmul.mubr.f32.gmra.mxu0 %v404
        %v711 = vpop.f32.mrf.mxu0
        %v712 = vadd.f32 0.0, %v711
        %v713 = vpop.f32.mrf.mxu0
        %714 = vmatprep.mubr.f32.mxu0 0.0
        %715 = vmatmul.mubr.f32.gmra.mxu0 %v407
        %v716 = vpop.f32.mrf.mxu0
        %v717 = vadd.f32 0.0, %v716
        %v718 = vpop.f32.mrf.mxu0
        %719 = vmatprep.mubr.f32.mxu0 0.0
        %720 = vmatmul.mubr.f32.gmra.mxu0 %v410
        %v721 = vpop.f32.mrf.mxu0
        %v722 = vadd.f32 0.0, %v721
        %v723 = vpop.f32.mrf.mxu0
        %724 = vmatprep.mubr.f32.mxu0 0.0
        %725 = vmatmul.mubr.f32.gmra.mxu0 %v413
        %v726 = vpop.f32.mrf.mxu0
        %v727 = vadd.f32 0.0, %v726
        %v728 = vpop.f32.mrf.mxu0
        %729 = vmatprep.mubr.f32.mxu0 0.0
        %730 = vmatmul.mubr.f32.gmra.mxu0 %v416
        %v731 = vpop.f32.mrf.mxu0
        %v732 = vadd.f32 0.0, %v731
        %v733 = vpop.f32.mrf.mxu0
        %734 = vmatprep.mubr.f32.mxu0 0.0
        %735 = vmatmul.mubr.f32.gmra.mxu0 %v419
        %v736 = vpop.f32.mrf.mxu0
        %v737 = vadd.f32 0.0, %v736
        %v738 = vpop.f32.mrf.mxu0
        %739 = vmatprep.mubr.f32.mxu0 0.0
        %740 = vmatmul.mubr.f32.gmra.mxu0 %v422
        %v741 = vpop.f32.mrf.mxu0
        %v742 = vadd.f32 0.0, %v741
        %v743 = vpop.f32.mrf.mxu0
        %744 = vmatprep.mubr.f32.mxu0 0.0
        %745 = vmatmul.mubr.f32.gmra.mxu0 %v425
        %v746 = vpop.f32.mrf.mxu0
        %v747 = vadd.f32 0.0, %v746
        %v748 = vpop.f32.mrf.mxu0
        %749 = vmatprep.mubr.f32.mxu0 0.0
        %750 = vmatmul.mubr.f32.gmra.mxu0 %v428
        %v751 = vpop.f32.mrf.mxu0
        %v752 = vadd.f32 0.0, %v751
        %v753 = vpop.f32.mrf.mxu0
        %754 = vmatprep.mubr.f32.mxu0 0.0
        %755 = vmatmul.mubr.f32.gmra.mxu0 %v431
        %v756 = vpop.f32.mrf.mxu0
        %v757 = vadd.f32 0.0, %v756
        %v758 = vpop.f32.mrf.mxu0
        %759 = vmatprep.mubr.f32.mxu0 0.0
        %760 = vmatmul.mubr.f32.gmra.mxu0 %v434
        %v761 = vpop.f32.mrf.mxu0
        %v762 = vadd.f32 0.0, %v761
        %v763 = vpop.f32.mrf.mxu0
        %764 = vmatprep.mubr.f32.mxu0 0.0
        %765 = vmatmul.mubr.f32.gmra.mxu0 %v437
        %v766 = vpop.f32.mrf.mxu0
        %v767 = vadd.f32 0.0, %v766
        %v768 = vpop.f32.mrf.mxu0
        %769 = vmatprep.mubr.f32.mxu0 0.0
        %770 = vmatmul.mubr.f32.gmra.mxu0 %v440
        %v771 = vpop.f32.mrf.mxu0
        %v772 = vadd.f32 0.0, %v771
        %v773 = vpop.f32.mrf.mxu0
        %774 = vmatprep.mubr.f32.mxu0 0.0
        %775 = vmatmul.mubr.f32.gmra.mxu0 %v443
        %v776 = vpop.f32.mrf.mxu0
        %v777 = vadd.f32 0.0, %v776
        %v778 = vpop.f32.mrf.mxu0
        %779 = vmatprep.mubr.f32.mxu0 0.0
        %780 = vmatmul.mubr.f32.gmra.mxu0 %v446
        %v781 = vpop.f32.mrf.mxu0
        %v782 = vadd.f32 0.0, %v781
        %v783 = vpop.f32.mrf.mxu0
        %784 = vmatprep.mubr.f32.mxu0 0.0
        %785 = vmatmul.mubr.f32.gmra.mxu0 %v449
        %v786 = vpop.f32.mrf.mxu0
        %v787 = vadd.f32 0.0, %v786
        %v788 = vpop.f32.mrf.mxu0
        %789 = vdwg.mxu0
        %v790 = vadd.f32 %v232, %v522
        %v791 = vadd.f32 %v232, %v527
        %v792 = vadd.f32 %v232, %v532
        %v793 = vadd.f32 %v232, %v537
        %v794 = vadd.f32 %v232, %v542
        %v795 = vadd.f32 %v232, %v547
        %v796 = vadd.f32 %v232, %v552
        %v797 = vadd.f32 %v232, %v557
        %v798 = vadd.f32 %v232, %v562
        %v799 = vadd.f32 %v232, %v567
        %v800 = vadd.f32 %v232, %v572
        %v801 = vadd.f32 %v232, %v577
        %v802 = vadd.f32 %v232, %v582
        %v803 = vadd.f32 %v232, %v587
        %v804 = vadd.f32 %v232, %v592
        %v805 = vadd.f32 %v232, %v597
        %v806 = vadd.f32 %v232, %v602
        %v807 = vadd.f32 %v232, %v607
        %v808 = vadd.f32 %v232, %v612
        %v809 = vadd.f32 %v232, %v617
        %v810 = vadd.f32 %v232, %v622
        %v811 = vadd.f32 %v232, %v627
        %v812 = vadd.f32 %v232, %v632
        %v813 = vadd.f32 %v232, %v637
        %v814 = vadd.f32 %v232, %v642
        %v815 = vadd.f32 %v232, %v647
        %v816 = vadd.f32 %v232, %v652
        %v817 = vadd.f32 %v232, %v657
        %v818 = vadd.f32 %v232, %v662
        %v819 = vadd.f32 %v232, %v667
        %v820 = vadd.f32 %v232, %v672
        %v821 = vadd.f32 %v232, %v677
        %v822 = vadd.f32 %v232, %v682
        %v823 = vadd.f32 %v232, %v687
        %v824 = vadd.f32 %v232, %v692
        %v825 = vadd.f32 %v232, %v697
        %v826 = vadd.f32 %v232, %v702
        %v827 = vadd.f32 %v232, %v707
        %v828 = vadd.f32 %v232, %v712
        %v829 = vadd.f32 %v232, %v717
        %v830 = vadd.f32 %v232, %v722
        %v831 = vadd.f32 %v232, %v727
        %v832 = vadd.f32 %v232, %v732
        %v833 = vadd.f32 %v232, %v737
        %v834 = vadd.f32 %v232, %v742
        %v835 = vadd.f32 %v232, %v747
        %v836 = vadd.f32 %v232, %v752
        %v837 = vadd.f32 %v232, %v757
        %v838 = vadd.f32 %v232, %v762
        %v839 = vadd.f32 %v232, %v767
        %v840 = vadd.f32 %v232, %v772
        %v841 = vadd.f32 %v232, %v777
        %v842 = vadd.f32 %v232, %v782
        %v843 = vadd.f32 %v232, %v787
        %v844 = vld [vmem:[%s224 + $0x1] sm:$0xff]
        %v845 = vld [vmem:[%s224 + $0x9] sm:$0xff]
        %v846 = vld [vmem:[%s224 + $0x11] sm:$0xff]
        %v847 = vld [vmem:[%s224 + $0x21] sm:$0xff]
        %v848 = vld [vmem:[%s224 + $0x29] sm:$0xff]
        %v849 = vld [vmem:[%s224 + $0x31] sm:$0xff]
        %v850 = vld [vmem:[%s224 + $0x41] sm:$0xff]
        %v851 = vld [vmem:[%s224 + $0x49] sm:$0xff]
        %v852 = vld [vmem:[%s224 + $0x51] sm:$0xff]
        %v853 = vld [vmem:[%s224 + $0x61] sm:$0xff]
        %v854 = vld [vmem:[%s224 + $0x69] sm:$0xff]
        %v855 = vld [vmem:[%s224 + $0x71] sm:$0xff]
        %v856 = vld [vmem:[%s224 + $0x81] sm:$0xff]
        %v857 = vld [vmem:[%s224 + $0x89] sm:$0xff]
        %v858 = vld [vmem:[%s224 + $0x91] sm:$0xff]
        %v859 = vld [vmem:[%s224 + $0xa1] sm:$0xff]
        %v860 = vld [vmem:[%s224 + $0xa9] sm:$0xff]
        %v861 = vld [vmem:[%s224 + $0xb1] sm:$0xff]
        %v862 = vld [vmem:[%s224 + $0xc1] sm:$0xff]
        %v863 = vld [vmem:[%s224 + $0xc9] sm:$0xff]
        %v864 = vld [vmem:[%s224 + $0xd1] sm:$0xff]
        %v865 = vld [vmem:[%s224 + $0xe1] sm:$0xff]
        %v866 = vld [vmem:[%s224 + $0xe9] sm:$0xff]
        %v867 = vld [vmem:[%s224 + $0xf1] sm:$0xff]
        %v868 = vld [vmem:[%s224 + $0x101] sm:$0xff]
        %v869 = vld [vmem:[%s224 + $0x109] sm:$0xff]
        %v870 = vld [vmem:[%s224 + $0x111] sm:$0xff]
        %v871 = vld [vmem:[%s224 + $0x121] sm:$0xff]
        %v872 = vld [vmem:[%s224 + $0x129] sm:$0xff]
        %v873 = vld [vmem:[%s224 + $0x131] sm:$0xff]
        %v874 = vld [vmem:[%s224 + $0x141] sm:$0xff]
        %v875 = vld [vmem:[%s224 + $0x149] sm:$0xff]
        %v876 = vld [vmem:[%s224 + $0x151] sm:$0xff]
        %v877 = vld [vmem:[%s224 + $0x161] sm:$0xff]
        %v878 = vld [vmem:[%s224 + $0x169] sm:$0xff]
        %v879 = vld [vmem:[%s224 + $0x171] sm:$0xff]
        %v880 = vld [vmem:[%s224 + $0x181] sm:$0xff]
        %v881 = vld [vmem:[%s224 + $0x189] sm:$0xff]
        %v882 = vld [vmem:[%s224 + $0x191] sm:$0xff]
        %v883 = vld [vmem:[%s224 + $0x1a1] sm:$0xff]
        %v884 = vld [vmem:[%s224 + $0x1a9] sm:$0xff]
        %v885 = vld [vmem:[%s224 + $0x1b1] sm:$0xff]
        %v886 = vld [vmem:[%s224 + $0x1c1] sm:$0xff]
        %v887 = vld [vmem:[%s224 + $0x1c9] sm:$0xff]
        %v888 = vld [vmem:[%s224 + $0x1d1] sm:$0xff]
        %v889 = vld [vmem:[%s224 + $0x1e1] sm:$0xff]
        %v890 = vld [vmem:[%s224 + $0x1e9] sm:$0xff]
        %v891 = vld [vmem:[%s224 + $0x1f1] sm:$0xff]
        %v892 = vld [vmem:[%s224 + $0x201] sm:$0xff]
        %v893 = vld [vmem:[%s224 + $0x209] sm:$0xff]
        %v894 = vld [vmem:[%s224 + $0x211] sm:$0xff]
        %v895 = vld [vmem:[%s224 + $0x221] sm:$0xff]
        %v896 = vld [vmem:[%s224 + $0x229] sm:$0xff]
        %v897 = vld [vmem:[%s224 + $0x231] sm:$0xff]
        %s898 = scalar_lea.vmem %s1, 4
        %v899 = vld [vmem:[%s898] sm:$0x7]
        %v901 = vsel %vm288, %v844, 0
        %v904 = vsel %vm288, %v845, 0
        %v907 = vsel %vm288, %v846, 0
        %v910 = vsel %vm288, %v847, 0
        %v913 = vsel %vm288, %v848, 0
        %v916 = vsel %vm288, %v849, 0
        %v919 = vsel %vm288, %v850, 0
        %v922 = vsel %vm288, %v851, 0
        %v925 = vsel %vm288, %v852, 0
        %v928 = vsel %vm288, %v853, 0
        %v931 = vsel %vm288, %v854, 0
        %v934 = vsel %vm288, %v855, 0
        %v937 = vsel %vm288, %v856, 0
        %v940 = vsel %vm288, %v857, 0
        %v943 = vsel %vm288, %v858, 0
        %v946 = vsel %vm288, %v859, 0
        %v949 = vsel %vm288, %v860, 0
        %v952 = vsel %vm288, %v861, 0
        %v955 = vsel %vm288, %v862, 0
        %v958 = vsel %vm288, %v863, 0
        %v961 = vsel %vm288, %v864, 0
        %v964 = vsel %vm288, %v865, 0
        %v967 = vsel %vm288, %v866, 0
        %v970 = vsel %vm288, %v867, 0
        %v973 = vsel %vm288, %v868, 0
        %v976 = vsel %vm288, %v869, 0
        %v979 = vsel %vm288, %v870, 0
        %v982 = vsel %vm288, %v871, 0
        %v985 = vsel %vm288, %v872, 0
        %v988 = vsel %vm288, %v873, 0
        %v991 = vsel %vm288, %v874, 0
        %v994 = vsel %vm288, %v875, 0
        %v997 = vsel %vm288, %v876, 0
        %v1000 = vsel %vm288, %v877, 0
        %v1003 = vsel %vm288, %v878, 0
        %v1006 = vsel %vm288, %v879, 0
        %v1009 = vsel %vm288, %v880, 0
        %v1012 = vsel %vm288, %v881, 0
        %v1015 = vsel %vm288, %v882, 0
        %v1018 = vsel %vm288, %v883, 0
        %v1021 = vsel %vm288, %v884, 0
        %v1024 = vsel %vm288, %v885, 0
        %v1027 = vsel %vm288, %v886, 0
        %v1030 = vsel %vm288, %v887, 0
        %v1033 = vsel %vm288, %v888, 0
        %v1036 = vsel %vm288, %v889, 0
        %v1039 = vsel %vm288, %v890, 0
        %v1042 = vsel %vm288, %v891, 0
        %v1045 = vsel %vm288, %v892, 0
        %v1048 = vsel %vm288, %v893, 0
        %v1051 = vsel %vm288, %v894, 0
        %v1054 = vsel %vm288, %v895, 0
        %v1057 = vsel %vm288, %v896, 0
        %v1060 = vsel %vm288, %v897, 0
        %v1063 = vsel %vm451, %v899, 0
        %1065 = vmatprep.subr.mxu0 0.0
        %1066 = vmatpush1.msra.mxu0 0.0
        %1067 = vmatprep.subr.mxu0 0.0
        %1068 = vmatpush1.msra.mxu0 0.0
        %1069 = vmatprep.subr.mxu0 0.0
        %1070 = vmatpush1.msra.mxu0 0.0
        %1071 = vmatprep.subr.mxu0 0.0
        %1072 = vmatpush1.msra.mxu0 0.0
        %1073 = vmatprep.subr.mxu0 0.0
        %1074 = vmatpush1.msra.mxu0 0.0
        %1075 = vmatprep.subr.mxu0 0.0
        %1076 = vmatpush1.msra.mxu0 0.0
        %1077 = vmatprep.subr.mxu0 0.0
        %1078 = vmatpush1.msra.mxu0 0.0
        %1079 = vmatprep.subr.mxu0 0.0
        %1080 = vmatpush1.msra.mxu0 0.0
        %1081 = vmatprep.subr.mxu0 0.0
        %1082 = vmatpush1.msra.mxu0 0.0
        %1083 = vmatprep.subr.mxu0 0.0
        %1084 = vmatpush1.msra.mxu0 0.0
        %1085 = vmatprep.subr.mxu0 0.0
        %1086 = vmatpush1.msra.mxu0 0.0
        %1087 = vmatprep.subr.mxu0 0.0
        %1088 = vmatpush1.msra.mxu0 0.0
        %1089 = vmatprep.subr.mxu0 0.0
        %1090 = vmatpush1.msra.mxu0 0.0
        %1091 = vmatprep.subr.mxu0 0.0
        %1092 = vmatpush1.msra.mxu0 0.0
        %1093 = vmatprep.subr.mxu0 0.0
        %1094 = vmatpush1.msra.mxu0 0.0
        %1095 = vmatprep.subr.mxu0 0.0
        %1096 = vmatpush1.msra.mxu0 %v1063
        %1097 = vmatprep.subr.mxu0 0.0
        %1098 = vmatpush2.msra.mxu0 0.0
        %1099 = vmatprep.subr.mxu0 0.0
        %1100 = vmatpush2.msra.mxu0 0.0
        %1101 = vmatprep.subr.mxu0 0.0
        %1102 = vmatpush2.msra.mxu0 0.0
        %1103 = vmatprep.subr.mxu0 0.0
        %1104 = vmatpush2.msra.mxu0 0.0
        %1105 = vmatprep.subr.mxu0 0.0
        %1106 = vmatpush2.msra.mxu0 0.0
        %1107 = vmatprep.subr.mxu0 0.0
        %1108 = vmatpush2.msra.mxu0 0.0
        %1109 = vmatprep.subr.mxu0 0.0
        %1110 = vmatpush2.msra.mxu0 0.0
        %1111 = vmatprep.subr.mxu0 0.0
        %1112 = vmatpush2.msra.mxu0 0.0
        %1113 = vmatprep.subr.mxu0 0.0
        %1114 = vmatpush2.msra.mxu0 0.0
        %1115 = vmatprep.subr.mxu0 0.0
        %1116 = vmatpush2.msra.mxu0 0.0
        %1117 = vmatprep.subr.mxu0 0.0
        %1118 = vmatpush2.msra.mxu0 0.0
        %1119 = vmatprep.subr.mxu0 0.0
        %1120 = vmatpush2.msra.mxu0 0.0
        %1121 = vmatprep.subr.mxu0 0.0
        %1122 = vmatpush2.msra.mxu0 0.0
        %1123 = vmatprep.subr.mxu0 0.0
        %1124 = vmatpush2.msra.mxu0 0.0
        %1125 = vmatprep.subr.mxu0 0.0
        %1126 = vmatpush2.msra.mxu0 0.0
        %1127 = vmatprep.subr.mxu0 0.0
        %1128 = vmatpush2.msra.mxu0 0.0
        %1129 = vmatprep.mubr.f32.mxu0 0.0
        %1130 = vmatmul.mubr.f32.gmra.mxu0 %v901
        %v1131 = vpop.f32.mrf.mxu0
        %v1132 = vadd.f32 0.0, %v1131
        %v1133 = vpop.f32.mrf.mxu0
        %1134 = vmatprep.mubr.f32.mxu0 0.0
        %1135 = vmatmul.mubr.f32.gmra.mxu0 %v904
        %v1136 = vpop.f32.mrf.mxu0
        %v1137 = vadd.f32 0.0, %v1136
        %v1138 = vpop.f32.mrf.mxu0
        %1139 = vmatprep.mubr.f32.mxu0 0.0
        %1140 = vmatmul.mubr.f32.gmra.mxu0 %v907
        %v1141 = vpop.f32.mrf.mxu0
        %v1142 = vadd.f32 0.0, %v1141
        %v1143 = vpop.f32.mrf.mxu0
        %1144 = vmatprep.mubr.f32.mxu0 0.0
        %1145 = vmatmul.mubr.f32.gmra.mxu0 %v910
        %v1146 = vpop.f32.mrf.mxu0
        %v1147 = vadd.f32 0.0, %v1146
        %v1148 = vpop.f32.mrf.mxu0
        %1149 = vmatprep.mubr.f32.mxu0 0.0
        %1150 = vmatmul.mubr.f32.gmra.mxu0 %v913
        %v1151 = vpop.f32.mrf.mxu0
        %v1152 = vadd.f32 0.0, %v1151
        %v1153 = vpop.f32.mrf.mxu0
        %1154 = vmatprep.mubr.f32.mxu0 0.0
        %1155 = vmatmul.mubr.f32.gmra.mxu0 %v916
        %v1156 = vpop.f32.mrf.mxu0
        %v1157 = vadd.f32 0.0, %v1156
        %v1158 = vpop.f32.mrf.mxu0
        %1159 = vmatprep.mubr.f32.mxu0 0.0
        %1160 = vmatmul.mubr.f32.gmra.mxu0 %v919
        %v1161 = vpop.f32.mrf.mxu0
        %v1162 = vadd.f32 0.0, %v1161
        %v1163 = vpop.f32.mrf.mxu0
        %1164 = vmatprep.mubr.f32.mxu0 0.0
        %1165 = vmatmul.mubr.f32.gmra.mxu0 %v922
        %v1166 = vpop.f32.mrf.mxu0
        %v1167 = vadd.f32 0.0, %v1166
        %v1168 = vpop.f32.mrf.mxu0
        %1169 = vmatprep.mubr.f32.mxu0 0.0
        %1170 = vmatmul.mubr.f32.gmra.mxu0 %v925
        %v1171 = vpop.f32.mrf.mxu0
        %v1172 = vadd.f32 0.0, %v1171
        %v1173 = vpop.f32.mrf.mxu0
        %1174 = vmatprep.mubr.f32.mxu0 0.0
        %1175 = vmatmul.mubr.f32.gmra.mxu0 %v928
        %v1176 = vpop.f32.mrf.mxu0
        %v1177 = vadd.f32 0.0, %v1176
        %v1178 = vpop.f32.mrf.mxu0
        %1179 = vmatprep.mubr.f32.mxu0 0.0
        %1180 = vmatmul.mubr.f32.gmra.mxu0 %v931
        %v1181 = vpop.f32.mrf.mxu0
        %v1182 = vadd.f32 0.0, %v1181
        %v1183 = vpop.f32.mrf.mxu0
        %1184 = vmatprep.mubr.f32.mxu0 0.0
        %1185 = vmatmul.mubr.f32.gmra.mxu0 %v934
        %v1186 = vpop.f32.mrf.mxu0
        %v1187 = vadd.f32 0.0, %v1186
        %v1188 = vpop.f32.mrf.mxu0
        %1189 = vmatprep.mubr.f32.mxu0 0.0
        %1190 = vmatmul.mubr.f32.gmra.mxu0 %v937
        %v1191 = vpop.f32.mrf.mxu0
        %v1192 = vadd.f32 0.0, %v1191
        %v1193 = vpop.f32.mrf.mxu0
        %1194 = vmatprep.mubr.f32.mxu0 0.0
        %1195 = vmatmul.mubr.f32.gmra.mxu0 %v940
        %v1196 = vpop.f32.mrf.mxu0
        %v1197 = vadd.f32 0.0, %v1196
        %v1198 = vpop.f32.mrf.mxu0
        %1199 = vmatprep.mubr.f32.mxu0 0.0
        %1200 = vmatmul.mubr.f32.gmra.mxu0 %v943
        %v1201 = vpop.f32.mrf.mxu0
        %v1202 = vadd.f32 0.0, %v1201
        %v1203 = vpop.f32.mrf.mxu0
        %1204 = vmatprep.mubr.f32.mxu0 0.0
        %1205 = vmatmul.mubr.f32.gmra.mxu0 %v946
        %v1206 = vpop.f32.mrf.mxu0
        %v1207 = vadd.f32 0.0, %v1206
        %v1208 = vpop.f32.mrf.mxu0
        %1209 = vmatprep.mubr.f32.mxu0 0.0
        %1210 = vmatmul.mubr.f32.gmra.mxu0 %v949
        %v1211 = vpop.f32.mrf.mxu0
        %v1212 = vadd.f32 0.0, %v1211
        %v1213 = vpop.f32.mrf.mxu0
        %1214 = vmatprep.mubr.f32.mxu0 0.0
        %1215 = vmatmul.mubr.f32.gmra.mxu0 %v952
        %v1216 = vpop.f32.mrf.mxu0
        %v1217 = vadd.f32 0.0, %v1216
        %v1218 = vpop.f32.mrf.mxu0
        %1219 = vmatprep.mubr.f32.mxu0 0.0
        %1220 = vmatmul.mubr.f32.gmra.mxu0 %v955
        %v1221 = vpop.f32.mrf.mxu0
        %v1222 = vadd.f32 0.0, %v1221
        %v1223 = vpop.f32.mrf.mxu0
        %1224 = vmatprep.mubr.f32.mxu0 0.0
        %1225 = vmatmul.mubr.f32.gmra.mxu0 %v958
        %v1226 = vpop.f32.mrf.mxu0
        %v1227 = vadd.f32 0.0, %v1226
        %v1228 = vpop.f32.mrf.mxu0
        %1229 = vmatprep.mubr.f32.mxu0 0.0
        %1230 = vmatmul.mubr.f32.gmra.mxu0 %v961
        %v1231 = vpop.f32.mrf.mxu0
        %v1232 = vadd.f32 0.0, %v1231
        %v1233 = vpop.f32.mrf.mxu0
        %1234 = vmatprep.mubr.f32.mxu0 0.0
        %1235 = vmatmul.mubr.f32.gmra.mxu0 %v964
        %v1236 = vpop.f32.mrf.mxu0
        %v1237 = vadd.f32 0.0, %v1236
        %v1238 = vpop.f32.mrf.mxu0
        %1239 = vmatprep.mubr.f32.mxu0 0.0
        %1240 = vmatmul.mubr.f32.gmra.mxu0 %v967
        %v1241 = vpop.f32.mrf.mxu0
        %v1242 = vadd.f32 0.0, %v1241
        %v1243 = vpop.f32.mrf.mxu0
        %1244 = vmatprep.mubr.f32.mxu0 0.0
        %1245 = vmatmul.mubr.f32.gmra.mxu0 %v970
        %v1246 = vpop.f32.mrf.mxu0
        %v1247 = vadd.f32 0.0, %v1246
        %v1248 = vpop.f32.mrf.mxu0
        %1249 = vmatprep.mubr.f32.mxu0 0.0
        %1250 = vmatmul.mubr.f32.gmra.mxu0 %v973
        %v1251 = vpop.f32.mrf.mxu0
        %v1252 = vadd.f32 0.0, %v1251
        %v1253 = vpop.f32.mrf.mxu0
        %1254 = vmatprep.mubr.f32.mxu0 0.0
        %1255 = vmatmul.mubr.f32.gmra.mxu0 %v976
        %v1256 = vpop.f32.mrf.mxu0
        %v1257 = vadd.f32 0.0, %v1256
        %v1258 = vpop.f32.mrf.mxu0
        %1259 = vmatprep.mubr.f32.mxu0 0.0
        %1260 = vmatmul.mubr.f32.gmra.mxu0 %v979
        %v1261 = vpop.f32.mrf.mxu0
        %v1262 = vadd.f32 0.0, %v1261
        %v1263 = vpop.f32.mrf.mxu0
        %1264 = vmatprep.mubr.f32.mxu0 0.0
        %1265 = vmatmul.mubr.f32.gmra.mxu0 %v982
        %v1266 = vpop.f32.mrf.mxu0
        %v1267 = vadd.f32 0.0, %v1266
        %v1268 = vpop.f32.mrf.mxu0
        %1269 = vmatprep.mubr.f32.mxu0 0.0
        %1270 = vmatmul.mubr.f32.gmra.mxu0 %v985
        %v1271 = vpop.f32.mrf.mxu0
        %v1272 = vadd.f32 0.0, %v1271
        %v1273 = vpop.f32.mrf.mxu0
        %1274 = vmatprep.mubr.f32.mxu0 0.0
        %1275 = vmatmul.mubr.f32.gmra.mxu0 %v988
        %v1276 = vpop.f32.mrf.mxu0
        %v1277 = vadd.f32 0.0, %v1276
        %v1278 = vpop.f32.mrf.mxu0
        %1279 = vmatprep.mubr.f32.mxu0 0.0
        %1280 = vmatmul.mubr.f32.gmra.mxu0 %v991
        %v1281 = vpop.f32.mrf.mxu0
        %v1282 = vadd.f32 0.0, %v1281
        %v1283 = vpop.f32.mrf.mxu0
        %1284 = vmatprep.mubr.f32.mxu0 0.0
        %1285 = vmatmul.mubr.f32.gmra.mxu0 %v994
        %v1286 = vpop.f32.mrf.mxu0
        %v1287 = vadd.f32 0.0, %v1286
        %v1288 = vpop.f32.mrf.mxu0
        %1289 = vmatprep.mubr.f32.mxu0 0.0
        %1290 = vmatmul.mubr.f32.gmra.mxu0 %v997
        %v1291 = vpop.f32.mrf.mxu0
        %v1292 = vadd.f32 0.0, %v1291
        %v1293 = vpop.f32.mrf.mxu0
        %1294 = vmatprep.mubr.f32.mxu0 0.0
        %1295 = vmatmul.mubr.f32.gmra.mxu0 %v1000
        %v1296 = vpop.f32.mrf.mxu0
        %v1297 = vadd.f32 0.0, %v1296
        %v1298 = vpop.f32.mrf.mxu0
        %1299 = vmatprep.mubr.f32.mxu0 0.0
        %1300 = vmatmul.mubr.f32.gmra.mxu0 %v1003
        %v1301 = vpop.f32.mrf.mxu0
        %v1302 = vadd.f32 0.0, %v1301
        %v1303 = vpop.f32.mrf.mxu0
        %1304 = vmatprep.mubr.f32.mxu0 0.0
        %1305 = vmatmul.mubr.f32.gmra.mxu0 %v1006
        %v1306 = vpop.f32.mrf.mxu0
        %v1307 = vadd.f32 0.0, %v1306
        %v1308 = vpop.f32.mrf.mxu0
        %1309 = vmatprep.mubr.f32.mxu0 0.0
        %1310 = vmatmul.mubr.f32.gmra.mxu0 %v1009
        %v1311 = vpop.f32.mrf.mxu0
        %v1312 = vadd.f32 0.0, %v1311
        %v1313 = vpop.f32.mrf.mxu0
        %1314 = vmatprep.mubr.f32.mxu0 0.0
        %1315 = vmatmul.mubr.f32.gmra.mxu0 %v1012
        %v1316 = vpop.f32.mrf.mxu0
        %v1317 = vadd.f32 0.0, %v1316
        %v1318 = vpop.f32.mrf.mxu0
        %1319 = vmatprep.mubr.f32.mxu0 0.0
        %1320 = vmatmul.mubr.f32.gmra.mxu0 %v1015
        %v1321 = vpop.f32.mrf.mxu0
        %v1322 = vadd.f32 0.0, %v1321
        %v1323 = vpop.f32.mrf.mxu0
        %1324 = vmatprep.mubr.f32.mxu0 0.0
        %1325 = vmatmul.mubr.f32.gmra.mxu0 %v1018
        %v1326 = vpop.f32.mrf.mxu0
        %v1327 = vadd.f32 0.0, %v1326
        %v1328 = vpop.f32.mrf.mxu0
        %1329 = vmatprep.mubr.f32.mxu0 0.0
        %1330 = vmatmul.mubr.f32.gmra.mxu0 %v1021
        %v1331 = vpop.f32.mrf.mxu0
        %v1332 = vadd.f32 0.0, %v1331
        %v1333 = vpop.f32.mrf.mxu0
        %1334 = vmatprep.mubr.f32.mxu0 0.0
        %1335 = vmatmul.mubr.f32.gmra.mxu0 %v1024
        %v1336 = vpop.f32.mrf.mxu0
        %v1337 = vadd.f32 0.0, %v1336
        %v1338 = vpop.f32.mrf.mxu0
        %1339 = vmatprep.mubr.f32.mxu0 0.0
        %1340 = vmatmul.mubr.f32.gmra.mxu0 %v1027
        %v1341 = vpop.f32.mrf.mxu0
        %v1342 = vadd.f32 0.0, %v1341
        %v1343 = vpop.f32.mrf.mxu0
        %1344 = vmatprep.mubr.f32.mxu0 0.0
        %1345 = vmatmul.mubr.f32.gmra.mxu0 %v1030
        %v1346 = vpop.f32.mrf.mxu0
        %v1347 = vadd.f32 0.0, %v1346
        %v1348 = vpop.f32.mrf.mxu0
        %1349 = vmatprep.mubr.f32.mxu0 0.0
        %1350 = vmatmul.mubr.f32.gmra.mxu0 %v1033
        %v1351 = vpop.f32.mrf.mxu0
        %v1352 = vadd.f32 0.0, %v1351
        %v1353 = vpop.f32.mrf.mxu0
        %1354 = vmatprep.mubr.f32.mxu0 0.0
        %1355 = vmatmul.mubr.f32.gmra.mxu0 %v1036
        %v1356 = vpop.f32.mrf.mxu0
        %v1357 = vadd.f32 0.0, %v1356
        %v1358 = vpop.f32.mrf.mxu0
        %1359 = vmatprep.mubr.f32.mxu0 0.0
        %1360 = vmatmul.mubr.f32.gmra.mxu0 %v1039
        %v1361 = vpop.f32.mrf.mxu0
        %v1362 = vadd.f32 0.0, %v1361
        %v1363 = vpop.f32.mrf.mxu0
        %1364 = vmatprep.mubr.f32.mxu0 0.0
        %1365 = vmatmul.mubr.f32.gmra.mxu0 %v1042
        %v1366 = vpop.f32.mrf.mxu0
        %v1367 = vadd.f32 0.0, %v1366
        %v1368 = vpop.f32.mrf.mxu0
        %1369 = vmatprep.mubr.f32.mxu0 0.0
        %1370 = vmatmul.mubr.f32.gmra.mxu0 %v1045
        %v1371 = vpop.f32.mrf.mxu0
        %v1372 = vadd.f32 0.0, %v1371
        %v1373 = vpop.f32.mrf.mxu0
        %1374 = vmatprep.mubr.f32.mxu0 0.0
        %1375 = vmatmul.mubr.f32.gmra.mxu0 %v1048
        %v1376 = vpop.f32.mrf.mxu0
        %v1377 = vadd.f32 0.0, %v1376
        %v1378 = vpop.f32.mrf.mxu0
        %1379 = vmatprep.mubr.f32.mxu0 0.0
        %1380 = vmatmul.mubr.f32.gmra.mxu0 %v1051
        %v1381 = vpop.f32.mrf.mxu0
        %v1382 = vadd.f32 0.0, %v1381
        %v1383 = vpop.f32.mrf.mxu0
        %1384 = vmatprep.mubr.f32.mxu0 0.0
        %1385 = vmatmul.mubr.f32.gmra.mxu0 %v1054
        %v1386 = vpop.f32.mrf.mxu0
        %v1387 = vadd.f32 0.0, %v1386
        %v1388 = vpop.f32.mrf.mxu0
        %1389 = vmatprep.mubr.f32.mxu0 0.0
        %1390 = vmatmul.mubr.f32.gmra.mxu0 %v1057
        %v1391 = vpop.f32.mrf.mxu0
        %v1392 = vadd.f32 0.0, %v1391
        %v1393 = vpop.f32.mrf.mxu0
        %1394 = vmatprep.mubr.f32.mxu0 0.0
        %1395 = vmatmul.mubr.f32.gmra.mxu0 %v1060
        %v1396 = vpop.f32.mrf.mxu0
        %v1397 = vadd.f32 0.0, %v1396
        %v1398 = vpop.f32.mrf.mxu0
        %1399 = vdwg.mxu0
        %v1400 = vadd.f32 %v790, %v1132
        %v1401 = vadd.f32 %v791, %v1137
        %v1402 = vadd.f32 %v792, %v1142
        %v1403 = vadd.f32 %v793, %v1147
        %v1404 = vadd.f32 %v794, %v1152
        %v1405 = vadd.f32 %v795, %v1157
        %v1406 = vadd.f32 %v796, %v1162
        %v1407 = vadd.f32 %v797, %v1167
        %v1408 = vadd.f32 %v798, %v1172
        %v1409 = vadd.f32 %v799, %v1177
        %v1410 = vadd.f32 %v800, %v1182
        %v1411 = vadd.f32 %v801, %v1187
        %v1412 = vadd.f32 %v802, %v1192
        %v1413 = vadd.f32 %v803, %v1197
        %v1414 = vadd.f32 %v804, %v1202
        %v1415 = vadd.f32 %v805, %v1207
        %v1416 = vadd.f32 %v806, %v1212
        %v1417 = vadd.f32 %v807, %v1217
        %v1418 = vadd.f32 %v808, %v1222
        %v1419 = vadd.f32 %v809, %v1227
        %v1420 = vadd.f32 %v810, %v1232
        %v1421 = vadd.f32 %v811, %v1237
        %v1422 = vadd.f32 %v812, %v1242
        %v1423 = vadd.f32 %v813, %v1247
        %v1424 = vadd.f32 %v814, %v1252
        %v1425 = vadd.f32 %v815, %v1257
        %v1426 = vadd.f32 %v816, %v1262
        %v1427 = vadd.f32 %v817, %v1267
        %v1428 = vadd.f32 %v818, %v1272
        %v1429 = vadd.f32 %v819, %v1277
        %v1430 = vadd.f32 %v820, %v1282
        %v1431 = vadd.f32 %v821, %v1287
        %v1432 = vadd.f32 %v822, %v1292
        %v1433 = vadd.f32 %v823, %v1297
        %v1434 = vadd.f32 %v824, %v1302
        %v1435 = vadd.f32 %v825, %v1307
        %v1436 = vadd.f32 %v826, %v1312
        %v1437 = vadd.f32 %v827, %v1317
        %v1438 = vadd.f32 %v828, %v1322
        %v1439 = vadd.f32 %v829, %v1327
        %v1440 = vadd.f32 %v830, %v1332
        %v1441 = vadd.f32 %v831, %v1337
        %v1442 = vadd.f32 %v832, %v1342
        %v1443 = vadd.f32 %v833, %v1347
        %v1444 = vadd.f32 %v834, %v1352
        %v1445 = vadd.f32 %v835, %v1357
        %v1446 = vadd.f32 %v836, %v1362
        %v1447 = vadd.f32 %v837, %v1367
        %v1448 = vadd.f32 %v838, %v1372
        %v1449 = vadd.f32 %v839, %v1377
        %v1450 = vadd.f32 %v840, %v1382
        %v1451 = vadd.f32 %v841, %v1387
        %v1452 = vadd.f32 %v842, %v1392
        %v1453 = vadd.f32 %v843, %v1397
        %v1454 = vld [vmem:[%s224 + $0x2] sm:$0xff]
        %v1455 = vld [vmem:[%s224 + $0xa] sm:$0xff]
        %v1456 = vld [vmem:[%s224 + $0x12] sm:$0xff]
        %v1457 = vld [vmem:[%s224 + $0x22] sm:$0xff]
        %v1458 = vld [vmem:[%s224 + $0x2a] sm:$0xff]
        %v1459 = vld [vmem:[%s224 + $0x32] sm:$0xff]
        %v1460 = vld [vmem:[%s224 + $0x42] sm:$0xff]
        %v1461 = vld [vmem:[%s224 + $0x4a] sm:$0xff]
        %v1462 = vld [vmem:[%s224 + $0x52] sm:$0xff]
        %v1463 = vld [vmem:[%s224 + $0x62] sm:$0xff]
        %v1464 = vld [vmem:[%s224 + $0x6a] sm:$0xff]
        %v1465 = vld [vmem:[%s224 + $0x72] sm:$0xff]
        %v1466 = vld [vmem:[%s224 + $0x82] sm:$0xff]
        %v1467 = vld [vmem:[%s224 + $0x8a] sm:$0xff]
        %v1468 = vld [vmem:[%s224 + $0x92] sm:$0xff]
        %v1469 = vld [vmem:[%s224 + $0xa2] sm:$0xff]
        %v1470 = vld [vmem:[%s224 + $0xaa] sm:$0xff]
        %v1471 = vld [vmem:[%s224 + $0xb2] sm:$0xff]
        %v1472 = vld [vmem:[%s224 + $0xc2] sm:$0xff]
        %v1473 = vld [vmem:[%s224 + $0xca] sm:$0xff]
        %v1474 = vld [vmem:[%s224 + $0xd2] sm:$0xff]
        %v1475 = vld [vmem:[%s224 + $0xe2] sm:$0xff]
        %v1476 = vld [vmem:[%s224 + $0xea] sm:$0xff]
        %v1477 = vld [vmem:[%s224 + $0xf2] sm:$0xff]
        %v1478 = vld [vmem:[%s224 + $0x102] sm:$0xff]
        %v1479 = vld [vmem:[%s224 + $0x10a] sm:$0xff]
        %v1480 = vld [vmem:[%s224 + $0x112] sm:$0xff]
        %v1481 = vld [vmem:[%s224 + $0x122] sm:$0xff]
        %v1482 = vld [vmem:[%s224 + $0x12a] sm:$0xff]
        %v1483 = vld [vmem:[%s224 + $0x132] sm:$0xff]
        %v1484 = vld [vmem:[%s224 + $0x142] sm:$0xff]
        %v1485 = vld [vmem:[%s224 + $0x14a] sm:$0xff]
        %v1486 = vld [vmem:[%s224 + $0x152] sm:$0xff]
        %v1487 = vld [vmem:[%s224 + $0x162] sm:$0xff]
        %v1488 = vld [vmem:[%s224 + $0x16a] sm:$0xff]
        %v1489 = vld [vmem:[%s224 + $0x172] sm:$0xff]
        %v1490 = vld [vmem:[%s224 + $0x182] sm:$0xff]
        %v1491 = vld [vmem:[%s224 + $0x18a] sm:$0xff]
        %v1492 = vld [vmem:[%s224 + $0x192] sm:$0xff]
        %v1493 = vld [vmem:[%s224 + $0x1a2] sm:$0xff]
        %v1494 = vld [vmem:[%s224 + $0x1aa] sm:$0xff]
        %v1495 = vld [vmem:[%s224 + $0x1b2] sm:$0xff]
        %v1496 = vld [vmem:[%s224 + $0x1c2] sm:$0xff]
        %v1497 = vld [vmem:[%s224 + $0x1ca] sm:$0xff]
        %v1498 = vld [vmem:[%s224 + $0x1d2] sm:$0xff]
        %v1499 = vld [vmem:[%s224 + $0x1e2] sm:$0xff]
        %v1500 = vld [vmem:[%s224 + $0x1ea] sm:$0xff]
        %v1501 = vld [vmem:[%s224 + $0x1f2] sm:$0xff]
        %v1502 = vld [vmem:[%s224 + $0x202] sm:$0xff]
        %v1503 = vld [vmem:[%s224 + $0x20a] sm:$0xff]
        %v1504 = vld [vmem:[%s224 + $0x212] sm:$0xff]
        %v1505 = vld [vmem:[%s224 + $0x222] sm:$0xff]
        %v1506 = vld [vmem:[%s224 + $0x22a] sm:$0xff]
        %v1507 = vld [vmem:[%s224 + $0x232] sm:$0xff]
        %s1508 = scalar_lea.vmem %s1, 8
        %v1509 = vld [vmem:[%s1508] sm:$0x7]
        %v1511 = vsel %vm288, %v1454, 0
        %v1514 = vsel %vm288, %v1455, 0
        %v1517 = vsel %vm288, %v1456, 0
        %v1520 = vsel %vm288, %v1457, 0
        %v1523 = vsel %vm288, %v1458, 0
        %v1526 = vsel %vm288, %v1459, 0
        %v1529 = vsel %vm288, %v1460, 0
        %v1532 = vsel %vm288, %v1461, 0
        %v1535 = vsel %vm288, %v1462, 0
        %v1538 = vsel %vm288, %v1463, 0
        %v1541 = vsel %vm288, %v1464, 0
        %v1544 = vsel %vm288, %v1465, 0
        %v1547 = vsel %vm288, %v1466, 0
        %v1550 = vsel %vm288, %v1467, 0
        %v1553 = vsel %vm288, %v1468, 0
        %v1556 = vsel %vm288, %v1469, 0
        %v1559 = vsel %vm288, %v1470, 0
        %v1562 = vsel %vm288, %v1471, 0
        %v1565 = vsel %vm288, %v1472, 0
        %v1568 = vsel %vm288, %v1473, 0
        %v1571 = vsel %vm288, %v1474, 0
        %v1574 = vsel %vm288, %v1475, 0
        %v1577 = vsel %vm288, %v1476, 0
        %v1580 = vsel %vm288, %v1477, 0
        %v1583 = vsel %vm288, %v1478, 0
        %v1586 = vsel %vm288, %v1479, 0
        %v1589 = vsel %vm288, %v1480, 0
        %v1592 = vsel %vm288, %v1481, 0
        %v1595 = vsel %vm288, %v1482, 0
        %v1598 = vsel %vm288, %v1483, 0
        %v1601 = vsel %vm288, %v1484, 0
        %v1604 = vsel %vm288, %v1485, 0
        %v1607 = vsel %vm288, %v1486, 0
        %v1610 = vsel %vm288, %v1487, 0
        %v1613 = vsel %vm288, %v1488, 0
        %v1616 = vsel %vm288, %v1489, 0
        %v1619 = vsel %vm288, %v1490, 0
        %v1622 = vsel %vm288, %v1491, 0
        %v1625 = vsel %vm288, %v1492, 0
        %v1628 = vsel %vm288, %v1493, 0
        %v1631 = vsel %vm288, %v1494, 0
        %v1634 = vsel %vm288, %v1495, 0
        %v1637 = vsel %vm288, %v1496, 0
        %v1640 = vsel %vm288, %v1497, 0
        %v1643 = vsel %vm288, %v1498, 0
        %v1646 = vsel %vm288, %v1499, 0
        %v1649 = vsel %vm288, %v1500, 0
        %v1652 = vsel %vm288, %v1501, 0
        %v1655 = vsel %vm288, %v1502, 0
        %v1658 = vsel %vm288, %v1503, 0
        %v1661 = vsel %vm288, %v1504, 0
        %v1664 = vsel %vm288, %v1505, 0
        %v1667 = vsel %vm288, %v1506, 0
        %v1670 = vsel %vm288, %v1507, 0
        %v1673 = vsel %vm451, %v1509, 0
        %1675 = vmatprep.subr.mxu0 0.0
        %1676 = vmatpush1.msra.mxu0 0.0
        %1677 = vmatprep.subr.mxu0 0.0
        %1678 = vmatpush1.msra.mxu0 0.0
        %1679 = vmatprep.subr.mxu0 0.0
        %1680 = vmatpush1.msra.mxu0 0.0
        %1681 = vmatprep.subr.mxu0 0.0
        %1682 = vmatpush1.msra.mxu0 0.0
        %1683 = vmatprep.subr.mxu0 0.0
        %1684 = vmatpush1.msra.mxu0 0.0
        %1685 = vmatprep.subr.mxu0 0.0
        %1686 = vmatpush1.msra.mxu0 0.0
        %1687 = vmatprep.subr.mxu0 0.0
        %1688 = vmatpush1.msra.mxu0 0.0
        %1689 = vmatprep.subr.mxu0 0.0
        %1690 = vmatpush1.msra.mxu0 0.0
        %1691 = vmatprep.subr.mxu0 0.0
        %1692 = vmatpush1.msra.mxu0 0.0
        %1693 = vmatprep.subr.mxu0 0.0
        %1694 = vmatpush1.msra.mxu0 0.0
        %1695 = vmatprep.subr.mxu0 0.0
        %1696 = vmatpush1.msra.mxu0 0.0
        %1697 = vmatprep.subr.mxu0 0.0
        %1698 = vmatpush1.msra.mxu0 0.0
        %1699 = vmatprep.subr.mxu0 0.0
        %1700 = vmatpush1.msra.mxu0 0.0
        %1701 = vmatprep.subr.mxu0 0.0
        %1702 = vmatpush1.msra.mxu0 0.0
        %1703 = vmatprep.subr.mxu0 0.0
        %1704 = vmatpush1.msra.mxu0 0.0
        %1705 = vmatprep.subr.mxu0 0.0
        %1706 = vmatpush1.msra.mxu0 %v1673
        %1707 = vmatprep.subr.mxu0 0.0
        %1708 = vmatpush2.msra.mxu0 0.0
        %1709 = vmatprep.subr.mxu0 0.0
        %1710 = vmatpush2.msra.mxu0 0.0
        %1711 = vmatprep.subr.mxu0 0.0
        %1712 = vmatpush2.msra.mxu0 0.0
        %1713 = vmatprep.subr.mxu0 0.0
        %1714 = vmatpush2.msra.mxu0 0.0
        %1715 = vmatprep.subr.mxu0 0.0
        %1716 = vmatpush2.msra.mxu0 0.0
        %1717 = vmatprep.subr.mxu0 0.0
        %1718 = vmatpush2.msra.mxu0 0.0
        %1719 = vmatprep.subr.mxu0 0.0
        %1720 = vmatpush2.msra.mxu0 0.0
        %1721 = vmatprep.subr.mxu0 0.0
        %1722 = vmatpush2.msra.mxu0 0.0
        %1723 = vmatprep.subr.mxu0 0.0
        %1724 = vmatpush2.msra.mxu0 0.0
        %1725 = vmatprep.subr.mxu0 0.0
        %1726 = vmatpush2.msra.mxu0 0.0
        %1727 = vmatprep.subr.mxu0 0.0
        %1728 = vmatpush2.msra.mxu0 0.0
        %1729 = vmatprep.subr.mxu0 0.0
        %1730 = vmatpush2.msra.mxu0 0.0
        %1731 = vmatprep.subr.mxu0 0.0
        %1732 = vmatpush2.msra.mxu0 0.0
        %1733 = vmatprep.subr.mxu0 0.0
        %1734 = vmatpush2.msra.mxu0 0.0
        %1735 = vmatprep.subr.mxu0 0.0
        %1736 = vmatpush2.msra.mxu0 0.0
        %1737 = vmatprep.subr.mxu0 0.0
        %1738 = vmatpush2.msra.mxu0 0.0
        %1739 = vmatprep.mubr.f32.mxu0 0.0
        %1740 = vmatmul.mubr.f32.gmra.mxu0 %v1511
        %v1741 = vpop.f32.mrf.mxu0
        %v1742 = vadd.f32 0.0, %v1741
        %v1743 = vpop.f32.mrf.mxu0
        %1744 = vmatprep.mubr.f32.mxu0 0.0
        %1745 = vmatmul.mubr.f32.gmra.mxu0 %v1514
        %v1746 = vpop.f32.mrf.mxu0
        %v1747 = vadd.f32 0.0, %v1746
        %v1748 = vpop.f32.mrf.mxu0
        %1749 = vmatprep.mubr.f32.mxu0 0.0
        %1750 = vmatmul.mubr.f32.gmra.mxu0 %v1517
        %v1751 = vpop.f32.mrf.mxu0
        %v1752 = vadd.f32 0.0, %v1751
        %v1753 = vpop.f32.mrf.mxu0
        %1754 = vmatprep.mubr.f32.mxu0 0.0
        %1755 = vmatmul.mubr.f32.gmra.mxu0 %v1520
        %v1756 = vpop.f32.mrf.mxu0
        %v1757 = vadd.f32 0.0, %v1756
        %v1758 = vpop.f32.mrf.mxu0
        %1759 = vmatprep.mubr.f32.mxu0 0.0
        %1760 = vmatmul.mubr.f32.gmra.mxu0 %v1523
        %v1761 = vpop.f32.mrf.mxu0
        %v1762 = vadd.f32 0.0, %v1761
        %v1763 = vpop.f32.mrf.mxu0
        %1764 = vmatprep.mubr.f32.mxu0 0.0
        %1765 = vmatmul.mubr.f32.gmra.mxu0 %v1526
        %v1766 = vpop.f32.mrf.mxu0
        %v1767 = vadd.f32 0.0, %v1766
        %v1768 = vpop.f32.mrf.mxu0
        %1769 = vmatprep.mubr.f32.mxu0 0.0
        %1770 = vmatmul.mubr.f32.gmra.mxu0 %v1529
        %v1771 = vpop.f32.mrf.mxu0
        %v1772 = vadd.f32 0.0, %v1771
        %v1773 = vpop.f32.mrf.mxu0
        %1774 = vmatprep.mubr.f32.mxu0 0.0
        %1775 = vmatmul.mubr.f32.gmra.mxu0 %v1532
        %v1776 = vpop.f32.mrf.mxu0
        %v1777 = vadd.f32 0.0, %v1776
        %v1778 = vpop.f32.mrf.mxu0
        %1779 = vmatprep.mubr.f32.mxu0 0.0
        %1780 = vmatmul.mubr.f32.gmra.mxu0 %v1535
        %v1781 = vpop.f32.mrf.mxu0
        %v1782 = vadd.f32 0.0, %v1781
        %v1783 = vpop.f32.mrf.mxu0
        %1784 = vmatprep.mubr.f32.mxu0 0.0
        %1785 = vmatmul.mubr.f32.gmra.mxu0 %v1538
        %v1786 = vpop.f32.mrf.mxu0
        %v1787 = vadd.f32 0.0, %v1786
        %v1788 = vpop.f32.mrf.mxu0
        %1789 = vmatprep.mubr.f32.mxu0 0.0
        %1790 = vmatmul.mubr.f32.gmra.mxu0 %v1541
        %v1791 = vpop.f32.mrf.mxu0
        %v1792 = vadd.f32 0.0, %v1791
        %v1793 = vpop.f32.mrf.mxu0
        %1794 = vmatprep.mubr.f32.mxu0 0.0
        %1795 = vmatmul.mubr.f32.gmra.mxu0 %v1544
        %v1796 = vpop.f32.mrf.mxu0
        %v1797 = vadd.f32 0.0, %v1796
        %v1798 = vpop.f32.mrf.mxu0
        %1799 = vmatprep.mubr.f32.mxu0 0.0
        %1800 = vmatmul.mubr.f32.gmra.mxu0 %v1547
        %v1801 = vpop.f32.mrf.mxu0
        %v1802 = vadd.f32 0.0, %v1801
        %v1803 = vpop.f32.mrf.mxu0
        %1804 = vmatprep.mubr.f32.mxu0 0.0
        %1805 = vmatmul.mubr.f32.gmra.mxu0 %v1550
        %v1806 = vpop.f32.mrf.mxu0
        %v1807 = vadd.f32 0.0, %v1806
        %v1808 = vpop.f32.mrf.mxu0
        %1809 = vmatprep.mubr.f32.mxu0 0.0
        %1810 = vmatmul.mubr.f32.gmra.mxu0 %v1553
        %v1811 = vpop.f32.mrf.mxu0
        %v1812 = vadd.f32 0.0, %v1811
        %v1813 = vpop.f32.mrf.mxu0
        %1814 = vmatprep.mubr.f32.mxu0 0.0
        %1815 = vmatmul.mubr.f32.gmra.mxu0 %v1556
        %v1816 = vpop.f32.mrf.mxu0
        %v1817 = vadd.f32 0.0, %v1816
        %v1818 = vpop.f32.mrf.mxu0
        %1819 = vmatprep.mubr.f32.mxu0 0.0
        %1820 = vmatmul.mubr.f32.gmra.mxu0 %v1559
        %v1821 = vpop.f32.mrf.mxu0
        %v1822 = vadd.f32 0.0, %v1821
        %v1823 = vpop.f32.mrf.mxu0
        %1824 = vmatprep.mubr.f32.mxu0 0.0
        %1825 = vmatmul.mubr.f32.gmra.mxu0 %v1562
        %v1826 = vpop.f32.mrf.mxu0
        %v1827 = vadd.f32 0.0, %v1826
        %v1828 = vpop.f32.mrf.mxu0
        %1829 = vmatprep.mubr.f32.mxu0 0.0
        %1830 = vmatmul.mubr.f32.gmra.mxu0 %v1565
        %v1831 = vpop.f32.mrf.mxu0
        %v1832 = vadd.f32 0.0, %v1831
        %v1833 = vpop.f32.mrf.mxu0
        %1834 = vmatprep.mubr.f32.mxu0 0.0
        %1835 = vmatmul.mubr.f32.gmra.mxu0 %v1568
        %v1836 = vpop.f32.mrf.mxu0
        %v1837 = vadd.f32 0.0, %v1836
        %v1838 = vpop.f32.mrf.mxu0
        %1839 = vmatprep.mubr.f32.mxu0 0.0
        %1840 = vmatmul.mubr.f32.gmra.mxu0 %v1571
        %v1841 = vpop.f32.mrf.mxu0
        %v1842 = vadd.f32 0.0, %v1841
        %v1843 = vpop.f32.mrf.mxu0
        %1844 = vmatprep.mubr.f32.mxu0 0.0
        %1845 = vmatmul.mubr.f32.gmra.mxu0 %v1574
        %v1846 = vpop.f32.mrf.mxu0
        %v1847 = vadd.f32 0.0, %v1846
        %v1848 = vpop.f32.mrf.mxu0
        %1849 = vmatprep.mubr.f32.mxu0 0.0
        %1850 = vmatmul.mubr.f32.gmra.mxu0 %v1577
        %v1851 = vpop.f32.mrf.mxu0
        %v1852 = vadd.f32 0.0, %v1851
        %v1853 = vpop.f32.mrf.mxu0
        %1854 = vmatprep.mubr.f32.mxu0 0.0
        %1855 = vmatmul.mubr.f32.gmra.mxu0 %v1580
        %v1856 = vpop.f32.mrf.mxu0
        %v1857 = vadd.f32 0.0, %v1856
        %v1858 = vpop.f32.mrf.mxu0
        %1859 = vmatprep.mubr.f32.mxu0 0.0
        %1860 = vmatmul.mubr.f32.gmra.mxu0 %v1583
        %v1861 = vpop.f32.mrf.mxu0
        %v1862 = vadd.f32 0.0, %v1861
        %v1863 = vpop.f32.mrf.mxu0
        %1864 = vmatprep.mubr.f32.mxu0 0.0
        %1865 = vmatmul.mubr.f32.gmra.mxu0 %v1586
        %v1866 = vpop.f32.mrf.mxu0
        %v1867 = vadd.f32 0.0, %v1866
        %v1868 = vpop.f32.mrf.mxu0
        %1869 = vmatprep.mubr.f32.mxu0 0.0
        %1870 = vmatmul.mubr.f32.gmra.mxu0 %v1589
        %v1871 = vpop.f32.mrf.mxu0
        %v1872 = vadd.f32 0.0, %v1871
        %v1873 = vpop.f32.mrf.mxu0
        %1874 = vmatprep.mubr.f32.mxu0 0.0
        %1875 = vmatmul.mubr.f32.gmra.mxu0 %v1592
        %v1876 = vpop.f32.mrf.mxu0
        %v1877 = vadd.f32 0.0, %v1876
        %v1878 = vpop.f32.mrf.mxu0
        %1879 = vmatprep.mubr.f32.mxu0 0.0
        %1880 = vmatmul.mubr.f32.gmra.mxu0 %v1595
        %v1881 = vpop.f32.mrf.mxu0
        %v1882 = vadd.f32 0.0, %v1881
        %v1883 = vpop.f32.mrf.mxu0
        %1884 = vmatprep.mubr.f32.mxu0 0.0
        %1885 = vmatmul.mubr.f32.gmra.mxu0 %v1598
        %v1886 = vpop.f32.mrf.mxu0
        %v1887 = vadd.f32 0.0, %v1886
        %v1888 = vpop.f32.mrf.mxu0
        %1889 = vmatprep.mubr.f32.mxu0 0.0
        %1890 = vmatmul.mubr.f32.gmra.mxu0 %v1601
        %v1891 = vpop.f32.mrf.mxu0
        %v1892 = vadd.f32 0.0, %v1891
        %v1893 = vpop.f32.mrf.mxu0
        %1894 = vmatprep.mubr.f32.mxu0 0.0
        %1895 = vmatmul.mubr.f32.gmra.mxu0 %v1604
        %v1896 = vpop.f32.mrf.mxu0
        %v1897 = vadd.f32 0.0, %v1896
        %v1898 = vpop.f32.mrf.mxu0
        %1899 = vmatprep.mubr.f32.mxu0 0.0
        %1900 = vmatmul.mubr.f32.gmra.mxu0 %v1607
        %v1901 = vpop.f32.mrf.mxu0
        %v1902 = vadd.f32 0.0, %v1901
        %v1903 = vpop.f32.mrf.mxu0
        %1904 = vmatprep.mubr.f32.mxu0 0.0
        %1905 = vmatmul.mubr.f32.gmra.mxu0 %v1610
        %v1906 = vpop.f32.mrf.mxu0
        %v1907 = vadd.f32 0.0, %v1906
        %v1908 = vpop.f32.mrf.mxu0
        %1909 = vmatprep.mubr.f32.mxu0 0.0
        %1910 = vmatmul.mubr.f32.gmra.mxu0 %v1613
        %v1911 = vpop.f32.mrf.mxu0
        %v1912 = vadd.f32 0.0, %v1911
        %v1913 = vpop.f32.mrf.mxu0
        %1914 = vmatprep.mubr.f32.mxu0 0.0
        %1915 = vmatmul.mubr.f32.gmra.mxu0 %v1616
        %v1916 = vpop.f32.mrf.mxu0
        %v1917 = vadd.f32 0.0, %v1916
        %v1918 = vpop.f32.mrf.mxu0
        %1919 = vmatprep.mubr.f32.mxu0 0.0
        %1920 = vmatmul.mubr.f32.gmra.mxu0 %v1619
        %v1921 = vpop.f32.mrf.mxu0
        %v1922 = vadd.f32 0.0, %v1921
        %v1923 = vpop.f32.mrf.mxu0
        %1924 = vmatprep.mubr.f32.mxu0 0.0
        %1925 = vmatmul.mubr.f32.gmra.mxu0 %v1622
        %v1926 = vpop.f32.mrf.mxu0
        %v1927 = vadd.f32 0.0, %v1926
        %v1928 = vpop.f32.mrf.mxu0
        %1929 = vmatprep.mubr.f32.mxu0 0.0
        %1930 = vmatmul.mubr.f32.gmra.mxu0 %v1625
        %v1931 = vpop.f32.mrf.mxu0
        %v1932 = vadd.f32 0.0, %v1931
        %v1933 = vpop.f32.mrf.mxu0
        %1934 = vmatprep.mubr.f32.mxu0 0.0
        %1935 = vmatmul.mubr.f32.gmra.mxu0 %v1628
        %v1936 = vpop.f32.mrf.mxu0
        %v1937 = vadd.f32 0.0, %v1936
        %v1938 = vpop.f32.mrf.mxu0
        %1939 = vmatprep.mubr.f32.mxu0 0.0
        %1940 = vmatmul.mubr.f32.gmra.mxu0 %v1631
        %v1941 = vpop.f32.mrf.mxu0
        %v1942 = vadd.f32 0.0, %v1941
        %v1943 = vpop.f32.mrf.mxu0
        %1944 = vmatprep.mubr.f32.mxu0 0.0
        %1945 = vmatmul.mubr.f32.gmra.mxu0 %v1634
        %v1946 = vpop.f32.mrf.mxu0
        %v1947 = vadd.f32 0.0, %v1946
        %v1948 = vpop.f32.mrf.mxu0
        %1949 = vmatprep.mubr.f32.mxu0 0.0
        %1950 = vmatmul.mubr.f32.gmra.mxu0 %v1637
        %v1951 = vpop.f32.mrf.mxu0
        %v1952 = vadd.f32 0.0, %v1951
        %v1953 = vpop.f32.mrf.mxu0
        %1954 = vmatprep.mubr.f32.mxu0 0.0
        %1955 = vmatmul.mubr.f32.gmra.mxu0 %v1640
        %v1956 = vpop.f32.mrf.mxu0
        %v1957 = vadd.f32 0.0, %v1956
        %v1958 = vpop.f32.mrf.mxu0
        %1959 = vmatprep.mubr.f32.mxu0 0.0
        %1960 = vmatmul.mubr.f32.gmra.mxu0 %v1643
        %v1961 = vpop.f32.mrf.mxu0
        %v1962 = vadd.f32 0.0, %v1961
        %v1963 = vpop.f32.mrf.mxu0
        %1964 = vmatprep.mubr.f32.mxu0 0.0
        %1965 = vmatmul.mubr.f32.gmra.mxu0 %v1646
        %v1966 = vpop.f32.mrf.mxu0
        %v1967 = vadd.f32 0.0, %v1966
        %v1968 = vpop.f32.mrf.mxu0
        %1969 = vmatprep.mubr.f32.mxu0 0.0
        %1970 = vmatmul.mubr.f32.gmra.mxu0 %v1649
        %v1971 = vpop.f32.mrf.mxu0
        %v1972 = vadd.f32 0.0, %v1971
        %v1973 = vpop.f32.mrf.mxu0
        %1974 = vmatprep.mubr.f32.mxu0 0.0
        %1975 = vmatmul.mubr.f32.gmra.mxu0 %v1652
        %v1976 = vpop.f32.mrf.mxu0
        %v1977 = vadd.f32 0.0, %v1976
        %v1978 = vpop.f32.mrf.mxu0
        %1979 = vmatprep.mubr.f32.mxu0 0.0
        %1980 = vmatmul.mubr.f32.gmra.mxu0 %v1655
        %v1981 = vpop.f32.mrf.mxu0
        %v1982 = vadd.f32 0.0, %v1981
        %v1983 = vpop.f32.mrf.mxu0
        %1984 = vmatprep.mubr.f32.mxu0 0.0
        %1985 = vmatmul.mubr.f32.gmra.mxu0 %v1658
        %v1986 = vpop.f32.mrf.mxu0
        %v1987 = vadd.f32 0.0, %v1986
        %v1988 = vpop.f32.mrf.mxu0
        %1989 = vmatprep.mubr.f32.mxu0 0.0
        %1990 = vmatmul.mubr.f32.gmra.mxu0 %v1661
        %v1991 = vpop.f32.mrf.mxu0
        %v1992 = vadd.f32 0.0, %v1991
        %v1993 = vpop.f32.mrf.mxu0
        %1994 = vmatprep.mubr.f32.mxu0 0.0
        %1995 = vmatmul.mubr.f32.gmra.mxu0 %v1664
        %v1996 = vpop.f32.mrf.mxu0
        %v1997 = vadd.f32 0.0, %v1996
        %v1998 = vpop.f32.mrf.mxu0
        %1999 = vmatprep.mubr.f32.mxu0 0.0
        %2000 = vmatmul.mubr.f32.gmra.mxu0 %v1667
        %v2001 = vpop.f32.mrf.mxu0
        %v2002 = vadd.f32 0.0, %v2001
        %v2003 = vpop.f32.mrf.mxu0
        %2004 = vmatprep.mubr.f32.mxu0 0.0
        %2005 = vmatmul.mubr.f32.gmra.mxu0 %v1670
        %v2006 = vpop.f32.mrf.mxu0
        %v2007 = vadd.f32 0.0, %v2006
        %v2008 = vpop.f32.mrf.mxu0
        %2009 = vdwg.mxu0
        %v2010 = vadd.f32 %v1400, %v1742
        %v2011 = vadd.f32 %v1401, %v1747
        %v2012 = vadd.f32 %v1402, %v1752
        %v2013 = vadd.f32 %v1403, %v1757
        %v2014 = vadd.f32 %v1404, %v1762
        %v2015 = vadd.f32 %v1405, %v1767
        %v2016 = vadd.f32 %v1406, %v1772
        %v2017 = vadd.f32 %v1407, %v1777
        %v2018 = vadd.f32 %v1408, %v1782
        %v2019 = vadd.f32 %v1409, %v1787
        %v2020 = vadd.f32 %v1410, %v1792
        %v2021 = vadd.f32 %v1411, %v1797
        %v2022 = vadd.f32 %v1412, %v1802
        %v2023 = vadd.f32 %v1413, %v1807
        %v2024 = vadd.f32 %v1414, %v1812
        %v2025 = vadd.f32 %v1415, %v1817
        %v2026 = vadd.f32 %v1416, %v1822
        %v2027 = vadd.f32 %v1417, %v1827
        %v2028 = vadd.f32 %v1418, %v1832
        %v2029 = vadd.f32 %v1419, %v1837
        %v2030 = vadd.f32 %v1420, %v1842
        %v2031 = vadd.f32 %v1421, %v1847
        %v2032 = vadd.f32 %v1422, %v1852
        %v2033 = vadd.f32 %v1423, %v1857
        %v2034 = vadd.f32 %v1424, %v1862
        %v2035 = vadd.f32 %v1425, %v1867
        %v2036 = vadd.f32 %v1426, %v1872
        %v2037 = vadd.f32 %v1427, %v1877
        %v2038 = vadd.f32 %v1428, %v1882
        %v2039 = vadd.f32 %v1429, %v1887
        %v2040 = vadd.f32 %v1430, %v1892
        %v2041 = vadd.f32 %v1431, %v1897
        %v2042 = vadd.f32 %v1432, %v1902
        %v2043 = vadd.f32 %v1433, %v1907
        %v2044 = vadd.f32 %v1434, %v1912
        %v2045 = vadd.f32 %v1435, %v1917
        %v2046 = vadd.f32 %v1436, %v1922
        %v2047 = vadd.f32 %v1437, %v1927
        %v2048 = vadd.f32 %v1438, %v1932
        %v2049 = vadd.f32 %v1439, %v1937
        %v2050 = vadd.f32 %v1440, %v1942
        %v2051 = vadd.f32 %v1441, %v1947
        %v2052 = vadd.f32 %v1442, %v1952
        %v2053 = vadd.f32 %v1443, %v1957
        %v2054 = vadd.f32 %v1444, %v1962
        %v2055 = vadd.f32 %v1445, %v1967
        %v2056 = vadd.f32 %v1446, %v1972
        %v2057 = vadd.f32 %v1447, %v1977
        %v2058 = vadd.f32 %v1448, %v1982
        %v2059 = vadd.f32 %v1449, %v1987
        %v2060 = vadd.f32 %v1450, %v1992
        %v2061 = vadd.f32 %v1451, %v1997
        %v2062 = vadd.f32 %v1452, %v2002
        %v2063 = vadd.f32 %v1453, %v2007
        %s2064 = scalar_lea.vmem %s224, 32
        %v2065 = vld [vmem:[%s2064] sm:$0xff]
        %v2066 = vld [vmem:[%s2064 + $0x8] sm:$0xff]
        %v2067 = vld [vmem:[%s2064 + $0x10] sm:$0xff]
        %v2068 = vld [vmem:[%s2064 + $0x20] sm:$0xff]
        %v2069 = vld [vmem:[%s2064 + $0x28] sm:$0xff]
        %v2070 = vld [vmem:[%s2064 + $0x30] sm:$0xff]
        %v2071 = vld [vmem:[%s2064 + $0x40] sm:$0xff]
        %v2072 = vld [vmem:[%s2064 + $0x48] sm:$0xff]
        %v2073 = vld [vmem:[%s2064 + $0x50] sm:$0xff]
        %v2074 = vld [vmem:[%s2064 + $0x60] sm:$0xff]
        %v2075 = vld [vmem:[%s2064 + $0x68] sm:$0xff]
        %v2076 = vld [vmem:[%s2064 + $0x70] sm:$0xff]
        %v2077 = vld [vmem:[%s2064 + $0x80] sm:$0xff]
        %v2078 = vld [vmem:[%s2064 + $0x88] sm:$0xff]
        %v2079 = vld [vmem:[%s2064 + $0x90] sm:$0xff]
        %v2080 = vld [vmem:[%s2064 + $0xa0] sm:$0xff]
        %v2081 = vld [vmem:[%s2064 + $0xa8] sm:$0xff]
        %v2082 = vld [vmem:[%s2064 + $0xb0] sm:$0xff]
        %v2083 = vld [vmem:[%s2064 + $0xc0] sm:$0xff]
        %v2084 = vld [vmem:[%s2064 + $0xc8] sm:$0xff]
        %v2085 = vld [vmem:[%s2064 + $0xd0] sm:$0xff]
        %v2086 = vld [vmem:[%s2064 + $0xe0] sm:$0xff]
        %v2087 = vld [vmem:[%s2064 + $0xe8] sm:$0xff]
        %v2088 = vld [vmem:[%s2064 + $0xf0] sm:$0xff]
        %v2089 = vld [vmem:[%s2064 + $0x100] sm:$0xff]
        %v2090 = vld [vmem:[%s2064 + $0x108] sm:$0xff]
        %v2091 = vld [vmem:[%s2064 + $0x110] sm:$0xff]
        %v2092 = vld [vmem:[%s2064 + $0x120] sm:$0xff]
        %v2093 = vld [vmem:[%s2064 + $0x128] sm:$0xff]
        %v2094 = vld [vmem:[%s2064 + $0x130] sm:$0xff]
        %v2095 = vld [vmem:[%s2064 + $0x140] sm:$0xff]
        %v2096 = vld [vmem:[%s2064 + $0x148] sm:$0xff]
        %v2097 = vld [vmem:[%s2064 + $0x150] sm:$0xff]
        %v2098 = vld [vmem:[%s2064 + $0x160] sm:$0xff]
        %v2099 = vld [vmem:[%s2064 + $0x168] sm:$0xff]
        %v2100 = vld [vmem:[%s2064 + $0x170] sm:$0xff]
        %v2101 = vld [vmem:[%s2064 + $0x180] sm:$0xff]
        %v2102 = vld [vmem:[%s2064 + $0x188] sm:$0xff]
        %v2103 = vld [vmem:[%s2064 + $0x190] sm:$0xff]
        %v2104 = vld [vmem:[%s2064 + $0x1a0] sm:$0xff]
        %v2105 = vld [vmem:[%s2064 + $0x1a8] sm:$0xff]
        %v2106 = vld [vmem:[%s2064 + $0x1b0] sm:$0xff]
        %v2107 = vld [vmem:[%s2064 + $0x1c0] sm:$0xff]
        %v2108 = vld [vmem:[%s2064 + $0x1c8] sm:$0xff]
        %v2109 = vld [vmem:[%s2064 + $0x1d0] sm:$0xff]
        %v2110 = vld [vmem:[%s2064 + $0x1e0] sm:$0xff]
        %v2111 = vld [vmem:[%s2064 + $0x1e8] sm:$0xff]
        %v2112 = vld [vmem:[%s2064 + $0x1f0] sm:$0xff]
        %v2113 = vld [vmem:[%s2064 + $0x200] sm:$0xff]
        %v2114 = vld [vmem:[%s2064 + $0x208] sm:$0xff]
        %v2115 = vld [vmem:[%s2064 + $0x210] sm:$0xff]
        %v2116 = vld [vmem:[%s2064 + $0x220] sm:$0xff]
        %v2117 = vld [vmem:[%s2064 + $0x228] sm:$0xff]
        %v2118 = vld [vmem:[%s2064 + $0x230] sm:$0xff]
        %s2119 = scalar_lea.vmem %s1, 12
        %v2120 = vld [vmem:[%s2119] sm:$0x7]
        %v2122 = vsel %vm288, %v2065, 0
        %v2125 = vsel %vm288, %v2066, 0
        %v2128 = vsel %vm288, %v2067, 0
        %v2131 = vsel %vm288, %v2068, 0
        %v2134 = vsel %vm288, %v2069, 0
        %v2137 = vsel %vm288, %v2070, 0
        %v2140 = vsel %vm288, %v2071, 0
        %v2143 = vsel %vm288, %v2072, 0
        %v2146 = vsel %vm288, %v2073, 0
        %v2149 = vsel %vm288, %v2074, 0
        %v2152 = vsel %vm288, %v2075, 0
        %v2155 = vsel %vm288, %v2076, 0
        %v2158 = vsel %vm288, %v2077, 0
        %v2161 = vsel %vm288, %v2078, 0
        %v2164 = vsel %vm288, %v2079, 0
        %v2167 = vsel %vm288, %v2080, 0
        %v2170 = vsel %vm288, %v2081, 0
        %v2173 = vsel %vm288, %v2082, 0
        %v2176 = vsel %vm288, %v2083, 0
        %v2179 = vsel %vm288, %v2084, 0
        %v2182 = vsel %vm288, %v2085, 0
        %v2185 = vsel %vm288, %v2086, 0
        %v2188 = vsel %vm288, %v2087, 0
        %v2191 = vsel %vm288, %v2088, 0
        %v2194 = vsel %vm288, %v2089, 0
        %v2197 = vsel %vm288, %v2090, 0
        %v2200 = vsel %vm288, %v2091, 0
        %v2203 = vsel %vm288, %v2092, 0
        %v2206 = vsel %vm288, %v2093, 0
        %v2209 = vsel %vm288, %v2094, 0
        %v2212 = vsel %vm288, %v2095, 0
        %v2215 = vsel %vm288, %v2096, 0
        %v2218 = vsel %vm288, %v2097, 0
        %v2221 = vsel %vm288, %v2098, 0
        %v2224 = vsel %vm288, %v2099, 0
        %v2227 = vsel %vm288, %v2100, 0
        %v2230 = vsel %vm288, %v2101, 0
        %v2233 = vsel %vm288, %v2102, 0
        %v2236 = vsel %vm288, %v2103, 0
        %v2239 = vsel %vm288, %v2104, 0
        %v2242 = vsel %vm288, %v2105, 0
        %v2245 = vsel %vm288, %v2106, 0
        %v2248 = vsel %vm288, %v2107, 0
        %v2251 = vsel %vm288, %v2108, 0
        %v2254 = vsel %vm288, %v2109, 0
        %v2257 = vsel %vm288, %v2110, 0
        %v2260 = vsel %vm288, %v2111, 0
        %v2263 = vsel %vm288, %v2112, 0
        %v2266 = vsel %vm288, %v2113, 0
        %v2269 = vsel %vm288, %v2114, 0
        %v2272 = vsel %vm288, %v2115, 0
        %v2275 = vsel %vm288, %v2116, 0
        %v2278 = vsel %vm288, %v2117, 0
        %v2281 = vsel %vm288, %v2118, 0
        %v2284 = vsel %vm451, %v2120, 0
        %2286 = vmatprep.subr.mxu0 0.0
        %2287 = vmatpush1.msra.mxu0 0.0
        %2288 = vmatprep.subr.mxu0 0.0
        %2289 = vmatpush1.msra.mxu0 0.0
        %2290 = vmatprep.subr.mxu0 0.0
        %2291 = vmatpush1.msra.mxu0 0.0
        %2292 = vmatprep.subr.mxu0 0.0
        %2293 = vmatpush1.msra.mxu0 0.0
        %2294 = vmatprep.subr.mxu0 0.0
        %2295 = vmatpush1.msra.mxu0 0.0
        %2296 = vmatprep.subr.mxu0 0.0
        %2297 = vmatpush1.msra.mxu0 0.0
        %2298 = vmatprep.subr.mxu0 0.0
        %2299 = vmatpush1.msra.mxu0 0.0
        %2300 = vmatprep.subr.mxu0 0.0
        %2301 = vmatpush1.msra.mxu0 0.0
        %2302 = vmatprep.subr.mxu0 0.0
        %2303 = vmatpush1.msra.mxu0 0.0
        %2304 = vmatprep.subr.mxu0 0.0
        %2305 = vmatpush1.msra.mxu0 0.0
        %2306 = vmatprep.subr.mxu0 0.0
        %2307 = vmatpush1.msra.mxu0 0.0
        %2308 = vmatprep.subr.mxu0 0.0
        %2309 = vmatpush1.msra.mxu0 0.0
        %2310 = vmatprep.subr.mxu0 0.0
        %2311 = vmatpush1.msra.mxu0 0.0
        %2312 = vmatprep.subr.mxu0 0.0
        %2313 = vmatpush1.msra.mxu0 0.0
        %2314 = vmatprep.subr.mxu0 0.0
        %2315 = vmatpush1.msra.mxu0 0.0
        %2316 = vmatprep.subr.mxu0 0.0
        %2317 = vmatpush1.msra.mxu0 %v2284
        %2318 = vmatprep.subr.mxu0 0.0
        %2319 = vmatpush2.msra.mxu0 0.0
        %2320 = vmatprep.subr.mxu0 0.0
        %2321 = vmatpush2.msra.mxu0 0.0
        %2322 = vmatprep.subr.mxu0 0.0
        %2323 = vmatpush2.msra.mxu0 0.0
        %2324 = vmatprep.subr.mxu0 0.0
        %2325 = vmatpush2.msra.mxu0 0.0
        %2326 = vmatprep.subr.mxu0 0.0
        %2327 = vmatpush2.msra.mxu0 0.0
        %2328 = vmatprep.subr.mxu0 0.0
        %2329 = vmatpush2.msra.mxu0 0.0
        %2330 = vmatprep.subr.mxu0 0.0
        %2331 = vmatpush2.msra.mxu0 0.0
        %2332 = vmatprep.subr.mxu0 0.0
        %2333 = vmatpush2.msra.mxu0 0.0
        %2334 = vmatprep.subr.mxu0 0.0
        %2335 = vmatpush2.msra.mxu0 0.0
        %2336 = vmatprep.subr.mxu0 0.0
        %2337 = vmatpush2.msra.mxu0 0.0
        %2338 = vmatprep.subr.mxu0 0.0
        %2339 = vmatpush2.msra.mxu0 0.0
        %2340 = vmatprep.subr.mxu0 0.0
        %2341 = vmatpush2.msra.mxu0 0.0
        %2342 = vmatprep.subr.mxu0 0.0
        %2343 = vmatpush2.msra.mxu0 0.0
        %2344 = vmatprep.subr.mxu0 0.0
        %2345 = vmatpush2.msra.mxu0 0.0
        %2346 = vmatprep.subr.mxu0 0.0
        %2347 = vmatpush2.msra.mxu0 0.0
        %2348 = vmatprep.subr.mxu0 0.0
        %2349 = vmatpush2.msra.mxu0 0.0
        %2350 = vmatprep.mubr.f32.mxu0 0.0
        %2351 = vmatmul.mubr.f32.gmra.mxu0 %v2122
        %v2352 = vpop.f32.mrf.mxu0
        %v2353 = vadd.f32 0.0, %v2352
        %v2354 = vpop.f32.mrf.mxu0
        %2355 = vmatprep.mubr.f32.mxu0 0.0
        %2356 = vmatmul.mubr.f32.gmra.mxu0 %v2125
        %v2357 = vpop.f32.mrf.mxu0
        %v2358 = vadd.f32 0.0, %v2357
        %v2359 = vpop.f32.mrf.mxu0
        %2360 = vmatprep.mubr.f32.mxu0 0.0
        %2361 = vmatmul.mubr.f32.gmra.mxu0 %v2128
        %v2362 = vpop.f32.mrf.mxu0
        %v2363 = vadd.f32 0.0, %v2362
        %v2364 = vpop.f32.mrf.mxu0
        %2365 = vmatprep.mubr.f32.mxu0 0.0
        %2366 = vmatmul.mubr.f32.gmra.mxu0 %v2131
        %v2367 = vpop.f32.mrf.mxu0
        %v2368 = vadd.f32 0.0, %v2367
        %v2369 = vpop.f32.mrf.mxu0
        %2370 = vmatprep.mubr.f32.mxu0 0.0
        %2371 = vmatmul.mubr.f32.gmra.mxu0 %v2134
        %v2372 = vpop.f32.mrf.mxu0
        %v2373 = vadd.f32 0.0, %v2372
        %v2374 = vpop.f32.mrf.mxu0
        %2375 = vmatprep.mubr.f32.mxu0 0.0
        %2376 = vmatmul.mubr.f32.gmra.mxu0 %v2137
        %v2377 = vpop.f32.mrf.mxu0
        %v2378 = vadd.f32 0.0, %v2377
        %v2379 = vpop.f32.mrf.mxu0
        %2380 = vmatprep.mubr.f32.mxu0 0.0
        %2381 = vmatmul.mubr.f32.gmra.mxu0 %v2140
        %v2382 = vpop.f32.mrf.mxu0
        %v2383 = vadd.f32 0.0, %v2382
        %v2384 = vpop.f32.mrf.mxu0
        %2385 = vmatprep.mubr.f32.mxu0 0.0
        %2386 = vmatmul.mubr.f32.gmra.mxu0 %v2143
        %v2387 = vpop.f32.mrf.mxu0
        %v2388 = vadd.f32 0.0, %v2387
        %v2389 = vpop.f32.mrf.mxu0
        %2390 = vmatprep.mubr.f32.mxu0 0.0
        %2391 = vmatmul.mubr.f32.gmra.mxu0 %v2146
        %v2392 = vpop.f32.mrf.mxu0
        %v2393 = vadd.f32 0.0, %v2392
        %v2394 = vpop.f32.mrf.mxu0
        %2395 = vmatprep.mubr.f32.mxu0 0.0
        %2396 = vmatmul.mubr.f32.gmra.mxu0 %v2149
        %v2397 = vpop.f32.mrf.mxu0
        %v2398 = vadd.f32 0.0, %v2397
        %v2399 = vpop.f32.mrf.mxu0
        %2400 = vmatprep.mubr.f32.mxu0 0.0
        %2401 = vmatmul.mubr.f32.gmra.mxu0 %v2152
        %v2402 = vpop.f32.mrf.mxu0
        %v2403 = vadd.f32 0.0, %v2402
        %v2404 = vpop.f32.mrf.mxu0
        %2405 = vmatprep.mubr.f32.mxu0 0.0
        %2406 = vmatmul.mubr.f32.gmra.mxu0 %v2155
        %v2407 = vpop.f32.mrf.mxu0
        %v2408 = vadd.f32 0.0, %v2407
        %v2409 = vpop.f32.mrf.mxu0
        %2410 = vmatprep.mubr.f32.mxu0 0.0
        %2411 = vmatmul.mubr.f32.gmra.mxu0 %v2158
        %v2412 = vpop.f32.mrf.mxu0
        %v2413 = vadd.f32 0.0, %v2412
        %v2414 = vpop.f32.mrf.mxu0
        %2415 = vmatprep.mubr.f32.mxu0 0.0
        %2416 = vmatmul.mubr.f32.gmra.mxu0 %v2161
        %v2417 = vpop.f32.mrf.mxu0
        %v2418 = vadd.f32 0.0, %v2417
        %v2419 = vpop.f32.mrf.mxu0
        %2420 = vmatprep.mubr.f32.mxu0 0.0
        %2421 = vmatmul.mubr.f32.gmra.mxu0 %v2164
        %v2422 = vpop.f32.mrf.mxu0
        %v2423 = vadd.f32 0.0, %v2422
        %v2424 = vpop.f32.mrf.mxu0
        %2425 = vmatprep.mubr.f32.mxu0 0.0
        %2426 = vmatmul.mubr.f32.gmra.mxu0 %v2167
        %v2427 = vpop.f32.mrf.mxu0
        %v2428 = vadd.f32 0.0, %v2427
        %v2429 = vpop.f32.mrf.mxu0
        %2430 = vmatprep.mubr.f32.mxu0 0.0
        %2431 = vmatmul.mubr.f32.gmra.mxu0 %v2170
        %v2432 = vpop.f32.mrf.mxu0
        %v2433 = vadd.f32 0.0, %v2432
        %v2434 = vpop.f32.mrf.mxu0
        %2435 = vmatprep.mubr.f32.mxu0 0.0
        %2436 = vmatmul.mubr.f32.gmra.mxu0 %v2173
        %v2437 = vpop.f32.mrf.mxu0
        %v2438 = vadd.f32 0.0, %v2437
        %v2439 = vpop.f32.mrf.mxu0
        %2440 = vmatprep.mubr.f32.mxu0 0.0
        %2441 = vmatmul.mubr.f32.gmra.mxu0 %v2176
        %v2442 = vpop.f32.mrf.mxu0
        %v2443 = vadd.f32 0.0, %v2442
        %v2444 = vpop.f32.mrf.mxu0
        %2445 = vmatprep.mubr.f32.mxu0 0.0
        %2446 = vmatmul.mubr.f32.gmra.mxu0 %v2179
        %v2447 = vpop.f32.mrf.mxu0
        %v2448 = vadd.f32 0.0, %v2447
        %v2449 = vpop.f32.mrf.mxu0
        %2450 = vmatprep.mubr.f32.mxu0 0.0
        %2451 = vmatmul.mubr.f32.gmra.mxu0 %v2182
        %v2452 = vpop.f32.mrf.mxu0
        %v2453 = vadd.f32 0.0, %v2452
        %v2454 = vpop.f32.mrf.mxu0
        %2455 = vmatprep.mubr.f32.mxu0 0.0
        %2456 = vmatmul.mubr.f32.gmra.mxu0 %v2185
        %v2457 = vpop.f32.mrf.mxu0
        %v2458 = vadd.f32 0.0, %v2457
        %v2459 = vpop.f32.mrf.mxu0
        %2460 = vmatprep.mubr.f32.mxu0 0.0
        %2461 = vmatmul.mubr.f32.gmra.mxu0 %v2188
        %v2462 = vpop.f32.mrf.mxu0
        %v2463 = vadd.f32 0.0, %v2462
        %v2464 = vpop.f32.mrf.mxu0
        %2465 = vmatprep.mubr.f32.mxu0 0.0
        %2466 = vmatmul.mubr.f32.gmra.mxu0 %v2191
        %v2467 = vpop.f32.mrf.mxu0
        %v2468 = vadd.f32 0.0, %v2467
        %v2469 = vpop.f32.mrf.mxu0
        %2470 = vmatprep.mubr.f32.mxu0 0.0
        %2471 = vmatmul.mubr.f32.gmra.mxu0 %v2194
        %v2472 = vpop.f32.mrf.mxu0
        %v2473 = vadd.f32 0.0, %v2472
        %v2474 = vpop.f32.mrf.mxu0
        %2475 = vmatprep.mubr.f32.mxu0 0.0
        %2476 = vmatmul.mubr.f32.gmra.mxu0 %v2197
        %v2477 = vpop.f32.mrf.mxu0
        %v2478 = vadd.f32 0.0, %v2477
        %v2479 = vpop.f32.mrf.mxu0
        %2480 = vmatprep.mubr.f32.mxu0 0.0
        %2481 = vmatmul.mubr.f32.gmra.mxu0 %v2200
        %v2482 = vpop.f32.mrf.mxu0
        %v2483 = vadd.f32 0.0, %v2482
        %v2484 = vpop.f32.mrf.mxu0
        %2485 = vmatprep.mubr.f32.mxu0 0.0
        %2486 = vmatmul.mubr.f32.gmra.mxu0 %v2203
        %v2487 = vpop.f32.mrf.mxu0
        %v2488 = vadd.f32 0.0, %v2487
        %v2489 = vpop.f32.mrf.mxu0
        %2490 = vmatprep.mubr.f32.mxu0 0.0
        %2491 = vmatmul.mubr.f32.gmra.mxu0 %v2206
        %v2492 = vpop.f32.mrf.mxu0
        %v2493 = vadd.f32 0.0, %v2492
        %v2494 = vpop.f32.mrf.mxu0
        %2495 = vmatprep.mubr.f32.mxu0 0.0
        %2496 = vmatmul.mubr.f32.gmra.mxu0 %v2209
        %v2497 = vpop.f32.mrf.mxu0
        %v2498 = vadd.f32 0.0, %v2497
        %v2499 = vpop.f32.mrf.mxu0
        %2500 = vmatprep.mubr.f32.mxu0 0.0
        %2501 = vmatmul.mubr.f32.gmra.mxu0 %v2212
        %v2502 = vpop.f32.mrf.mxu0
        %v2503 = vadd.f32 0.0, %v2502
        %v2504 = vpop.f32.mrf.mxu0
        %2505 = vmatprep.mubr.f32.mxu0 0.0
        %2506 = vmatmul.mubr.f32.gmra.mxu0 %v2215
        %v2507 = vpop.f32.mrf.mxu0
        %v2508 = vadd.f32 0.0, %v2507
        %v2509 = vpop.f32.mrf.mxu0
        %2510 = vmatprep.mubr.f32.mxu0 0.0
        %2511 = vmatmul.mubr.f32.gmra.mxu0 %v2218
        %v2512 = vpop.f32.mrf.mxu0
        %v2513 = vadd.f32 0.0, %v2512
        %v2514 = vpop.f32.mrf.mxu0
        %2515 = vmatprep.mubr.f32.mxu0 0.0
        %2516 = vmatmul.mubr.f32.gmra.mxu0 %v2221
        %v2517 = vpop.f32.mrf.mxu0
        %v2518 = vadd.f32 0.0, %v2517
        %v2519 = vpop.f32.mrf.mxu0
        %2520 = vmatprep.mubr.f32.mxu0 0.0
        %2521 = vmatmul.mubr.f32.gmra.mxu0 %v2224
        %v2522 = vpop.f32.mrf.mxu0
        %v2523 = vadd.f32 0.0, %v2522
        %v2524 = vpop.f32.mrf.mxu0
        %2525 = vmatprep.mubr.f32.mxu0 0.0
        %2526 = vmatmul.mubr.f32.gmra.mxu0 %v2227
        %v2527 = vpop.f32.mrf.mxu0
        %v2528 = vadd.f32 0.0, %v2527
        %v2529 = vpop.f32.mrf.mxu0
        %2530 = vmatprep.mubr.f32.mxu0 0.0
        %2531 = vmatmul.mubr.f32.gmra.mxu0 %v2230
        %v2532 = vpop.f32.mrf.mxu0
        %v2533 = vadd.f32 0.0, %v2532
        %v2534 = vpop.f32.mrf.mxu0
        %2535 = vmatprep.mubr.f32.mxu0 0.0
        %2536 = vmatmul.mubr.f32.gmra.mxu0 %v2233
        %v2537 = vpop.f32.mrf.mxu0
        %v2538 = vadd.f32 0.0, %v2537
        %v2539 = vpop.f32.mrf.mxu0
        %2540 = vmatprep.mubr.f32.mxu0 0.0
        %2541 = vmatmul.mubr.f32.gmra.mxu0 %v2236
        %v2542 = vpop.f32.mrf.mxu0
        %v2543 = vadd.f32 0.0, %v2542
        %v2544 = vpop.f32.mrf.mxu0
        %2545 = vmatprep.mubr.f32.mxu0 0.0
        %2546 = vmatmul.mubr.f32.gmra.mxu0 %v2239
        %v2547 = vpop.f32.mrf.mxu0
        %v2548 = vadd.f32 0.0, %v2547
        %v2549 = vpop.f32.mrf.mxu0
        %2550 = vmatprep.mubr.f32.mxu0 0.0
        %2551 = vmatmul.mubr.f32.gmra.mxu0 %v2242
        %v2552 = vpop.f32.mrf.mxu0
        %v2553 = vadd.f32 0.0, %v2552
        %v2554 = vpop.f32.mrf.mxu0
        %2555 = vmatprep.mubr.f32.mxu0 0.0
        %2556 = vmatmul.mubr.f32.gmra.mxu0 %v2245
        %v2557 = vpop.f32.mrf.mxu0
        %v2558 = vadd.f32 0.0, %v2557
        %v2559 = vpop.f32.mrf.mxu0
        %2560 = vmatprep.mubr.f32.mxu0 0.0
        %2561 = vmatmul.mubr.f32.gmra.mxu0 %v2248
        %v2562 = vpop.f32.mrf.mxu0
        %v2563 = vadd.f32 0.0, %v2562
        %v2564 = vpop.f32.mrf.mxu0
        %2565 = vmatprep.mubr.f32.mxu0 0.0
        %2566 = vmatmul.mubr.f32.gmra.mxu0 %v2251
        %v2567 = vpop.f32.mrf.mxu0
        %v2568 = vadd.f32 0.0, %v2567
        %v2569 = vpop.f32.mrf.mxu0
        %2570 = vmatprep.mubr.f32.mxu0 0.0
        %2571 = vmatmul.mubr.f32.gmra.mxu0 %v2254
        %v2572 = vpop.f32.mrf.mxu0
        %v2573 = vadd.f32 0.0, %v2572
        %v2574 = vpop.f32.mrf.mxu0
        %2575 = vmatprep.mubr.f32.mxu0 0.0
        %2576 = vmatmul.mubr.f32.gmra.mxu0 %v2257
        %v2577 = vpop.f32.mrf.mxu0
        %v2578 = vadd.f32 0.0, %v2577
        %v2579 = vpop.f32.mrf.mxu0
        %2580 = vmatprep.mubr.f32.mxu0 0.0
        %2581 = vmatmul.mubr.f32.gmra.mxu0 %v2260
        %v2582 = vpop.f32.mrf.mxu0
        %v2583 = vadd.f32 0.0, %v2582
        %v2584 = vpop.f32.mrf.mxu0
        %2585 = vmatprep.mubr.f32.mxu0 0.0
        %2586 = vmatmul.mubr.f32.gmra.mxu0 %v2263
        %v2587 = vpop.f32.mrf.mxu0
        %v2588 = vadd.f32 0.0, %v2587
        %v2589 = vpop.f32.mrf.mxu0
        %2590 = vmatprep.mubr.f32.mxu0 0.0
        %2591 = vmatmul.mubr.f32.gmra.mxu0 %v2266
        %v2592 = vpop.f32.mrf.mxu0
        %v2593 = vadd.f32 0.0, %v2592
        %v2594 = vpop.f32.mrf.mxu0
        %2595 = vmatprep.mubr.f32.mxu0 0.0
        %2596 = vmatmul.mubr.f32.gmra.mxu0 %v2269
        %v2597 = vpop.f32.mrf.mxu0
        %v2598 = vadd.f32 0.0, %v2597
        %v2599 = vpop.f32.mrf.mxu0
        %2600 = vmatprep.mubr.f32.mxu0 0.0
        %2601 = vmatmul.mubr.f32.gmra.mxu0 %v2272
        %v2602 = vpop.f32.mrf.mxu0
        %v2603 = vadd.f32 0.0, %v2602
        %v2604 = vpop.f32.mrf.mxu0
        %2605 = vmatprep.mubr.f32.mxu0 0.0
        %2606 = vmatmul.mubr.f32.gmra.mxu0 %v2275
        %v2607 = vpop.f32.mrf.mxu0
        %v2608 = vadd.f32 0.0, %v2607
        %v2609 = vpop.f32.mrf.mxu0
        %2610 = vmatprep.mubr.f32.mxu0 0.0
        %2611 = vmatmul.mubr.f32.gmra.mxu0 %v2278
        %v2612 = vpop.f32.mrf.mxu0
        %v2613 = vadd.f32 0.0, %v2612
        %v2614 = vpop.f32.mrf.mxu0
        %2615 = vmatprep.mubr.f32.mxu0 0.0
        %2616 = vmatmul.mubr.f32.gmra.mxu0 %v2281
        %v2617 = vpop.f32.mrf.mxu0
        %v2618 = vadd.f32 0.0, %v2617
        %v2619 = vpop.f32.mrf.mxu0
        %2620 = vdwg.mxu0
        %v2621 = vadd.f32 %v2010, %v2353
        %v2622 = vadd.f32 %v2011, %v2358
        %v2623 = vadd.f32 %v2012, %v2363
        %v2624 = vadd.f32 %v2013, %v2368
        %v2625 = vadd.f32 %v2014, %v2373
        %v2626 = vadd.f32 %v2015, %v2378
        %v2627 = vadd.f32 %v2016, %v2383
        %v2628 = vadd.f32 %v2017, %v2388
        %v2629 = vadd.f32 %v2018, %v2393
        %v2630 = vadd.f32 %v2019, %v2398
        %v2631 = vadd.f32 %v2020, %v2403
        %v2632 = vadd.f32 %v2021, %v2408
        %v2633 = vadd.f32 %v2022, %v2413
        %v2634 = vadd.f32 %v2023, %v2418
        %v2635 = vadd.f32 %v2024, %v2423
        %v2636 = vadd.f32 %v2025, %v2428
        %v2637 = vadd.f32 %v2026, %v2433
        %v2638 = vadd.f32 %v2027, %v2438
        %v2639 = vadd.f32 %v2028, %v2443
        %v2640 = vadd.f32 %v2029, %v2448
        %v2641 = vadd.f32 %v2030, %v2453
        %v2642 = vadd.f32 %v2031, %v2458
        %v2643 = vadd.f32 %v2032, %v2463
        %v2644 = vadd.f32 %v2033, %v2468
        %v2645 = vadd.f32 %v2034, %v2473
        %v2646 = vadd.f32 %v2035, %v2478
        %v2647 = vadd.f32 %v2036, %v2483
        %v2648 = vadd.f32 %v2037, %v2488
        %v2649 = vadd.f32 %v2038, %v2493
        %v2650 = vadd.f32 %v2039, %v2498
        %v2651 = vadd.f32 %v2040, %v2503
        %v2652 = vadd.f32 %v2041, %v2508
        %v2653 = vadd.f32 %v2042, %v2513
        %v2654 = vadd.f32 %v2043, %v2518
        %v2655 = vadd.f32 %v2044, %v2523
        %v2656 = vadd.f32 %v2045, %v2528
        %v2657 = vadd.f32 %v2046, %v2533
        %v2658 = vadd.f32 %v2047, %v2538
        %v2659 = vadd.f32 %v2048, %v2543
        %v2660 = vadd.f32 %v2049, %v2548
        %v2661 = vadd.f32 %v2050, %v2553
        %v2662 = vadd.f32 %v2051, %v2558
        %v2663 = vadd.f32 %v2052, %v2563
        %v2664 = vadd.f32 %v2053, %v2568
        %v2665 = vadd.f32 %v2054, %v2573
        %v2666 = vadd.f32 %v2055, %v2578
        %v2667 = vadd.f32 %v2056, %v2583
        %v2668 = vadd.f32 %v2057, %v2588
        %v2669 = vadd.f32 %v2058, %v2593
        %v2670 = vadd.f32 %v2059, %v2598
        %v2671 = vadd.f32 %v2060, %v2603
        %v2672 = vadd.f32 %v2061, %v2608
        %v2673 = vadd.f32 %v2062, %v2613
        %v2674 = vadd.f32 %v2063, %v2618
        %v2675 = vld [vmem:[%s2064 + $0x1] sm:$0xff]
        %v2676 = vld [vmem:[%s2064 + $0x9] sm:$0xff]
        %v2677 = vld [vmem:[%s2064 + $0x11] sm:$0xff]
        %v2678 = vld [vmem:[%s2064 + $0x21] sm:$0xff]
        %v2679 = vld [vmem:[%s2064 + $0x29] sm:$0xff]
        %v2680 = vld [vmem:[%s2064 + $0x31] sm:$0xff]
        %v2681 = vld [vmem:[%s2064 + $0x41] sm:$0xff]
        %v2682 = vld [vmem:[%s2064 + $0x49] sm:$0xff]
        %v2683 = vld [vmem:[%s2064 + $0x51] sm:$0xff]
        %v2684 = vld [vmem:[%s2064 + $0x61] sm:$0xff]
        %v2685 = vld [vmem:[%s2064 + $0x69] sm:$0xff]
        %v2686 = vld [vmem:[%s2064 + $0x71] sm:$0xff]
        %v2687 = vld [vmem:[%s2064 + $0x81] sm:$0xff]
        %v2688 = vld [vmem:[%s2064 + $0x89] sm:$0xff]
        %v2689 = vld [vmem:[%s2064 + $0x91] sm:$0xff]
        %v2690 = vld [vmem:[%s2064 + $0xa1] sm:$0xff]
        %v2691 = vld [vmem:[%s2064 + $0xa9] sm:$0xff]
        %v2692 = vld [vmem:[%s2064 + $0xb1] sm:$0xff]
        %v2693 = vld [vmem:[%s2064 + $0xc1] sm:$0xff]
        %v2694 = vld [vmem:[%s2064 + $0xc9] sm:$0xff]
        %v2695 = vld [vmem:[%s2064 + $0xd1] sm:$0xff]
        %v2696 = vld [vmem:[%s2064 + $0xe1] sm:$0xff]
        %v2697 = vld [vmem:[%s2064 + $0xe9] sm:$0xff]
        %v2698 = vld [vmem:[%s2064 + $0xf1] sm:$0xff]
        %v2699 = vld [vmem:[%s2064 + $0x101] sm:$0xff]
        %v2700 = vld [vmem:[%s2064 + $0x109] sm:$0xff]
        %v2701 = vld [vmem:[%s2064 + $0x111] sm:$0xff]
        %v2702 = vld [vmem:[%s2064 + $0x121] sm:$0xff]
        %v2703 = vld [vmem:[%s2064 + $0x129] sm:$0xff]
        %v2704 = vld [vmem:[%s2064 + $0x131] sm:$0xff]
        %v2705 = vld [vmem:[%s2064 + $0x141] sm:$0xff]
        %v2706 = vld [vmem:[%s2064 + $0x149] sm:$0xff]
        %v2707 = vld [vmem:[%s2064 + $0x151] sm:$0xff]
        %v2708 = vld [vmem:[%s2064 + $0x161] sm:$0xff]
        %v2709 = vld [vmem:[%s2064 + $0x169] sm:$0xff]
        %v2710 = vld [vmem:[%s2064 + $0x171] sm:$0xff]
        %v2711 = vld [vmem:[%s2064 + $0x181] sm:$0xff]
        %v2712 = vld [vmem:[%s2064 + $0x189] sm:$0xff]
        %v2713 = vld [vmem:[%s2064 + $0x191] sm:$0xff]
        %v2714 = vld [vmem:[%s2064 + $0x1a1] sm:$0xff]
        %v2715 = vld [vmem:[%s2064 + $0x1a9] sm:$0xff]
        %v2716 = vld [vmem:[%s2064 + $0x1b1] sm:$0xff]
        %v2717 = vld [vmem:[%s2064 + $0x1c1] sm:$0xff]
        %v2718 = vld [vmem:[%s2064 + $0x1c9] sm:$0xff]
        %v2719 = vld [vmem:[%s2064 + $0x1d1] sm:$0xff]
        %v2720 = vld [vmem:[%s2064 + $0x1e1] sm:$0xff]
        %v2721 = vld [vmem:[%s2064 + $0x1e9] sm:$0xff]
        %v2722 = vld [vmem:[%s2064 + $0x1f1] sm:$0xff]
        %v2723 = vld [vmem:[%s2064 + $0x201] sm:$0xff]
        %v2724 = vld [vmem:[%s2064 + $0x209] sm:$0xff]
        %v2725 = vld [vmem:[%s2064 + $0x211] sm:$0xff]
        %v2726 = vld [vmem:[%s2064 + $0x221] sm:$0xff]
        %v2727 = vld [vmem:[%s2064 + $0x229] sm:$0xff]
        %v2728 = vld [vmem:[%s2064 + $0x231] sm:$0xff]
        %s2729 = scalar_lea.vmem %s1, 16
        %v2730 = vld [vmem:[%s2729] sm:$0x7]
        %v2732 = vsel %vm288, %v2675, 0
        %v2735 = vsel %vm288, %v2676, 0
        %v2738 = vsel %vm288, %v2677, 0
        %v2741 = vsel %vm288, %v2678, 0
        %v2744 = vsel %vm288, %v2679, 0
        %v2747 = vsel %vm288, %v2680, 0
        %v2750 = vsel %vm288, %v2681, 0
        %v2753 = vsel %vm288, %v2682, 0
        %v2756 = vsel %vm288, %v2683, 0
        %v2759 = vsel %vm288, %v2684, 0
        %v2762 = vsel %vm288, %v2685, 0
        %v2765 = vsel %vm288, %v2686, 0
        %v2768 = vsel %vm288, %v2687, 0
        %v2771 = vsel %vm288, %v2688, 0
        %v2774 = vsel %vm288, %v2689, 0
        %v2777 = vsel %vm288, %v2690, 0
        %v2780 = vsel %vm288, %v2691, 0
        %v2783 = vsel %vm288, %v2692, 0
        %v2786 = vsel %vm288, %v2693, 0
        %v2789 = vsel %vm288, %v2694, 0
        %v2792 = vsel %vm288, %v2695, 0
        %v2795 = vsel %vm288, %v2696, 0
        %v2798 = vsel %vm288, %v2697, 0
        %v2801 = vsel %vm288, %v2698, 0
        %v2804 = vsel %vm288, %v2699, 0
        %v2807 = vsel %vm288, %v2700, 0
        %v2810 = vsel %vm288, %v2701, 0
        %v2813 = vsel %vm288, %v2702, 0
        %v2816 = vsel %vm288, %v2703, 0
        %v2819 = vsel %vm288, %v2704, 0
        %v2822 = vsel %vm288, %v2705, 0
        %v2825 = vsel %vm288, %v2706, 0
        %v2828 = vsel %vm288, %v2707, 0
        %v2831 = vsel %vm288, %v2708, 0
        %v2834 = vsel %vm288, %v2709, 0
        %v2837 = vsel %vm288, %v2710, 0
        %v2840 = vsel %vm288, %v2711, 0
        %v2843 = vsel %vm288, %v2712, 0
        %v2846 = vsel %vm288, %v2713, 0
        %v2849 = vsel %vm288, %v2714, 0
        %v2852 = vsel %vm288, %v2715, 0
        %v2855 = vsel %vm288, %v2716, 0
        %v2858 = vsel %vm288, %v2717, 0
        %v2861 = vsel %vm288, %v2718, 0
        %v2864 = vsel %vm288, %v2719, 0
        %v2867 = vsel %vm288, %v2720, 0
        %v2870 = vsel %vm288, %v2721, 0
        %v2873 = vsel %vm288, %v2722, 0
        %v2876 = vsel %vm288, %v2723, 0
        %v2879 = vsel %vm288, %v2724, 0
        %v2882 = vsel %vm288, %v2725, 0
        %v2885 = vsel %vm288, %v2726, 0
        %v2888 = vsel %vm288, %v2727, 0
        %v2891 = vsel %vm288, %v2728, 0
        %v2894 = vsel %vm451, %v2730, 0
        %2896 = vmatprep.subr.mxu0 0.0
        %2897 = vmatpush1.msra.mxu0 0.0
        %2898 = vmatprep.subr.mxu0 0.0
        %2899 = vmatpush1.msra.mxu0 0.0
        %2900 = vmatprep.subr.mxu0 0.0
        %2901 = vmatpush1.msra.mxu0 0.0
        %2902 = vmatprep.subr.mxu0 0.0
        %2903 = vmatpush1.msra.mxu0 0.0
        %2904 = vmatprep.subr.mxu0 0.0
        %2905 = vmatpush1.msra.mxu0 0.0
        %2906 = vmatprep.subr.mxu0 0.0
        %2907 = vmatpush1.msra.mxu0 0.0
        %2908 = vmatprep.subr.mxu0 0.0
        %2909 = vmatpush1.msra.mxu0 0.0
        %2910 = vmatprep.subr.mxu0 0.0
        %2911 = vmatpush1.msra.mxu0 0.0
        %2912 = vmatprep.subr.mxu0 0.0
        %2913 = vmatpush1.msra.mxu0 0.0
        %2914 = vmatprep.subr.mxu0 0.0
        %2915 = vmatpush1.msra.mxu0 0.0
        %2916 = vmatprep.subr.mxu0 0.0
        %2917 = vmatpush1.msra.mxu0 0.0
        %2918 = vmatprep.subr.mxu0 0.0
        %2919 = vmatpush1.msra.mxu0 0.0
        %2920 = vmatprep.subr.mxu0 0.0
        %2921 = vmatpush1.msra.mxu0 0.0
        %2922 = vmatprep.subr.mxu0 0.0
        %2923 = vmatpush1.msra.mxu0 0.0
        %2924 = vmatprep.subr.mxu0 0.0
        %2925 = vmatpush1.msra.mxu0 0.0
        %2926 = vmatprep.subr.mxu0 0.0
        %2927 = vmatpush1.msra.mxu0 %v2894
        %2928 = vmatprep.subr.mxu0 0.0
        %2929 = vmatpush2.msra.mxu0 0.0
        %2930 = vmatprep.subr.mxu0 0.0
        %2931 = vmatpush2.msra.mxu0 0.0
        %2932 = vmatprep.subr.mxu0 0.0
        %2933 = vmatpush2.msra.mxu0 0.0
        %2934 = vmatprep.subr.mxu0 0.0
        %2935 = vmatpush2.msra.mxu0 0.0
        %2936 = vmatprep.subr.mxu0 0.0
        %2937 = vmatpush2.msra.mxu0 0.0
        %2938 = vmatprep.subr.mxu0 0.0
        %2939 = vmatpush2.msra.mxu0 0.0
        %2940 = vmatprep.subr.mxu0 0.0
        %2941 = vmatpush2.msra.mxu0 0.0
        %2942 = vmatprep.subr.mxu0 0.0
        %2943 = vmatpush2.msra.mxu0 0.0
        %2944 = vmatprep.subr.mxu0 0.0
        %2945 = vmatpush2.msra.mxu0 0.0
        %2946 = vmatprep.subr.mxu0 0.0
        %2947 = vmatpush2.msra.mxu0 0.0
        %2948 = vmatprep.subr.mxu0 0.0
        %2949 = vmatpush2.msra.mxu0 0.0
        %2950 = vmatprep.subr.mxu0 0.0
        %2951 = vmatpush2.msra.mxu0 0.0
        %2952 = vmatprep.subr.mxu0 0.0
        %2953 = vmatpush2.msra.mxu0 0.0
        %2954 = vmatprep.subr.mxu0 0.0
        %2955 = vmatpush2.msra.mxu0 0.0
        %2956 = vmatprep.subr.mxu0 0.0
        %2957 = vmatpush2.msra.mxu0 0.0
        %2958 = vmatprep.subr.mxu0 0.0
        %2959 = vmatpush2.msra.mxu0 0.0
        %2960 = vmatprep.mubr.f32.mxu0 0.0
        %2961 = vmatmul.mubr.f32.gmra.mxu0 %v2732
        %v2962 = vpop.f32.mrf.mxu0
        %v2963 = vadd.f32 0.0, %v2962
        %v2964 = vpop.f32.mrf.mxu0
        %2965 = vmatprep.mubr.f32.mxu0 0.0
        %2966 = vmatmul.mubr.f32.gmra.mxu0 %v2735
        %v2967 = vpop.f32.mrf.mxu0
        %v2968 = vadd.f32 0.0, %v2967
        %v2969 = vpop.f32.mrf.mxu0
        %2970 = vmatprep.mubr.f32.mxu0 0.0
        %2971 = vmatmul.mubr.f32.gmra.mxu0 %v2738
        %v2972 = vpop.f32.mrf.mxu0
        %v2973 = vadd.f32 0.0, %v2972
        %v2974 = vpop.f32.mrf.mxu0
        %2975 = vmatprep.mubr.f32.mxu0 0.0
        %2976 = vmatmul.mubr.f32.gmra.mxu0 %v2741
        %v2977 = vpop.f32.mrf.mxu0
        %v2978 = vadd.f32 0.0, %v2977
        %v2979 = vpop.f32.mrf.mxu0
        %2980 = vmatprep.mubr.f32.mxu0 0.0
        %2981 = vmatmul.mubr.f32.gmra.mxu0 %v2744
        %v2982 = vpop.f32.mrf.mxu0
        %v2983 = vadd.f32 0.0, %v2982
        %v2984 = vpop.f32.mrf.mxu0
        %2985 = vmatprep.mubr.f32.mxu0 0.0
        %2986 = vmatmul.mubr.f32.gmra.mxu0 %v2747
        %v2987 = vpop.f32.mrf.mxu0
        %v2988 = vadd.f32 0.0, %v2987
        %v2989 = vpop.f32.mrf.mxu0
        %2990 = vmatprep.mubr.f32.mxu0 0.0
        %2991 = vmatmul.mubr.f32.gmra.mxu0 %v2750
        %v2992 = vpop.f32.mrf.mxu0
        %v2993 = vadd.f32 0.0, %v2992
        %v2994 = vpop.f32.mrf.mxu0
        %2995 = vmatprep.mubr.f32.mxu0 0.0
        %2996 = vmatmul.mubr.f32.gmra.mxu0 %v2753
        %v2997 = vpop.f32.mrf.mxu0
        %v2998 = vadd.f32 0.0, %v2997
        %v2999 = vpop.f32.mrf.mxu0
        %3000 = vmatprep.mubr.f32.mxu0 0.0
        %3001 = vmatmul.mubr.f32.gmra.mxu0 %v2756
        %v3002 = vpop.f32.mrf.mxu0
        %v3003 = vadd.f32 0.0, %v3002
        %v3004 = vpop.f32.mrf.mxu0
        %3005 = vmatprep.mubr.f32.mxu0 0.0
        %3006 = vmatmul.mubr.f32.gmra.mxu0 %v2759
        %v3007 = vpop.f32.mrf.mxu0
        %v3008 = vadd.f32 0.0, %v3007
        %v3009 = vpop.f32.mrf.mxu0
        %3010 = vmatprep.mubr.f32.mxu0 0.0
        %3011 = vmatmul.mubr.f32.gmra.mxu0 %v2762
        %v3012 = vpop.f32.mrf.mxu0
        %v3013 = vadd.f32 0.0, %v3012
        %v3014 = vpop.f32.mrf.mxu0
        %3015 = vmatprep.mubr.f32.mxu0 0.0
        %3016 = vmatmul.mubr.f32.gmra.mxu0 %v2765
        %v3017 = vpop.f32.mrf.mxu0
        %v3018 = vadd.f32 0.0, %v3017
        %v3019 = vpop.f32.mrf.mxu0
        %3020 = vmatprep.mubr.f32.mxu0 0.0
        %3021 = vmatmul.mubr.f32.gmra.mxu0 %v2768
        %v3022 = vpop.f32.mrf.mxu0
        %v3023 = vadd.f32 0.0, %v3022
        %v3024 = vpop.f32.mrf.mxu0
        %3025 = vmatprep.mubr.f32.mxu0 0.0
        %3026 = vmatmul.mubr.f32.gmra.mxu0 %v2771
        %v3027 = vpop.f32.mrf.mxu0
        %v3028 = vadd.f32 0.0, %v3027
        %v3029 = vpop.f32.mrf.mxu0
        %3030 = vmatprep.mubr.f32.mxu0 0.0
        %3031 = vmatmul.mubr.f32.gmra.mxu0 %v2774
        %v3032 = vpop.f32.mrf.mxu0
        %v3033 = vadd.f32 0.0, %v3032
        %v3034 = vpop.f32.mrf.mxu0
        %3035 = vmatprep.mubr.f32.mxu0 0.0
        %3036 = vmatmul.mubr.f32.gmra.mxu0 %v2777
        %v3037 = vpop.f32.mrf.mxu0
        %v3038 = vadd.f32 0.0, %v3037
        %v3039 = vpop.f32.mrf.mxu0
        %3040 = vmatprep.mubr.f32.mxu0 0.0
        %3041 = vmatmul.mubr.f32.gmra.mxu0 %v2780
        %v3042 = vpop.f32.mrf.mxu0
        %v3043 = vadd.f32 0.0, %v3042
        %v3044 = vpop.f32.mrf.mxu0
        %3045 = vmatprep.mubr.f32.mxu0 0.0
        %3046 = vmatmul.mubr.f32.gmra.mxu0 %v2783
        %v3047 = vpop.f32.mrf.mxu0
        %v3048 = vadd.f32 0.0, %v3047
        %v3049 = vpop.f32.mrf.mxu0
        %3050 = vmatprep.mubr.f32.mxu0 0.0
        %3051 = vmatmul.mubr.f32.gmra.mxu0 %v2786
        %v3052 = vpop.f32.mrf.mxu0
        %v3053 = vadd.f32 0.0, %v3052
        %v3054 = vpop.f32.mrf.mxu0
        %3055 = vmatprep.mubr.f32.mxu0 0.0
        %3056 = vmatmul.mubr.f32.gmra.mxu0 %v2789
        %v3057 = vpop.f32.mrf.mxu0
        %v3058 = vadd.f32 0.0, %v3057
        %v3059 = vpop.f32.mrf.mxu0
        %3060 = vmatprep.mubr.f32.mxu0 0.0
        %3061 = vmatmul.mubr.f32.gmra.mxu0 %v2792
        %v3062 = vpop.f32.mrf.mxu0
        %v3063 = vadd.f32 0.0, %v3062
        %v3064 = vpop.f32.mrf.mxu0
        %3065 = vmatprep.mubr.f32.mxu0 0.0
        %3066 = vmatmul.mubr.f32.gmra.mxu0 %v2795
        %v3067 = vpop.f32.mrf.mxu0
        %v3068 = vadd.f32 0.0, %v3067
        %v3069 = vpop.f32.mrf.mxu0
        %3070 = vmatprep.mubr.f32.mxu0 0.0
        %3071 = vmatmul.mubr.f32.gmra.mxu0 %v2798
        %v3072 = vpop.f32.mrf.mxu0
        %v3073 = vadd.f32 0.0, %v3072
        %v3074 = vpop.f32.mrf.mxu0
        %3075 = vmatprep.mubr.f32.mxu0 0.0
        %3076 = vmatmul.mubr.f32.gmra.mxu0 %v2801
        %v3077 = vpop.f32.mrf.mxu0
        %v3078 = vadd.f32 0.0, %v3077
        %v3079 = vpop.f32.mrf.mxu0
        %3080 = vmatprep.mubr.f32.mxu0 0.0
        %3081 = vmatmul.mubr.f32.gmra.mxu0 %v2804
        %v3082 = vpop.f32.mrf.mxu0
        %v3083 = vadd.f32 0.0, %v3082
        %v3084 = vpop.f32.mrf.mxu0
        %3085 = vmatprep.mubr.f32.mxu0 0.0
        %3086 = vmatmul.mubr.f32.gmra.mxu0 %v2807
        %v3087 = vpop.f32.mrf.mxu0
        %v3088 = vadd.f32 0.0, %v3087
        %v3089 = vpop.f32.mrf.mxu0
        %3090 = vmatprep.mubr.f32.mxu0 0.0
        %3091 = vmatmul.mubr.f32.gmra.mxu0 %v2810
        %v3092 = vpop.f32.mrf.mxu0
        %v3093 = vadd.f32 0.0, %v3092
        %v3094 = vpop.f32.mrf.mxu0
        %3095 = vmatprep.mubr.f32.mxu0 0.0
        %3096 = vmatmul.mubr.f32.gmra.mxu0 %v2813
        %v3097 = vpop.f32.mrf.mxu0
        %v3098 = vadd.f32 0.0, %v3097
        %v3099 = vpop.f32.mrf.mxu0
        %3100 = vmatprep.mubr.f32.mxu0 0.0
        %3101 = vmatmul.mubr.f32.gmra.mxu0 %v2816
        %v3102 = vpop.f32.mrf.mxu0
        %v3103 = vadd.f32 0.0, %v3102
        %v3104 = vpop.f32.mrf.mxu0
        %3105 = vmatprep.mubr.f32.mxu0 0.0
        %3106 = vmatmul.mubr.f32.gmra.mxu0 %v2819
        %v3107 = vpop.f32.mrf.mxu0
        %v3108 = vadd.f32 0.0, %v3107
        %v3109 = vpop.f32.mrf.mxu0
        %3110 = vmatprep.mubr.f32.mxu0 0.0
        %3111 = vmatmul.mubr.f32.gmra.mxu0 %v2822
        %v3112 = vpop.f32.mrf.mxu0
        %v3113 = vadd.f32 0.0, %v3112
        %v3114 = vpop.f32.mrf.mxu0
        %3115 = vmatprep.mubr.f32.mxu0 0.0
        %3116 = vmatmul.mubr.f32.gmra.mxu0 %v2825
        %v3117 = vpop.f32.mrf.mxu0
        %v3118 = vadd.f32 0.0, %v3117
        %v3119 = vpop.f32.mrf.mxu0
        %3120 = vmatprep.mubr.f32.mxu0 0.0
        %3121 = vmatmul.mubr.f32.gmra.mxu0 %v2828
        %v3122 = vpop.f32.mrf.mxu0
        %v3123 = vadd.f32 0.0, %v3122
        %v3124 = vpop.f32.mrf.mxu0
        %3125 = vmatprep.mubr.f32.mxu0 0.0
        %3126 = vmatmul.mubr.f32.gmra.mxu0 %v2831
        %v3127 = vpop.f32.mrf.mxu0
        %v3128 = vadd.f32 0.0, %v3127
        %v3129 = vpop.f32.mrf.mxu0
        %3130 = vmatprep.mubr.f32.mxu0 0.0
        %3131 = vmatmul.mubr.f32.gmra.mxu0 %v2834
        %v3132 = vpop.f32.mrf.mxu0
        %v3133 = vadd.f32 0.0, %v3132
        %v3134 = vpop.f32.mrf.mxu0
        %3135 = vmatprep.mubr.f32.mxu0 0.0
        %3136 = vmatmul.mubr.f32.gmra.mxu0 %v2837
        %v3137 = vpop.f32.mrf.mxu0
        %v3138 = vadd.f32 0.0, %v3137
        %v3139 = vpop.f32.mrf.mxu0
        %3140 = vmatprep.mubr.f32.mxu0 0.0
        %3141 = vmatmul.mubr.f32.gmra.mxu0 %v2840
        %v3142 = vpop.f32.mrf.mxu0
        %v3143 = vadd.f32 0.0, %v3142
        %v3144 = vpop.f32.mrf.mxu0
        %3145 = vmatprep.mubr.f32.mxu0 0.0
        %3146 = vmatmul.mubr.f32.gmra.mxu0 %v2843
        %v3147 = vpop.f32.mrf.mxu0
        %v3148 = vadd.f32 0.0, %v3147
        %v3149 = vpop.f32.mrf.mxu0
        %3150 = vmatprep.mubr.f32.mxu0 0.0
        %3151 = vmatmul.mubr.f32.gmra.mxu0 %v2846
        %v3152 = vpop.f32.mrf.mxu0
        %v3153 = vadd.f32 0.0, %v3152
        %v3154 = vpop.f32.mrf.mxu0
        %3155 = vmatprep.mubr.f32.mxu0 0.0
        %3156 = vmatmul.mubr.f32.gmra.mxu0 %v2849
        %v3157 = vpop.f32.mrf.mxu0
        %v3158 = vadd.f32 0.0, %v3157
        %v3159 = vpop.f32.mrf.mxu0
        %3160 = vmatprep.mubr.f32.mxu0 0.0
        %3161 = vmatmul.mubr.f32.gmra.mxu0 %v2852
        %v3162 = vpop.f32.mrf.mxu0
        %v3163 = vadd.f32 0.0, %v3162
        %v3164 = vpop.f32.mrf.mxu0
        %3165 = vmatprep.mubr.f32.mxu0 0.0
        %3166 = vmatmul.mubr.f32.gmra.mxu0 %v2855
        %v3167 = vpop.f32.mrf.mxu0
        %v3168 = vadd.f32 0.0, %v3167
        %v3169 = vpop.f32.mrf.mxu0
        %3170 = vmatprep.mubr.f32.mxu0 0.0
        %3171 = vmatmul.mubr.f32.gmra.mxu0 %v2858
        %v3172 = vpop.f32.mrf.mxu0
        %v3173 = vadd.f32 0.0, %v3172
        %v3174 = vpop.f32.mrf.mxu0
        %3175 = vmatprep.mubr.f32.mxu0 0.0
        %3176 = vmatmul.mubr.f32.gmra.mxu0 %v2861
        %v3177 = vpop.f32.mrf.mxu0
        %v3178 = vadd.f32 0.0, %v3177
        %v3179 = vpop.f32.mrf.mxu0
        %3180 = vmatprep.mubr.f32.mxu0 0.0
        %3181 = vmatmul.mubr.f32.gmra.mxu0 %v2864
        %v3182 = vpop.f32.mrf.mxu0
        %v3183 = vadd.f32 0.0, %v3182
        %v3184 = vpop.f32.mrf.mxu0
        %3185 = vmatprep.mubr.f32.mxu0 0.0
        %3186 = vmatmul.mubr.f32.gmra.mxu0 %v2867
        %v3187 = vpop.f32.mrf.mxu0
        %v3188 = vadd.f32 0.0, %v3187
        %v3189 = vpop.f32.mrf.mxu0
        %3190 = vmatprep.mubr.f32.mxu0 0.0
        %3191 = vmatmul.mubr.f32.gmra.mxu0 %v2870
        %v3192 = vpop.f32.mrf.mxu0
        %v3193 = vadd.f32 0.0, %v3192
        %v3194 = vpop.f32.mrf.mxu0
        %3195 = vmatprep.mubr.f32.mxu0 0.0
        %3196 = vmatmul.mubr.f32.gmra.mxu0 %v2873
        %v3197 = vpop.f32.mrf.mxu0
        %v3198 = vadd.f32 0.0, %v3197
        %v3199 = vpop.f32.mrf.mxu0
        %3200 = vmatprep.mubr.f32.mxu0 0.0
        %3201 = vmatmul.mubr.f32.gmra.mxu0 %v2876
        %v3202 = vpop.f32.mrf.mxu0
        %v3203 = vadd.f32 0.0, %v3202
        %v3204 = vpop.f32.mrf.mxu0
        %3205 = vmatprep.mubr.f32.mxu0 0.0
        %3206 = vmatmul.mubr.f32.gmra.mxu0 %v2879
        %v3207 = vpop.f32.mrf.mxu0
        %v3208 = vadd.f32 0.0, %v3207
        %v3209 = vpop.f32.mrf.mxu0
        %3210 = vmatprep.mubr.f32.mxu0 0.0
        %3211 = vmatmul.mubr.f32.gmra.mxu0 %v2882
        %v3212 = vpop.f32.mrf.mxu0
        %v3213 = vadd.f32 0.0, %v3212
        %v3214 = vpop.f32.mrf.mxu0
        %3215 = vmatprep.mubr.f32.mxu0 0.0
        %3216 = vmatmul.mubr.f32.gmra.mxu0 %v2885
        %v3217 = vpop.f32.mrf.mxu0
        %v3218 = vadd.f32 0.0, %v3217
        %v3219 = vpop.f32.mrf.mxu0
        %3220 = vmatprep.mubr.f32.mxu0 0.0
        %3221 = vmatmul.mubr.f32.gmra.mxu0 %v2888
        %v3222 = vpop.f32.mrf.mxu0
        %v3223 = vadd.f32 0.0, %v3222
        %v3224 = vpop.f32.mrf.mxu0
        %3225 = vmatprep.mubr.f32.mxu0 0.0
        %3226 = vmatmul.mubr.f32.gmra.mxu0 %v2891
        %v3227 = vpop.f32.mrf.mxu0
        %v3228 = vadd.f32 0.0, %v3227
        %v3229 = vpop.f32.mrf.mxu0
        %3230 = vdwg.mxu0
        %v3231 = vadd.f32 %v2621, %v2963
        %v3232 = vadd.f32 %v2622, %v2968
        %v3233 = vadd.f32 %v2623, %v2973
        %v3234 = vadd.f32 %v2624, %v2978
        %v3235 = vadd.f32 %v2625, %v2983
        %v3236 = vadd.f32 %v2626, %v2988
        %v3237 = vadd.f32 %v2627, %v2993
        %v3238 = vadd.f32 %v2628, %v2998
        %v3239 = vadd.f32 %v2629, %v3003
        %v3240 = vadd.f32 %v2630, %v3008
        %v3241 = vadd.f32 %v2631, %v3013
        %v3242 = vadd.f32 %v2632, %v3018
        %v3243 = vadd.f32 %v2633, %v3023
        %v3244 = vadd.f32 %v2634, %v3028
        %v3245 = vadd.f32 %v2635, %v3033
        %v3246 = vadd.f32 %v2636, %v3038
        %v3247 = vadd.f32 %v2637, %v3043
        %v3248 = vadd.f32 %v2638, %v3048
        %v3249 = vadd.f32 %v2639, %v3053
        %v3250 = vadd.f32 %v2640, %v3058
        %v3251 = vadd.f32 %v2641, %v3063
        %v3252 = vadd.f32 %v2642, %v3068
        %v3253 = vadd.f32 %v2643, %v3073
        %v3254 = vadd.f32 %v2644, %v3078
        %v3255 = vadd.f32 %v2645, %v3083
        %v3256 = vadd.f32 %v2646, %v3088
        %v3257 = vadd.f32 %v2647, %v3093
        %v3258 = vadd.f32 %v2648, %v3098
        %v3259 = vadd.f32 %v2649, %v3103
        %v3260 = vadd.f32 %v2650, %v3108
        %v3261 = vadd.f32 %v2651, %v3113
        %v3262 = vadd.f32 %v2652, %v3118
        %v3263 = vadd.f32 %v2653, %v3123
        %v3264 = vadd.f32 %v2654, %v3128
        %v3265 = vadd.f32 %v2655, %v3133
        %v3266 = vadd.f32 %v2656, %v3138
        %v3267 = vadd.f32 %v2657, %v3143
        %v3268 = vadd.f32 %v2658, %v3148
        %v3269 = vadd.f32 %v2659, %v3153
        %v3270 = vadd.f32 %v2660, %v3158
        %v3271 = vadd.f32 %v2661, %v3163
        %v3272 = vadd.f32 %v2662, %v3168
        %v3273 = vadd.f32 %v2663, %v3173
        %v3274 = vadd.f32 %v2664, %v3178
        %v3275 = vadd.f32 %v2665, %v3183
        %v3276 = vadd.f32 %v2666, %v3188
        %v3277 = vadd.f32 %v2667, %v3193
        %v3278 = vadd.f32 %v2668, %v3198
        %v3279 = vadd.f32 %v2669, %v3203
        %v3280 = vadd.f32 %v2670, %v3208
        %v3281 = vadd.f32 %v2671, %v3213
        %v3282 = vadd.f32 %v2672, %v3218
        %v3283 = vadd.f32 %v2673, %v3223
        %v3284 = vadd.f32 %v2674, %v3228
        %v3285 = vld [vmem:[%s2064 + $0x2] sm:$0xff]
        %v3286 = vld [vmem:[%s2064 + $0xa] sm:$0xff]
        %v3287 = vld [vmem:[%s2064 + $0x12] sm:$0xff]
        %v3288 = vld [vmem:[%s2064 + $0x22] sm:$0xff]
        %v3289 = vld [vmem:[%s2064 + $0x2a] sm:$0xff]
        %v3290 = vld [vmem:[%s2064 + $0x32] sm:$0xff]
        %v3291 = vld [vmem:[%s2064 + $0x42] sm:$0xff]
        %v3292 = vld [vmem:[%s2064 + $0x4a] sm:$0xff]
        %v3293 = vld [vmem:[%s2064 + $0x52] sm:$0xff]
        %v3294 = vld [vmem:[%s2064 + $0x62] sm:$0xff]
        %v3295 = vld [vmem:[%s2064 + $0x6a] sm:$0xff]
        %v3296 = vld [vmem:[%s2064 + $0x72] sm:$0xff]
        %v3297 = vld [vmem:[%s2064 + $0x82] sm:$0xff]
        %v3298 = vld [vmem:[%s2064 + $0x8a] sm:$0xff]
        %v3299 = vld [vmem:[%s2064 + $0x92] sm:$0xff]
        %v3300 = vld [vmem:[%s2064 + $0xa2] sm:$0xff]
        %v3301 = vld [vmem:[%s2064 + $0xaa] sm:$0xff]
        %v3302 = vld [vmem:[%s2064 + $0xb2] sm:$0xff]
        %v3303 = vld [vmem:[%s2064 + $0xc2] sm:$0xff]
        %v3304 = vld [vmem:[%s2064 + $0xca] sm:$0xff]
        %v3305 = vld [vmem:[%s2064 + $0xd2] sm:$0xff]
        %v3306 = vld [vmem:[%s2064 + $0xe2] sm:$0xff]
        %v3307 = vld [vmem:[%s2064 + $0xea] sm:$0xff]
        %v3308 = vld [vmem:[%s2064 + $0xf2] sm:$0xff]
        %v3309 = vld [vmem:[%s2064 + $0x102] sm:$0xff]
        %v3310 = vld [vmem:[%s2064 + $0x10a] sm:$0xff]
        %v3311 = vld [vmem:[%s2064 + $0x112] sm:$0xff]
        %v3312 = vld [vmem:[%s2064 + $0x122] sm:$0xff]
        %v3313 = vld [vmem:[%s2064 + $0x12a] sm:$0xff]
        %v3314 = vld [vmem:[%s2064 + $0x132] sm:$0xff]
        %v3315 = vld [vmem:[%s2064 + $0x142] sm:$0xff]
        %v3316 = vld [vmem:[%s2064 + $0x14a] sm:$0xff]
        %v3317 = vld [vmem:[%s2064 + $0x152] sm:$0xff]
        %v3318 = vld [vmem:[%s2064 + $0x162] sm:$0xff]
        %v3319 = vld [vmem:[%s2064 + $0x16a] sm:$0xff]
        %v3320 = vld [vmem:[%s2064 + $0x172] sm:$0xff]
        %v3321 = vld [vmem:[%s2064 + $0x182] sm:$0xff]
        %v3322 = vld [vmem:[%s2064 + $0x18a] sm:$0xff]
        %v3323 = vld [vmem:[%s2064 + $0x192] sm:$0xff]
        %v3324 = vld [vmem:[%s2064 + $0x1a2] sm:$0xff]
        %v3325 = vld [vmem:[%s2064 + $0x1aa] sm:$0xff]
        %v3326 = vld [vmem:[%s2064 + $0x1b2] sm:$0xff]
        %v3327 = vld [vmem:[%s2064 + $0x1c2] sm:$0xff]
        %v3328 = vld [vmem:[%s2064 + $0x1ca] sm:$0xff]
        %v3329 = vld [vmem:[%s2064 + $0x1d2] sm:$0xff]
        %v3330 = vld [vmem:[%s2064 + $0x1e2] sm:$0xff]
        %v3331 = vld [vmem:[%s2064 + $0x1ea] sm:$0xff]
        %v3332 = vld [vmem:[%s2064 + $0x1f2] sm:$0xff]
        %v3333 = vld [vmem:[%s2064 + $0x202] sm:$0xff]
        %v3334 = vld [vmem:[%s2064 + $0x20a] sm:$0xff]
        %v3335 = vld [vmem:[%s2064 + $0x212] sm:$0xff]
        %v3336 = vld [vmem:[%s2064 + $0x222] sm:$0xff]
        %v3337 = vld [vmem:[%s2064 + $0x22a] sm:$0xff]
        %v3338 = vld [vmem:[%s2064 + $0x232] sm:$0xff]
        %s3339 = scalar_lea.vmem %s1, 20
        %v3340 = vld [vmem:[%s3339] sm:$0x7]
        %v3342 = vsel %vm288, %v3285, 0
        %v3345 = vsel %vm288, %v3286, 0
        %v3348 = vsel %vm288, %v3287, 0
        %v3351 = vsel %vm288, %v3288, 0
        %v3354 = vsel %vm288, %v3289, 0
        %v3357 = vsel %vm288, %v3290, 0
        %v3360 = vsel %vm288, %v3291, 0
        %v3363 = vsel %vm288, %v3292, 0
        %v3366 = vsel %vm288, %v3293, 0
        %v3369 = vsel %vm288, %v3294, 0
        %v3372 = vsel %vm288, %v3295, 0
        %v3375 = vsel %vm288, %v3296, 0
        %v3378 = vsel %vm288, %v3297, 0
        %v3381 = vsel %vm288, %v3298, 0
        %v3384 = vsel %vm288, %v3299, 0
        %v3387 = vsel %vm288, %v3300, 0
        %v3390 = vsel %vm288, %v3301, 0
        %v3393 = vsel %vm288, %v3302, 0
        %v3396 = vsel %vm288, %v3303, 0
        %v3399 = vsel %vm288, %v3304, 0
        %v3402 = vsel %vm288, %v3305, 0
        %v3405 = vsel %vm288, %v3306, 0
        %v3408 = vsel %vm288, %v3307, 0
        %v3411 = vsel %vm288, %v3308, 0
        %v3414 = vsel %vm288, %v3309, 0
        %v3417 = vsel %vm288, %v3310, 0
        %v3420 = vsel %vm288, %v3311, 0
        %v3423 = vsel %vm288, %v3312, 0
        %v3426 = vsel %vm288, %v3313, 0
        %v3429 = vsel %vm288, %v3314, 0
        %v3432 = vsel %vm288, %v3315, 0
        %v3435 = vsel %vm288, %v3316, 0
        %v3438 = vsel %vm288, %v3317, 0
        %v3441 = vsel %vm288, %v3318, 0
        %v3444 = vsel %vm288, %v3319, 0
        %v3447 = vsel %vm288, %v3320, 0
        %v3450 = vsel %vm288, %v3321, 0
        %v3453 = vsel %vm288, %v3322, 0
        %v3456 = vsel %vm288, %v3323, 0
        %v3459 = vsel %vm288, %v3324, 0
        %v3462 = vsel %vm288, %v3325, 0
        %v3465 = vsel %vm288, %v3326, 0
        %v3468 = vsel %vm288, %v3327, 0
        %v3471 = vsel %vm288, %v3328, 0
        %v3474 = vsel %vm288, %v3329, 0
        %v3477 = vsel %vm288, %v3330, 0
        %v3480 = vsel %vm288, %v3331, 0
        %v3483 = vsel %vm288, %v3332, 0
        %v3486 = vsel %vm288, %v3333, 0
        %v3489 = vsel %vm288, %v3334, 0
        %v3492 = vsel %vm288, %v3335, 0
        %v3495 = vsel %vm288, %v3336, 0
        %v3498 = vsel %vm288, %v3337, 0
        %v3501 = vsel %vm288, %v3338, 0
        %v3504 = vsel %vm451, %v3340, 0
        %3506 = vmatprep.subr.mxu0 0.0
        %3507 = vmatpush1.msra.mxu0 0.0
        %3508 = vmatprep.subr.mxu0 0.0
        %3509 = vmatpush1.msra.mxu0 0.0
        %3510 = vmatprep.subr.mxu0 0.0
        %3511 = vmatpush1.msra.mxu0 0.0
        %3512 = vmatprep.subr.mxu0 0.0
        %3513 = vmatpush1.msra.mxu0 0.0
        %3514 = vmatprep.subr.mxu0 0.0
        %3515 = vmatpush1.msra.mxu0 0.0
        %3516 = vmatprep.subr.mxu0 0.0
        %3517 = vmatpush1.msra.mxu0 0.0
        %3518 = vmatprep.subr.mxu0 0.0
        %3519 = vmatpush1.msra.mxu0 0.0
        %3520 = vmatprep.subr.mxu0 0.0
        %3521 = vmatpush1.msra.mxu0 0.0
        %3522 = vmatprep.subr.mxu0 0.0
        %3523 = vmatpush1.msra.mxu0 0.0
        %3524 = vmatprep.subr.mxu0 0.0
        %3525 = vmatpush1.msra.mxu0 0.0
        %3526 = vmatprep.subr.mxu0 0.0
        %3527 = vmatpush1.msra.mxu0 0.0
        %3528 = vmatprep.subr.mxu0 0.0
        %3529 = vmatpush1.msra.mxu0 0.0
        %3530 = vmatprep.subr.mxu0 0.0
        %3531 = vmatpush1.msra.mxu0 0.0
        %3532 = vmatprep.subr.mxu0 0.0
        %3533 = vmatpush1.msra.mxu0 0.0
        %3534 = vmatprep.subr.mxu0 0.0
        %3535 = vmatpush1.msra.mxu0 0.0
        %3536 = vmatprep.subr.mxu0 0.0
        %3537 = vmatpush1.msra.mxu0 %v3504
        %3538 = vmatprep.subr.mxu0 0.0
        %3539 = vmatpush2.msra.mxu0 0.0
        %3540 = vmatprep.subr.mxu0 0.0
        %3541 = vmatpush2.msra.mxu0 0.0
        %3542 = vmatprep.subr.mxu0 0.0
        %3543 = vmatpush2.msra.mxu0 0.0
        %3544 = vmatprep.subr.mxu0 0.0
        %3545 = vmatpush2.msra.mxu0 0.0
        %3546 = vmatprep.subr.mxu0 0.0
        %3547 = vmatpush2.msra.mxu0 0.0
        %3548 = vmatprep.subr.mxu0 0.0
        %3549 = vmatpush2.msra.mxu0 0.0
        %3550 = vmatprep.subr.mxu0 0.0
        %3551 = vmatpush2.msra.mxu0 0.0
        %3552 = vmatprep.subr.mxu0 0.0
        %3553 = vmatpush2.msra.mxu0 0.0
        %3554 = vmatprep.subr.mxu0 0.0
        %3555 = vmatpush2.msra.mxu0 0.0
        %3556 = vmatprep.subr.mxu0 0.0
        %3557 = vmatpush2.msra.mxu0 0.0
        %3558 = vmatprep.subr.mxu0 0.0
        %3559 = vmatpush2.msra.mxu0 0.0
        %3560 = vmatprep.subr.mxu0 0.0
        %3561 = vmatpush2.msra.mxu0 0.0
        %3562 = vmatprep.subr.mxu0 0.0
        %3563 = vmatpush2.msra.mxu0 0.0
        %3564 = vmatprep.subr.mxu0 0.0
        %3565 = vmatpush2.msra.mxu0 0.0
        %3566 = vmatprep.subr.mxu0 0.0
        %3567 = vmatpush2.msra.mxu0 0.0
        %3568 = vmatprep.subr.mxu0 0.0
        %3569 = vmatpush2.msra.mxu0 0.0
        %3570 = vmatprep.mubr.f32.mxu0 0.0
        %3571 = vmatmul.mubr.f32.gmra.mxu0 %v3342
        %v3572 = vpop.f32.mrf.mxu0
        %v3573 = vadd.f32 0.0, %v3572
        %v3574 = vpop.f32.mrf.mxu0
        %3575 = vmatprep.mubr.f32.mxu0 0.0
        %3576 = vmatmul.mubr.f32.gmra.mxu0 %v3345
        %v3577 = vpop.f32.mrf.mxu0
        %v3578 = vadd.f32 0.0, %v3577
        %v3579 = vpop.f32.mrf.mxu0
        %3580 = vmatprep.mubr.f32.mxu0 0.0
        %3581 = vmatmul.mubr.f32.gmra.mxu0 %v3348
        %v3582 = vpop.f32.mrf.mxu0
        %v3583 = vadd.f32 0.0, %v3582
        %v3584 = vpop.f32.mrf.mxu0
        %3585 = vmatprep.mubr.f32.mxu0 0.0
        %3586 = vmatmul.mubr.f32.gmra.mxu0 %v3351
        %v3587 = vpop.f32.mrf.mxu0
        %v3588 = vadd.f32 0.0, %v3587
        %v3589 = vpop.f32.mrf.mxu0
        %3590 = vmatprep.mubr.f32.mxu0 0.0
        %3591 = vmatmul.mubr.f32.gmra.mxu0 %v3354
        %v3592 = vpop.f32.mrf.mxu0
        %v3593 = vadd.f32 0.0, %v3592
        %v3594 = vpop.f32.mrf.mxu0
        %3595 = vmatprep.mubr.f32.mxu0 0.0
        %3596 = vmatmul.mubr.f32.gmra.mxu0 %v3357
        %v3597 = vpop.f32.mrf.mxu0
        %v3598 = vadd.f32 0.0, %v3597
        %v3599 = vpop.f32.mrf.mxu0
        %3600 = vmatprep.mubr.f32.mxu0 0.0
        %3601 = vmatmul.mubr.f32.gmra.mxu0 %v3360
        %v3602 = vpop.f32.mrf.mxu0
        %v3603 = vadd.f32 0.0, %v3602
        %v3604 = vpop.f32.mrf.mxu0
        %3605 = vmatprep.mubr.f32.mxu0 0.0
        %3606 = vmatmul.mubr.f32.gmra.mxu0 %v3363
        %v3607 = vpop.f32.mrf.mxu0
        %v3608 = vadd.f32 0.0, %v3607
        %v3609 = vpop.f32.mrf.mxu0
        %3610 = vmatprep.mubr.f32.mxu0 0.0
        %3611 = vmatmul.mubr.f32.gmra.mxu0 %v3366
        %v3612 = vpop.f32.mrf.mxu0
        %v3613 = vadd.f32 0.0, %v3612
        %v3614 = vpop.f32.mrf.mxu0
        %3615 = vmatprep.mubr.f32.mxu0 0.0
        %3616 = vmatmul.mubr.f32.gmra.mxu0 %v3369
        %v3617 = vpop.f32.mrf.mxu0
        %v3618 = vadd.f32 0.0, %v3617
        %v3619 = vpop.f32.mrf.mxu0
        %3620 = vmatprep.mubr.f32.mxu0 0.0
        %3621 = vmatmul.mubr.f32.gmra.mxu0 %v3372
        %v3622 = vpop.f32.mrf.mxu0
        %v3623 = vadd.f32 0.0, %v3622
        %v3624 = vpop.f32.mrf.mxu0
        %3625 = vmatprep.mubr.f32.mxu0 0.0
        %3626 = vmatmul.mubr.f32.gmra.mxu0 %v3375
        %v3627 = vpop.f32.mrf.mxu0
        %v3628 = vadd.f32 0.0, %v3627
        %v3629 = vpop.f32.mrf.mxu0
        %3630 = vmatprep.mubr.f32.mxu0 0.0
        %3631 = vmatmul.mubr.f32.gmra.mxu0 %v3378
        %v3632 = vpop.f32.mrf.mxu0
        %v3633 = vadd.f32 0.0, %v3632
        %v3634 = vpop.f32.mrf.mxu0
        %3635 = vmatprep.mubr.f32.mxu0 0.0
        %3636 = vmatmul.mubr.f32.gmra.mxu0 %v3381
        %v3637 = vpop.f32.mrf.mxu0
        %v3638 = vadd.f32 0.0, %v3637
        %v3639 = vpop.f32.mrf.mxu0
        %3640 = vmatprep.mubr.f32.mxu0 0.0
        %3641 = vmatmul.mubr.f32.gmra.mxu0 %v3384
        %v3642 = vpop.f32.mrf.mxu0
        %v3643 = vadd.f32 0.0, %v3642
        %v3644 = vpop.f32.mrf.mxu0
        %3645 = vmatprep.mubr.f32.mxu0 0.0
        %3646 = vmatmul.mubr.f32.gmra.mxu0 %v3387
        %v3647 = vpop.f32.mrf.mxu0
        %v3648 = vadd.f32 0.0, %v3647
        %v3649 = vpop.f32.mrf.mxu0
        %3650 = vmatprep.mubr.f32.mxu0 0.0
        %3651 = vmatmul.mubr.f32.gmra.mxu0 %v3390
        %v3652 = vpop.f32.mrf.mxu0
        %v3653 = vadd.f32 0.0, %v3652
        %v3654 = vpop.f32.mrf.mxu0
        %3655 = vmatprep.mubr.f32.mxu0 0.0
        %3656 = vmatmul.mubr.f32.gmra.mxu0 %v3393
        %v3657 = vpop.f32.mrf.mxu0
        %v3658 = vadd.f32 0.0, %v3657
        %v3659 = vpop.f32.mrf.mxu0
        %3660 = vmatprep.mubr.f32.mxu0 0.0
        %3661 = vmatmul.mubr.f32.gmra.mxu0 %v3396
        %v3662 = vpop.f32.mrf.mxu0
        %v3663 = vadd.f32 0.0, %v3662
        %v3664 = vpop.f32.mrf.mxu0
        %3665 = vmatprep.mubr.f32.mxu0 0.0
        %3666 = vmatmul.mubr.f32.gmra.mxu0 %v3399
        %v3667 = vpop.f32.mrf.mxu0
        %v3668 = vadd.f32 0.0, %v3667
        %v3669 = vpop.f32.mrf.mxu0
        %3670 = vmatprep.mubr.f32.mxu0 0.0
        %3671 = vmatmul.mubr.f32.gmra.mxu0 %v3402
        %v3672 = vpop.f32.mrf.mxu0
        %v3673 = vadd.f32 0.0, %v3672
        %v3674 = vpop.f32.mrf.mxu0
        %3675 = vmatprep.mubr.f32.mxu0 0.0
        %3676 = vmatmul.mubr.f32.gmra.mxu0 %v3405
        %v3677 = vpop.f32.mrf.mxu0
        %v3678 = vadd.f32 0.0, %v3677
        %v3679 = vpop.f32.mrf.mxu0
        %3680 = vmatprep.mubr.f32.mxu0 0.0
        %3681 = vmatmul.mubr.f32.gmra.mxu0 %v3408
        %v3682 = vpop.f32.mrf.mxu0
        %v3683 = vadd.f32 0.0, %v3682
        %v3684 = vpop.f32.mrf.mxu0
        %3685 = vmatprep.mubr.f32.mxu0 0.0
        %3686 = vmatmul.mubr.f32.gmra.mxu0 %v3411
        %v3687 = vpop.f32.mrf.mxu0
        %v3688 = vadd.f32 0.0, %v3687
        %v3689 = vpop.f32.mrf.mxu0
        %3690 = vmatprep.mubr.f32.mxu0 0.0
        %3691 = vmatmul.mubr.f32.gmra.mxu0 %v3414
        %v3692 = vpop.f32.mrf.mxu0
        %v3693 = vadd.f32 0.0, %v3692
        %v3694 = vpop.f32.mrf.mxu0
        %3695 = vmatprep.mubr.f32.mxu0 0.0
        %3696 = vmatmul.mubr.f32.gmra.mxu0 %v3417
        %v3697 = vpop.f32.mrf.mxu0
        %v3698 = vadd.f32 0.0, %v3697
        %v3699 = vpop.f32.mrf.mxu0
        %3700 = vmatprep.mubr.f32.mxu0 0.0
        %3701 = vmatmul.mubr.f32.gmra.mxu0 %v3420
        %v3702 = vpop.f32.mrf.mxu0
        %v3703 = vadd.f32 0.0, %v3702
        %v3704 = vpop.f32.mrf.mxu0
        %3705 = vmatprep.mubr.f32.mxu0 0.0
        %3706 = vmatmul.mubr.f32.gmra.mxu0 %v3423
        %v3707 = vpop.f32.mrf.mxu0
        %v3708 = vadd.f32 0.0, %v3707
        %v3709 = vpop.f32.mrf.mxu0
        %3710 = vmatprep.mubr.f32.mxu0 0.0
        %3711 = vmatmul.mubr.f32.gmra.mxu0 %v3426
        %v3712 = vpop.f32.mrf.mxu0
        %v3713 = vadd.f32 0.0, %v3712
        %v3714 = vpop.f32.mrf.mxu0
        %3715 = vmatprep.mubr.f32.mxu0 0.0
        %3716 = vmatmul.mubr.f32.gmra.mxu0 %v3429
        %v3717 = vpop.f32.mrf.mxu0
        %v3718 = vadd.f32 0.0, %v3717
        %v3719 = vpop.f32.mrf.mxu0
        %3720 = vmatprep.mubr.f32.mxu0 0.0
        %3721 = vmatmul.mubr.f32.gmra.mxu0 %v3432
        %v3722 = vpop.f32.mrf.mxu0
        %v3723 = vadd.f32 0.0, %v3722
        %v3724 = vpop.f32.mrf.mxu0
        %3725 = vmatprep.mubr.f32.mxu0 0.0
        %3726 = vmatmul.mubr.f32.gmra.mxu0 %v3435
        %v3727 = vpop.f32.mrf.mxu0
        %v3728 = vadd.f32 0.0, %v3727
        %v3729 = vpop.f32.mrf.mxu0
        %3730 = vmatprep.mubr.f32.mxu0 0.0
        %3731 = vmatmul.mubr.f32.gmra.mxu0 %v3438
        %v3732 = vpop.f32.mrf.mxu0
        %v3733 = vadd.f32 0.0, %v3732
        %v3734 = vpop.f32.mrf.mxu0
        %3735 = vmatprep.mubr.f32.mxu0 0.0
        %3736 = vmatmul.mubr.f32.gmra.mxu0 %v3441
        %v3737 = vpop.f32.mrf.mxu0
        %v3738 = vadd.f32 0.0, %v3737
        %v3739 = vpop.f32.mrf.mxu0
        %3740 = vmatprep.mubr.f32.mxu0 0.0
        %3741 = vmatmul.mubr.f32.gmra.mxu0 %v3444
        %v3742 = vpop.f32.mrf.mxu0
        %v3743 = vadd.f32 0.0, %v3742
        %v3744 = vpop.f32.mrf.mxu0
        %3745 = vmatprep.mubr.f32.mxu0 0.0
        %3746 = vmatmul.mubr.f32.gmra.mxu0 %v3447
        %v3747 = vpop.f32.mrf.mxu0
        %v3748 = vadd.f32 0.0, %v3747
        %v3749 = vpop.f32.mrf.mxu0
        %3750 = vmatprep.mubr.f32.mxu0 0.0
        %3751 = vmatmul.mubr.f32.gmra.mxu0 %v3450
        %v3752 = vpop.f32.mrf.mxu0
        %v3753 = vadd.f32 0.0, %v3752
        %v3754 = vpop.f32.mrf.mxu0
        %3755 = vmatprep.mubr.f32.mxu0 0.0
        %3756 = vmatmul.mubr.f32.gmra.mxu0 %v3453
        %v3757 = vpop.f32.mrf.mxu0
        %v3758 = vadd.f32 0.0, %v3757
        %v3759 = vpop.f32.mrf.mxu0
        %3760 = vmatprep.mubr.f32.mxu0 0.0
        %3761 = vmatmul.mubr.f32.gmra.mxu0 %v3456
        %v3762 = vpop.f32.mrf.mxu0
        %v3763 = vadd.f32 0.0, %v3762
        %v3764 = vpop.f32.mrf.mxu0
        %3765 = vmatprep.mubr.f32.mxu0 0.0
        %3766 = vmatmul.mubr.f32.gmra.mxu0 %v3459
        %v3767 = vpop.f32.mrf.mxu0
        %v3768 = vadd.f32 0.0, %v3767
        %v3769 = vpop.f32.mrf.mxu0
        %3770 = vmatprep.mubr.f32.mxu0 0.0
        %3771 = vmatmul.mubr.f32.gmra.mxu0 %v3462
        %v3772 = vpop.f32.mrf.mxu0
        %v3773 = vadd.f32 0.0, %v3772
        %v3774 = vpop.f32.mrf.mxu0
        %3775 = vmatprep.mubr.f32.mxu0 0.0
        %3776 = vmatmul.mubr.f32.gmra.mxu0 %v3465
        %v3777 = vpop.f32.mrf.mxu0
        %v3778 = vadd.f32 0.0, %v3777
        %v3779 = vpop.f32.mrf.mxu0
        %3780 = vmatprep.mubr.f32.mxu0 0.0
        %3781 = vmatmul.mubr.f32.gmra.mxu0 %v3468
        %v3782 = vpop.f32.mrf.mxu0
        %v3783 = vadd.f32 0.0, %v3782
        %v3784 = vpop.f32.mrf.mxu0
        %3785 = vmatprep.mubr.f32.mxu0 0.0
        %3786 = vmatmul.mubr.f32.gmra.mxu0 %v3471
        %v3787 = vpop.f32.mrf.mxu0
        %v3788 = vadd.f32 0.0, %v3787
        %v3789 = vpop.f32.mrf.mxu0
        %3790 = vmatprep.mubr.f32.mxu0 0.0
        %3791 = vmatmul.mubr.f32.gmra.mxu0 %v3474
        %v3792 = vpop.f32.mrf.mxu0
        %v3793 = vadd.f32 0.0, %v3792
        %v3794 = vpop.f32.mrf.mxu0
        %3795 = vmatprep.mubr.f32.mxu0 0.0
        %3796 = vmatmul.mubr.f32.gmra.mxu0 %v3477
        %v3797 = vpop.f32.mrf.mxu0
        %v3798 = vadd.f32 0.0, %v3797
        %v3799 = vpop.f32.mrf.mxu0
        %3800 = vmatprep.mubr.f32.mxu0 0.0
        %3801 = vmatmul.mubr.f32.gmra.mxu0 %v3480
        %v3802 = vpop.f32.mrf.mxu0
        %v3803 = vadd.f32 0.0, %v3802
        %v3804 = vpop.f32.mrf.mxu0
        %3805 = vmatprep.mubr.f32.mxu0 0.0
        %3806 = vmatmul.mubr.f32.gmra.mxu0 %v3483
        %v3807 = vpop.f32.mrf.mxu0
        %v3808 = vadd.f32 0.0, %v3807
        %v3809 = vpop.f32.mrf.mxu0
        %3810 = vmatprep.mubr.f32.mxu0 0.0
        %3811 = vmatmul.mubr.f32.gmra.mxu0 %v3486
        %v3812 = vpop.f32.mrf.mxu0
        %v3813 = vadd.f32 0.0, %v3812
        %v3814 = vpop.f32.mrf.mxu0
        %3815 = vmatprep.mubr.f32.mxu0 0.0
        %3816 = vmatmul.mubr.f32.gmra.mxu0 %v3489
        %v3817 = vpop.f32.mrf.mxu0
        %v3818 = vadd.f32 0.0, %v3817
        %v3819 = vpop.f32.mrf.mxu0
        %3820 = vmatprep.mubr.f32.mxu0 0.0
        %3821 = vmatmul.mubr.f32.gmra.mxu0 %v3492
        %v3822 = vpop.f32.mrf.mxu0
        %v3823 = vadd.f32 0.0, %v3822
        %v3824 = vpop.f32.mrf.mxu0
        %3825 = vmatprep.mubr.f32.mxu0 0.0
        %3826 = vmatmul.mubr.f32.gmra.mxu0 %v3495
        %v3827 = vpop.f32.mrf.mxu0
        %v3828 = vadd.f32 0.0, %v3827
        %v3829 = vpop.f32.mrf.mxu0
        %3830 = vmatprep.mubr.f32.mxu0 0.0
        %3831 = vmatmul.mubr.f32.gmra.mxu0 %v3498
        %v3832 = vpop.f32.mrf.mxu0
        %v3833 = vadd.f32 0.0, %v3832
        %v3834 = vpop.f32.mrf.mxu0
        %3835 = vmatprep.mubr.f32.mxu0 0.0
        %3836 = vmatmul.mubr.f32.gmra.mxu0 %v3501
        %v3837 = vpop.f32.mrf.mxu0
        %v3838 = vadd.f32 0.0, %v3837
        %v3839 = vpop.f32.mrf.mxu0
        %3840 = vdwg.mxu0
        %v3841 = vadd.f32 %v3231, %v3573
        %v3842 = vadd.f32 %v3232, %v3578
        %v3843 = vadd.f32 %v3233, %v3583
        %v3844 = vadd.f32 %v3234, %v3588
        %v3845 = vadd.f32 %v3235, %v3593
        %v3846 = vadd.f32 %v3236, %v3598
        %v3847 = vadd.f32 %v3237, %v3603
        %v3848 = vadd.f32 %v3238, %v3608
        %v3849 = vadd.f32 %v3239, %v3613
        %v3850 = vadd.f32 %v3240, %v3618
        %v3851 = vadd.f32 %v3241, %v3623
        %v3852 = vadd.f32 %v3242, %v3628
        %v3853 = vadd.f32 %v3243, %v3633
        %v3854 = vadd.f32 %v3244, %v3638
        %v3855 = vadd.f32 %v3245, %v3643
        %v3856 = vadd.f32 %v3246, %v3648
        %v3857 = vadd.f32 %v3247, %v3653
        %v3858 = vadd.f32 %v3248, %v3658
        %v3859 = vadd.f32 %v3249, %v3663
        %v3860 = vadd.f32 %v3250, %v3668
        %v3861 = vadd.f32 %v3251, %v3673
        %v3862 = vadd.f32 %v3252, %v3678
        %v3863 = vadd.f32 %v3253, %v3683
        %v3864 = vadd.f32 %v3254, %v3688
        %v3865 = vadd.f32 %v3255, %v3693
        %v3866 = vadd.f32 %v3256, %v3698
        %v3867 = vadd.f32 %v3257, %v3703
        %v3868 = vadd.f32 %v3258, %v3708
        %v3869 = vadd.f32 %v3259, %v3713
        %v3870 = vadd.f32 %v3260, %v3718
        %v3871 = vadd.f32 %v3261, %v3723
        %v3872 = vadd.f32 %v3262, %v3728
        %v3873 = vadd.f32 %v3263, %v3733
        %v3874 = vadd.f32 %v3264, %v3738
        %v3875 = vadd.f32 %v3265, %v3743
        %v3876 = vadd.f32 %v3266, %v3748
        %v3877 = vadd.f32 %v3267, %v3753
        %v3878 = vadd.f32 %v3268, %v3758
        %v3879 = vadd.f32 %v3269, %v3763
        %v3880 = vadd.f32 %v3270, %v3768
        %v3881 = vadd.f32 %v3271, %v3773
        %v3882 = vadd.f32 %v3272, %v3778
        %v3883 = vadd.f32 %v3273, %v3783
        %v3884 = vadd.f32 %v3274, %v3788
        %v3885 = vadd.f32 %v3275, %v3793
        %v3886 = vadd.f32 %v3276, %v3798
        %v3887 = vadd.f32 %v3277, %v3803
        %v3888 = vadd.f32 %v3278, %v3808
        %v3889 = vadd.f32 %v3279, %v3813
        %v3890 = vadd.f32 %v3280, %v3818
        %v3891 = vadd.f32 %v3281, %v3823
        %v3892 = vadd.f32 %v3282, %v3828
        %v3893 = vadd.f32 %v3283, %v3833
        %v3894 = vadd.f32 %v3284, %v3838
        %s3895 = scalar_lea.vmem %s224, 64
        %v3896 = vld [vmem:[%s3895] sm:$0xff]
        %v3897 = vld [vmem:[%s3895 + $0x8] sm:$0xff]
        %v3898 = vld [vmem:[%s3895 + $0x10] sm:$0xff]
        %v3899 = vld [vmem:[%s3895 + $0x20] sm:$0xff]
        %v3900 = vld [vmem:[%s3895 + $0x28] sm:$0xff]
        %v3901 = vld [vmem:[%s3895 + $0x30] sm:$0xff]
        %v3902 = vld [vmem:[%s3895 + $0x40] sm:$0xff]
        %v3903 = vld [vmem:[%s3895 + $0x48] sm:$0xff]
        %v3904 = vld [vmem:[%s3895 + $0x50] sm:$0xff]
        %v3905 = vld [vmem:[%s3895 + $0x60] sm:$0xff]
        %v3906 = vld [vmem:[%s3895 + $0x68] sm:$0xff]
        %v3907 = vld [vmem:[%s3895 + $0x70] sm:$0xff]
        %v3908 = vld [vmem:[%s3895 + $0x80] sm:$0xff]
        %v3909 = vld [vmem:[%s3895 + $0x88] sm:$0xff]
        %v3910 = vld [vmem:[%s3895 + $0x90] sm:$0xff]
        %v3911 = vld [vmem:[%s3895 + $0xa0] sm:$0xff]
        %v3912 = vld [vmem:[%s3895 + $0xa8] sm:$0xff]
        %v3913 = vld [vmem:[%s3895 + $0xb0] sm:$0xff]
        %v3914 = vld [vmem:[%s3895 + $0xc0] sm:$0xff]
        %v3915 = vld [vmem:[%s3895 + $0xc8] sm:$0xff]
        %v3916 = vld [vmem:[%s3895 + $0xd0] sm:$0xff]
        %v3917 = vld [vmem:[%s3895 + $0xe0] sm:$0xff]
        %v3918 = vld [vmem:[%s3895 + $0xe8] sm:$0xff]
        %v3919 = vld [vmem:[%s3895 + $0xf0] sm:$0xff]
        %v3920 = vld [vmem:[%s3895 + $0x100] sm:$0xff]
        %v3921 = vld [vmem:[%s3895 + $0x108] sm:$0xff]
        %v3922 = vld [vmem:[%s3895 + $0x110] sm:$0xff]
        %v3923 = vld [vmem:[%s3895 + $0x120] sm:$0xff]
        %v3924 = vld [vmem:[%s3895 + $0x128] sm:$0xff]
        %v3925 = vld [vmem:[%s3895 + $0x130] sm:$0xff]
        %v3926 = vld [vmem:[%s3895 + $0x140] sm:$0xff]
        %v3927 = vld [vmem:[%s3895 + $0x148] sm:$0xff]
        %v3928 = vld [vmem:[%s3895 + $0x150] sm:$0xff]
        %v3929 = vld [vmem:[%s3895 + $0x160] sm:$0xff]
        %v3930 = vld [vmem:[%s3895 + $0x168] sm:$0xff]
        %v3931 = vld [vmem:[%s3895 + $0x170] sm:$0xff]
        %v3932 = vld [vmem:[%s3895 + $0x180] sm:$0xff]
        %v3933 = vld [vmem:[%s3895 + $0x188] sm:$0xff]
        %v3934 = vld [vmem:[%s3895 + $0x190] sm:$0xff]
        %v3935 = vld [vmem:[%s3895 + $0x1a0] sm:$0xff]
        %v3936 = vld [vmem:[%s3895 + $0x1a8] sm:$0xff]
        %v3937 = vld [vmem:[%s3895 + $0x1b0] sm:$0xff]
        %v3938 = vld [vmem:[%s3895 + $0x1c0] sm:$0xff]
        %v3939 = vld [vmem:[%s3895 + $0x1c8] sm:$0xff]
        %v3940 = vld [vmem:[%s3895 + $0x1d0] sm:$0xff]
        %v3941 = vld [vmem:[%s3895 + $0x1e0] sm:$0xff]
        %v3942 = vld [vmem:[%s3895 + $0x1e8] sm:$0xff]
        %v3943 = vld [vmem:[%s3895 + $0x1f0] sm:$0xff]
        %v3944 = vld [vmem:[%s3895 + $0x200] sm:$0xff]
        %v3945 = vld [vmem:[%s3895 + $0x208] sm:$0xff]
        %v3946 = vld [vmem:[%s3895 + $0x210] sm:$0xff]
        %v3947 = vld [vmem:[%s3895 + $0x220] sm:$0xff]
        %v3948 = vld [vmem:[%s3895 + $0x228] sm:$0xff]
        %v3949 = vld [vmem:[%s3895 + $0x230] sm:$0xff]
        %s3950 = scalar_lea.vmem %s1, 24
        %v3951 = vld [vmem:[%s3950] sm:$0x7]
        %v3953 = vsel %vm288, %v3896, 0
        %v3956 = vsel %vm288, %v3897, 0
        %v3959 = vsel %vm288, %v3898, 0
        %v3962 = vsel %vm288, %v3899, 0
        %v3965 = vsel %vm288, %v3900, 0
        %v3968 = vsel %vm288, %v3901, 0
        %v3971 = vsel %vm288, %v3902, 0
        %v3974 = vsel %vm288, %v3903, 0
        %v3977 = vsel %vm288, %v3904, 0
        %v3980 = vsel %vm288, %v3905, 0
        %v3983 = vsel %vm288, %v3906, 0
        %v3986 = vsel %vm288, %v3907, 0
        %v3989 = vsel %vm288, %v3908, 0
        %v3992 = vsel %vm288, %v3909, 0
        %v3995 = vsel %vm288, %v3910, 0
        %v3998 = vsel %vm288, %v3911, 0
        %v4001 = vsel %vm288, %v3912, 0
        %v4004 = vsel %vm288, %v3913, 0
        %v4007 = vsel %vm288, %v3914, 0
        %v4010 = vsel %vm288, %v3915, 0
        %v4013 = vsel %vm288, %v3916, 0
        %v4016 = vsel %vm288, %v3917, 0
        %v4019 = vsel %vm288, %v3918, 0
        %v4022 = vsel %vm288, %v3919, 0
        %v4025 = vsel %vm288, %v3920, 0
        %v4028 = vsel %vm288, %v3921, 0
        %v4031 = vsel %vm288, %v3922, 0
        %v4034 = vsel %vm288, %v3923, 0
        %v4037 = vsel %vm288, %v3924, 0
        %v4040 = vsel %vm288, %v3925, 0
        %v4043 = vsel %vm288, %v3926, 0
        %v4046 = vsel %vm288, %v3927, 0
        %v4049 = vsel %vm288, %v3928, 0
        %v4052 = vsel %vm288, %v3929, 0
        %v4055 = vsel %vm288, %v3930, 0
        %v4058 = vsel %vm288, %v3931, 0
        %v4061 = vsel %vm288, %v3932, 0
        %v4064 = vsel %vm288, %v3933, 0
        %v4067 = vsel %vm288, %v3934, 0
        %v4070 = vsel %vm288, %v3935, 0
        %v4073 = vsel %vm288, %v3936, 0
        %v4076 = vsel %vm288, %v3937, 0
        %v4079 = vsel %vm288, %v3938, 0
        %v4082 = vsel %vm288, %v3939, 0
        %v4085 = vsel %vm288, %v3940, 0
        %v4088 = vsel %vm288, %v3941, 0
        %v4091 = vsel %vm288, %v3942, 0
        %v4094 = vsel %vm288, %v3943, 0
        %v4097 = vsel %vm288, %v3944, 0
        %v4100 = vsel %vm288, %v3945, 0
        %v4103 = vsel %vm288, %v3946, 0
        %v4106 = vsel %vm288, %v3947, 0
        %v4109 = vsel %vm288, %v3948, 0
        %v4112 = vsel %vm288, %v3949, 0
        %v4115 = vsel %vm451, %v3951, 0
        %4117 = vmatprep.subr.mxu0 0.0
        %4118 = vmatpush1.msra.mxu0 0.0
        %4119 = vmatprep.subr.mxu0 0.0
        %4120 = vmatpush1.msra.mxu0 0.0
        %4121 = vmatprep.subr.mxu0 0.0
        %4122 = vmatpush1.msra.mxu0 0.0
        %4123 = vmatprep.subr.mxu0 0.0
        %4124 = vmatpush1.msra.mxu0 0.0
        %4125 = vmatprep.subr.mxu0 0.0
        %4126 = vmatpush1.msra.mxu0 0.0
        %4127 = vmatprep.subr.mxu0 0.0
        %4128 = vmatpush1.msra.mxu0 0.0
        %4129 = vmatprep.subr.mxu0 0.0
        %4130 = vmatpush1.msra.mxu0 0.0
        %4131 = vmatprep.subr.mxu0 0.0
        %4132 = vmatpush1.msra.mxu0 0.0
        %4133 = vmatprep.subr.mxu0 0.0
        %4134 = vmatpush1.msra.mxu0 0.0
        %4135 = vmatprep.subr.mxu0 0.0
        %4136 = vmatpush1.msra.mxu0 0.0
        %4137 = vmatprep.subr.mxu0 0.0
        %4138 = vmatpush1.msra.mxu0 0.0
        %4139 = vmatprep.subr.mxu0 0.0
        %4140 = vmatpush1.msra.mxu0 0.0
        %4141 = vmatprep.subr.mxu0 0.0
        %4142 = vmatpush1.msra.mxu0 0.0
        %4143 = vmatprep.subr.mxu0 0.0
        %4144 = vmatpush1.msra.mxu0 0.0
        %4145 = vmatprep.subr.mxu0 0.0
        %4146 = vmatpush1.msra.mxu0 0.0
        %4147 = vmatprep.subr.mxu0 0.0
        %4148 = vmatpush1.msra.mxu0 %v4115
        %4149 = vmatprep.subr.mxu0 0.0
        %4150 = vmatpush2.msra.mxu0 0.0
        %4151 = vmatprep.subr.mxu0 0.0
        %4152 = vmatpush2.msra.mxu0 0.0
        %4153 = vmatprep.subr.mxu0 0.0
        %4154 = vmatpush2.msra.mxu0 0.0
        %4155 = vmatprep.subr.mxu0 0.0
        %4156 = vmatpush2.msra.mxu0 0.0
        %4157 = vmatprep.subr.mxu0 0.0
        %4158 = vmatpush2.msra.mxu0 0.0
        %4159 = vmatprep.subr.mxu0 0.0
        %4160 = vmatpush2.msra.mxu0 0.0
        %4161 = vmatprep.subr.mxu0 0.0
        %4162 = vmatpush2.msra.mxu0 0.0
        %4163 = vmatprep.subr.mxu0 0.0
        %4164 = vmatpush2.msra.mxu0 0.0
        %4165 = vmatprep.subr.mxu0 0.0
        %4166 = vmatpush2.msra.mxu0 0.0
        %4167 = vmatprep.subr.mxu0 0.0
        %4168 = vmatpush2.msra.mxu0 0.0
        %4169 = vmatprep.subr.mxu0 0.0
        %4170 = vmatpush2.msra.mxu0 0.0
        %4171 = vmatprep.subr.mxu0 0.0
        %4172 = vmatpush2.msra.mxu0 0.0
        %4173 = vmatprep.subr.mxu0 0.0
        %4174 = vmatpush2.msra.mxu0 0.0
        %4175 = vmatprep.subr.mxu0 0.0
        %4176 = vmatpush2.msra.mxu0 0.0
        %4177 = vmatprep.subr.mxu0 0.0
        %4178 = vmatpush2.msra.mxu0 0.0
        %4179 = vmatprep.subr.mxu0 0.0
        %4180 = vmatpush2.msra.mxu0 0.0
        %4181 = vmatprep.mubr.f32.mxu0 0.0
        %4182 = vmatmul.mubr.f32.gmra.mxu0 %v3953
        %v4183 = vpop.f32.mrf.mxu0
        %v4184 = vadd.f32 0.0, %v4183
        %v4185 = vpop.f32.mrf.mxu0
        %4186 = vmatprep.mubr.f32.mxu0 0.0
        %4187 = vmatmul.mubr.f32.gmra.mxu0 %v3956
        %v4188 = vpop.f32.mrf.mxu0
        %v4189 = vadd.f32 0.0, %v4188
        %v4190 = vpop.f32.mrf.mxu0
        %4191 = vmatprep.mubr.f32.mxu0 0.0
        %4192 = vmatmul.mubr.f32.gmra.mxu0 %v3959
        %v4193 = vpop.f32.mrf.mxu0
        %v4194 = vadd.f32 0.0, %v4193
        %v4195 = vpop.f32.mrf.mxu0
        %4196 = vmatprep.mubr.f32.mxu0 0.0
        %4197 = vmatmul.mubr.f32.gmra.mxu0 %v3962
        %v4198 = vpop.f32.mrf.mxu0
        %v4199 = vadd.f32 0.0, %v4198
        %v4200 = vpop.f32.mrf.mxu0
        %4201 = vmatprep.mubr.f32.mxu0 0.0
        %4202 = vmatmul.mubr.f32.gmra.mxu0 %v3965
        %v4203 = vpop.f32.mrf.mxu0
        %v4204 = vadd.f32 0.0, %v4203
        %v4205 = vpop.f32.mrf.mxu0
        %4206 = vmatprep.mubr.f32.mxu0 0.0
        %4207 = vmatmul.mubr.f32.gmra.mxu0 %v3968
        %v4208 = vpop.f32.mrf.mxu0
        %v4209 = vadd.f32 0.0, %v4208
        %v4210 = vpop.f32.mrf.mxu0
        %4211 = vmatprep.mubr.f32.mxu0 0.0
        %4212 = vmatmul.mubr.f32.gmra.mxu0 %v3971
        %v4213 = vpop.f32.mrf.mxu0
        %v4214 = vadd.f32 0.0, %v4213
        %v4215 = vpop.f32.mrf.mxu0
        %4216 = vmatprep.mubr.f32.mxu0 0.0
        %4217 = vmatmul.mubr.f32.gmra.mxu0 %v3974
        %v4218 = vpop.f32.mrf.mxu0
        %v4219 = vadd.f32 0.0, %v4218
        %v4220 = vpop.f32.mrf.mxu0
        %4221 = vmatprep.mubr.f32.mxu0 0.0
        %4222 = vmatmul.mubr.f32.gmra.mxu0 %v3977
        %v4223 = vpop.f32.mrf.mxu0
        %v4224 = vadd.f32 0.0, %v4223
        %v4225 = vpop.f32.mrf.mxu0
        %4226 = vmatprep.mubr.f32.mxu0 0.0
        %4227 = vmatmul.mubr.f32.gmra.mxu0 %v3980
        %v4228 = vpop.f32.mrf.mxu0
        %v4229 = vadd.f32 0.0, %v4228
        %v4230 = vpop.f32.mrf.mxu0
        %4231 = vmatprep.mubr.f32.mxu0 0.0
        %4232 = vmatmul.mubr.f32.gmra.mxu0 %v3983
        %v4233 = vpop.f32.mrf.mxu0
        %v4234 = vadd.f32 0.0, %v4233
        %v4235 = vpop.f32.mrf.mxu0
        %4236 = vmatprep.mubr.f32.mxu0 0.0
        %4237 = vmatmul.mubr.f32.gmra.mxu0 %v3986
        %v4238 = vpop.f32.mrf.mxu0
        %v4239 = vadd.f32 0.0, %v4238
        %v4240 = vpop.f32.mrf.mxu0
        %4241 = vmatprep.mubr.f32.mxu0 0.0
        %4242 = vmatmul.mubr.f32.gmra.mxu0 %v3989
        %v4243 = vpop.f32.mrf.mxu0
        %v4244 = vadd.f32 0.0, %v4243
        %v4245 = vpop.f32.mrf.mxu0
        %4246 = vmatprep.mubr.f32.mxu0 0.0
        %4247 = vmatmul.mubr.f32.gmra.mxu0 %v3992
        %v4248 = vpop.f32.mrf.mxu0
        %v4249 = vadd.f32 0.0, %v4248
        %v4250 = vpop.f32.mrf.mxu0
        %4251 = vmatprep.mubr.f32.mxu0 0.0
        %4252 = vmatmul.mubr.f32.gmra.mxu0 %v3995
        %v4253 = vpop.f32.mrf.mxu0
        %v4254 = vadd.f32 0.0, %v4253
        %v4255 = vpop.f32.mrf.mxu0
        %4256 = vmatprep.mubr.f32.mxu0 0.0
        %4257 = vmatmul.mubr.f32.gmra.mxu0 %v3998
        %v4258 = vpop.f32.mrf.mxu0
        %v4259 = vadd.f32 0.0, %v4258
        %v4260 = vpop.f32.mrf.mxu0
        %4261 = vmatprep.mubr.f32.mxu0 0.0
        %4262 = vmatmul.mubr.f32.gmra.mxu0 %v4001
        %v4263 = vpop.f32.mrf.mxu0
        %v4264 = vadd.f32 0.0, %v4263
        %v4265 = vpop.f32.mrf.mxu0
        %4266 = vmatprep.mubr.f32.mxu0 0.0
        %4267 = vmatmul.mubr.f32.gmra.mxu0 %v4004
        %v4268 = vpop.f32.mrf.mxu0
        %v4269 = vadd.f32 0.0, %v4268
        %v4270 = vpop.f32.mrf.mxu0
        %4271 = vmatprep.mubr.f32.mxu0 0.0
        %4272 = vmatmul.mubr.f32.gmra.mxu0 %v4007
        %v4273 = vpop.f32.mrf.mxu0
        %v4274 = vadd.f32 0.0, %v4273
        %v4275 = vpop.f32.mrf.mxu0
        %4276 = vmatprep.mubr.f32.mxu0 0.0
        %4277 = vmatmul.mubr.f32.gmra.mxu0 %v4010
        %v4278 = vpop.f32.mrf.mxu0
        %v4279 = vadd.f32 0.0, %v4278
        %v4280 = vpop.f32.mrf.mxu0
        %4281 = vmatprep.mubr.f32.mxu0 0.0
        %4282 = vmatmul.mubr.f32.gmra.mxu0 %v4013
        %v4283 = vpop.f32.mrf.mxu0
        %v4284 = vadd.f32 0.0, %v4283
        %v4285 = vpop.f32.mrf.mxu0
        %4286 = vmatprep.mubr.f32.mxu0 0.0
        %4287 = vmatmul.mubr.f32.gmra.mxu0 %v4016
        %v4288 = vpop.f32.mrf.mxu0
        %v4289 = vadd.f32 0.0, %v4288
        %v4290 = vpop.f32.mrf.mxu0
        %4291 = vmatprep.mubr.f32.mxu0 0.0
        %4292 = vmatmul.mubr.f32.gmra.mxu0 %v4019
        %v4293 = vpop.f32.mrf.mxu0
        %v4294 = vadd.f32 0.0, %v4293
        %v4295 = vpop.f32.mrf.mxu0
        %4296 = vmatprep.mubr.f32.mxu0 0.0
        %4297 = vmatmul.mubr.f32.gmra.mxu0 %v4022
        %v4298 = vpop.f32.mrf.mxu0
        %v4299 = vadd.f32 0.0, %v4298
        %v4300 = vpop.f32.mrf.mxu0
        %4301 = vmatprep.mubr.f32.mxu0 0.0
        %4302 = vmatmul.mubr.f32.gmra.mxu0 %v4025
        %v4303 = vpop.f32.mrf.mxu0
        %v4304 = vadd.f32 0.0, %v4303
        %v4305 = vpop.f32.mrf.mxu0
        %4306 = vmatprep.mubr.f32.mxu0 0.0
        %4307 = vmatmul.mubr.f32.gmra.mxu0 %v4028
        %v4308 = vpop.f32.mrf.mxu0
        %v4309 = vadd.f32 0.0, %v4308
        %v4310 = vpop.f32.mrf.mxu0
        %4311 = vmatprep.mubr.f32.mxu0 0.0
        %4312 = vmatmul.mubr.f32.gmra.mxu0 %v4031
        %v4313 = vpop.f32.mrf.mxu0
        %v4314 = vadd.f32 0.0, %v4313
        %v4315 = vpop.f32.mrf.mxu0
        %4316 = vmatprep.mubr.f32.mxu0 0.0
        %4317 = vmatmul.mubr.f32.gmra.mxu0 %v4034
        %v4318 = vpop.f32.mrf.mxu0
        %v4319 = vadd.f32 0.0, %v4318
        %v4320 = vpop.f32.mrf.mxu0
        %4321 = vmatprep.mubr.f32.mxu0 0.0
        %4322 = vmatmul.mubr.f32.gmra.mxu0 %v4037
        %v4323 = vpop.f32.mrf.mxu0
        %v4324 = vadd.f32 0.0, %v4323
        %v4325 = vpop.f32.mrf.mxu0
        %4326 = vmatprep.mubr.f32.mxu0 0.0
        %4327 = vmatmul.mubr.f32.gmra.mxu0 %v4040
        %v4328 = vpop.f32.mrf.mxu0
        %v4329 = vadd.f32 0.0, %v4328
        %v4330 = vpop.f32.mrf.mxu0
        %4331 = vmatprep.mubr.f32.mxu0 0.0
        %4332 = vmatmul.mubr.f32.gmra.mxu0 %v4043
        %v4333 = vpop.f32.mrf.mxu0
        %v4334 = vadd.f32 0.0, %v4333
        %v4335 = vpop.f32.mrf.mxu0
        %4336 = vmatprep.mubr.f32.mxu0 0.0
        %4337 = vmatmul.mubr.f32.gmra.mxu0 %v4046
        %v4338 = vpop.f32.mrf.mxu0
        %v4339 = vadd.f32 0.0, %v4338
        %v4340 = vpop.f32.mrf.mxu0
        %4341 = vmatprep.mubr.f32.mxu0 0.0
        %4342 = vmatmul.mubr.f32.gmra.mxu0 %v4049
        %v4343 = vpop.f32.mrf.mxu0
        %v4344 = vadd.f32 0.0, %v4343
        %v4345 = vpop.f32.mrf.mxu0
        %4346 = vmatprep.mubr.f32.mxu0 0.0
        %4347 = vmatmul.mubr.f32.gmra.mxu0 %v4052
        %v4348 = vpop.f32.mrf.mxu0
        %v4349 = vadd.f32 0.0, %v4348
        %v4350 = vpop.f32.mrf.mxu0
        %4351 = vmatprep.mubr.f32.mxu0 0.0
        %4352 = vmatmul.mubr.f32.gmra.mxu0 %v4055
        %v4353 = vpop.f32.mrf.mxu0
        %v4354 = vadd.f32 0.0, %v4353
        %v4355 = vpop.f32.mrf.mxu0
        %4356 = vmatprep.mubr.f32.mxu0 0.0
        %4357 = vmatmul.mubr.f32.gmra.mxu0 %v4058
        %v4358 = vpop.f32.mrf.mxu0
        %v4359 = vadd.f32 0.0, %v4358
        %v4360 = vpop.f32.mrf.mxu0
        %4361 = vmatprep.mubr.f32.mxu0 0.0
        %4362 = vmatmul.mubr.f32.gmra.mxu0 %v4061
        %v4363 = vpop.f32.mrf.mxu0
        %v4364 = vadd.f32 0.0, %v4363
        %v4365 = vpop.f32.mrf.mxu0
        %4366 = vmatprep.mubr.f32.mxu0 0.0
        %4367 = vmatmul.mubr.f32.gmra.mxu0 %v4064
        %v4368 = vpop.f32.mrf.mxu0
        %v4369 = vadd.f32 0.0, %v4368
        %v4370 = vpop.f32.mrf.mxu0
        %4371 = vmatprep.mubr.f32.mxu0 0.0
        %4372 = vmatmul.mubr.f32.gmra.mxu0 %v4067
        %v4373 = vpop.f32.mrf.mxu0
        %v4374 = vadd.f32 0.0, %v4373
        %v4375 = vpop.f32.mrf.mxu0
        %4376 = vmatprep.mubr.f32.mxu0 0.0
        %4377 = vmatmul.mubr.f32.gmra.mxu0 %v4070
        %v4378 = vpop.f32.mrf.mxu0
        %v4379 = vadd.f32 0.0, %v4378
        %v4380 = vpop.f32.mrf.mxu0
        %4381 = vmatprep.mubr.f32.mxu0 0.0
        %4382 = vmatmul.mubr.f32.gmra.mxu0 %v4073
        %v4383 = vpop.f32.mrf.mxu0
        %v4384 = vadd.f32 0.0, %v4383
        %v4385 = vpop.f32.mrf.mxu0
        %4386 = vmatprep.mubr.f32.mxu0 0.0
        %4387 = vmatmul.mubr.f32.gmra.mxu0 %v4076
        %v4388 = vpop.f32.mrf.mxu0
        %v4389 = vadd.f32 0.0, %v4388
        %v4390 = vpop.f32.mrf.mxu0
        %4391 = vmatprep.mubr.f32.mxu0 0.0
        %4392 = vmatmul.mubr.f32.gmra.mxu0 %v4079
        %v4393 = vpop.f32.mrf.mxu0
        %v4394 = vadd.f32 0.0, %v4393
        %v4395 = vpop.f32.mrf.mxu0
        %4396 = vmatprep.mubr.f32.mxu0 0.0
        %4397 = vmatmul.mubr.f32.gmra.mxu0 %v4082
        %v4398 = vpop.f32.mrf.mxu0
        %v4399 = vadd.f32 0.0, %v4398
        %v4400 = vpop.f32.mrf.mxu0
        %4401 = vmatprep.mubr.f32.mxu0 0.0
        %4402 = vmatmul.mubr.f32.gmra.mxu0 %v4085
        %v4403 = vpop.f32.mrf.mxu0
        %v4404 = vadd.f32 0.0, %v4403
        %v4405 = vpop.f32.mrf.mxu0
        %4406 = vmatprep.mubr.f32.mxu0 0.0
        %4407 = vmatmul.mubr.f32.gmra.mxu0 %v4088
        %v4408 = vpop.f32.mrf.mxu0
        %v4409 = vadd.f32 0.0, %v4408
        %v4410 = vpop.f32.mrf.mxu0
        %4411 = vmatprep.mubr.f32.mxu0 0.0
        %4412 = vmatmul.mubr.f32.gmra.mxu0 %v4091
        %v4413 = vpop.f32.mrf.mxu0
        %v4414 = vadd.f32 0.0, %v4413
        %v4415 = vpop.f32.mrf.mxu0
        %4416 = vmatprep.mubr.f32.mxu0 0.0
        %4417 = vmatmul.mubr.f32.gmra.mxu0 %v4094
        %v4418 = vpop.f32.mrf.mxu0
        %v4419 = vadd.f32 0.0, %v4418
        %v4420 = vpop.f32.mrf.mxu0
        %4421 = vmatprep.mubr.f32.mxu0 0.0
        %4422 = vmatmul.mubr.f32.gmra.mxu0 %v4097
        %v4423 = vpop.f32.mrf.mxu0
        %v4424 = vadd.f32 0.0, %v4423
        %v4425 = vpop.f32.mrf.mxu0
        %4426 = vmatprep.mubr.f32.mxu0 0.0
        %4427 = vmatmul.mubr.f32.gmra.mxu0 %v4100
        %v4428 = vpop.f32.mrf.mxu0
        %v4429 = vadd.f32 0.0, %v4428
        %v4430 = vpop.f32.mrf.mxu0
        %4431 = vmatprep.mubr.f32.mxu0 0.0
        %4432 = vmatmul.mubr.f32.gmra.mxu0 %v4103
        %v4433 = vpop.f32.mrf.mxu0
        %v4434 = vadd.f32 0.0, %v4433
        %v4435 = vpop.f32.mrf.mxu0
        %4436 = vmatprep.mubr.f32.mxu0 0.0
        %4437 = vmatmul.mubr.f32.gmra.mxu0 %v4106
        %v4438 = vpop.f32.mrf.mxu0
        %v4439 = vadd.f32 0.0, %v4438
        %v4440 = vpop.f32.mrf.mxu0
        %4441 = vmatprep.mubr.f32.mxu0 0.0
        %4442 = vmatmul.mubr.f32.gmra.mxu0 %v4109
        %v4443 = vpop.f32.mrf.mxu0
        %v4444 = vadd.f32 0.0, %v4443
        %v4445 = vpop.f32.mrf.mxu0
        %4446 = vmatprep.mubr.f32.mxu0 0.0
        %4447 = vmatmul.mubr.f32.gmra.mxu0 %v4112
        %v4448 = vpop.f32.mrf.mxu0
        %v4449 = vadd.f32 0.0, %v4448
        %v4450 = vpop.f32.mrf.mxu0
        %4451 = vdwg.mxu0
        %v4452 = vadd.f32 %v3841, %v4184
        %v4453 = vadd.f32 %v3842, %v4189
        %v4454 = vadd.f32 %v3843, %v4194
        %v4455 = vadd.f32 %v3844, %v4199
        %v4456 = vadd.f32 %v3845, %v4204
        %v4457 = vadd.f32 %v3846, %v4209
        %v4458 = vadd.f32 %v3847, %v4214
        %v4459 = vadd.f32 %v3848, %v4219
        %v4460 = vadd.f32 %v3849, %v4224
        %v4461 = vadd.f32 %v3850, %v4229
        %v4462 = vadd.f32 %v3851, %v4234
        %v4463 = vadd.f32 %v3852, %v4239
        %v4464 = vadd.f32 %v3853, %v4244
        %v4465 = vadd.f32 %v3854, %v4249
        %v4466 = vadd.f32 %v3855, %v4254
        %v4467 = vadd.f32 %v3856, %v4259
        %v4468 = vadd.f32 %v3857, %v4264
        %v4469 = vadd.f32 %v3858, %v4269
        %v4470 = vadd.f32 %v3859, %v4274
        %v4471 = vadd.f32 %v3860, %v4279
        %v4472 = vadd.f32 %v3861, %v4284
        %v4473 = vadd.f32 %v3862, %v4289
        %v4474 = vadd.f32 %v3863, %v4294
        %v4475 = vadd.f32 %v3864, %v4299
        %v4476 = vadd.f32 %v3865, %v4304
        %v4477 = vadd.f32 %v3866, %v4309
        %v4478 = vadd.f32 %v3867, %v4314
        %v4479 = vadd.f32 %v3868, %v4319
        %v4480 = vadd.f32 %v3869, %v4324
        %v4481 = vadd.f32 %v3870, %v4329
        %v4482 = vadd.f32 %v3871, %v4334
        %v4483 = vadd.f32 %v3872, %v4339
        %v4484 = vadd.f32 %v3873, %v4344
        %v4485 = vadd.f32 %v3874, %v4349
        %v4486 = vadd.f32 %v3875, %v4354
        %v4487 = vadd.f32 %v3876, %v4359
        %v4488 = vadd.f32 %v3877, %v4364
        %v4489 = vadd.f32 %v3878, %v4369
        %v4490 = vadd.f32 %v3879, %v4374
        %v4491 = vadd.f32 %v3880, %v4379
        %v4492 = vadd.f32 %v3881, %v4384
        %v4493 = vadd.f32 %v3882, %v4389
        %v4494 = vadd.f32 %v3883, %v4394
        %v4495 = vadd.f32 %v3884, %v4399
        %v4496 = vadd.f32 %v3885, %v4404
        %v4497 = vadd.f32 %v3886, %v4409
        %v4498 = vadd.f32 %v3887, %v4414
        %v4499 = vadd.f32 %v3888, %v4419
        %v4500 = vadd.f32 %v3889, %v4424
        %v4501 = vadd.f32 %v3890, %v4429
        %v4502 = vadd.f32 %v3891, %v4434
        %v4503 = vadd.f32 %v3892, %v4439
        %v4504 = vadd.f32 %v3893, %v4444
        %v4505 = vadd.f32 %v3894, %v4449
        %v4506 = vld [vmem:[%s3895 + $0x1] sm:$0xff]
        %v4507 = vld [vmem:[%s3895 + $0x9] sm:$0xff]
        %v4508 = vld [vmem:[%s3895 + $0x11] sm:$0xff]
        %v4509 = vld [vmem:[%s3895 + $0x21] sm:$0xff]
        %v4510 = vld [vmem:[%s3895 + $0x29] sm:$0xff]
        %v4511 = vld [vmem:[%s3895 + $0x31] sm:$0xff]
        %v4512 = vld [vmem:[%s3895 + $0x41] sm:$0xff]
        %v4513 = vld [vmem:[%s3895 + $0x49] sm:$0xff]
        %v4514 = vld [vmem:[%s3895 + $0x51] sm:$0xff]
        %v4515 = vld [vmem:[%s3895 + $0x61] sm:$0xff]
        %v4516 = vld [vmem:[%s3895 + $0x69] sm:$0xff]
        %v4517 = vld [vmem:[%s3895 + $0x71] sm:$0xff]
        %v4518 = vld [vmem:[%s3895 + $0x81] sm:$0xff]
        %v4519 = vld [vmem:[%s3895 + $0x89] sm:$0xff]
        %v4520 = vld [vmem:[%s3895 + $0x91] sm:$0xff]
        %v4521 = vld [vmem:[%s3895 + $0xa1] sm:$0xff]
        %v4522 = vld [vmem:[%s3895 + $0xa9] sm:$0xff]
        %v4523 = vld [vmem:[%s3895 + $0xb1] sm:$0xff]
        %v4524 = vld [vmem:[%s3895 + $0xc1] sm:$0xff]
        %v4525 = vld [vmem:[%s3895 + $0xc9] sm:$0xff]
        %v4526 = vld [vmem:[%s3895 + $0xd1] sm:$0xff]
        %v4527 = vld [vmem:[%s3895 + $0xe1] sm:$0xff]
        %v4528 = vld [vmem:[%s3895 + $0xe9] sm:$0xff]
        %v4529 = vld [vmem:[%s3895 + $0xf1] sm:$0xff]
        %v4530 = vld [vmem:[%s3895 + $0x101] sm:$0xff]
        %v4531 = vld [vmem:[%s3895 + $0x109] sm:$0xff]
        %v4532 = vld [vmem:[%s3895 + $0x111] sm:$0xff]
        %v4533 = vld [vmem:[%s3895 + $0x121] sm:$0xff]
        %v4534 = vld [vmem:[%s3895 + $0x129] sm:$0xff]
        %v4535 = vld [vmem:[%s3895 + $0x131] sm:$0xff]
        %v4536 = vld [vmem:[%s3895 + $0x141] sm:$0xff]
        %v4537 = vld [vmem:[%s3895 + $0x149] sm:$0xff]
        %v4538 = vld [vmem:[%s3895 + $0x151] sm:$0xff]
        %v4539 = vld [vmem:[%s3895 + $0x161] sm:$0xff]
        %v4540 = vld [vmem:[%s3895 + $0x169] sm:$0xff]
        %v4541 = vld [vmem:[%s3895 + $0x171] sm:$0xff]
        %v4542 = vld [vmem:[%s3895 + $0x181] sm:$0xff]
        %v4543 = vld [vmem:[%s3895 + $0x189] sm:$0xff]
        %v4544 = vld [vmem:[%s3895 + $0x191] sm:$0xff]
        %v4545 = vld [vmem:[%s3895 + $0x1a1] sm:$0xff]
        %v4546 = vld [vmem:[%s3895 + $0x1a9] sm:$0xff]
        %v4547 = vld [vmem:[%s3895 + $0x1b1] sm:$0xff]
        %v4548 = vld [vmem:[%s3895 + $0x1c1] sm:$0xff]
        %v4549 = vld [vmem:[%s3895 + $0x1c9] sm:$0xff]
        %v4550 = vld [vmem:[%s3895 + $0x1d1] sm:$0xff]
        %v4551 = vld [vmem:[%s3895 + $0x1e1] sm:$0xff]
        %v4552 = vld [vmem:[%s3895 + $0x1e9] sm:$0xff]
        %v4553 = vld [vmem:[%s3895 + $0x1f1] sm:$0xff]
        %v4554 = vld [vmem:[%s3895 + $0x201] sm:$0xff]
        %v4555 = vld [vmem:[%s3895 + $0x209] sm:$0xff]
        %v4556 = vld [vmem:[%s3895 + $0x211] sm:$0xff]
        %v4557 = vld [vmem:[%s3895 + $0x221] sm:$0xff]
        %v4558 = vld [vmem:[%s3895 + $0x229] sm:$0xff]
        %v4559 = vld [vmem:[%s3895 + $0x231] sm:$0xff]
        %s4560 = scalar_lea.vmem %s1, 28
        %v4561 = vld [vmem:[%s4560] sm:$0x7]
        %v4563 = vsel %vm288, %v4506, 0
        %v4566 = vsel %vm288, %v4507, 0
        %v4569 = vsel %vm288, %v4508, 0
        %v4572 = vsel %vm288, %v4509, 0
        %v4575 = vsel %vm288, %v4510, 0
        %v4578 = vsel %vm288, %v4511, 0
        %v4581 = vsel %vm288, %v4512, 0
        %v4584 = vsel %vm288, %v4513, 0
        %v4587 = vsel %vm288, %v4514, 0
        %v4590 = vsel %vm288, %v4515, 0
        %v4593 = vsel %vm288, %v4516, 0
        %v4596 = vsel %vm288, %v4517, 0
        %v4599 = vsel %vm288, %v4518, 0
        %v4602 = vsel %vm288, %v4519, 0
        %v4605 = vsel %vm288, %v4520, 0
        %v4608 = vsel %vm288, %v4521, 0
        %v4611 = vsel %vm288, %v4522, 0
        %v4614 = vsel %vm288, %v4523, 0
        %v4617 = vsel %vm288, %v4524, 0
        %v4620 = vsel %vm288, %v4525, 0
        %v4623 = vsel %vm288, %v4526, 0
        %v4626 = vsel %vm288, %v4527, 0
        %v4629 = vsel %vm288, %v4528, 0
        %v4632 = vsel %vm288, %v4529, 0
        %v4635 = vsel %vm288, %v4530, 0
        %v4638 = vsel %vm288, %v4531, 0
        %v4641 = vsel %vm288, %v4532, 0
        %v4644 = vsel %vm288, %v4533, 0
        %v4647 = vsel %vm288, %v4534, 0
        %v4650 = vsel %vm288, %v4535, 0
        %v4653 = vsel %vm288, %v4536, 0
        %v4656 = vsel %vm288, %v4537, 0
        %v4659 = vsel %vm288, %v4538, 0
        %v4662 = vsel %vm288, %v4539, 0
        %v4665 = vsel %vm288, %v4540, 0
        %v4668 = vsel %vm288, %v4541, 0
        %v4671 = vsel %vm288, %v4542, 0
        %v4674 = vsel %vm288, %v4543, 0
        %v4677 = vsel %vm288, %v4544, 0
        %v4680 = vsel %vm288, %v4545, 0
        %v4683 = vsel %vm288, %v4546, 0
        %v4686 = vsel %vm288, %v4547, 0
        %v4689 = vsel %vm288, %v4548, 0
        %v4692 = vsel %vm288, %v4549, 0
        %v4695 = vsel %vm288, %v4550, 0
        %v4698 = vsel %vm288, %v4551, 0
        %v4701 = vsel %vm288, %v4552, 0
        %v4704 = vsel %vm288, %v4553, 0
        %v4707 = vsel %vm288, %v4554, 0
        %v4710 = vsel %vm288, %v4555, 0
        %v4713 = vsel %vm288, %v4556, 0
        %v4716 = vsel %vm288, %v4557, 0
        %v4719 = vsel %vm288, %v4558, 0
        %v4722 = vsel %vm288, %v4559, 0
        %v4725 = vsel %vm451, %v4561, 0
        %4727 = vmatprep.subr.mxu0 0.0
        %4728 = vmatpush1.msra.mxu0 0.0
        %4729 = vmatprep.subr.mxu0 0.0
        %4730 = vmatpush1.msra.mxu0 0.0
        %4731 = vmatprep.subr.mxu0 0.0
        %4732 = vmatpush1.msra.mxu0 0.0
        %4733 = vmatprep.subr.mxu0 0.0
        %4734 = vmatpush1.msra.mxu0 0.0
        %4735 = vmatprep.subr.mxu0 0.0
        %4736 = vmatpush1.msra.mxu0 0.0
        %4737 = vmatprep.subr.mxu0 0.0
        %4738 = vmatpush1.msra.mxu0 0.0
        %4739 = vmatprep.subr.mxu0 0.0
        %4740 = vmatpush1.msra.mxu0 0.0
        %4741 = vmatprep.subr.mxu0 0.0
        %4742 = vmatpush1.msra.mxu0 0.0
        %4743 = vmatprep.subr.mxu0 0.0
        %4744 = vmatpush1.msra.mxu0 0.0
        %4745 = vmatprep.subr.mxu0 0.0
        %4746 = vmatpush1.msra.mxu0 0.0
        %4747 = vmatprep.subr.mxu0 0.0
        %4748 = vmatpush1.msra.mxu0 0.0
        %4749 = vmatprep.subr.mxu0 0.0
        %4750 = vmatpush1.msra.mxu0 0.0
        %4751 = vmatprep.subr.mxu0 0.0
        %4752 = vmatpush1.msra.mxu0 0.0
        %4753 = vmatprep.subr.mxu0 0.0
        %4754 = vmatpush1.msra.mxu0 0.0
        %4755 = vmatprep.subr.mxu0 0.0
        %4756 = vmatpush1.msra.mxu0 0.0
        %4757 = vmatprep.subr.mxu0 0.0
        %4758 = vmatpush1.msra.mxu0 %v4725
        %4759 = vmatprep.subr.mxu0 0.0
        %4760 = vmatpush2.msra.mxu0 0.0
        %4761 = vmatprep.subr.mxu0 0.0
        %4762 = vmatpush2.msra.mxu0 0.0
        %4763 = vmatprep.subr.mxu0 0.0
        %4764 = vmatpush2.msra.mxu0 0.0
        %4765 = vmatprep.subr.mxu0 0.0
        %4766 = vmatpush2.msra.mxu0 0.0
        %4767 = vmatprep.subr.mxu0 0.0
        %4768 = vmatpush2.msra.mxu0 0.0
        %4769 = vmatprep.subr.mxu0 0.0
        %4770 = vmatpush2.msra.mxu0 0.0
        %4771 = vmatprep.subr.mxu0 0.0
        %4772 = vmatpush2.msra.mxu0 0.0
        %4773 = vmatprep.subr.mxu0 0.0
        %4774 = vmatpush2.msra.mxu0 0.0
        %4775 = vmatprep.subr.mxu0 0.0
        %4776 = vmatpush2.msra.mxu0 0.0
        %4777 = vmatprep.subr.mxu0 0.0
        %4778 = vmatpush2.msra.mxu0 0.0
        %4779 = vmatprep.subr.mxu0 0.0
        %4780 = vmatpush2.msra.mxu0 0.0
        %4781 = vmatprep.subr.mxu0 0.0
        %4782 = vmatpush2.msra.mxu0 0.0
        %4783 = vmatprep.subr.mxu0 0.0
        %4784 = vmatpush2.msra.mxu0 0.0
        %4785 = vmatprep.subr.mxu0 0.0
        %4786 = vmatpush2.msra.mxu0 0.0
        %4787 = vmatprep.subr.mxu0 0.0
        %4788 = vmatpush2.msra.mxu0 0.0
        %4789 = vmatprep.subr.mxu0 0.0
        %4790 = vmatpush2.msra.mxu0 0.0
        %4791 = vmatprep.mubr.f32.mxu0 0.0
        %4792 = vmatmul.mubr.f32.gmra.mxu0 %v4563
        %v4793 = vpop.f32.mrf.mxu0
        %v4794 = vadd.f32 0.0, %v4793
        %v4795 = vpop.f32.mrf.mxu0
        %4796 = vmatprep.mubr.f32.mxu0 0.0
        %4797 = vmatmul.mubr.f32.gmra.mxu0 %v4566
        %v4798 = vpop.f32.mrf.mxu0
        %v4799 = vadd.f32 0.0, %v4798
        %v4800 = vpop.f32.mrf.mxu0
        %4801 = vmatprep.mubr.f32.mxu0 0.0
        %4802 = vmatmul.mubr.f32.gmra.mxu0 %v4569
        %v4803 = vpop.f32.mrf.mxu0
        %v4804 = vadd.f32 0.0, %v4803
        %v4805 = vpop.f32.mrf.mxu0
        %4806 = vmatprep.mubr.f32.mxu0 0.0
        %4807 = vmatmul.mubr.f32.gmra.mxu0 %v4572
        %v4808 = vpop.f32.mrf.mxu0
        %v4809 = vadd.f32 0.0, %v4808
        %v4810 = vpop.f32.mrf.mxu0
        %4811 = vmatprep.mubr.f32.mxu0 0.0
        %4812 = vmatmul.mubr.f32.gmra.mxu0 %v4575
        %v4813 = vpop.f32.mrf.mxu0
        %v4814 = vadd.f32 0.0, %v4813
        %v4815 = vpop.f32.mrf.mxu0
        %4816 = vmatprep.mubr.f32.mxu0 0.0
        %4817 = vmatmul.mubr.f32.gmra.mxu0 %v4578
        %v4818 = vpop.f32.mrf.mxu0
        %v4819 = vadd.f32 0.0, %v4818
        %v4820 = vpop.f32.mrf.mxu0
        %4821 = vmatprep.mubr.f32.mxu0 0.0
        %4822 = vmatmul.mubr.f32.gmra.mxu0 %v4581
        %v4823 = vpop.f32.mrf.mxu0
        %v4824 = vadd.f32 0.0, %v4823
        %v4825 = vpop.f32.mrf.mxu0
        %4826 = vmatprep.mubr.f32.mxu0 0.0
        %4827 = vmatmul.mubr.f32.gmra.mxu0 %v4584
        %v4828 = vpop.f32.mrf.mxu0
        %v4829 = vadd.f32 0.0, %v4828
        %v4830 = vpop.f32.mrf.mxu0
        %4831 = vmatprep.mubr.f32.mxu0 0.0
        %4832 = vmatmul.mubr.f32.gmra.mxu0 %v4587
        %v4833 = vpop.f32.mrf.mxu0
        %v4834 = vadd.f32 0.0, %v4833
        %v4835 = vpop.f32.mrf.mxu0
        %4836 = vmatprep.mubr.f32.mxu0 0.0
        %4837 = vmatmul.mubr.f32.gmra.mxu0 %v4590
        %v4838 = vpop.f32.mrf.mxu0
        %v4839 = vadd.f32 0.0, %v4838
        %v4840 = vpop.f32.mrf.mxu0
        %4841 = vmatprep.mubr.f32.mxu0 0.0
        %4842 = vmatmul.mubr.f32.gmra.mxu0 %v4593
        %v4843 = vpop.f32.mrf.mxu0
        %v4844 = vadd.f32 0.0, %v4843
        %v4845 = vpop.f32.mrf.mxu0
        %4846 = vmatprep.mubr.f32.mxu0 0.0
        %4847 = vmatmul.mubr.f32.gmra.mxu0 %v4596
        %v4848 = vpop.f32.mrf.mxu0
        %v4849 = vadd.f32 0.0, %v4848
        %v4850 = vpop.f32.mrf.mxu0
        %4851 = vmatprep.mubr.f32.mxu0 0.0
        %4852 = vmatmul.mubr.f32.gmra.mxu0 %v4599
        %v4853 = vpop.f32.mrf.mxu0
        %v4854 = vadd.f32 0.0, %v4853
        %v4855 = vpop.f32.mrf.mxu0
        %4856 = vmatprep.mubr.f32.mxu0 0.0
        %4857 = vmatmul.mubr.f32.gmra.mxu0 %v4602
        %v4858 = vpop.f32.mrf.mxu0
        %v4859 = vadd.f32 0.0, %v4858
        %v4860 = vpop.f32.mrf.mxu0
        %4861 = vmatprep.mubr.f32.mxu0 0.0
        %4862 = vmatmul.mubr.f32.gmra.mxu0 %v4605
        %v4863 = vpop.f32.mrf.mxu0
        %v4864 = vadd.f32 0.0, %v4863
        %v4865 = vpop.f32.mrf.mxu0
        %4866 = vmatprep.mubr.f32.mxu0 0.0
        %4867 = vmatmul.mubr.f32.gmra.mxu0 %v4608
        %v4868 = vpop.f32.mrf.mxu0
        %v4869 = vadd.f32 0.0, %v4868
        %v4870 = vpop.f32.mrf.mxu0
        %4871 = vmatprep.mubr.f32.mxu0 0.0
        %4872 = vmatmul.mubr.f32.gmra.mxu0 %v4611
        %v4873 = vpop.f32.mrf.mxu0
        %v4874 = vadd.f32 0.0, %v4873
        %v4875 = vpop.f32.mrf.mxu0
        %4876 = vmatprep.mubr.f32.mxu0 0.0
        %4877 = vmatmul.mubr.f32.gmra.mxu0 %v4614
        %v4878 = vpop.f32.mrf.mxu0
        %v4879 = vadd.f32 0.0, %v4878
        %v4880 = vpop.f32.mrf.mxu0
        %4881 = vmatprep.mubr.f32.mxu0 0.0
        %4882 = vmatmul.mubr.f32.gmra.mxu0 %v4617
        %v4883 = vpop.f32.mrf.mxu0
        %v4884 = vadd.f32 0.0, %v4883
        %v4885 = vpop.f32.mrf.mxu0
        %4886 = vmatprep.mubr.f32.mxu0 0.0
        %4887 = vmatmul.mubr.f32.gmra.mxu0 %v4620
        %v4888 = vpop.f32.mrf.mxu0
        %v4889 = vadd.f32 0.0, %v4888
        %v4890 = vpop.f32.mrf.mxu0
        %4891 = vmatprep.mubr.f32.mxu0 0.0
        %4892 = vmatmul.mubr.f32.gmra.mxu0 %v4623
        %v4893 = vpop.f32.mrf.mxu0
        %v4894 = vadd.f32 0.0, %v4893
        %v4895 = vpop.f32.mrf.mxu0
        %4896 = vmatprep.mubr.f32.mxu0 0.0
        %4897 = vmatmul.mubr.f32.gmra.mxu0 %v4626
        %v4898 = vpop.f32.mrf.mxu0
        %v4899 = vadd.f32 0.0, %v4898
        %v4900 = vpop.f32.mrf.mxu0
        %4901 = vmatprep.mubr.f32.mxu0 0.0
        %4902 = vmatmul.mubr.f32.gmra.mxu0 %v4629
        %v4903 = vpop.f32.mrf.mxu0
        %v4904 = vadd.f32 0.0, %v4903
        %v4905 = vpop.f32.mrf.mxu0
        %4906 = vmatprep.mubr.f32.mxu0 0.0
        %4907 = vmatmul.mubr.f32.gmra.mxu0 %v4632
        %v4908 = vpop.f32.mrf.mxu0
        %v4909 = vadd.f32 0.0, %v4908
        %v4910 = vpop.f32.mrf.mxu0
        %4911 = vmatprep.mubr.f32.mxu0 0.0
        %4912 = vmatmul.mubr.f32.gmra.mxu0 %v4635
        %v4913 = vpop.f32.mrf.mxu0
        %v4914 = vadd.f32 0.0, %v4913
        %v4915 = vpop.f32.mrf.mxu0
        %4916 = vmatprep.mubr.f32.mxu0 0.0
        %4917 = vmatmul.mubr.f32.gmra.mxu0 %v4638
        %v4918 = vpop.f32.mrf.mxu0
        %v4919 = vadd.f32 0.0, %v4918
        %v4920 = vpop.f32.mrf.mxu0
        %4921 = vmatprep.mubr.f32.mxu0 0.0
        %4922 = vmatmul.mubr.f32.gmra.mxu0 %v4641
        %v4923 = vpop.f32.mrf.mxu0
        %v4924 = vadd.f32 0.0, %v4923
        %v4925 = vpop.f32.mrf.mxu0
        %4926 = vmatprep.mubr.f32.mxu0 0.0
        %4927 = vmatmul.mubr.f32.gmra.mxu0 %v4644
        %v4928 = vpop.f32.mrf.mxu0
        %v4929 = vadd.f32 0.0, %v4928
        %v4930 = vpop.f32.mrf.mxu0
        %4931 = vmatprep.mubr.f32.mxu0 0.0
        %4932 = vmatmul.mubr.f32.gmra.mxu0 %v4647
        %v4933 = vpop.f32.mrf.mxu0
        %v4934 = vadd.f32 0.0, %v4933
        %v4935 = vpop.f32.mrf.mxu0
        %4936 = vmatprep.mubr.f32.mxu0 0.0
        %4937 = vmatmul.mubr.f32.gmra.mxu0 %v4650
        %v4938 = vpop.f32.mrf.mxu0
        %v4939 = vadd.f32 0.0, %v4938
        %v4940 = vpop.f32.mrf.mxu0
        %4941 = vmatprep.mubr.f32.mxu0 0.0
        %4942 = vmatmul.mubr.f32.gmra.mxu0 %v4653
        %v4943 = vpop.f32.mrf.mxu0
        %v4944 = vadd.f32 0.0, %v4943
        %v4945 = vpop.f32.mrf.mxu0
        %4946 = vmatprep.mubr.f32.mxu0 0.0
        %4947 = vmatmul.mubr.f32.gmra.mxu0 %v4656
        %v4948 = vpop.f32.mrf.mxu0
        %v4949 = vadd.f32 0.0, %v4948
        %v4950 = vpop.f32.mrf.mxu0
        %4951 = vmatprep.mubr.f32.mxu0 0.0
        %4952 = vmatmul.mubr.f32.gmra.mxu0 %v4659
        %v4953 = vpop.f32.mrf.mxu0
        %v4954 = vadd.f32 0.0, %v4953
        %v4955 = vpop.f32.mrf.mxu0
        %4956 = vmatprep.mubr.f32.mxu0 0.0
        %4957 = vmatmul.mubr.f32.gmra.mxu0 %v4662
        %v4958 = vpop.f32.mrf.mxu0
        %v4959 = vadd.f32 0.0, %v4958
        %v4960 = vpop.f32.mrf.mxu0
        %4961 = vmatprep.mubr.f32.mxu0 0.0
        %4962 = vmatmul.mubr.f32.gmra.mxu0 %v4665
        %v4963 = vpop.f32.mrf.mxu0
        %v4964 = vadd.f32 0.0, %v4963
        %v4965 = vpop.f32.mrf.mxu0
        %4966 = vmatprep.mubr.f32.mxu0 0.0
        %4967 = vmatmul.mubr.f32.gmra.mxu0 %v4668
        %v4968 = vpop.f32.mrf.mxu0
        %v4969 = vadd.f32 0.0, %v4968
        %v4970 = vpop.f32.mrf.mxu0
        %4971 = vmatprep.mubr.f32.mxu0 0.0
        %4972 = vmatmul.mubr.f32.gmra.mxu0 %v4671
        %v4973 = vpop.f32.mrf.mxu0
        %v4974 = vadd.f32 0.0, %v4973
        %v4975 = vpop.f32.mrf.mxu0
        %4976 = vmatprep.mubr.f32.mxu0 0.0
        %4977 = vmatmul.mubr.f32.gmra.mxu0 %v4674
        %v4978 = vpop.f32.mrf.mxu0
        %v4979 = vadd.f32 0.0, %v4978
        %v4980 = vpop.f32.mrf.mxu0
        %4981 = vmatprep.mubr.f32.mxu0 0.0
        %4982 = vmatmul.mubr.f32.gmra.mxu0 %v4677
        %v4983 = vpop.f32.mrf.mxu0
        %v4984 = vadd.f32 0.0, %v4983
        %v4985 = vpop.f32.mrf.mxu0
        %4986 = vmatprep.mubr.f32.mxu0 0.0
        %4987 = vmatmul.mubr.f32.gmra.mxu0 %v4680
        %v4988 = vpop.f32.mrf.mxu0
        %v4989 = vadd.f32 0.0, %v4988
        %v4990 = vpop.f32.mrf.mxu0
        %4991 = vmatprep.mubr.f32.mxu0 0.0
        %4992 = vmatmul.mubr.f32.gmra.mxu0 %v4683
        %v4993 = vpop.f32.mrf.mxu0
        %v4994 = vadd.f32 0.0, %v4993
        %v4995 = vpop.f32.mrf.mxu0
        %4996 = vmatprep.mubr.f32.mxu0 0.0
        %4997 = vmatmul.mubr.f32.gmra.mxu0 %v4686
        %v4998 = vpop.f32.mrf.mxu0
        %v4999 = vadd.f32 0.0, %v4998
        %v5000 = vpop.f32.mrf.mxu0
        %5001 = vmatprep.mubr.f32.mxu0 0.0
        %5002 = vmatmul.mubr.f32.gmra.mxu0 %v4689
        %v5003 = vpop.f32.mrf.mxu0
        %v5004 = vadd.f32 0.0, %v5003
        %v5005 = vpop.f32.mrf.mxu0
        %5006 = vmatprep.mubr.f32.mxu0 0.0
        %5007 = vmatmul.mubr.f32.gmra.mxu0 %v4692
        %v5008 = vpop.f32.mrf.mxu0
        %v5009 = vadd.f32 0.0, %v5008
        %v5010 = vpop.f32.mrf.mxu0
        %5011 = vmatprep.mubr.f32.mxu0 0.0
        %5012 = vmatmul.mubr.f32.gmra.mxu0 %v4695
        %v5013 = vpop.f32.mrf.mxu0
        %v5014 = vadd.f32 0.0, %v5013
        %v5015 = vpop.f32.mrf.mxu0
        %5016 = vmatprep.mubr.f32.mxu0 0.0
        %5017 = vmatmul.mubr.f32.gmra.mxu0 %v4698
        %v5018 = vpop.f32.mrf.mxu0
        %v5019 = vadd.f32 0.0, %v5018
        %v5020 = vpop.f32.mrf.mxu0
        %5021 = vmatprep.mubr.f32.mxu0 0.0
        %5022 = vmatmul.mubr.f32.gmra.mxu0 %v4701
        %v5023 = vpop.f32.mrf.mxu0
        %v5024 = vadd.f32 0.0, %v5023
        %v5025 = vpop.f32.mrf.mxu0
        %5026 = vmatprep.mubr.f32.mxu0 0.0
        %5027 = vmatmul.mubr.f32.gmra.mxu0 %v4704
        %v5028 = vpop.f32.mrf.mxu0
        %v5029 = vadd.f32 0.0, %v5028
        %v5030 = vpop.f32.mrf.mxu0
        %5031 = vmatprep.mubr.f32.mxu0 0.0
        %5032 = vmatmul.mubr.f32.gmra.mxu0 %v4707
        %v5033 = vpop.f32.mrf.mxu0
        %v5034 = vadd.f32 0.0, %v5033
        %v5035 = vpop.f32.mrf.mxu0
        %5036 = vmatprep.mubr.f32.mxu0 0.0
        %5037 = vmatmul.mubr.f32.gmra.mxu0 %v4710
        %v5038 = vpop.f32.mrf.mxu0
        %v5039 = vadd.f32 0.0, %v5038
        %v5040 = vpop.f32.mrf.mxu0
        %5041 = vmatprep.mubr.f32.mxu0 0.0
        %5042 = vmatmul.mubr.f32.gmra.mxu0 %v4713
        %v5043 = vpop.f32.mrf.mxu0
        %v5044 = vadd.f32 0.0, %v5043
        %v5045 = vpop.f32.mrf.mxu0
        %5046 = vmatprep.mubr.f32.mxu0 0.0
        %5047 = vmatmul.mubr.f32.gmra.mxu0 %v4716
        %v5048 = vpop.f32.mrf.mxu0
        %v5049 = vadd.f32 0.0, %v5048
        %v5050 = vpop.f32.mrf.mxu0
        %5051 = vmatprep.mubr.f32.mxu0 0.0
        %5052 = vmatmul.mubr.f32.gmra.mxu0 %v4719
        %v5053 = vpop.f32.mrf.mxu0
        %v5054 = vadd.f32 0.0, %v5053
        %v5055 = vpop.f32.mrf.mxu0
        %5056 = vmatprep.mubr.f32.mxu0 0.0
        %5057 = vmatmul.mubr.f32.gmra.mxu0 %v4722
        %v5058 = vpop.f32.mrf.mxu0
        %v5059 = vadd.f32 0.0, %v5058
        %v5060 = vpop.f32.mrf.mxu0
        %5061 = vdwg.mxu0
        %v5062 = vadd.f32 %v4452, %v4794
        %v5063 = vadd.f32 %v4453, %v4799
        %v5064 = vadd.f32 %v4454, %v4804
        %v5065 = vadd.f32 %v4455, %v4809
        %v5066 = vadd.f32 %v4456, %v4814
        %v5067 = vadd.f32 %v4457, %v4819
        %v5068 = vadd.f32 %v4458, %v4824
        %v5069 = vadd.f32 %v4459, %v4829
        %v5070 = vadd.f32 %v4460, %v4834
        %v5071 = vadd.f32 %v4461, %v4839
        %v5072 = vadd.f32 %v4462, %v4844
        %v5073 = vadd.f32 %v4463, %v4849
        %v5074 = vadd.f32 %v4464, %v4854
        %v5075 = vadd.f32 %v4465, %v4859
        %v5076 = vadd.f32 %v4466, %v4864
        %v5077 = vadd.f32 %v4467, %v4869
        %v5078 = vadd.f32 %v4468, %v4874
        %v5079 = vadd.f32 %v4469, %v4879
        %v5080 = vadd.f32 %v4470, %v4884
        %v5081 = vadd.f32 %v4471, %v4889
        %v5082 = vadd.f32 %v4472, %v4894
        %v5083 = vadd.f32 %v4473, %v4899
        %v5084 = vadd.f32 %v4474, %v4904
        %v5085 = vadd.f32 %v4475, %v4909
        %v5086 = vadd.f32 %v4476, %v4914
        %v5087 = vadd.f32 %v4477, %v4919
        %v5088 = vadd.f32 %v4478, %v4924
        %v5089 = vadd.f32 %v4479, %v4929
        %v5090 = vadd.f32 %v4480, %v4934
        %v5091 = vadd.f32 %v4481, %v4939
        %v5092 = vadd.f32 %v4482, %v4944
        %v5093 = vadd.f32 %v4483, %v4949
        %v5094 = vadd.f32 %v4484, %v4954
        %v5095 = vadd.f32 %v4485, %v4959
        %v5096 = vadd.f32 %v4486, %v4964
        %v5097 = vadd.f32 %v4487, %v4969
        %v5098 = vadd.f32 %v4488, %v4974
        %v5099 = vadd.f32 %v4489, %v4979
        %v5100 = vadd.f32 %v4490, %v4984
        %v5101 = vadd.f32 %v4491, %v4989
        %v5102 = vadd.f32 %v4492, %v4994
        %v5103 = vadd.f32 %v4493, %v4999
        %v5104 = vadd.f32 %v4494, %v5004
        %v5105 = vadd.f32 %v4495, %v5009
        %v5106 = vadd.f32 %v4496, %v5014
        %v5107 = vadd.f32 %v4497, %v5019
        %v5108 = vadd.f32 %v4498, %v5024
        %v5109 = vadd.f32 %v4499, %v5029
        %v5110 = vadd.f32 %v4500, %v5034
        %v5111 = vadd.f32 %v4501, %v5039
        %v5112 = vadd.f32 %v4502, %v5044
        %v5113 = vadd.f32 %v4503, %v5049
        %v5114 = vadd.f32 %v4504, %v5054
        %v5115 = vadd.f32 %v4505, %v5059
        %v5116 = vld [vmem:[%s3895 + $0x2] sm:$0xff]
        %v5117 = vld [vmem:[%s3895 + $0xa] sm:$0xff]
        %v5118 = vld [vmem:[%s3895 + $0x12] sm:$0xff]
        %v5119 = vld [vmem:[%s3895 + $0x22] sm:$0xff]
        %v5120 = vld [vmem:[%s3895 + $0x2a] sm:$0xff]
        %v5121 = vld [vmem:[%s3895 + $0x32] sm:$0xff]
        %v5122 = vld [vmem:[%s3895 + $0x42] sm:$0xff]
        %v5123 = vld [vmem:[%s3895 + $0x4a] sm:$0xff]
        %v5124 = vld [vmem:[%s3895 + $0x52] sm:$0xff]
        %v5125 = vld [vmem:[%s3895 + $0x62] sm:$0xff]
        %v5126 = vld [vmem:[%s3895 + $0x6a] sm:$0xff]
        %v5127 = vld [vmem:[%s3895 + $0x72] sm:$0xff]
        %v5128 = vld [vmem:[%s3895 + $0x82] sm:$0xff]
        %v5129 = vld [vmem:[%s3895 + $0x8a] sm:$0xff]
        %v5130 = vld [vmem:[%s3895 + $0x92] sm:$0xff]
        %v5131 = vld [vmem:[%s3895 + $0xa2] sm:$0xff]
        %v5132 = vld [vmem:[%s3895 + $0xaa] sm:$0xff]
        %v5133 = vld [vmem:[%s3895 + $0xb2] sm:$0xff]
        %v5134 = vld [vmem:[%s3895 + $0xc2] sm:$0xff]
        %v5135 = vld [vmem:[%s3895 + $0xca] sm:$0xff]
        %v5136 = vld [vmem:[%s3895 + $0xd2] sm:$0xff]
        %v5137 = vld [vmem:[%s3895 + $0xe2] sm:$0xff]
        %v5138 = vld [vmem:[%s3895 + $0xea] sm:$0xff]
        %v5139 = vld [vmem:[%s3895 + $0xf2] sm:$0xff]
        %v5140 = vld [vmem:[%s3895 + $0x102] sm:$0xff]
        %v5141 = vld [vmem:[%s3895 + $0x10a] sm:$0xff]
        %v5142 = vld [vmem:[%s3895 + $0x112] sm:$0xff]
        %v5143 = vld [vmem:[%s3895 + $0x122] sm:$0xff]
        %v5144 = vld [vmem:[%s3895 + $0x12a] sm:$0xff]
        %v5145 = vld [vmem:[%s3895 + $0x132] sm:$0xff]
        %v5146 = vld [vmem:[%s3895 + $0x142] sm:$0xff]
        %v5147 = vld [vmem:[%s3895 + $0x14a] sm:$0xff]
        %v5148 = vld [vmem:[%s3895 + $0x152] sm:$0xff]
        %v5149 = vld [vmem:[%s3895 + $0x162] sm:$0xff]
        %v5150 = vld [vmem:[%s3895 + $0x16a] sm:$0xff]
        %v5151 = vld [vmem:[%s3895 + $0x172] sm:$0xff]
        %v5152 = vld [vmem:[%s3895 + $0x182] sm:$0xff]
        %v5153 = vld [vmem:[%s3895 + $0x18a] sm:$0xff]
        %v5154 = vld [vmem:[%s3895 + $0x192] sm:$0xff]
        %v5155 = vld [vmem:[%s3895 + $0x1a2] sm:$0xff]
        %v5156 = vld [vmem:[%s3895 + $0x1aa] sm:$0xff]
        %v5157 = vld [vmem:[%s3895 + $0x1b2] sm:$0xff]
        %v5158 = vld [vmem:[%s3895 + $0x1c2] sm:$0xff]
        %v5159 = vld [vmem:[%s3895 + $0x1ca] sm:$0xff]
        %v5160 = vld [vmem:[%s3895 + $0x1d2] sm:$0xff]
        %v5161 = vld [vmem:[%s3895 + $0x1e2] sm:$0xff]
        %v5162 = vld [vmem:[%s3895 + $0x1ea] sm:$0xff]
        %v5163 = vld [vmem:[%s3895 + $0x1f2] sm:$0xff]
        %v5164 = vld [vmem:[%s3895 + $0x202] sm:$0xff]
        %v5165 = vld [vmem:[%s3895 + $0x20a] sm:$0xff]
        %v5166 = vld [vmem:[%s3895 + $0x212] sm:$0xff]
        %v5167 = vld [vmem:[%s3895 + $0x222] sm:$0xff]
        %v5168 = vld [vmem:[%s3895 + $0x22a] sm:$0xff]
        %v5169 = vld [vmem:[%s3895 + $0x232] sm:$0xff]
        %s5170 = scalar_lea.vmem %s1, 32
        %v5171 = vld [vmem:[%s5170] sm:$0x7]
        %v5173 = vsel %vm288, %v5116, 0
        %v5176 = vsel %vm288, %v5117, 0
        %v5179 = vsel %vm288, %v5118, 0
        %v5182 = vsel %vm288, %v5119, 0
        %v5185 = vsel %vm288, %v5120, 0
        %v5188 = vsel %vm288, %v5121, 0
        %v5191 = vsel %vm288, %v5122, 0
        %v5194 = vsel %vm288, %v5123, 0
        %v5197 = vsel %vm288, %v5124, 0
        %v5200 = vsel %vm288, %v5125, 0
        %v5203 = vsel %vm288, %v5126, 0
        %v5206 = vsel %vm288, %v5127, 0
        %v5209 = vsel %vm288, %v5128, 0
        %v5212 = vsel %vm288, %v5129, 0
        %v5215 = vsel %vm288, %v5130, 0
        %v5218 = vsel %vm288, %v5131, 0
        %v5221 = vsel %vm288, %v5132, 0
        %v5224 = vsel %vm288, %v5133, 0
        %v5227 = vsel %vm288, %v5134, 0
        %v5230 = vsel %vm288, %v5135, 0
        %v5233 = vsel %vm288, %v5136, 0
        %v5236 = vsel %vm288, %v5137, 0
        %v5239 = vsel %vm288, %v5138, 0
        %v5242 = vsel %vm288, %v5139, 0
        %v5245 = vsel %vm288, %v5140, 0
        %v5248 = vsel %vm288, %v5141, 0
        %v5251 = vsel %vm288, %v5142, 0
        %v5254 = vsel %vm288, %v5143, 0
        %v5257 = vsel %vm288, %v5144, 0
        %v5260 = vsel %vm288, %v5145, 0
        %v5263 = vsel %vm288, %v5146, 0
        %v5266 = vsel %vm288, %v5147, 0
        %v5269 = vsel %vm288, %v5148, 0
        %v5272 = vsel %vm288, %v5149, 0
        %v5275 = vsel %vm288, %v5150, 0
        %v5278 = vsel %vm288, %v5151, 0
        %v5281 = vsel %vm288, %v5152, 0
        %v5284 = vsel %vm288, %v5153, 0
        %v5287 = vsel %vm288, %v5154, 0
        %v5290 = vsel %vm288, %v5155, 0
        %v5293 = vsel %vm288, %v5156, 0
        %v5296 = vsel %vm288, %v5157, 0
        %v5299 = vsel %vm288, %v5158, 0
        %v5302 = vsel %vm288, %v5159, 0
        %v5305 = vsel %vm288, %v5160, 0
        %v5308 = vsel %vm288, %v5161, 0
        %v5311 = vsel %vm288, %v5162, 0
        %v5314 = vsel %vm288, %v5163, 0
        %v5317 = vsel %vm288, %v5164, 0
        %v5320 = vsel %vm288, %v5165, 0
        %v5323 = vsel %vm288, %v5166, 0
        %v5326 = vsel %vm288, %v5167, 0
        %v5329 = vsel %vm288, %v5168, 0
        %v5332 = vsel %vm288, %v5169, 0
        %v5335 = vsel %vm451, %v5171, 0
        %5337 = vmatprep.subr.mxu0 0.0
        %5338 = vmatpush1.msra.mxu0 0.0
        %5339 = vmatprep.subr.mxu0 0.0
        %5340 = vmatpush1.msra.mxu0 0.0
        %5341 = vmatprep.subr.mxu0 0.0
        %5342 = vmatpush1.msra.mxu0 0.0
        %5343 = vmatprep.subr.mxu0 0.0
        %5344 = vmatpush1.msra.mxu0 0.0
        %5345 = vmatprep.subr.mxu0 0.0
        %5346 = vmatpush1.msra.mxu0 0.0
        %5347 = vmatprep.subr.mxu0 0.0
        %5348 = vmatpush1.msra.mxu0 0.0
        %5349 = vmatprep.subr.mxu0 0.0
        %5350 = vmatpush1.msra.mxu0 0.0
        %5351 = vmatprep.subr.mxu0 0.0
        %5352 = vmatpush1.msra.mxu0 0.0
        %5353 = vmatprep.subr.mxu0 0.0
        %5354 = vmatpush1.msra.mxu0 0.0
        %5355 = vmatprep.subr.mxu0 0.0
        %5356 = vmatpush1.msra.mxu0 0.0
        %5357 = vmatprep.subr.mxu0 0.0
        %5358 = vmatpush1.msra.mxu0 0.0
        %5359 = vmatprep.subr.mxu0 0.0
        %5360 = vmatpush1.msra.mxu0 0.0
        %5361 = vmatprep.subr.mxu0 0.0
        %5362 = vmatpush1.msra.mxu0 0.0
        %5363 = vmatprep.subr.mxu0 0.0
        %5364 = vmatpush1.msra.mxu0 0.0
        %5365 = vmatprep.subr.mxu0 0.0
        %5366 = vmatpush1.msra.mxu0 0.0
        %5367 = vmatprep.subr.mxu0 0.0
        %5368 = vmatpush1.msra.mxu0 %v5335
        %5369 = vmatprep.subr.mxu0 0.0
        %5370 = vmatpush2.msra.mxu0 0.0
        %5371 = vmatprep.subr.mxu0 0.0
        %5372 = vmatpush2.msra.mxu0 0.0
        %5373 = vmatprep.subr.mxu0 0.0
        %5374 = vmatpush2.msra.mxu0 0.0
        %5375 = vmatprep.subr.mxu0 0.0
        %5376 = vmatpush2.msra.mxu0 0.0
        %5377 = vmatprep.subr.mxu0 0.0
        %5378 = vmatpush2.msra.mxu0 0.0
        %5379 = vmatprep.subr.mxu0 0.0
        %5380 = vmatpush2.msra.mxu0 0.0
        %5381 = vmatprep.subr.mxu0 0.0
        %5382 = vmatpush2.msra.mxu0 0.0
        %5383 = vmatprep.subr.mxu0 0.0
        %5384 = vmatpush2.msra.mxu0 0.0
        %5385 = vmatprep.subr.mxu0 0.0
        %5386 = vmatpush2.msra.mxu0 0.0
        %5387 = vmatprep.subr.mxu0 0.0
        %5388 = vmatpush2.msra.mxu0 0.0
        %5389 = vmatprep.subr.mxu0 0.0
        %5390 = vmatpush2.msra.mxu0 0.0
        %5391 = vmatprep.subr.mxu0 0.0
        %5392 = vmatpush2.msra.mxu0 0.0
        %5393 = vmatprep.subr.mxu0 0.0
        %5394 = vmatpush2.msra.mxu0 0.0
        %5395 = vmatprep.subr.mxu0 0.0
        %5396 = vmatpush2.msra.mxu0 0.0
        %5397 = vmatprep.subr.mxu0 0.0
        %5398 = vmatpush2.msra.mxu0 0.0
        %5399 = vmatprep.subr.mxu0 0.0
        %5400 = vmatpush2.msra.mxu0 0.0
        %5401 = vmatprep.mubr.f32.mxu0 0.0
        %5402 = vmatmul.mubr.f32.gmra.mxu0 %v5173
        %v5403 = vpop.f32.mrf.mxu0
        %v5404 = vadd.f32 0.0, %v5403
        %v5405 = vpop.f32.mrf.mxu0
        %5406 = vmatprep.mubr.f32.mxu0 0.0
        %5407 = vmatmul.mubr.f32.gmra.mxu0 %v5176
        %v5408 = vpop.f32.mrf.mxu0
        %v5409 = vadd.f32 0.0, %v5408
        %v5410 = vpop.f32.mrf.mxu0
        %5411 = vmatprep.mubr.f32.mxu0 0.0
        %5412 = vmatmul.mubr.f32.gmra.mxu0 %v5179
        %v5413 = vpop.f32.mrf.mxu0
        %v5414 = vadd.f32 0.0, %v5413
        %v5415 = vpop.f32.mrf.mxu0
        %5416 = vmatprep.mubr.f32.mxu0 0.0
        %5417 = vmatmul.mubr.f32.gmra.mxu0 %v5182
        %v5418 = vpop.f32.mrf.mxu0
        %v5419 = vadd.f32 0.0, %v5418
        %v5420 = vpop.f32.mrf.mxu0
        %5421 = vmatprep.mubr.f32.mxu0 0.0
        %5422 = vmatmul.mubr.f32.gmra.mxu0 %v5185
        %v5423 = vpop.f32.mrf.mxu0
        %v5424 = vadd.f32 0.0, %v5423
        %v5425 = vpop.f32.mrf.mxu0
        %5426 = vmatprep.mubr.f32.mxu0 0.0
        %5427 = vmatmul.mubr.f32.gmra.mxu0 %v5188
        %v5428 = vpop.f32.mrf.mxu0
        %v5429 = vadd.f32 0.0, %v5428
        %v5430 = vpop.f32.mrf.mxu0
        %5431 = vmatprep.mubr.f32.mxu0 0.0
        %5432 = vmatmul.mubr.f32.gmra.mxu0 %v5191
        %v5433 = vpop.f32.mrf.mxu0
        %v5434 = vadd.f32 0.0, %v5433
        %v5435 = vpop.f32.mrf.mxu0
        %5436 = vmatprep.mubr.f32.mxu0 0.0
        %5437 = vmatmul.mubr.f32.gmra.mxu0 %v5194
        %v5438 = vpop.f32.mrf.mxu0
        %v5439 = vadd.f32 0.0, %v5438
        %v5440 = vpop.f32.mrf.mxu0
        %5441 = vmatprep.mubr.f32.mxu0 0.0
        %5442 = vmatmul.mubr.f32.gmra.mxu0 %v5197
        %v5443 = vpop.f32.mrf.mxu0
        %v5444 = vadd.f32 0.0, %v5443
        %v5445 = vpop.f32.mrf.mxu0
        %5446 = vmatprep.mubr.f32.mxu0 0.0
        %5447 = vmatmul.mubr.f32.gmra.mxu0 %v5200
        %v5448 = vpop.f32.mrf.mxu0
        %v5449 = vadd.f32 0.0, %v5448
        %v5450 = vpop.f32.mrf.mxu0
        %5451 = vmatprep.mubr.f32.mxu0 0.0
        %5452 = vmatmul.mubr.f32.gmra.mxu0 %v5203
        %v5453 = vpop.f32.mrf.mxu0
        %v5454 = vadd.f32 0.0, %v5453
        %v5455 = vpop.f32.mrf.mxu0
        %5456 = vmatprep.mubr.f32.mxu0 0.0
        %5457 = vmatmul.mubr.f32.gmra.mxu0 %v5206
        %v5458 = vpop.f32.mrf.mxu0
        %v5459 = vadd.f32 0.0, %v5458
        %v5460 = vpop.f32.mrf.mxu0
        %5461 = vmatprep.mubr.f32.mxu0 0.0
        %5462 = vmatmul.mubr.f32.gmra.mxu0 %v5209
        %v5463 = vpop.f32.mrf.mxu0
        %v5464 = vadd.f32 0.0, %v5463
        %v5465 = vpop.f32.mrf.mxu0
        %5466 = vmatprep.mubr.f32.mxu0 0.0
        %5467 = vmatmul.mubr.f32.gmra.mxu0 %v5212
        %v5468 = vpop.f32.mrf.mxu0
        %v5469 = vadd.f32 0.0, %v5468
        %v5470 = vpop.f32.mrf.mxu0
        %5471 = vmatprep.mubr.f32.mxu0 0.0
        %5472 = vmatmul.mubr.f32.gmra.mxu0 %v5215
        %v5473 = vpop.f32.mrf.mxu0
        %v5474 = vadd.f32 0.0, %v5473
        %v5475 = vpop.f32.mrf.mxu0
        %5476 = vmatprep.mubr.f32.mxu0 0.0
        %5477 = vmatmul.mubr.f32.gmra.mxu0 %v5218
        %v5478 = vpop.f32.mrf.mxu0
        %v5479 = vadd.f32 0.0, %v5478
        %v5480 = vpop.f32.mrf.mxu0
        %5481 = vmatprep.mubr.f32.mxu0 0.0
        %5482 = vmatmul.mubr.f32.gmra.mxu0 %v5221
        %v5483 = vpop.f32.mrf.mxu0
        %v5484 = vadd.f32 0.0, %v5483
        %v5485 = vpop.f32.mrf.mxu0
        %5486 = vmatprep.mubr.f32.mxu0 0.0
        %5487 = vmatmul.mubr.f32.gmra.mxu0 %v5224
        %v5488 = vpop.f32.mrf.mxu0
        %v5489 = vadd.f32 0.0, %v5488
        %v5490 = vpop.f32.mrf.mxu0
        %5491 = vmatprep.mubr.f32.mxu0 0.0
        %5492 = vmatmul.mubr.f32.gmra.mxu0 %v5227
        %v5493 = vpop.f32.mrf.mxu0
        %v5494 = vadd.f32 0.0, %v5493
        %v5495 = vpop.f32.mrf.mxu0
        %5496 = vmatprep.mubr.f32.mxu0 0.0
        %5497 = vmatmul.mubr.f32.gmra.mxu0 %v5230
        %v5498 = vpop.f32.mrf.mxu0
        %v5499 = vadd.f32 0.0, %v5498
        %v5500 = vpop.f32.mrf.mxu0
        %5501 = vmatprep.mubr.f32.mxu0 0.0
        %5502 = vmatmul.mubr.f32.gmra.mxu0 %v5233
        %v5503 = vpop.f32.mrf.mxu0
        %v5504 = vadd.f32 0.0, %v5503
        %v5505 = vpop.f32.mrf.mxu0
        %5506 = vmatprep.mubr.f32.mxu0 0.0
        %5507 = vmatmul.mubr.f32.gmra.mxu0 %v5236
        %v5508 = vpop.f32.mrf.mxu0
        %v5509 = vadd.f32 0.0, %v5508
        %v5510 = vpop.f32.mrf.mxu0
        %5511 = vmatprep.mubr.f32.mxu0 0.0
        %5512 = vmatmul.mubr.f32.gmra.mxu0 %v5239
        %v5513 = vpop.f32.mrf.mxu0
        %v5514 = vadd.f32 0.0, %v5513
        %v5515 = vpop.f32.mrf.mxu0
        %5516 = vmatprep.mubr.f32.mxu0 0.0
        %5517 = vmatmul.mubr.f32.gmra.mxu0 %v5242
        %v5518 = vpop.f32.mrf.mxu0
        %v5519 = vadd.f32 0.0, %v5518
        %v5520 = vpop.f32.mrf.mxu0
        %5521 = vmatprep.mubr.f32.mxu0 0.0
        %5522 = vmatmul.mubr.f32.gmra.mxu0 %v5245
        %v5523 = vpop.f32.mrf.mxu0
        %v5524 = vadd.f32 0.0, %v5523
        %v5525 = vpop.f32.mrf.mxu0
        %5526 = vmatprep.mubr.f32.mxu0 0.0
        %5527 = vmatmul.mubr.f32.gmra.mxu0 %v5248
        %v5528 = vpop.f32.mrf.mxu0
        %v5529 = vadd.f32 0.0, %v5528
        %v5530 = vpop.f32.mrf.mxu0
        %5531 = vmatprep.mubr.f32.mxu0 0.0
        %5532 = vmatmul.mubr.f32.gmra.mxu0 %v5251
        %v5533 = vpop.f32.mrf.mxu0
        %v5534 = vadd.f32 0.0, %v5533
        %v5535 = vpop.f32.mrf.mxu0
        %5536 = vmatprep.mubr.f32.mxu0 0.0
        %5537 = vmatmul.mubr.f32.gmra.mxu0 %v5254
        %v5538 = vpop.f32.mrf.mxu0
        %v5539 = vadd.f32 0.0, %v5538
        %v5540 = vpop.f32.mrf.mxu0
        %5541 = vmatprep.mubr.f32.mxu0 0.0
        %5542 = vmatmul.mubr.f32.gmra.mxu0 %v5257
        %v5543 = vpop.f32.mrf.mxu0
        %v5544 = vadd.f32 0.0, %v5543
        %v5545 = vpop.f32.mrf.mxu0
        %5546 = vmatprep.mubr.f32.mxu0 0.0
        %5547 = vmatmul.mubr.f32.gmra.mxu0 %v5260
        %v5548 = vpop.f32.mrf.mxu0
        %v5549 = vadd.f32 0.0, %v5548
        %v5550 = vpop.f32.mrf.mxu0
        %5551 = vmatprep.mubr.f32.mxu0 0.0
        %5552 = vmatmul.mubr.f32.gmra.mxu0 %v5263
        %v5553 = vpop.f32.mrf.mxu0
        %v5554 = vadd.f32 0.0, %v5553
        %v5555 = vpop.f32.mrf.mxu0
        %5556 = vmatprep.mubr.f32.mxu0 0.0
        %5557 = vmatmul.mubr.f32.gmra.mxu0 %v5266
        %v5558 = vpop.f32.mrf.mxu0
        %v5559 = vadd.f32 0.0, %v5558
        %v5560 = vpop.f32.mrf.mxu0
        %5561 = vmatprep.mubr.f32.mxu0 0.0
        %5562 = vmatmul.mubr.f32.gmra.mxu0 %v5269
        %v5563 = vpop.f32.mrf.mxu0
        %v5564 = vadd.f32 0.0, %v5563
        %v5565 = vpop.f32.mrf.mxu0
        %5566 = vmatprep.mubr.f32.mxu0 0.0
        %5567 = vmatmul.mubr.f32.gmra.mxu0 %v5272
        %v5568 = vpop.f32.mrf.mxu0
        %v5569 = vadd.f32 0.0, %v5568
        %v5570 = vpop.f32.mrf.mxu0
        %5571 = vmatprep.mubr.f32.mxu0 0.0
        %5572 = vmatmul.mubr.f32.gmra.mxu0 %v5275
        %v5573 = vpop.f32.mrf.mxu0
        %v5574 = vadd.f32 0.0, %v5573
        %v5575 = vpop.f32.mrf.mxu0
        %5576 = vmatprep.mubr.f32.mxu0 0.0
        %5577 = vmatmul.mubr.f32.gmra.mxu0 %v5278
        %v5578 = vpop.f32.mrf.mxu0
        %v5579 = vadd.f32 0.0, %v5578
        %v5580 = vpop.f32.mrf.mxu0
        %5581 = vmatprep.mubr.f32.mxu0 0.0
        %5582 = vmatmul.mubr.f32.gmra.mxu0 %v5281
        %v5583 = vpop.f32.mrf.mxu0
        %v5584 = vadd.f32 0.0, %v5583
        %v5585 = vpop.f32.mrf.mxu0
        %5586 = vmatprep.mubr.f32.mxu0 0.0
        %5587 = vmatmul.mubr.f32.gmra.mxu0 %v5284
        %v5588 = vpop.f32.mrf.mxu0
        %v5589 = vadd.f32 0.0, %v5588
        %v5590 = vpop.f32.mrf.mxu0
        %5591 = vmatprep.mubr.f32.mxu0 0.0
        %5592 = vmatmul.mubr.f32.gmra.mxu0 %v5287
        %v5593 = vpop.f32.mrf.mxu0
        %v5594 = vadd.f32 0.0, %v5593
        %v5595 = vpop.f32.mrf.mxu0
        %5596 = vmatprep.mubr.f32.mxu0 0.0
        %5597 = vmatmul.mubr.f32.gmra.mxu0 %v5290
        %v5598 = vpop.f32.mrf.mxu0
        %v5599 = vadd.f32 0.0, %v5598
        %v5600 = vpop.f32.mrf.mxu0
        %5601 = vmatprep.mubr.f32.mxu0 0.0
        %5602 = vmatmul.mubr.f32.gmra.mxu0 %v5293
        %v5603 = vpop.f32.mrf.mxu0
        %v5604 = vadd.f32 0.0, %v5603
        %v5605 = vpop.f32.mrf.mxu0
        %5606 = vmatprep.mubr.f32.mxu0 0.0
        %5607 = vmatmul.mubr.f32.gmra.mxu0 %v5296
        %v5608 = vpop.f32.mrf.mxu0
        %v5609 = vadd.f32 0.0, %v5608
        %v5610 = vpop.f32.mrf.mxu0
        %5611 = vmatprep.mubr.f32.mxu0 0.0
        %5612 = vmatmul.mubr.f32.gmra.mxu0 %v5299
        %v5613 = vpop.f32.mrf.mxu0
        %v5614 = vadd.f32 0.0, %v5613
        %v5615 = vpop.f32.mrf.mxu0
        %5616 = vmatprep.mubr.f32.mxu0 0.0
        %5617 = vmatmul.mubr.f32.gmra.mxu0 %v5302
        %v5618 = vpop.f32.mrf.mxu0
        %v5619 = vadd.f32 0.0, %v5618
        %v5620 = vpop.f32.mrf.mxu0
        %5621 = vmatprep.mubr.f32.mxu0 0.0
        %5622 = vmatmul.mubr.f32.gmra.mxu0 %v5305
        %v5623 = vpop.f32.mrf.mxu0
        %v5624 = vadd.f32 0.0, %v5623
        %v5625 = vpop.f32.mrf.mxu0
        %5626 = vmatprep.mubr.f32.mxu0 0.0
        %5627 = vmatmul.mubr.f32.gmra.mxu0 %v5308
        %v5628 = vpop.f32.mrf.mxu0
        %v5629 = vadd.f32 0.0, %v5628
        %v5630 = vpop.f32.mrf.mxu0
        %5631 = vmatprep.mubr.f32.mxu0 0.0
        %5632 = vmatmul.mubr.f32.gmra.mxu0 %v5311
        %v5633 = vpop.f32.mrf.mxu0
        %v5634 = vadd.f32 0.0, %v5633
        %v5635 = vpop.f32.mrf.mxu0
        %5636 = vmatprep.mubr.f32.mxu0 0.0
        %5637 = vmatmul.mubr.f32.gmra.mxu0 %v5314
        %v5638 = vpop.f32.mrf.mxu0
        %v5639 = vadd.f32 0.0, %v5638
        %v5640 = vpop.f32.mrf.mxu0
        %5641 = vmatprep.mubr.f32.mxu0 0.0
        %5642 = vmatmul.mubr.f32.gmra.mxu0 %v5317
        %v5643 = vpop.f32.mrf.mxu0
        %v5644 = vadd.f32 0.0, %v5643
        %v5645 = vpop.f32.mrf.mxu0
        %5646 = vmatprep.mubr.f32.mxu0 0.0
        %5647 = vmatmul.mubr.f32.gmra.mxu0 %v5320
        %v5648 = vpop.f32.mrf.mxu0
        %v5649 = vadd.f32 0.0, %v5648
        %v5650 = vpop.f32.mrf.mxu0
        %5651 = vmatprep.mubr.f32.mxu0 0.0
        %5652 = vmatmul.mubr.f32.gmra.mxu0 %v5323
        %v5653 = vpop.f32.mrf.mxu0
        %v5654 = vadd.f32 0.0, %v5653
        %v5655 = vpop.f32.mrf.mxu0
        %5656 = vmatprep.mubr.f32.mxu0 0.0
        %5657 = vmatmul.mubr.f32.gmra.mxu0 %v5326
        %v5658 = vpop.f32.mrf.mxu0
        %v5659 = vadd.f32 0.0, %v5658
        %v5660 = vpop.f32.mrf.mxu0
        %5661 = vmatprep.mubr.f32.mxu0 0.0
        %5662 = vmatmul.mubr.f32.gmra.mxu0 %v5329
        %v5663 = vpop.f32.mrf.mxu0
        %v5664 = vadd.f32 0.0, %v5663
        %v5665 = vpop.f32.mrf.mxu0
        %5666 = vmatprep.mubr.f32.mxu0 0.0
        %5667 = vmatmul.mubr.f32.gmra.mxu0 %v5332
        %v5668 = vpop.f32.mrf.mxu0
        %v5669 = vadd.f32 0.0, %v5668
        %v5670 = vpop.f32.mrf.mxu0
        %5671 = vdwg.mxu0
        %v5672 = vadd.f32 %v5062, %v5404
        %v5673 = vadd.f32 %v5063, %v5409
        %v5674 = vadd.f32 %v5064, %v5414
        %v5675 = vadd.f32 %v5065, %v5419
        %v5676 = vadd.f32 %v5066, %v5424
        %v5677 = vadd.f32 %v5067, %v5429
        %v5678 = vadd.f32 %v5068, %v5434
        %v5679 = vadd.f32 %v5069, %v5439
        %v5680 = vadd.f32 %v5070, %v5444
        %v5681 = vadd.f32 %v5071, %v5449
        %v5682 = vadd.f32 %v5072, %v5454
        %v5683 = vadd.f32 %v5073, %v5459
        %v5684 = vadd.f32 %v5074, %v5464
        %v5685 = vadd.f32 %v5075, %v5469
        %v5686 = vadd.f32 %v5076, %v5474
        %v5687 = vadd.f32 %v5077, %v5479
        %v5688 = vadd.f32 %v5078, %v5484
        %v5689 = vadd.f32 %v5079, %v5489
        %v5690 = vadd.f32 %v5080, %v5494
        %v5691 = vadd.f32 %v5081, %v5499
        %v5692 = vadd.f32 %v5082, %v5504
        %v5693 = vadd.f32 %v5083, %v5509
        %v5694 = vadd.f32 %v5084, %v5514
        %v5695 = vadd.f32 %v5085, %v5519
        %v5696 = vadd.f32 %v5086, %v5524
        %v5697 = vadd.f32 %v5087, %v5529
        %v5698 = vadd.f32 %v5088, %v5534
        %v5699 = vadd.f32 %v5089, %v5539
        %v5700 = vadd.f32 %v5090, %v5544
        %v5701 = vadd.f32 %v5091, %v5549
        %v5702 = vadd.f32 %v5092, %v5554
        %v5703 = vadd.f32 %v5093, %v5559
        %v5704 = vadd.f32 %v5094, %v5564
        %v5705 = vadd.f32 %v5095, %v5569
        %v5706 = vadd.f32 %v5096, %v5574
        %v5707 = vadd.f32 %v5097, %v5579
        %v5708 = vadd.f32 %v5098, %v5584
        %v5709 = vadd.f32 %v5099, %v5589
        %v5710 = vadd.f32 %v5100, %v5594
        %v5711 = vadd.f32 %v5101, %v5599
        %v5712 = vadd.f32 %v5102, %v5604
        %v5713 = vadd.f32 %v5103, %v5609
        %v5714 = vadd.f32 %v5104, %v5614
        %v5715 = vadd.f32 %v5105, %v5619
        %v5716 = vadd.f32 %v5106, %v5624
        %v5717 = vadd.f32 %v5107, %v5629
        %v5718 = vadd.f32 %v5108, %v5634
        %v5719 = vadd.f32 %v5109, %v5639
        %v5720 = vadd.f32 %v5110, %v5644
        %v5721 = vadd.f32 %v5111, %v5649
        %v5722 = vadd.f32 %v5112, %v5654
        %v5723 = vadd.f32 %v5113, %v5659
        %v5724 = vadd.f32 %v5114, %v5664
        %v5725 = vadd.f32 %v5115, %v5669
        %v5726 = vmax.f32 %v5672, 0.0
        %v5727 = vmax.f32 %v5673, 0.0
        %v5728 = vmax.f32 %v5674, 0.0
        %v5729 = vmax.f32 %v5675, 0.0
        %v5730 = vmax.f32 %v5676, 0.0
        %v5731 = vmax.f32 %v5677, 0.0
        %v5732 = vmax.f32 %v5678, 0.0
        %v5733 = vmax.f32 %v5679, 0.0
        %v5734 = vmax.f32 %v5680, 0.0
        %v5735 = vmax.f32 %v5681, 0.0
        %v5736 = vmax.f32 %v5682, 0.0
        %v5737 = vmax.f32 %v5683, 0.0
        %v5738 = vmax.f32 %v5684, 0.0
        %v5739 = vmax.f32 %v5685, 0.0
        %v5740 = vmax.f32 %v5686, 0.0
        %v5741 = vmax.f32 %v5687, 0.0
        %v5742 = vmax.f32 %v5688, 0.0
        %v5743 = vmax.f32 %v5689, 0.0
        %v5744 = vmax.f32 %v5690, 0.0
        %v5745 = vmax.f32 %v5691, 0.0
        %v5746 = vmax.f32 %v5692, 0.0
        %v5747 = vmax.f32 %v5693, 0.0
        %v5748 = vmax.f32 %v5694, 0.0
        %v5749 = vmax.f32 %v5695, 0.0
        %v5750 = vmax.f32 %v5696, 0.0
        %v5751 = vmax.f32 %v5697, 0.0
        %v5752 = vmax.f32 %v5698, 0.0
        %v5753 = vmax.f32 %v5699, 0.0
        %v5754 = vmax.f32 %v5700, 0.0
        %v5755 = vmax.f32 %v5701, 0.0
        %v5756 = vmax.f32 %v5702, 0.0
        %v5757 = vmax.f32 %v5703, 0.0
        %v5758 = vmax.f32 %v5704, 0.0
        %v5759 = vmax.f32 %v5705, 0.0
        %v5760 = vmax.f32 %v5706, 0.0
        %v5761 = vmax.f32 %v5707, 0.0
        %v5762 = vmax.f32 %v5708, 0.0
        %v5763 = vmax.f32 %v5709, 0.0
        %v5764 = vmax.f32 %v5710, 0.0
        %v5765 = vmax.f32 %v5711, 0.0
        %v5766 = vmax.f32 %v5712, 0.0
        %v5767 = vmax.f32 %v5713, 0.0
        %v5768 = vmax.f32 %v5714, 0.0
        %v5769 = vmax.f32 %v5715, 0.0
        %v5770 = vmax.f32 %v5716, 0.0
        %v5771 = vmax.f32 %v5717, 0.0
        %v5772 = vmax.f32 %v5718, 0.0
        %v5773 = vmax.f32 %v5719, 0.0
        %v5774 = vmax.f32 %v5720, 0.0
        %v5775 = vmax.f32 %v5721, 0.0
        %v5776 = vmax.f32 %v5722, 0.0
        %v5777 = vmax.f32 %v5723, 0.0
        %v5778 = vmax.f32 %v5724, 0.0
        %v5779 = vmax.f32 %v5725, 0.0
        %v5780 = vlaneseq
        %v5781 = vshrl.u32 %v5780, 7
        %v5782 = vadd.s32 %v5781, 8
        %v5783 = vadd.s32 %v5781, 16
        %v5784 = vsub.s32 %v5781, 1
        %v5785 = vsub.s32 %v5782, 1
        %v5786 = vsub.s32 %v5783, 1
        %vm5787 = vcmp.ge.s32.totalorder %v5784, 0
        %vm5788 = vcmp.ge.s32.totalorder %v5785, 0
        %vm5789 = vcmp.ge.s32.totalorder %v5786, 0
        %v5790 = vsel %vm5787, 1, 0
        %v5791 = vsel %vm5788, 1, 0
        %v5792 = vsel %vm5789, 1, 0
        %vm5793 = vcmp.eq.s32.totalorder %v5790, 1
        %vm5794 = vcmp.eq.s32.totalorder %v5791, 1
        %vm5795 = vcmp.eq.s32.totalorder %v5792, 1
        %vm5796 = vmand 0, %vm5793
        %vm5797 = vmand 0, %vm5794
        %vm5798 = vmand 0, %vm5795
        %vm5799 = vmand 1, %vm5793
        %vm5800 = vmand 1, %vm5794
        %vm5801 = vmand 1, %vm5795
        %vm5802 = vcmp.lt.s32.totalorder %v5784, 16
        %vm5803 = vcmp.lt.s32.totalorder %v5785, 16
        %vm5804 = vcmp.lt.s32.totalorder %v5786, 16
        %v5805 = vsel %vm5802, 1, 0
        %v5806 = vsel %vm5803, 1, 0
        %v5807 = vsel %vm5804, 1, 0
        %vm5808 = vcmp.eq.s32.totalorder %v5805, 1
        %vm5809 = vcmp.eq.s32.totalorder %v5806, 1
        %vm5810 = vcmp.eq.s32.totalorder %v5807, 1
        %vm5811 = vmand %vm5796, %vm5808
        %vm5812 = vmand %vm5797, %vm5809
        %vm5813 = vmand %vm5798, %vm5810
        %vm5814 = vmand %vm5799, %vm5808
        %vm5815 = vmand %vm5800, %vm5809
        %vm5816 = vmand %vm5801, %vm5810
        %v5817 = vsel %vm5811, 1, 0
        %v5818 = vsel %vm5812, 1, 0
        %v5819 = vsel %vm5813, 1, 0
        %v5820 = vsel %vm5814, 1, 0
        %v5821 = vsel %vm5815, 1, 0
        %v5822 = vsel %vm5816, 1, 0
        %vm5823 = vcmp.eq.s32.totalorder %v5817, 1
        %vm5824 = vcmp.eq.s32.totalorder %v5818, 1
        %vm5825 = vcmp.eq.s32.totalorder %v5819, 1
        %vm5826 = vcmp.eq.s32.totalorder %v5820, 1
        %vm5827 = vcmp.eq.s32.totalorder %v5821, 1
        %vm5828 = vcmp.eq.s32.totalorder %v5822, 1
        %v5829 = vsel %vm5823, %v5726, 0.0
        %v5830 = vsel %vm5824, %v5727, 0.0
        %v5831 = vsel %vm5825, %v5728, 0.0
        %v5832 = vsel %vm5826, %v5729, 0.0
        %v5833 = vsel %vm5827, %v5730, 0.0
        %v5834 = vsel %vm5828, %v5731, 0.0
        %v5835 = vsel %vm5826, %v5732, 0.0
        %v5836 = vsel %vm5827, %v5733, 0.0
        %v5837 = vsel %vm5828, %v5734, 0.0
        %v5838 = vsel %vm5826, %v5735, 0.0
        %v5839 = vsel %vm5827, %v5736, 0.0
        %v5840 = vsel %vm5828, %v5737, 0.0
        %v5841 = vsel %vm5826, %v5738, 0.0
        %v5842 = vsel %vm5827, %v5739, 0.0
        %v5843 = vsel %vm5828, %v5740, 0.0
        %v5844 = vsel %vm5826, %v5741, 0.0
        %v5845 = vsel %vm5827, %v5742, 0.0
        %v5846 = vsel %vm5828, %v5743, 0.0
        %v5847 = vsel %vm5826, %v5744, 0.0
        %v5848 = vsel %vm5827, %v5745, 0.0
        %v5849 = vsel %vm5828, %v5746, 0.0
        %v5850 = vsel %vm5826, %v5747, 0.0
        %v5851 = vsel %vm5827, %v5748, 0.0
        %v5852 = vsel %vm5828, %v5749, 0.0
        %v5853 = vsel %vm5826, %v5750, 0.0
        %v5854 = vsel %vm5827, %v5751, 0.0
        %v5855 = vsel %vm5828, %v5752, 0.0
        %v5856 = vsel %vm5826, %v5753, 0.0
        %v5857 = vsel %vm5827, %v5754, 0.0
        %v5858 = vsel %vm5828, %v5755, 0.0
        %v5859 = vsel %vm5826, %v5756, 0.0
        %v5860 = vsel %vm5827, %v5757, 0.0
        %v5861 = vsel %vm5828, %v5758, 0.0
        %v5862 = vsel %vm5826, %v5759, 0.0
        %v5863 = vsel %vm5827, %v5760, 0.0
        %v5864 = vsel %vm5828, %v5761, 0.0
        %v5865 = vsel %vm5826, %v5762, 0.0
        %v5866 = vsel %vm5827, %v5763, 0.0
        %v5867 = vsel %vm5828, %v5764, 0.0
        %v5868 = vsel %vm5826, %v5765, 0.0
        %v5869 = vsel %vm5827, %v5766, 0.0
        %v5870 = vsel %vm5828, %v5767, 0.0
        %v5871 = vsel %vm5826, %v5768, 0.0
        %v5872 = vsel %vm5827, %v5769, 0.0
        %v5873 = vsel %vm5828, %v5770, 0.0
        %v5874 = vsel %vm5826, %v5771, 0.0
        %v5875 = vsel %vm5827, %v5772, 0.0
        %v5876 = vsel %vm5828, %v5773, 0.0
        %v5877 = vsel %vm5826, %v5774, 0.0
        %v5878 = vsel %vm5827, %v5775, 0.0
        %v5879 = vsel %vm5828, %v5776, 0.0
        %v5880 = vsel %vm5823, %v5777, 0.0
        %v5881 = vsel %vm5824, %v5778, 0.0
        %v5882 = vsel %vm5825, %v5779, 0.0
        %vm5883 = vcmask 261120
        %5884 = vst.msk [vmem:[#allocation2] sm:$0xff] %vm5883, %v5829
        %5885 = vst.msk [vmem:[#allocation2 + $0x8] sm:$0xff] %vm5883, %v5830
        %5886 = vst.msk [vmem:[#allocation2 + $0x10] sm:$0xff] %vm5883, %v5831
        %5887 = vst.msk [vmem:[#allocation2 + $0x18] sm:$0xff] %vm5883, %v5832
        %5888 = vst.msk [vmem:[#allocation2 + $0x20] sm:$0xff] %vm5883, %v5833
        %5889 = vst.msk [vmem:[#allocation2 + $0x28] sm:$0xff] %vm5883, %v5834
        %5890 = vst.msk [vmem:[#allocation2 + $0x30] sm:$0xff] %vm5883, %v5835
        %5891 = vst.msk [vmem:[#allocation2 + $0x38] sm:$0xff] %vm5883, %v5836
        %5892 = vst.msk [vmem:[#allocation2 + $0x40] sm:$0xff] %vm5883, %v5837
        %5893 = vst.msk [vmem:[#allocation2 + $0x48] sm:$0xff] %vm5883, %v5838
        %5894 = vst.msk [vmem:[#allocation2 + $0x50] sm:$0xff] %vm5883, %v5839
        %5895 = vst.msk [vmem:[#allocation2 + $0x58] sm:$0xff] %vm5883, %v5840
        %5896 = vst.msk [vmem:[#allocation2 + $0x60] sm:$0xff] %vm5883, %v5841
        %5897 = vst.msk [vmem:[#allocation2 + $0x68] sm:$0xff] %vm5883, %v5842
        %5898 = vst.msk [vmem:[#allocation2 + $0x70] sm:$0xff] %vm5883, %v5843
        %5899 = vst.msk [vmem:[#allocation2 + $0x78] sm:$0xff] %vm5883, %v5844
        %5900 = vst.msk [vmem:[#allocation2 + $0x80] sm:$0xff] %vm5883, %v5845
        %5901 = vst.msk [vmem:[#allocation2 + $0x88] sm:$0xff] %vm5883, %v5846
        %5902 = vst.msk [vmem:[#allocation2 + $0x90] sm:$0xff] %vm5883, %v5847
        %5903 = vst.msk [vmem:[#allocation2 + $0x98] sm:$0xff] %vm5883, %v5848
        %5904 = vst.msk [vmem:[#allocation2 + $0xa0] sm:$0xff] %vm5883, %v5849
        %5905 = vst.msk [vmem:[#allocation2 + $0xa8] sm:$0xff] %vm5883, %v5850
        %5906 = vst.msk [vmem:[#allocation2 + $0xb0] sm:$0xff] %vm5883, %v5851
        %5907 = vst.msk [vmem:[#allocation2 + $0xb8] sm:$0xff] %vm5883, %v5852
        %5908 = vst.msk [vmem:[#allocation2 + $0xc0] sm:$0xff] %vm5883, %v5853
        %5909 = vst.msk [vmem:[#allocation2 + $0xc8] sm:$0xff] %vm5883, %v5854
        %5910 = vst.msk [vmem:[#allocation2 + $0xd0] sm:$0xff] %vm5883, %v5855
        %5911 = vst.msk [vmem:[#allocation2 + $0xd8] sm:$0xff] %vm5883, %v5856
        %5912 = vst.msk [vmem:[#allocation2 + $0xe0] sm:$0xff] %vm5883, %v5857
        %5913 = vst.msk [vmem:[#allocation2 + $0xe8] sm:$0xff] %vm5883, %v5858
        %5914 = vst.msk [vmem:[#allocation2 + $0xf0] sm:$0xff] %vm5883, %v5859
        %5915 = vst.msk [vmem:[#allocation2 + $0xf8] sm:$0xff] %vm5883, %v5860
        %5916 = vst.msk [vmem:[#allocation2 + $0x100] sm:$0xff] %vm5883, %v5861
        %5917 = vst.msk [vmem:[#allocation2 + $0x108] sm:$0xff] %vm5883, %v5862
        %5918 = vst.msk [vmem:[#allocation2 + $0x110] sm:$0xff] %vm5883, %v5863
        %5919 = vst.msk [vmem:[#allocation2 + $0x118] sm:$0xff] %vm5883, %v5864
        %5920 = vst.msk [vmem:[#allocation2 + $0x120] sm:$0xff] %vm5883, %v5865
        %5921 = vst.msk [vmem:[#allocation2 + $0x128] sm:$0xff] %vm5883, %v5866
        %5922 = vst.msk [vmem:[#allocation2 + $0x130] sm:$0xff] %vm5883, %v5867
        %5923 = vst.msk [vmem:[#allocation2 + $0x138] sm:$0xff] %vm5883, %v5868
        %5924 = vst.msk [vmem:[#allocation2 + $0x140] sm:$0xff] %vm5883, %v5869
        %5925 = vst.msk [vmem:[#allocation2 + $0x148] sm:$0xff] %vm5883, %v5870
        %5926 = vst.msk [vmem:[#allocation2 + $0x150] sm:$0xff] %vm5883, %v5871
        %5927 = vst.msk [vmem:[#allocation2 + $0x158] sm:$0xff] %vm5883, %v5872
        %5928 = vst.msk [vmem:[#allocation2 + $0x160] sm:$0xff] %vm5883, %v5873
        %5929 = vst.msk [vmem:[#allocation2 + $0x168] sm:$0xff] %vm5883, %v5874
        %5930 = vst.msk [vmem:[#allocation2 + $0x170] sm:$0xff] %vm5883, %v5875
        %5931 = vst.msk [vmem:[#allocation2 + $0x178] sm:$0xff] %vm5883, %v5876
        %5932 = vst.msk [vmem:[#allocation2 + $0x180] sm:$0xff] %vm5883, %v5877
        %5933 = vst.msk [vmem:[#allocation2 + $0x188] sm:$0xff] %vm5883, %v5878
        %5934 = vst.msk [vmem:[#allocation2 + $0x190] sm:$0xff] %vm5883, %v5879
        %5935 = vst.msk [vmem:[#allocation2 + $0x198] sm:$0xff] %vm5883, %v5880
        %5936 = vst.msk [vmem:[#allocation2 + $0x1a0] sm:$0xff] %vm5883, %v5881
        %5937 = vst.msk [vmem:[#allocation2 + $0x1a8] sm:$0xff] %vm5883, %v5882
        %v5938 = vld [vmem:[#allocation3] sm:$0x1]
        %s5939 = vtos %v5938
        %v5940 = vstv %s5939
        %v5941 = vadd.f32 %v5940, 0.0
        %v5942 = vld [vmem:[#allocation2] sm:$0xff]
        %v5943 = vld [vmem:[#allocation2 + $0x8] sm:$0xff]
        %v5944 = vld [vmem:[#allocation2 + $0x18] sm:$0xff]
        %v5945 = vld [vmem:[#allocation2 + $0x20] sm:$0xff]
        %v5946 = vld [vmem:[#allocation2 + $0x30] sm:$0xff]
        %v5947 = vld [vmem:[#allocation2 + $0x38] sm:$0xff]
        %v5948 = vld [vmem:[#allocation2 + $0x48] sm:$0xff]
        %v5949 = vld [vmem:[#allocation2 + $0x50] sm:$0xff]
        %v5950 = vld [vmem:[#allocation2 + $0x60] sm:$0xff]
        %v5951 = vld [vmem:[#allocation2 + $0x68] sm:$0xff]
        %v5952 = vld [vmem:[#allocation2 + $0x78] sm:$0xff]
        %v5953 = vld [vmem:[#allocation2 + $0x80] sm:$0xff]
        %v5954 = vld [vmem:[#allocation2 + $0x90] sm:$0xff]
        %v5955 = vld [vmem:[#allocation2 + $0x98] sm:$0xff]
        %v5956 = vld [vmem:[#allocation2 + $0xa8] sm:$0xff]
        %v5957 = vld [vmem:[#allocation2 + $0xb0] sm:$0xff]
        %v5958 = vld [vmem:[#allocation2 + $0xc0] sm:$0xff]
        %v5959 = vld [vmem:[#allocation2 + $0xc8] sm:$0xff]
        %v5960 = vld [vmem:[#allocation2 + $0xd8] sm:$0xff]
        %v5961 = vld [vmem:[#allocation2 + $0xe0] sm:$0xff]
        %v5962 = vld [vmem:[#allocation2 + $0xf0] sm:$0xff]
        %v5963 = vld [vmem:[#allocation2 + $0xf8] sm:$0xff]
        %v5964 = vld [vmem:[#allocation2 + $0x108] sm:$0xff]
        %v5965 = vld [vmem:[#allocation2 + $0x110] sm:$0xff]
        %v5966 = vld [vmem:[#allocation2 + $0x120] sm:$0xff]
        %v5967 = vld [vmem:[#allocation2 + $0x128] sm:$0xff]
        %v5968 = vld [vmem:[#allocation2 + $0x138] sm:$0xff]
        %v5969 = vld [vmem:[#allocation2 + $0x140] sm:$0xff]
        %v5970 = vld [vmem:[#allocation2 + $0x150] sm:$0xff]
        %v5971 = vld [vmem:[#allocation2 + $0x158] sm:$0xff]
        %v5972 = vld [vmem:[#allocation2 + $0x168] sm:$0xff]
        %v5973 = vld [vmem:[#allocation2 + $0x170] sm:$0xff]
        %v5974 = vld [vmem:[%s3] sm:$0x1]
        %v5976 = vlaneseq
        %v5977 = vshrl.u32 %v5976, 7
        %v5978 = vsub.s32 0, %v5977
        %v5979 = vrot.slane %v5974, %v5978
        %v5981 = vmul.f32 %v5942, %v5979
        %v5982 = vmul.f32 %v5943, %v5979
        %v5983 = vmul.f32 %v5944, %v5979
        %v5984 = vmul.f32 %v5945, %v5979
        %v5985 = vmul.f32 %v5946, %v5979
        %v5986 = vmul.f32 %v5947, %v5979
        %v5987 = vmul.f32 %v5948, %v5979
        %v5988 = vmul.f32 %v5949, %v5979
        %v5989 = vmul.f32 %v5950, %v5979
        %v5990 = vmul.f32 %v5951, %v5979
        %v5991 = vmul.f32 %v5952, %v5979
        %v5992 = vmul.f32 %v5953, %v5979
        %v5993 = vmul.f32 %v5954, %v5979
        %v5994 = vmul.f32 %v5955, %v5979
        %v5995 = vmul.f32 %v5956, %v5979
        %v5996 = vmul.f32 %v5957, %v5979
        %v5997 = vmul.f32 %v5958, %v5979
        %v5998 = vmul.f32 %v5959, %v5979
        %v5999 = vmul.f32 %v5960, %v5979
        %v6000 = vmul.f32 %v5961, %v5979
        %v6001 = vmul.f32 %v5962, %v5979
        %v6002 = vmul.f32 %v5963, %v5979
        %v6003 = vmul.f32 %v5964, %v5979
        %v6004 = vmul.f32 %v5965, %v5979
        %v6005 = vmul.f32 %v5966, %v5979
        %v6006 = vmul.f32 %v5967, %v5979
        %v6007 = vmul.f32 %v5968, %v5979
        %v6008 = vmul.f32 %v5969, %v5979
        %v6009 = vmul.f32 %v5970, %v5979
        %v6010 = vmul.f32 %v5971, %v5979
        %v6011 = vmul.f32 %v5972, %v5979
        %v6012 = vmul.f32 %v5973, %v5979
        %v6013 = vsel %vm5883, %v5981, 0.0
        %6014 = vadd.xlane.f32.xlu0 %v6013
        %v6015 = vpop.xlane.xlu0 %6014
        %v6016 = vsel %vm5883, %v5982, 0.0
        %6017 = vadd.xlane.f32.xlu0 %v6016
        %v6018 = vpop.xlane.xlu0 %6017
        %v6019 = vsel %vm5883, %v5983, 0.0
        %6020 = vadd.xlane.f32.xlu0 %v6019
        %v6021 = vpop.xlane.xlu0 %6020
        %v6022 = vsel %vm5883, %v5984, 0.0
        %6023 = vadd.xlane.f32.xlu0 %v6022
        %v6024 = vpop.xlane.xlu0 %6023
        %v6025 = vsel %vm5883, %v5985, 0.0
        %6026 = vadd.xlane.f32.xlu0 %v6025
        %v6027 = vpop.xlane.xlu0 %6026
        %v6028 = vsel %vm5883, %v5986, 0.0
        %6029 = vadd.xlane.f32.xlu0 %v6028
        %v6030 = vpop.xlane.xlu0 %6029
        %v6031 = vsel %vm5883, %v5987, 0.0
        %6032 = vadd.xlane.f32.xlu0 %v6031
        %v6033 = vpop.xlane.xlu0 %6032
        %v6034 = vsel %vm5883, %v5988, 0.0
        %6035 = vadd.xlane.f32.xlu0 %v6034
        %v6036 = vpop.xlane.xlu0 %6035
        %v6037 = vsel %vm5883, %v5989, 0.0
        %6038 = vadd.xlane.f32.xlu0 %v6037
        %v6039 = vpop.xlane.xlu0 %6038
        %v6040 = vsel %vm5883, %v5990, 0.0
        %6041 = vadd.xlane.f32.xlu0 %v6040
        %v6042 = vpop.xlane.xlu0 %6041
        %v6043 = vsel %vm5883, %v5991, 0.0
        %6044 = vadd.xlane.f32.xlu0 %v6043
        %v6045 = vpop.xlane.xlu0 %6044
        %v6046 = vsel %vm5883, %v5992, 0.0
        %6047 = vadd.xlane.f32.xlu0 %v6046
        %v6048 = vpop.xlane.xlu0 %6047
        %v6049 = vsel %vm5883, %v5993, 0.0
        %6050 = vadd.xlane.f32.xlu0 %v6049
        %v6051 = vpop.xlane.xlu0 %6050
        %v6052 = vsel %vm5883, %v5994, 0.0
        %6053 = vadd.xlane.f32.xlu0 %v6052
        %v6054 = vpop.xlane.xlu0 %6053
        %v6055 = vsel %vm5883, %v5995, 0.0
        %6056 = vadd.xlane.f32.xlu0 %v6055
        %v6057 = vpop.xlane.xlu0 %6056
        %v6058 = vsel %vm5883, %v5996, 0.0
        %6059 = vadd.xlane.f32.xlu0 %v6058
        %v6060 = vpop.xlane.xlu0 %6059
        %v6061 = vsel %vm5883, %v5997, 0.0
        %6062 = vadd.xlane.f32.xlu0 %v6061
        %v6063 = vpop.xlane.xlu0 %6062
        %v6064 = vsel %vm5883, %v5998, 0.0
        %6065 = vadd.xlane.f32.xlu0 %v6064
        %v6066 = vpop.xlane.xlu0 %6065
        %v6067 = vsel %vm5883, %v5999, 0.0
        %6068 = vadd.xlane.f32.xlu0 %v6067
        %v6069 = vpop.xlane.xlu0 %6068
        %v6070 = vsel %vm5883, %v6000, 0.0
        %6071 = vadd.xlane.f32.xlu0 %v6070
        %v6072 = vpop.xlane.xlu0 %6071
        %v6073 = vsel %vm5883, %v6001, 0.0
        %6074 = vadd.xlane.f32.xlu0 %v6073
        %v6075 = vpop.xlane.xlu0 %6074
        %v6076 = vsel %vm5883, %v6002, 0.0
        %6077 = vadd.xlane.f32.xlu0 %v6076
        %v6078 = vpop.xlane.xlu0 %6077
        %v6079 = vsel %vm5883, %v6003, 0.0
        %6080 = vadd.xlane.f32.xlu0 %v6079
        %v6081 = vpop.xlane.xlu0 %6080
        %v6082 = vsel %vm5883, %v6004, 0.0
        %6083 = vadd.xlane.f32.xlu0 %v6082
        %v6084 = vpop.xlane.xlu0 %6083
        %v6085 = vsel %vm5883, %v6005, 0.0
        %6086 = vadd.xlane.f32.xlu0 %v6085
        %v6087 = vpop.xlane.xlu0 %6086
        %v6088 = vsel %vm5883, %v6006, 0.0
        %6089 = vadd.xlane.f32.xlu0 %v6088
        %v6090 = vpop.xlane.xlu0 %6089
        %v6091 = vsel %vm5883, %v6007, 0.0
        %6092 = vadd.xlane.f32.xlu0 %v6091
        %v6093 = vpop.xlane.xlu0 %6092
        %v6094 = vsel %vm5883, %v6008, 0.0
        %6095 = vadd.xlane.f32.xlu0 %v6094
        %v6096 = vpop.xlane.xlu0 %6095
        %v6097 = vsel %vm5883, %v6009, 0.0
        %6098 = vadd.xlane.f32.xlu0 %v6097
        %v6099 = vpop.xlane.xlu0 %6098
        %v6100 = vsel %vm5883, %v6010, 0.0
        %6101 = vadd.xlane.f32.xlu0 %v6100
        %v6102 = vpop.xlane.xlu0 %6101
        %v6103 = vsel %vm5883, %v6011, 0.0
        %6104 = vadd.xlane.f32.xlu0 %v6103
        %v6105 = vpop.xlane.xlu0 %6104
        %v6106 = vsel %vm5883, %v6012, 0.0
        %6107 = vadd.xlane.f32.xlu0 %v6106
        %v6108 = vpop.xlane.xlu0 %6107
        %v6109 = vadd.f32 %v5941, %v6015
        %v6110 = vadd.f32 %v5941, %v6018
        %v6111 = vadd.f32 %v5941, %v6021
        %v6112 = vadd.f32 %v5941, %v6024
        %v6113 = vadd.f32 %v5941, %v6027
        %v6114 = vadd.f32 %v5941, %v6030
        %v6115 = vadd.f32 %v5941, %v6033
        %v6116 = vadd.f32 %v5941, %v6036
        %v6117 = vadd.f32 %v5941, %v6039
        %v6118 = vadd.f32 %v5941, %v6042
        %v6119 = vadd.f32 %v5941, %v6045
        %v6120 = vadd.f32 %v5941, %v6048
        %v6121 = vadd.f32 %v5941, %v6051
        %v6122 = vadd.f32 %v5941, %v6054
        %v6123 = vadd.f32 %v5941, %v6057
        %v6124 = vadd.f32 %v5941, %v6060
        %v6125 = vadd.f32 %v5941, %v6063
        %v6126 = vadd.f32 %v5941, %v6066
        %v6127 = vadd.f32 %v5941, %v6069
        %v6128 = vadd.f32 %v5941, %v6072
        %v6129 = vadd.f32 %v5941, %v6075
        %v6130 = vadd.f32 %v5941, %v6078
        %v6131 = vadd.f32 %v5941, %v6081
        %v6132 = vadd.f32 %v5941, %v6084
        %v6133 = vadd.f32 %v5941, %v6087
        %v6134 = vadd.f32 %v5941, %v6090
        %v6135 = vadd.f32 %v5941, %v6093
        %v6136 = vadd.f32 %v5941, %v6096
        %v6137 = vadd.f32 %v5941, %v6099
        %v6138 = vadd.f32 %v5941, %v6102
        %v6139 = vadd.f32 %v5941, %v6105
        %v6140 = vadd.f32 %v5941, %v6108
        %v6141 = vld [vmem:[#allocation2 + $0x1] sm:$0xff]
        %v6142 = vld [vmem:[#allocation2 + $0x9] sm:$0xff]
        %v6143 = vld [vmem:[#allocation2 + $0x19] sm:$0xff]
        %v6144 = vld [vmem:[#allocation2 + $0x21] sm:$0xff]
        %v6145 = vld [vmem:[#allocation2 + $0x31] sm:$0xff]
        %v6146 = vld [vmem:[#allocation2 + $0x39] sm:$0xff]
        %v6147 = vld [vmem:[#allocation2 + $0x49] sm:$0xff]
        %v6148 = vld [vmem:[#allocation2 + $0x51] sm:$0xff]
        %v6149 = vld [vmem:[#allocation2 + $0x61] sm:$0xff]
        %v6150 = vld [vmem:[#allocation2 + $0x69] sm:$0xff]
        %v6151 = vld [vmem:[#allocation2 + $0x79] sm:$0xff]
        %v6152 = vld [vmem:[#allocation2 + $0x81] sm:$0xff]
        %v6153 = vld [vmem:[#allocation2 + $0x91] sm:$0xff]
        %v6154 = vld [vmem:[#allocation2 + $0x99] sm:$0xff]
        %v6155 = vld [vmem:[#allocation2 + $0xa9] sm:$0xff]
        %v6156 = vld [vmem:[#allocation2 + $0xb1] sm:$0xff]
        %v6157 = vld [vmem:[#allocation2 + $0xc1] sm:$0xff]
        %v6158 = vld [vmem:[#allocation2 + $0xc9] sm:$0xff]
        %v6159 = vld [vmem:[#allocation2 + $0xd9] sm:$0xff]
        %v6160 = vld [vmem:[#allocation2 + $0xe1] sm:$0xff]
        %v6161 = vld [vmem:[#allocation2 + $0xf1] sm:$0xff]
        %v6162 = vld [vmem:[#allocation2 + $0xf9] sm:$0xff]
        %v6163 = vld [vmem:[#allocation2 + $0x109] sm:$0xff]
        %v6164 = vld [vmem:[#allocation2 + $0x111] sm:$0xff]
        %v6165 = vld [vmem:[#allocation2 + $0x121] sm:$0xff]
        %v6166 = vld [vmem:[#allocation2 + $0x129] sm:$0xff]
        %v6167 = vld [vmem:[#allocation2 + $0x139] sm:$0xff]
        %v6168 = vld [vmem:[#allocation2 + $0x141] sm:$0xff]
        %v6169 = vld [vmem:[#allocation2 + $0x151] sm:$0xff]
        %v6170 = vld [vmem:[#allocation2 + $0x159] sm:$0xff]
        %v6171 = vld [vmem:[#allocation2 + $0x169] sm:$0xff]
        %v6172 = vld [vmem:[#allocation2 + $0x171] sm:$0xff]
        %s6173 = scalar_lea.vmem %s3, 1
        %v6174 = vld [vmem:[%s6173] sm:$0x1]
        %v6176 = vlaneseq
        %v6177 = vshrl.u32 %v6176, 7
        %v6178 = vsub.s32 0, %v6177
        %v6179 = vrot.slane %v6174, %v6178
        %v6181 = vmul.f32 %v6141, %v6179
        %v6182 = vmul.f32 %v6142, %v6179
        %v6183 = vmul.f32 %v6143, %v6179
        %v6184 = vmul.f32 %v6144, %v6179
        %v6185 = vmul.f32 %v6145, %v6179
        %v6186 = vmul.f32 %v6146, %v6179
        %v6187 = vmul.f32 %v6147, %v6179
        %v6188 = vmul.f32 %v6148, %v6179
        %v6189 = vmul.f32 %v6149, %v6179
        %v6190 = vmul.f32 %v6150, %v6179
        %v6191 = vmul.f32 %v6151, %v6179
        %v6192 = vmul.f32 %v6152, %v6179
        %v6193 = vmul.f32 %v6153, %v6179
        %v6194 = vmul.f32 %v6154, %v6179
        %v6195 = vmul.f32 %v6155, %v6179
        %v6196 = vmul.f32 %v6156, %v6179
        %v6197 = vmul.f32 %v6157, %v6179
        %v6198 = vmul.f32 %v6158, %v6179
        %v6199 = vmul.f32 %v6159, %v6179
        %v6200 = vmul.f32 %v6160, %v6179
        %v6201 = vmul.f32 %v6161, %v6179
        %v6202 = vmul.f32 %v6162, %v6179
        %v6203 = vmul.f32 %v6163, %v6179
        %v6204 = vmul.f32 %v6164, %v6179
        %v6205 = vmul.f32 %v6165, %v6179
        %v6206 = vmul.f32 %v6166, %v6179
        %v6207 = vmul.f32 %v6167, %v6179
        %v6208 = vmul.f32 %v6168, %v6179
        %v6209 = vmul.f32 %v6169, %v6179
        %v6210 = vmul.f32 %v6170, %v6179
        %v6211 = vmul.f32 %v6171, %v6179
        %v6212 = vmul.f32 %v6172, %v6179
        %v6213 = vsel %vm5883, %v6181, 0.0
        %6214 = vadd.xlane.f32.xlu0 %v6213
        %v6215 = vpop.xlane.xlu0 %6214
        %v6216 = vsel %vm5883, %v6182, 0.0
        %6217 = vadd.xlane.f32.xlu0 %v6216
        %v6218 = vpop.xlane.xlu0 %6217
        %v6219 = vsel %vm5883, %v6183, 0.0
        %6220 = vadd.xlane.f32.xlu0 %v6219
        %v6221 = vpop.xlane.xlu0 %6220
        %v6222 = vsel %vm5883, %v6184, 0.0
        %6223 = vadd.xlane.f32.xlu0 %v6222
        %v6224 = vpop.xlane.xlu0 %6223
        %v6225 = vsel %vm5883, %v6185, 0.0
        %6226 = vadd.xlane.f32.xlu0 %v6225
        %v6227 = vpop.xlane.xlu0 %6226
        %v6228 = vsel %vm5883, %v6186, 0.0
        %6229 = vadd.xlane.f32.xlu0 %v6228
        %v6230 = vpop.xlane.xlu0 %6229
        %v6231 = vsel %vm5883, %v6187, 0.0
        %6232 = vadd.xlane.f32.xlu0 %v6231
        %v6233 = vpop.xlane.xlu0 %6232
        %v6234 = vsel %vm5883, %v6188, 0.0
        %6235 = vadd.xlane.f32.xlu0 %v6234
        %v6236 = vpop.xlane.xlu0 %6235
        %v6237 = vsel %vm5883, %v6189, 0.0
        %6238 = vadd.xlane.f32.xlu0 %v6237
        %v6239 = vpop.xlane.xlu0 %6238
        %v6240 = vsel %vm5883, %v6190, 0.0
        %6241 = vadd.xlane.f32.xlu0 %v6240
        %v6242 = vpop.xlane.xlu0 %6241
        %v6243 = vsel %vm5883, %v6191, 0.0
        %6244 = vadd.xlane.f32.xlu0 %v6243
        %v6245 = vpop.xlane.xlu0 %6244
        %v6246 = vsel %vm5883, %v6192, 0.0
        %6247 = vadd.xlane.f32.xlu0 %v6246
        %v6248 = vpop.xlane.xlu0 %6247
        %v6249 = vsel %vm5883, %v6193, 0.0
        %6250 = vadd.xlane.f32.xlu0 %v6249
        %v6251 = vpop.xlane.xlu0 %6250
        %v6252 = vsel %vm5883, %v6194, 0.0
        %6253 = vadd.xlane.f32.xlu0 %v6252
        %v6254 = vpop.xlane.xlu0 %6253
        %v6255 = vsel %vm5883, %v6195, 0.0
        %6256 = vadd.xlane.f32.xlu0 %v6255
        %v6257 = vpop.xlane.xlu0 %6256
        %v6258 = vsel %vm5883, %v6196, 0.0
        %6259 = vadd.xlane.f32.xlu0 %v6258
        %v6260 = vpop.xlane.xlu0 %6259
        %v6261 = vsel %vm5883, %v6197, 0.0
        %6262 = vadd.xlane.f32.xlu0 %v6261
        %v6263 = vpop.xlane.xlu0 %6262
        %v6264 = vsel %vm5883, %v6198, 0.0
        %6265 = vadd.xlane.f32.xlu0 %v6264
        %v6266 = vpop.xlane.xlu0 %6265
        %v6267 = vsel %vm5883, %v6199, 0.0
        %6268 = vadd.xlane.f32.xlu0 %v6267
        %v6269 = vpop.xlane.xlu0 %6268
        %v6270 = vsel %vm5883, %v6200, 0.0
        %6271 = vadd.xlane.f32.xlu0 %v6270
        %v6272 = vpop.xlane.xlu0 %6271
        %v6273 = vsel %vm5883, %v6201, 0.0
        %6274 = vadd.xlane.f32.xlu0 %v6273
        %v6275 = vpop.xlane.xlu0 %6274
        %v6276 = vsel %vm5883, %v6202, 0.0
        %6277 = vadd.xlane.f32.xlu0 %v6276
        %v6278 = vpop.xlane.xlu0 %6277
        %v6279 = vsel %vm5883, %v6203, 0.0
        %6280 = vadd.xlane.f32.xlu0 %v6279
        %v6281 = vpop.xlane.xlu0 %6280
        %v6282 = vsel %vm5883, %v6204, 0.0
        %6283 = vadd.xlane.f32.xlu0 %v6282
        %v6284 = vpop.xlane.xlu0 %6283
        %v6285 = vsel %vm5883, %v6205, 0.0
        %6286 = vadd.xlane.f32.xlu0 %v6285
        %v6287 = vpop.xlane.xlu0 %6286
        %v6288 = vsel %vm5883, %v6206, 0.0
        %6289 = vadd.xlane.f32.xlu0 %v6288
        %v6290 = vpop.xlane.xlu0 %6289
        %v6291 = vsel %vm5883, %v6207, 0.0
        %6292 = vadd.xlane.f32.xlu0 %v6291
        %v6293 = vpop.xlane.xlu0 %6292
        %v6294 = vsel %vm5883, %v6208, 0.0
        %6295 = vadd.xlane.f32.xlu0 %v6294
        %v6296 = vpop.xlane.xlu0 %6295
        %v6297 = vsel %vm5883, %v6209, 0.0
        %6298 = vadd.xlane.f32.xlu0 %v6297
        %v6299 = vpop.xlane.xlu0 %6298
        %v6300 = vsel %vm5883, %v6210, 0.0
        %6301 = vadd.xlane.f32.xlu0 %v6300
        %v6302 = vpop.xlane.xlu0 %6301
        %v6303 = vsel %vm5883, %v6211, 0.0
        %6304 = vadd.xlane.f32.xlu0 %v6303
        %v6305 = vpop.xlane.xlu0 %6304
        %v6306 = vsel %vm5883, %v6212, 0.0
        %6307 = vadd.xlane.f32.xlu0 %v6306
        %v6308 = vpop.xlane.xlu0 %6307
        %v6309 = vadd.f32 %v6109, %v6215
        %v6310 = vadd.f32 %v6110, %v6218
        %v6311 = vadd.f32 %v6111, %v6221
        %v6312 = vadd.f32 %v6112, %v6224
        %v6313 = vadd.f32 %v6113, %v6227
        %v6314 = vadd.f32 %v6114, %v6230
        %v6315 = vadd.f32 %v6115, %v6233
        %v6316 = vadd.f32 %v6116, %v6236
        %v6317 = vadd.f32 %v6117, %v6239
        %v6318 = vadd.f32 %v6118, %v6242
        %v6319 = vadd.f32 %v6119, %v6245
        %v6320 = vadd.f32 %v6120, %v6248
        %v6321 = vadd.f32 %v6121, %v6251
        %v6322 = vadd.f32 %v6122, %v6254
        %v6323 = vadd.f32 %v6123, %v6257
        %v6324 = vadd.f32 %v6124, %v6260
        %v6325 = vadd.f32 %v6125, %v6263
        %v6326 = vadd.f32 %v6126, %v6266
        %v6327 = vadd.f32 %v6127, %v6269
        %v6328 = vadd.f32 %v6128, %v6272
        %v6329 = vadd.f32 %v6129, %v6275
        %v6330 = vadd.f32 %v6130, %v6278
        %v6331 = vadd.f32 %v6131, %v6281
        %v6332 = vadd.f32 %v6132, %v6284
        %v6333 = vadd.f32 %v6133, %v6287
        %v6334 = vadd.f32 %v6134, %v6290
        %v6335 = vadd.f32 %v6135, %v6293
        %v6336 = vadd.f32 %v6136, %v6296
        %v6337 = vadd.f32 %v6137, %v6299
        %v6338 = vadd.f32 %v6138, %v6302
        %v6339 = vadd.f32 %v6139, %v6305
        %v6340 = vadd.f32 %v6140, %v6308
        %v6341 = vld [vmem:[#allocation2 + $0x2] sm:$0xff]
        %v6342 = vld [vmem:[#allocation2 + $0xa] sm:$0xff]
        %v6343 = vld [vmem:[#allocation2 + $0x1a] sm:$0xff]
        %v6344 = vld [vmem:[#allocation2 + $0x22] sm:$0xff]
        %v6345 = vld [vmem:[#allocation2 + $0x32] sm:$0xff]
        %v6346 = vld [vmem:[#allocation2 + $0x3a] sm:$0xff]
        %v6347 = vld [vmem:[#allocation2 + $0x4a] sm:$0xff]
        %v6348 = vld [vmem:[#allocation2 + $0x52] sm:$0xff]
        %v6349 = vld [vmem:[#allocation2 + $0x62] sm:$0xff]
        %v6350 = vld [vmem:[#allocation2 + $0x6a] sm:$0xff]
        %v6351 = vld [vmem:[#allocation2 + $0x7a] sm:$0xff]
        %v6352 = vld [vmem:[#allocation2 + $0x82] sm:$0xff]
        %v6353 = vld [vmem:[#allocation2 + $0x92] sm:$0xff]
        %v6354 = vld [vmem:[#allocation2 + $0x9a] sm:$0xff]
        %v6355 = vld [vmem:[#allocation2 + $0xaa] sm:$0xff]
        %v6356 = vld [vmem:[#allocation2 + $0xb2] sm:$0xff]
        %v6357 = vld [vmem:[#allocation2 + $0xc2] sm:$0xff]
        %v6358 = vld [vmem:[#allocation2 + $0xca] sm:$0xff]
        %v6359 = vld [vmem:[#allocation2 + $0xda] sm:$0xff]
        %v6360 = vld [vmem:[#allocation2 + $0xe2] sm:$0xff]
        %v6361 = vld [vmem:[#allocation2 + $0xf2] sm:$0xff]
        %v6362 = vld [vmem:[#allocation2 + $0xfa] sm:$0xff]
        %v6363 = vld [vmem:[#allocation2 + $0x10a] sm:$0xff]
        %v6364 = vld [vmem:[#allocation2 + $0x112] sm:$0xff]
        %v6365 = vld [vmem:[#allocation2 + $0x122] sm:$0xff]
        %v6366 = vld [vmem:[#allocation2 + $0x12a] sm:$0xff]
        %v6367 = vld [vmem:[#allocation2 + $0x13a] sm:$0xff]
        %v6368 = vld [vmem:[#allocation2 + $0x142] sm:$0xff]
        %v6369 = vld [vmem:[#allocation2 + $0x152] sm:$0xff]
        %v6370 = vld [vmem:[#allocation2 + $0x15a] sm:$0xff]
        %v6371 = vld [vmem:[#allocation2 + $0x16a] sm:$0xff]
        %v6372 = vld [vmem:[#allocation2 + $0x172] sm:$0xff]
        %s6373 = scalar_lea.vmem %s3, 2
        %v6374 = vld [vmem:[%s6373] sm:$0x1]
        %v6376 = vlaneseq
        %v6377 = vshrl.u32 %v6376, 7
        %v6378 = vsub.s32 0, %v6377
        %v6379 = vrot.slane %v6374, %v6378
        %v6381 = vmul.f32 %v6341, %v6379
        %v6382 = vmul.f32 %v6342, %v6379
        %v6383 = vmul.f32 %v6343, %v6379
        %v6384 = vmul.f32 %v6344, %v6379
        %v6385 = vmul.f32 %v6345, %v6379
        %v6386 = vmul.f32 %v6346, %v6379
        %v6387 = vmul.f32 %v6347, %v6379
        %v6388 = vmul.f32 %v6348, %v6379
        %v6389 = vmul.f32 %v6349, %v6379
        %v6390 = vmul.f32 %v6350, %v6379
        %v6391 = vmul.f32 %v6351, %v6379
        %v6392 = vmul.f32 %v6352, %v6379
        %v6393 = vmul.f32 %v6353, %v6379
        %v6394 = vmul.f32 %v6354, %v6379
        %v6395 = vmul.f32 %v6355, %v6379
        %v6396 = vmul.f32 %v6356, %v6379
        %v6397 = vmul.f32 %v6357, %v6379
        %v6398 = vmul.f32 %v6358, %v6379
        %v6399 = vmul.f32 %v6359, %v6379
        %v6400 = vmul.f32 %v6360, %v6379
        %v6401 = vmul.f32 %v6361, %v6379
        %v6402 = vmul.f32 %v6362, %v6379
        %v6403 = vmul.f32 %v6363, %v6379
        %v6404 = vmul.f32 %v6364, %v6379
        %v6405 = vmul.f32 %v6365, %v6379
        %v6406 = vmul.f32 %v6366, %v6379
        %v6407 = vmul.f32 %v6367, %v6379
        %v6408 = vmul.f32 %v6368, %v6379
        %v6409 = vmul.f32 %v6369, %v6379
        %v6410 = vmul.f32 %v6370, %v6379
        %v6411 = vmul.f32 %v6371, %v6379
        %v6412 = vmul.f32 %v6372, %v6379
        %v6413 = vsel %vm5883, %v6381, 0.0
        %6414 = vadd.xlane.f32.xlu0 %v6413
        %v6415 = vpop.xlane.xlu0 %6414
        %v6416 = vsel %vm5883, %v6382, 0.0
        %6417 = vadd.xlane.f32.xlu0 %v6416
        %v6418 = vpop.xlane.xlu0 %6417
        %v6419 = vsel %vm5883, %v6383, 0.0
        %6420 = vadd.xlane.f32.xlu0 %v6419
        %v6421 = vpop.xlane.xlu0 %6420
        %v6422 = vsel %vm5883, %v6384, 0.0
        %6423 = vadd.xlane.f32.xlu0 %v6422
        %v6424 = vpop.xlane.xlu0 %6423
        %v6425 = vsel %vm5883, %v6385, 0.0
        %6426 = vadd.xlane.f32.xlu0 %v6425
        %v6427 = vpop.xlane.xlu0 %6426
        %v6428 = vsel %vm5883, %v6386, 0.0
        %6429 = vadd.xlane.f32.xlu0 %v6428
        %v6430 = vpop.xlane.xlu0 %6429
        %v6431 = vsel %vm5883, %v6387, 0.0
        %6432 = vadd.xlane.f32.xlu0 %v6431
        %v6433 = vpop.xlane.xlu0 %6432
        %v6434 = vsel %vm5883, %v6388, 0.0
        %6435 = vadd.xlane.f32.xlu0 %v6434
        %v6436 = vpop.xlane.xlu0 %6435
        %v6437 = vsel %vm5883, %v6389, 0.0
        %6438 = vadd.xlane.f32.xlu0 %v6437
        %v6439 = vpop.xlane.xlu0 %6438
        %v6440 = vsel %vm5883, %v6390, 0.0
        %6441 = vadd.xlane.f32.xlu0 %v6440
        %v6442 = vpop.xlane.xlu0 %6441
        %v6443 = vsel %vm5883, %v6391, 0.0
        %6444 = vadd.xlane.f32.xlu0 %v6443
        %v6445 = vpop.xlane.xlu0 %6444
        %v6446 = vsel %vm5883, %v6392, 0.0
        %6447 = vadd.xlane.f32.xlu0 %v6446
        %v6448 = vpop.xlane.xlu0 %6447
        %v6449 = vsel %vm5883, %v6393, 0.0
        %6450 = vadd.xlane.f32.xlu0 %v6449
        %v6451 = vpop.xlane.xlu0 %6450
        %v6452 = vsel %vm5883, %v6394, 0.0
        %6453 = vadd.xlane.f32.xlu0 %v6452
        %v6454 = vpop.xlane.xlu0 %6453
        %v6455 = vsel %vm5883, %v6395, 0.0
        %6456 = vadd.xlane.f32.xlu0 %v6455
        %v6457 = vpop.xlane.xlu0 %6456
        %v6458 = vsel %vm5883, %v6396, 0.0
        %6459 = vadd.xlane.f32.xlu0 %v6458
        %v6460 = vpop.xlane.xlu0 %6459
        %v6461 = vsel %vm5883, %v6397, 0.0
        %6462 = vadd.xlane.f32.xlu0 %v6461
        %v6463 = vpop.xlane.xlu0 %6462
        %v6464 = vsel %vm5883, %v6398, 0.0
        %6465 = vadd.xlane.f32.xlu0 %v6464
        %v6466 = vpop.xlane.xlu0 %6465
        %v6467 = vsel %vm5883, %v6399, 0.0
        %6468 = vadd.xlane.f32.xlu0 %v6467
        %v6469 = vpop.xlane.xlu0 %6468
        %v6470 = vsel %vm5883, %v6400, 0.0
        %6471 = vadd.xlane.f32.xlu0 %v6470
        %v6472 = vpop.xlane.xlu0 %6471
        %v6473 = vsel %vm5883, %v6401, 0.0
        %6474 = vadd.xlane.f32.xlu0 %v6473
        %v6475 = vpop.xlane.xlu0 %6474
        %v6476 = vsel %vm5883, %v6402, 0.0
        %6477 = vadd.xlane.f32.xlu0 %v6476
        %v6478 = vpop.xlane.xlu0 %6477
        %v6479 = vsel %vm5883, %v6403, 0.0
        %6480 = vadd.xlane.f32.xlu0 %v6479
        %v6481 = vpop.xlane.xlu0 %6480
        %v6482 = vsel %vm5883, %v6404, 0.0
        %6483 = vadd.xlane.f32.xlu0 %v6482
        %v6484 = vpop.xlane.xlu0 %6483
        %v6485 = vsel %vm5883, %v6405, 0.0
        %6486 = vadd.xlane.f32.xlu0 %v6485
        %v6487 = vpop.xlane.xlu0 %6486
        %v6488 = vsel %vm5883, %v6406, 0.0
        %6489 = vadd.xlane.f32.xlu0 %v6488
        %v6490 = vpop.xlane.xlu0 %6489
        %v6491 = vsel %vm5883, %v6407, 0.0
        %6492 = vadd.xlane.f32.xlu0 %v6491
        %v6493 = vpop.xlane.xlu0 %6492
        %v6494 = vsel %vm5883, %v6408, 0.0
        %6495 = vadd.xlane.f32.xlu0 %v6494
        %v6496 = vpop.xlane.xlu0 %6495
        %v6497 = vsel %vm5883, %v6409, 0.0
        %6498 = vadd.xlane.f32.xlu0 %v6497
        %v6499 = vpop.xlane.xlu0 %6498
        %v6500 = vsel %vm5883, %v6410, 0.0
        %6501 = vadd.xlane.f32.xlu0 %v6500
        %v6502 = vpop.xlane.xlu0 %6501
        %v6503 = vsel %vm5883, %v6411, 0.0
        %6504 = vadd.xlane.f32.xlu0 %v6503
        %v6505 = vpop.xlane.xlu0 %6504
        %v6506 = vsel %vm5883, %v6412, 0.0
        %6507 = vadd.xlane.f32.xlu0 %v6506
        %v6508 = vpop.xlane.xlu0 %6507
        %v6509 = vadd.f32 %v6309, %v6415
        %v6510 = vadd.f32 %v6310, %v6418
        %v6511 = vadd.f32 %v6311, %v6421
        %v6512 = vadd.f32 %v6312, %v6424
        %v6513 = vadd.f32 %v6313, %v6427
        %v6514 = vadd.f32 %v6314, %v6430
        %v6515 = vadd.f32 %v6315, %v6433
        %v6516 = vadd.f32 %v6316, %v6436
        %v6517 = vadd.f32 %v6317, %v6439
        %v6518 = vadd.f32 %v6318, %v6442
        %v6519 = vadd.f32 %v6319, %v6445
        %v6520 = vadd.f32 %v6320, %v6448
        %v6521 = vadd.f32 %v6321, %v6451
        %v6522 = vadd.f32 %v6322, %v6454
        %v6523 = vadd.f32 %v6323, %v6457
        %v6524 = vadd.f32 %v6324, %v6460
        %v6525 = vadd.f32 %v6325, %v6463
        %v6526 = vadd.f32 %v6326, %v6466
        %v6527 = vadd.f32 %v6327, %v6469
        %v6528 = vadd.f32 %v6328, %v6472
        %v6529 = vadd.f32 %v6329, %v6475
        %v6530 = vadd.f32 %v6330, %v6478
        %v6531 = vadd.f32 %v6331, %v6481
        %v6532 = vadd.f32 %v6332, %v6484
        %v6533 = vadd.f32 %v6333, %v6487
        %v6534 = vadd.f32 %v6334, %v6490
        %v6535 = vadd.f32 %v6335, %v6493
        %v6536 = vadd.f32 %v6336, %v6496
        %v6537 = vadd.f32 %v6337, %v6499
        %v6538 = vadd.f32 %v6338, %v6502
        %v6539 = vadd.f32 %v6339, %v6505
        %v6540 = vadd.f32 %v6340, %v6508
        %s6541 = scalar_lea.vmem [#allocation2], 24
        %v6542 = vld [vmem:[%s6541] sm:$0xff]
        %v6543 = vld [vmem:[%s6541 + $0x8] sm:$0xff]
        %v6544 = vld [vmem:[%s6541 + $0x18] sm:$0xff]
        %v6545 = vld [vmem:[%s6541 + $0x20] sm:$0xff]
        %v6546 = vld [vmem:[%s6541 + $0x30] sm:$0xff]
        %v6547 = vld [vmem:[%s6541 + $0x38] sm:$0xff]
        %v6548 = vld [vmem:[%s6541 + $0x48] sm:$0xff]
        %v6549 = vld [vmem:[%s6541 + $0x50] sm:$0xff]
        %v6550 = vld [vmem:[%s6541 + $0x60] sm:$0xff]
        %v6551 = vld [vmem:[%s6541 + $0x68] sm:$0xff]
        %v6552 = vld [vmem:[%s6541 + $0x78] sm:$0xff]
        %v6553 = vld [vmem:[%s6541 + $0x80] sm:$0xff]
        %v6554 = vld [vmem:[%s6541 + $0x90] sm:$0xff]
        %v6555 = vld [vmem:[%s6541 + $0x98] sm:$0xff]
        %v6556 = vld [vmem:[%s6541 + $0xa8] sm:$0xff]
        %v6557 = vld [vmem:[%s6541 + $0xb0] sm:$0xff]
        %v6558 = vld [vmem:[%s6541 + $0xc0] sm:$0xff]
        %v6559 = vld [vmem:[%s6541 + $0xc8] sm:$0xff]
        %v6560 = vld [vmem:[%s6541 + $0xd8] sm:$0xff]
        %v6561 = vld [vmem:[%s6541 + $0xe0] sm:$0xff]
        %v6562 = vld [vmem:[%s6541 + $0xf0] sm:$0xff]
        %v6563 = vld [vmem:[%s6541 + $0xf8] sm:$0xff]
        %v6564 = vld [vmem:[%s6541 + $0x108] sm:$0xff]
        %v6565 = vld [vmem:[%s6541 + $0x110] sm:$0xff]
        %v6566 = vld [vmem:[%s6541 + $0x120] sm:$0xff]
        %v6567 = vld [vmem:[%s6541 + $0x128] sm:$0xff]
        %v6568 = vld [vmem:[%s6541 + $0x138] sm:$0xff]
        %v6569 = vld [vmem:[%s6541 + $0x140] sm:$0xff]
        %v6570 = vld [vmem:[%s6541 + $0x150] sm:$0xff]
        %v6571 = vld [vmem:[%s6541 + $0x158] sm:$0xff]
        %v6572 = vld [vmem:[%s6541 + $0x168] sm:$0xff]
        %v6573 = vld [vmem:[%s6541 + $0x170] sm:$0xff]
        %s6574 = scalar_lea.vmem %s3, 3
        %v6575 = vld [vmem:[%s6574] sm:$0x1]
        %v6577 = vlaneseq
        %v6578 = vshrl.u32 %v6577, 7
        %v6579 = vsub.s32 0, %v6578
        %v6580 = vrot.slane %v6575, %v6579
        %v6582 = vmul.f32 %v6542, %v6580
        %v6583 = vmul.f32 %v6543, %v6580
        %v6584 = vmul.f32 %v6544, %v6580
        %v6585 = vmul.f32 %v6545, %v6580
        %v6586 = vmul.f32 %v6546, %v6580
        %v6587 = vmul.f32 %v6547, %v6580
        %v6588 = vmul.f32 %v6548, %v6580
        %v6589 = vmul.f32 %v6549, %v6580
        %v6590 = vmul.f32 %v6550, %v6580
        %v6591 = vmul.f32 %v6551, %v6580
        %v6592 = vmul.f32 %v6552, %v6580
        %v6593 = vmul.f32 %v6553, %v6580
        %v6594 = vmul.f32 %v6554, %v6580
        %v6595 = vmul.f32 %v6555, %v6580
        %v6596 = vmul.f32 %v6556, %v6580
        %v6597 = vmul.f32 %v6557, %v6580
        %v6598 = vmul.f32 %v6558, %v6580
        %v6599 = vmul.f32 %v6559, %v6580
        %v6600 = vmul.f32 %v6560, %v6580
        %v6601 = vmul.f32 %v6561, %v6580
        %v6602 = vmul.f32 %v6562, %v6580
        %v6603 = vmul.f32 %v6563, %v6580
        %v6604 = vmul.f32 %v6564, %v6580
        %v6605 = vmul.f32 %v6565, %v6580
        %v6606 = vmul.f32 %v6566, %v6580
        %v6607 = vmul.f32 %v6567, %v6580
        %v6608 = vmul.f32 %v6568, %v6580
        %v6609 = vmul.f32 %v6569, %v6580
        %v6610 = vmul.f32 %v6570, %v6580
        %v6611 = vmul.f32 %v6571, %v6580
        %v6612 = vmul.f32 %v6572, %v6580
        %v6613 = vmul.f32 %v6573, %v6580
        %v6614 = vsel %vm5883, %v6582, 0.0
        %6615 = vadd.xlane.f32.xlu0 %v6614
        %v6616 = vpop.xlane.xlu0 %6615
        %v6617 = vsel %vm5883, %v6583, 0.0
        %6618 = vadd.xlane.f32.xlu0 %v6617
        %v6619 = vpop.xlane.xlu0 %6618
        %v6620 = vsel %vm5883, %v6584, 0.0
        %6621 = vadd.xlane.f32.xlu0 %v6620
        %v6622 = vpop.xlane.xlu0 %6621
        %v6623 = vsel %vm5883, %v6585, 0.0
        %6624 = vadd.xlane.f32.xlu0 %v6623
        %v6625 = vpop.xlane.xlu0 %6624
        %v6626 = vsel %vm5883, %v6586, 0.0
        %6627 = vadd.xlane.f32.xlu0 %v6626
        %v6628 = vpop.xlane.xlu0 %6627
        %v6629 = vsel %vm5883, %v6587, 0.0
        %6630 = vadd.xlane.f32.xlu0 %v6629
        %v6631 = vpop.xlane.xlu0 %6630
        %v6632 = vsel %vm5883, %v6588, 0.0
        %6633 = vadd.xlane.f32.xlu0 %v6632
        %v6634 = vpop.xlane.xlu0 %6633
        %v6635 = vsel %vm5883, %v6589, 0.0
        %6636 = vadd.xlane.f32.xlu0 %v6635
        %v6637 = vpop.xlane.xlu0 %6636
        %v6638 = vsel %vm5883, %v6590, 0.0
        %6639 = vadd.xlane.f32.xlu0 %v6638
        %v6640 = vpop.xlane.xlu0 %6639
        %v6641 = vsel %vm5883, %v6591, 0.0
        %6642 = vadd.xlane.f32.xlu0 %v6641
        %v6643 = vpop.xlane.xlu0 %6642
        %v6644 = vsel %vm5883, %v6592, 0.0
        %6645 = vadd.xlane.f32.xlu0 %v6644
        %v6646 = vpop.xlane.xlu0 %6645
        %v6647 = vsel %vm5883, %v6593, 0.0
        %6648 = vadd.xlane.f32.xlu0 %v6647
        %v6649 = vpop.xlane.xlu0 %6648
        %v6650 = vsel %vm5883, %v6594, 0.0
        %6651 = vadd.xlane.f32.xlu0 %v6650
        %v6652 = vpop.xlane.xlu0 %6651
        %v6653 = vsel %vm5883, %v6595, 0.0
        %6654 = vadd.xlane.f32.xlu0 %v6653
        %v6655 = vpop.xlane.xlu0 %6654
        %v6656 = vsel %vm5883, %v6596, 0.0
        %6657 = vadd.xlane.f32.xlu0 %v6656
        %v6658 = vpop.xlane.xlu0 %6657
        %v6659 = vsel %vm5883, %v6597, 0.0
        %6660 = vadd.xlane.f32.xlu0 %v6659
        %v6661 = vpop.xlane.xlu0 %6660
        %v6662 = vsel %vm5883, %v6598, 0.0
        %6663 = vadd.xlane.f32.xlu0 %v6662
        %v6664 = vpop.xlane.xlu0 %6663
        %v6665 = vsel %vm5883, %v6599, 0.0
        %6666 = vadd.xlane.f32.xlu0 %v6665
        %v6667 = vpop.xlane.xlu0 %6666
        %v6668 = vsel %vm5883, %v6600, 0.0
        %6669 = vadd.xlane.f32.xlu0 %v6668
        %v6670 = vpop.xlane.xlu0 %6669
        %v6671 = vsel %vm5883, %v6601, 0.0
        %6672 = vadd.xlane.f32.xlu0 %v6671
        %v6673 = vpop.xlane.xlu0 %6672
        %v6674 = vsel %vm5883, %v6602, 0.0
        %6675 = vadd.xlane.f32.xlu0 %v6674
        %v6676 = vpop.xlane.xlu0 %6675
        %v6677 = vsel %vm5883, %v6603, 0.0
        %6678 = vadd.xlane.f32.xlu0 %v6677
        %v6679 = vpop.xlane.xlu0 %6678
        %v6680 = vsel %vm5883, %v6604, 0.0
        %6681 = vadd.xlane.f32.xlu0 %v6680
        %v6682 = vpop.xlane.xlu0 %6681
        %v6683 = vsel %vm5883, %v6605, 0.0
        %6684 = vadd.xlane.f32.xlu0 %v6683
        %v6685 = vpop.xlane.xlu0 %6684
        %v6686 = vsel %vm5883, %v6606, 0.0
        %6687 = vadd.xlane.f32.xlu0 %v6686
        %v6688 = vpop.xlane.xlu0 %6687
        %v6689 = vsel %vm5883, %v6607, 0.0
        %6690 = vadd.xlane.f32.xlu0 %v6689
        %v6691 = vpop.xlane.xlu0 %6690
        %v6692 = vsel %vm5883, %v6608, 0.0
        %6693 = vadd.xlane.f32.xlu0 %v6692
        %v6694 = vpop.xlane.xlu0 %6693
        %v6695 = vsel %vm5883, %v6609, 0.0
        %6696 = vadd.xlane.f32.xlu0 %v6695
        %v6697 = vpop.xlane.xlu0 %6696
        %v6698 = vsel %vm5883, %v6610, 0.0
        %6699 = vadd.xlane.f32.xlu0 %v6698
        %v6700 = vpop.xlane.xlu0 %6699
        %v6701 = vsel %vm5883, %v6611, 0.0
        %6702 = vadd.xlane.f32.xlu0 %v6701
        %v6703 = vpop.xlane.xlu0 %6702
        %v6704 = vsel %vm5883, %v6612, 0.0
        %6705 = vadd.xlane.f32.xlu0 %v6704
        %v6706 = vpop.xlane.xlu0 %6705
        %v6707 = vsel %vm5883, %v6613, 0.0
        %6708 = vadd.xlane.f32.xlu0 %v6707
        %v6709 = vpop.xlane.xlu0 %6708
        %v6710 = vadd.f32 %v6509, %v6616
        %v6711 = vadd.f32 %v6510, %v6619
        %v6712 = vadd.f32 %v6511, %v6622
        %v6713 = vadd.f32 %v6512, %v6625
        %v6714 = vadd.f32 %v6513, %v6628
        %v6715 = vadd.f32 %v6514, %v6631
        %v6716 = vadd.f32 %v6515, %v6634
        %v6717 = vadd.f32 %v6516, %v6637
        %v6718 = vadd.f32 %v6517, %v6640
        %v6719 = vadd.f32 %v6518, %v6643
        %v6720 = vadd.f32 %v6519, %v6646
        %v6721 = vadd.f32 %v6520, %v6649
        %v6722 = vadd.f32 %v6521, %v6652
        %v6723 = vadd.f32 %v6522, %v6655
        %v6724 = vadd.f32 %v6523, %v6658
        %v6725 = vadd.f32 %v6524, %v6661
        %v6726 = vadd.f32 %v6525, %v6664
        %v6727 = vadd.f32 %v6526, %v6667
        %v6728 = vadd.f32 %v6527, %v6670
        %v6729 = vadd.f32 %v6528, %v6673
        %v6730 = vadd.f32 %v6529, %v6676
        %v6731 = vadd.f32 %v6530, %v6679
        %v6732 = vadd.f32 %v6531, %v6682
        %v6733 = vadd.f32 %v6532, %v6685
        %v6734 = vadd.f32 %v6533, %v6688
        %v6735 = vadd.f32 %v6534, %v6691
        %v6736 = vadd.f32 %v6535, %v6694
        %v6737 = vadd.f32 %v6536, %v6697
        %v6738 = vadd.f32 %v6537, %v6700
        %v6739 = vadd.f32 %v6538, %v6703
        %v6740 = vadd.f32 %v6539, %v6706
        %v6741 = vadd.f32 %v6540, %v6709
        %v6742 = vld [vmem:[%s6541 + $0x1] sm:$0xff]
        %v6743 = vld [vmem:[%s6541 + $0x9] sm:$0xff]
        %v6744 = vld [vmem:[%s6541 + $0x19] sm:$0xff]
        %v6745 = vld [vmem:[%s6541 + $0x21] sm:$0xff]
        %v6746 = vld [vmem:[%s6541 + $0x31] sm:$0xff]
        %v6747 = vld [vmem:[%s6541 + $0x39] sm:$0xff]
        %v6748 = vld [vmem:[%s6541 + $0x49] sm:$0xff]
        %v6749 = vld [vmem:[%s6541 + $0x51] sm:$0xff]
        %v6750 = vld [vmem:[%s6541 + $0x61] sm:$0xff]
        %v6751 = vld [vmem:[%s6541 + $0x69] sm:$0xff]
        %v6752 = vld [vmem:[%s6541 + $0x79] sm:$0xff]
        %v6753 = vld [vmem:[%s6541 + $0x81] sm:$0xff]
        %v6754 = vld [vmem:[%s6541 + $0x91] sm:$0xff]
        %v6755 = vld [vmem:[%s6541 + $0x99] sm:$0xff]
        %v6756 = vld [vmem:[%s6541 + $0xa9] sm:$0xff]
        %v6757 = vld [vmem:[%s6541 + $0xb1] sm:$0xff]
        %v6758 = vld [vmem:[%s6541 + $0xc1] sm:$0xff]
        %v6759 = vld [vmem:[%s6541 + $0xc9] sm:$0xff]
        %v6760 = vld [vmem:[%s6541 + $0xd9] sm:$0xff]
        %v6761 = vld [vmem:[%s6541 + $0xe1] sm:$0xff]
        %v6762 = vld [vmem:[%s6541 + $0xf1] sm:$0xff]
        %v6763 = vld [vmem:[%s6541 + $0xf9] sm:$0xff]
        %v6764 = vld [vmem:[%s6541 + $0x109] sm:$0xff]
        %v6765 = vld [vmem:[%s6541 + $0x111] sm:$0xff]
        %v6766 = vld [vmem:[%s6541 + $0x121] sm:$0xff]
        %v6767 = vld [vmem:[%s6541 + $0x129] sm:$0xff]
        %v6768 = vld [vmem:[%s6541 + $0x139] sm:$0xff]
        %v6769 = vld [vmem:[%s6541 + $0x141] sm:$0xff]
        %v6770 = vld [vmem:[%s6541 + $0x151] sm:$0xff]
        %v6771 = vld [vmem:[%s6541 + $0x159] sm:$0xff]
        %v6772 = vld [vmem:[%s6541 + $0x169] sm:$0xff]
        %v6773 = vld [vmem:[%s6541 + $0x171] sm:$0xff]
        %s6774 = scalar_lea.vmem %s3, 4
        %v6775 = vld [vmem:[%s6774] sm:$0x1]
        %v6777 = vlaneseq
        %v6778 = vshrl.u32 %v6777, 7
        %v6779 = vsub.s32 0, %v6778
        %v6780 = vrot.slane %v6775, %v6779
        %v6782 = vmul.f32 %v6742, %v6780
        %v6783 = vmul.f32 %v6743, %v6780
        %v6784 = vmul.f32 %v6744, %v6780
        %v6785 = vmul.f32 %v6745, %v6780
        %v6786 = vmul.f32 %v6746, %v6780
        %v6787 = vmul.f32 %v6747, %v6780
        %v6788 = vmul.f32 %v6748, %v6780
        %v6789 = vmul.f32 %v6749, %v6780
        %v6790 = vmul.f32 %v6750, %v6780
        %v6791 = vmul.f32 %v6751, %v6780
        %v6792 = vmul.f32 %v6752, %v6780
        %v6793 = vmul.f32 %v6753, %v6780
        %v6794 = vmul.f32 %v6754, %v6780
        %v6795 = vmul.f32 %v6755, %v6780
        %v6796 = vmul.f32 %v6756, %v6780
        %v6797 = vmul.f32 %v6757, %v6780
        %v6798 = vmul.f32 %v6758, %v6780
        %v6799 = vmul.f32 %v6759, %v6780
        %v6800 = vmul.f32 %v6760, %v6780
        %v6801 = vmul.f32 %v6761, %v6780
        %v6802 = vmul.f32 %v6762, %v6780
        %v6803 = vmul.f32 %v6763, %v6780
        %v6804 = vmul.f32 %v6764, %v6780
        %v6805 = vmul.f32 %v6765, %v6780
        %v6806 = vmul.f32 %v6766, %v6780
        %v6807 = vmul.f32 %v6767, %v6780
        %v6808 = vmul.f32 %v6768, %v6780
        %v6809 = vmul.f32 %v6769, %v6780
        %v6810 = vmul.f32 %v6770, %v6780
        %v6811 = vmul.f32 %v6771, %v6780
        %v6812 = vmul.f32 %v6772, %v6780
        %v6813 = vmul.f32 %v6773, %v6780
        %v6814 = vsel %vm5883, %v6782, 0.0
        %6815 = vadd.xlane.f32.xlu0 %v6814
        %v6816 = vpop.xlane.xlu0 %6815
        %v6817 = vsel %vm5883, %v6783, 0.0
        %6818 = vadd.xlane.f32.xlu0 %v6817
        %v6819 = vpop.xlane.xlu0 %6818
        %v6820 = vsel %vm5883, %v6784, 0.0
        %6821 = vadd.xlane.f32.xlu0 %v6820
        %v6822 = vpop.xlane.xlu0 %6821
        %v6823 = vsel %vm5883, %v6785, 0.0
        %6824 = vadd.xlane.f32.xlu0 %v6823
        %v6825 = vpop.xlane.xlu0 %6824
        %v6826 = vsel %vm5883, %v6786, 0.0
        %6827 = vadd.xlane.f32.xlu0 %v6826
        %v6828 = vpop.xlane.xlu0 %6827
        %v6829 = vsel %vm5883, %v6787, 0.0
        %6830 = vadd.xlane.f32.xlu0 %v6829
        %v6831 = vpop.xlane.xlu0 %6830
        %v6832 = vsel %vm5883, %v6788, 0.0
        %6833 = vadd.xlane.f32.xlu0 %v6832
        %v6834 = vpop.xlane.xlu0 %6833
        %v6835 = vsel %vm5883, %v6789, 0.0
        %6836 = vadd.xlane.f32.xlu0 %v6835
        %v6837 = vpop.xlane.xlu0 %6836
        %v6838 = vsel %vm5883, %v6790, 0.0
        %6839 = vadd.xlane.f32.xlu0 %v6838
        %v6840 = vpop.xlane.xlu0 %6839
        %v6841 = vsel %vm5883, %v6791, 0.0
        %6842 = vadd.xlane.f32.xlu0 %v6841
        %v6843 = vpop.xlane.xlu0 %6842
        %v6844 = vsel %vm5883, %v6792, 0.0
        %6845 = vadd.xlane.f32.xlu0 %v6844
        %v6846 = vpop.xlane.xlu0 %6845
        %v6847 = vsel %vm5883, %v6793, 0.0
        %6848 = vadd.xlane.f32.xlu0 %v6847
        %v6849 = vpop.xlane.xlu0 %6848
        %v6850 = vsel %vm5883, %v6794, 0.0
        %6851 = vadd.xlane.f32.xlu0 %v6850
        %v6852 = vpop.xlane.xlu0 %6851
        %v6853 = vsel %vm5883, %v6795, 0.0
        %6854 = vadd.xlane.f32.xlu0 %v6853
        %v6855 = vpop.xlane.xlu0 %6854
        %v6856 = vsel %vm5883, %v6796, 0.0
        %6857 = vadd.xlane.f32.xlu0 %v6856
        %v6858 = vpop.xlane.xlu0 %6857
        %v6859 = vsel %vm5883, %v6797, 0.0
        %6860 = vadd.xlane.f32.xlu0 %v6859
        %v6861 = vpop.xlane.xlu0 %6860
        %v6862 = vsel %vm5883, %v6798, 0.0
        %6863 = vadd.xlane.f32.xlu0 %v6862
        %v6864 = vpop.xlane.xlu0 %6863
        %v6865 = vsel %vm5883, %v6799, 0.0
        %6866 = vadd.xlane.f32.xlu0 %v6865
        %v6867 = vpop.xlane.xlu0 %6866
        %v6868 = vsel %vm5883, %v6800, 0.0
        %6869 = vadd.xlane.f32.xlu0 %v6868
        %v6870 = vpop.xlane.xlu0 %6869
        %v6871 = vsel %vm5883, %v6801, 0.0
        %6872 = vadd.xlane.f32.xlu0 %v6871
        %v6873 = vpop.xlane.xlu0 %6872
        %v6874 = vsel %vm5883, %v6802, 0.0
        %6875 = vadd.xlane.f32.xlu0 %v6874
        %v6876 = vpop.xlane.xlu0 %6875
        %v6877 = vsel %vm5883, %v6803, 0.0
        %6878 = vadd.xlane.f32.xlu0 %v6877
        %v6879 = vpop.xlane.xlu0 %6878
        %v6880 = vsel %vm5883, %v6804, 0.0
        %6881 = vadd.xlane.f32.xlu0 %v6880
        %v6882 = vpop.xlane.xlu0 %6881
        %v6883 = vsel %vm5883, %v6805, 0.0
        %6884 = vadd.xlane.f32.xlu0 %v6883
        %v6885 = vpop.xlane.xlu0 %6884
        %v6886 = vsel %vm5883, %v6806, 0.0
        %6887 = vadd.xlane.f32.xlu0 %v6886
        %v6888 = vpop.xlane.xlu0 %6887
        %v6889 = vsel %vm5883, %v6807, 0.0
        %6890 = vadd.xlane.f32.xlu0 %v6889
        %v6891 = vpop.xlane.xlu0 %6890
        %v6892 = vsel %vm5883, %v6808, 0.0
        %6893 = vadd.xlane.f32.xlu0 %v6892
        %v6894 = vpop.xlane.xlu0 %6893
        %v6895 = vsel %vm5883, %v6809, 0.0
        %6896 = vadd.xlane.f32.xlu0 %v6895
        %v6897 = vpop.xlane.xlu0 %6896
        %v6898 = vsel %vm5883, %v6810, 0.0
        %6899 = vadd.xlane.f32.xlu0 %v6898
        %v6900 = vpop.xlane.xlu0 %6899
        %v6901 = vsel %vm5883, %v6811, 0.0
        %6902 = vadd.xlane.f32.xlu0 %v6901
        %v6903 = vpop.xlane.xlu0 %6902
        %v6904 = vsel %vm5883, %v6812, 0.0
        %6905 = vadd.xlane.f32.xlu0 %v6904
        %v6906 = vpop.xlane.xlu0 %6905
        %v6907 = vsel %vm5883, %v6813, 0.0
        %6908 = vadd.xlane.f32.xlu0 %v6907
        %v6909 = vpop.xlane.xlu0 %6908
        %v6910 = vadd.f32 %v6710, %v6816
        %v6911 = vadd.f32 %v6711, %v6819
        %v6912 = vadd.f32 %v6712, %v6822
        %v6913 = vadd.f32 %v6713, %v6825
        %v6914 = vadd.f32 %v6714, %v6828
        %v6915 = vadd.f32 %v6715, %v6831
        %v6916 = vadd.f32 %v6716, %v6834
        %v6917 = vadd.f32 %v6717, %v6837
        %v6918 = vadd.f32 %v6718, %v6840
        %v6919 = vadd.f32 %v6719, %v6843
        %v6920 = vadd.f32 %v6720, %v6846
        %v6921 = vadd.f32 %v6721, %v6849
        %v6922 = vadd.f32 %v6722, %v6852
        %v6923 = vadd.f32 %v6723, %v6855
        %v6924 = vadd.f32 %v6724, %v6858
        %v6925 = vadd.f32 %v6725, %v6861
        %v6926 = vadd.f32 %v6726, %v6864
        %v6927 = vadd.f32 %v6727, %v6867
        %v6928 = vadd.f32 %v6728, %v6870
        %v6929 = vadd.f32 %v6729, %v6873
        %v6930 = vadd.f32 %v6730, %v6876
        %v6931 = vadd.f32 %v6731, %v6879
        %v6932 = vadd.f32 %v6732, %v6882
        %v6933 = vadd.f32 %v6733, %v6885
        %v6934 = vadd.f32 %v6734, %v6888
        %v6935 = vadd.f32 %v6735, %v6891
        %v6936 = vadd.f32 %v6736, %v6894
        %v6937 = vadd.f32 %v6737, %v6897
        %v6938 = vadd.f32 %v6738, %v6900
        %v6939 = vadd.f32 %v6739, %v6903
        %v6940 = vadd.f32 %v6740, %v6906
        %v6941 = vadd.f32 %v6741, %v6909
        %v6942 = vld [vmem:[%s6541 + $0x2] sm:$0xff]
        %v6943 = vld [vmem:[%s6541 + $0xa] sm:$0xff]
        %v6944 = vld [vmem:[%s6541 + $0x1a] sm:$0xff]
        %v6945 = vld [vmem:[%s6541 + $0x22] sm:$0xff]
        %v6946 = vld [vmem:[%s6541 + $0x32] sm:$0xff]
        %v6947 = vld [vmem:[%s6541 + $0x3a] sm:$0xff]
        %v6948 = vld [vmem:[%s6541 + $0x4a] sm:$0xff]
        %v6949 = vld [vmem:[%s6541 + $0x52] sm:$0xff]
        %v6950 = vld [vmem:[%s6541 + $0x62] sm:$0xff]
        %v6951 = vld [vmem:[%s6541 + $0x6a] sm:$0xff]
        %v6952 = vld [vmem:[%s6541 + $0x7a] sm:$0xff]
        %v6953 = vld [vmem:[%s6541 + $0x82] sm:$0xff]
        %v6954 = vld [vmem:[%s6541 + $0x92] sm:$0xff]
        %v6955 = vld [vmem:[%s6541 + $0x9a] sm:$0xff]
        %v6956 = vld [vmem:[%s6541 + $0xaa] sm:$0xff]
        %v6957 = vld [vmem:[%s6541 + $0xb2] sm:$0xff]
        %v6958 = vld [vmem:[%s6541 + $0xc2] sm:$0xff]
        %v6959 = vld [vmem:[%s6541 + $0xca] sm:$0xff]
        %v6960 = vld [vmem:[%s6541 + $0xda] sm:$0xff]
        %v6961 = vld [vmem:[%s6541 + $0xe2] sm:$0xff]
        %v6962 = vld [vmem:[%s6541 + $0xf2] sm:$0xff]
        %v6963 = vld [vmem:[%s6541 + $0xfa] sm:$0xff]
        %v6964 = vld [vmem:[%s6541 + $0x10a] sm:$0xff]
        %v6965 = vld [vmem:[%s6541 + $0x112] sm:$0xff]
        %v6966 = vld [vmem:[%s6541 + $0x122] sm:$0xff]
        %v6967 = vld [vmem:[%s6541 + $0x12a] sm:$0xff]
        %v6968 = vld [vmem:[%s6541 + $0x13a] sm:$0xff]
        %v6969 = vld [vmem:[%s6541 + $0x142] sm:$0xff]
        %v6970 = vld [vmem:[%s6541 + $0x152] sm:$0xff]
        %v6971 = vld [vmem:[%s6541 + $0x15a] sm:$0xff]
        %v6972 = vld [vmem:[%s6541 + $0x16a] sm:$0xff]
        %v6973 = vld [vmem:[%s6541 + $0x172] sm:$0xff]
        %s6974 = scalar_lea.vmem %s3, 5
        %v6975 = vld [vmem:[%s6974] sm:$0x1]
        %v6977 = vlaneseq
        %v6978 = vshrl.u32 %v6977, 7
        %v6979 = vsub.s32 0, %v6978
        %v6980 = vrot.slane %v6975, %v6979
        %v6982 = vmul.f32 %v6942, %v6980
        %v6983 = vmul.f32 %v6943, %v6980
        %v6984 = vmul.f32 %v6944, %v6980
        %v6985 = vmul.f32 %v6945, %v6980
        %v6986 = vmul.f32 %v6946, %v6980
        %v6987 = vmul.f32 %v6947, %v6980
        %v6988 = vmul.f32 %v6948, %v6980
        %v6989 = vmul.f32 %v6949, %v6980
        %v6990 = vmul.f32 %v6950, %v6980
        %v6991 = vmul.f32 %v6951, %v6980
        %v6992 = vmul.f32 %v6952, %v6980
        %v6993 = vmul.f32 %v6953, %v6980
        %v6994 = vmul.f32 %v6954, %v6980
        %v6995 = vmul.f32 %v6955, %v6980
        %v6996 = vmul.f32 %v6956, %v6980
        %v6997 = vmul.f32 %v6957, %v6980
        %v6998 = vmul.f32 %v6958, %v6980
        %v6999 = vmul.f32 %v6959, %v6980
        %v7000 = vmul.f32 %v6960, %v6980
        %v7001 = vmul.f32 %v6961, %v6980
        %v7002 = vmul.f32 %v6962, %v6980
        %v7003 = vmul.f32 %v6963, %v6980
        %v7004 = vmul.f32 %v6964, %v6980
        %v7005 = vmul.f32 %v6965, %v6980
        %v7006 = vmul.f32 %v6966, %v6980
        %v7007 = vmul.f32 %v6967, %v6980
        %v7008 = vmul.f32 %v6968, %v6980
        %v7009 = vmul.f32 %v6969, %v6980
        %v7010 = vmul.f32 %v6970, %v6980
        %v7011 = vmul.f32 %v6971, %v6980
        %v7012 = vmul.f32 %v6972, %v6980
        %v7013 = vmul.f32 %v6973, %v6980
        %v7014 = vsel %vm5883, %v6982, 0.0
        %7015 = vadd.xlane.f32.xlu0 %v7014
        %v7016 = vpop.xlane.xlu0 %7015
        %v7017 = vsel %vm5883, %v6983, 0.0
        %7018 = vadd.xlane.f32.xlu0 %v7017
        %v7019 = vpop.xlane.xlu0 %7018
        %v7020 = vsel %vm5883, %v6984, 0.0
        %7021 = vadd.xlane.f32.xlu0 %v7020
        %v7022 = vpop.xlane.xlu0 %7021
        %v7023 = vsel %vm5883, %v6985, 0.0
        %7024 = vadd.xlane.f32.xlu0 %v7023
        %v7025 = vpop.xlane.xlu0 %7024
        %v7026 = vsel %vm5883, %v6986, 0.0
        %7027 = vadd.xlane.f32.xlu0 %v7026
        %v7028 = vpop.xlane.xlu0 %7027
        %v7029 = vsel %vm5883, %v6987, 0.0
        %7030 = vadd.xlane.f32.xlu0 %v7029
        %v7031 = vpop.xlane.xlu0 %7030
        %v7032 = vsel %vm5883, %v6988, 0.0
        %7033 = vadd.xlane.f32.xlu0 %v7032
        %v7034 = vpop.xlane.xlu0 %7033
        %v7035 = vsel %vm5883, %v6989, 0.0
        %7036 = vadd.xlane.f32.xlu0 %v7035
        %v7037 = vpop.xlane.xlu0 %7036
        %v7038 = vsel %vm5883, %v6990, 0.0
        %7039 = vadd.xlane.f32.xlu0 %v7038
        %v7040 = vpop.xlane.xlu0 %7039
        %v7041 = vsel %vm5883, %v6991, 0.0
        %7042 = vadd.xlane.f32.xlu0 %v7041
        %v7043 = vpop.xlane.xlu0 %7042
        %v7044 = vsel %vm5883, %v6992, 0.0
        %7045 = vadd.xlane.f32.xlu0 %v7044
        %v7046 = vpop.xlane.xlu0 %7045
        %v7047 = vsel %vm5883, %v6993, 0.0
        %7048 = vadd.xlane.f32.xlu0 %v7047
        %v7049 = vpop.xlane.xlu0 %7048
        %v7050 = vsel %vm5883, %v6994, 0.0
        %7051 = vadd.xlane.f32.xlu0 %v7050
        %v7052 = vpop.xlane.xlu0 %7051
        %v7053 = vsel %vm5883, %v6995, 0.0
        %7054 = vadd.xlane.f32.xlu0 %v7053
        %v7055 = vpop.xlane.xlu0 %7054
        %v7056 = vsel %vm5883, %v6996, 0.0
        %7057 = vadd.xlane.f32.xlu0 %v7056
        %v7058 = vpop.xlane.xlu0 %7057
        %v7059 = vsel %vm5883, %v6997, 0.0
        %7060 = vadd.xlane.f32.xlu0 %v7059
        %v7061 = vpop.xlane.xlu0 %7060
        %v7062 = vsel %vm5883, %v6998, 0.0
        %7063 = vadd.xlane.f32.xlu0 %v7062
        %v7064 = vpop.xlane.xlu0 %7063
        %v7065 = vsel %vm5883, %v6999, 0.0
        %7066 = vadd.xlane.f32.xlu0 %v7065
        %v7067 = vpop.xlane.xlu0 %7066
        %v7068 = vsel %vm5883, %v7000, 0.0
        %7069 = vadd.xlane.f32.xlu0 %v7068
        %v7070 = vpop.xlane.xlu0 %7069
        %v7071 = vsel %vm5883, %v7001, 0.0
        %7072 = vadd.xlane.f32.xlu0 %v7071
        %v7073 = vpop.xlane.xlu0 %7072
        %v7074 = vsel %vm5883, %v7002, 0.0
        %7075 = vadd.xlane.f32.xlu0 %v7074
        %v7076 = vpop.xlane.xlu0 %7075
        %v7077 = vsel %vm5883, %v7003, 0.0
        %7078 = vadd.xlane.f32.xlu0 %v7077
        %v7079 = vpop.xlane.xlu0 %7078
        %v7080 = vsel %vm5883, %v7004, 0.0
        %7081 = vadd.xlane.f32.xlu0 %v7080
        %v7082 = vpop.xlane.xlu0 %7081
        %v7083 = vsel %vm5883, %v7005, 0.0
        %7084 = vadd.xlane.f32.xlu0 %v7083
        %v7085 = vpop.xlane.xlu0 %7084
        %v7086 = vsel %vm5883, %v7006, 0.0
        %7087 = vadd.xlane.f32.xlu0 %v7086
        %v7088 = vpop.xlane.xlu0 %7087
        %v7089 = vsel %vm5883, %v7007, 0.0
        %7090 = vadd.xlane.f32.xlu0 %v7089
        %v7091 = vpop.xlane.xlu0 %7090
        %v7092 = vsel %vm5883, %v7008, 0.0
        %7093 = vadd.xlane.f32.xlu0 %v7092
        %v7094 = vpop.xlane.xlu0 %7093
        %v7095 = vsel %vm5883, %v7009, 0.0
        %7096 = vadd.xlane.f32.xlu0 %v7095
        %v7097 = vpop.xlane.xlu0 %7096
        %v7098 = vsel %vm5883, %v7010, 0.0
        %7099 = vadd.xlane.f32.xlu0 %v7098
        %v7100 = vpop.xlane.xlu0 %7099
        %v7101 = vsel %vm5883, %v7011, 0.0
        %7102 = vadd.xlane.f32.xlu0 %v7101
        %v7103 = vpop.xlane.xlu0 %7102
        %v7104 = vsel %vm5883, %v7012, 0.0
        %7105 = vadd.xlane.f32.xlu0 %v7104
        %v7106 = vpop.xlane.xlu0 %7105
        %v7107 = vsel %vm5883, %v7013, 0.0
        %7108 = vadd.xlane.f32.xlu0 %v7107
        %v7109 = vpop.xlane.xlu0 %7108
        %v7110 = vadd.f32 %v6910, %v7016
        %v7111 = vadd.f32 %v6911, %v7019
        %v7112 = vadd.f32 %v6912, %v7022
        %v7113 = vadd.f32 %v6913, %v7025
        %v7114 = vadd.f32 %v6914, %v7028
        %v7115 = vadd.f32 %v6915, %v7031
        %v7116 = vadd.f32 %v6916, %v7034
        %v7117 = vadd.f32 %v6917, %v7037
        %v7118 = vadd.f32 %v6918, %v7040
        %v7119 = vadd.f32 %v6919, %v7043
        %v7120 = vadd.f32 %v6920, %v7046
        %v7121 = vadd.f32 %v6921, %v7049
        %v7122 = vadd.f32 %v6922, %v7052
        %v7123 = vadd.f32 %v6923, %v7055
        %v7124 = vadd.f32 %v6924, %v7058
        %v7125 = vadd.f32 %v6925, %v7061
        %v7126 = vadd.f32 %v6926, %v7064
        %v7127 = vadd.f32 %v6927, %v7067
        %v7128 = vadd.f32 %v6928, %v7070
        %v7129 = vadd.f32 %v6929, %v7073
        %v7130 = vadd.f32 %v6930, %v7076
        %v7131 = vadd.f32 %v6931, %v7079
        %v7132 = vadd.f32 %v6932, %v7082
        %v7133 = vadd.f32 %v6933, %v7085
        %v7134 = vadd.f32 %v6934, %v7088
        %v7135 = vadd.f32 %v6935, %v7091
        %v7136 = vadd.f32 %v6936, %v7094
        %v7137 = vadd.f32 %v6937, %v7097
        %v7138 = vadd.f32 %v6938, %v7100
        %v7139 = vadd.f32 %v6939, %v7103
        %v7140 = vadd.f32 %v6940, %v7106
        %v7141 = vadd.f32 %v6941, %v7109
        %s7142 = scalar_lea.vmem [#allocation2], 48
        %v7143 = vld [vmem:[%s7142] sm:$0xff]
        %v7144 = vld [vmem:[%s7142 + $0x8] sm:$0xff]
        %v7145 = vld [vmem:[%s7142 + $0x18] sm:$0xff]
        %v7146 = vld [vmem:[%s7142 + $0x20] sm:$0xff]
        %v7147 = vld [vmem:[%s7142 + $0x30] sm:$0xff]
        %v7148 = vld [vmem:[%s7142 + $0x38] sm:$0xff]
        %v7149 = vld [vmem:[%s7142 + $0x48] sm:$0xff]
        %v7150 = vld [vmem:[%s7142 + $0x50] sm:$0xff]
        %v7151 = vld [vmem:[%s7142 + $0x60] sm:$0xff]
        %v7152 = vld [vmem:[%s7142 + $0x68] sm:$0xff]
        %v7153 = vld [vmem:[%s7142 + $0x78] sm:$0xff]
        %v7154 = vld [vmem:[%s7142 + $0x80] sm:$0xff]
        %v7155 = vld [vmem:[%s7142 + $0x90] sm:$0xff]
        %v7156 = vld [vmem:[%s7142 + $0x98] sm:$0xff]
        %v7157 = vld [vmem:[%s7142 + $0xa8] sm:$0xff]
        %v7158 = vld [vmem:[%s7142 + $0xb0] sm:$0xff]
        %v7159 = vld [vmem:[%s7142 + $0xc0] sm:$0xff]
        %v7160 = vld [vmem:[%s7142 + $0xc8] sm:$0xff]
        %v7161 = vld [vmem:[%s7142 + $0xd8] sm:$0xff]
        %v7162 = vld [vmem:[%s7142 + $0xe0] sm:$0xff]
        %v7163 = vld [vmem:[%s7142 + $0xf0] sm:$0xff]
        %v7164 = vld [vmem:[%s7142 + $0xf8] sm:$0xff]
        %v7165 = vld [vmem:[%s7142 + $0x108] sm:$0xff]
        %v7166 = vld [vmem:[%s7142 + $0x110] sm:$0xff]
        %v7167 = vld [vmem:[%s7142 + $0x120] sm:$0xff]
        %v7168 = vld [vmem:[%s7142 + $0x128] sm:$0xff]
        %v7169 = vld [vmem:[%s7142 + $0x138] sm:$0xff]
        %v7170 = vld [vmem:[%s7142 + $0x140] sm:$0xff]
        %v7171 = vld [vmem:[%s7142 + $0x150] sm:$0xff]
        %v7172 = vld [vmem:[%s7142 + $0x158] sm:$0xff]
        %v7173 = vld [vmem:[%s7142 + $0x168] sm:$0xff]
        %v7174 = vld [vmem:[%s7142 + $0x170] sm:$0xff]
        %s7175 = scalar_lea.vmem %s3, 6
        %v7176 = vld [vmem:[%s7175] sm:$0x1]
        %v7178 = vlaneseq
        %v7179 = vshrl.u32 %v7178, 7
        %v7180 = vsub.s32 0, %v7179
        %v7181 = vrot.slane %v7176, %v7180
        %v7183 = vmul.f32 %v7143, %v7181
        %v7184 = vmul.f32 %v7144, %v7181
        %v7185 = vmul.f32 %v7145, %v7181
        %v7186 = vmul.f32 %v7146, %v7181
        %v7187 = vmul.f32 %v7147, %v7181
        %v7188 = vmul.f32 %v7148, %v7181
        %v7189 = vmul.f32 %v7149, %v7181
        %v7190 = vmul.f32 %v7150, %v7181
        %v7191 = vmul.f32 %v7151, %v7181
        %v7192 = vmul.f32 %v7152, %v7181
        %v7193 = vmul.f32 %v7153, %v7181
        %v7194 = vmul.f32 %v7154, %v7181
        %v7195 = vmul.f32 %v7155, %v7181
        %v7196 = vmul.f32 %v7156, %v7181
        %v7197 = vmul.f32 %v7157, %v7181
        %v7198 = vmul.f32 %v7158, %v7181
        %v7199 = vmul.f32 %v7159, %v7181
        %v7200 = vmul.f32 %v7160, %v7181
        %v7201 = vmul.f32 %v7161, %v7181
        %v7202 = vmul.f32 %v7162, %v7181
        %v7203 = vmul.f32 %v7163, %v7181
        %v7204 = vmul.f32 %v7164, %v7181
        %v7205 = vmul.f32 %v7165, %v7181
        %v7206 = vmul.f32 %v7166, %v7181
        %v7207 = vmul.f32 %v7167, %v7181
        %v7208 = vmul.f32 %v7168, %v7181
        %v7209 = vmul.f32 %v7169, %v7181
        %v7210 = vmul.f32 %v7170, %v7181
        %v7211 = vmul.f32 %v7171, %v7181
        %v7212 = vmul.f32 %v7172, %v7181
        %v7213 = vmul.f32 %v7173, %v7181
        %v7214 = vmul.f32 %v7174, %v7181
        %v7215 = vsel %vm5883, %v7183, 0.0
        %7216 = vadd.xlane.f32.xlu0 %v7215
        %v7217 = vpop.xlane.xlu0 %7216
        %v7218 = vsel %vm5883, %v7184, 0.0
        %7219 = vadd.xlane.f32.xlu0 %v7218
        %v7220 = vpop.xlane.xlu0 %7219
        %v7221 = vsel %vm5883, %v7185, 0.0
        %7222 = vadd.xlane.f32.xlu0 %v7221
        %v7223 = vpop.xlane.xlu0 %7222
        %v7224 = vsel %vm5883, %v7186, 0.0
        %7225 = vadd.xlane.f32.xlu0 %v7224
        %v7226 = vpop.xlane.xlu0 %7225
        %v7227 = vsel %vm5883, %v7187, 0.0
        %7228 = vadd.xlane.f32.xlu0 %v7227
        %v7229 = vpop.xlane.xlu0 %7228
        %v7230 = vsel %vm5883, %v7188, 0.0
        %7231 = vadd.xlane.f32.xlu0 %v7230
        %v7232 = vpop.xlane.xlu0 %7231
        %v7233 = vsel %vm5883, %v7189, 0.0
        %7234 = vadd.xlane.f32.xlu0 %v7233
        %v7235 = vpop.xlane.xlu0 %7234
        %v7236 = vsel %vm5883, %v7190, 0.0
        %7237 = vadd.xlane.f32.xlu0 %v7236
        %v7238 = vpop.xlane.xlu0 %7237
        %v7239 = vsel %vm5883, %v7191, 0.0
        %7240 = vadd.xlane.f32.xlu0 %v7239
        %v7241 = vpop.xlane.xlu0 %7240
        %v7242 = vsel %vm5883, %v7192, 0.0
        %7243 = vadd.xlane.f32.xlu0 %v7242
        %v7244 = vpop.xlane.xlu0 %7243
        %v7245 = vsel %vm5883, %v7193, 0.0
        %7246 = vadd.xlane.f32.xlu0 %v7245
        %v7247 = vpop.xlane.xlu0 %7246
        %v7248 = vsel %vm5883, %v7194, 0.0
        %7249 = vadd.xlane.f32.xlu0 %v7248
        %v7250 = vpop.xlane.xlu0 %7249
        %v7251 = vsel %vm5883, %v7195, 0.0
        %7252 = vadd.xlane.f32.xlu0 %v7251
        %v7253 = vpop.xlane.xlu0 %7252
        %v7254 = vsel %vm5883, %v7196, 0.0
        %7255 = vadd.xlane.f32.xlu0 %v7254
        %v7256 = vpop.xlane.xlu0 %7255
        %v7257 = vsel %vm5883, %v7197, 0.0
        %7258 = vadd.xlane.f32.xlu0 %v7257
        %v7259 = vpop.xlane.xlu0 %7258
        %v7260 = vsel %vm5883, %v7198, 0.0
        %7261 = vadd.xlane.f32.xlu0 %v7260
        %v7262 = vpop.xlane.xlu0 %7261
        %v7263 = vsel %vm5883, %v7199, 0.0
        %7264 = vadd.xlane.f32.xlu0 %v7263
        %v7265 = vpop.xlane.xlu0 %7264
        %v7266 = vsel %vm5883, %v7200, 0.0
        %7267 = vadd.xlane.f32.xlu0 %v7266
        %v7268 = vpop.xlane.xlu0 %7267
        %v7269 = vsel %vm5883, %v7201, 0.0
        %7270 = vadd.xlane.f32.xlu0 %v7269
        %v7271 = vpop.xlane.xlu0 %7270
        %v7272 = vsel %vm5883, %v7202, 0.0
        %7273 = vadd.xlane.f32.xlu0 %v7272
        %v7274 = vpop.xlane.xlu0 %7273
        %v7275 = vsel %vm5883, %v7203, 0.0
        %7276 = vadd.xlane.f32.xlu0 %v7275
        %v7277 = vpop.xlane.xlu0 %7276
        %v7278 = vsel %vm5883, %v7204, 0.0
        %7279 = vadd.xlane.f32.xlu0 %v7278
        %v7280 = vpop.xlane.xlu0 %7279
        %v7281 = vsel %vm5883, %v7205, 0.0
        %7282 = vadd.xlane.f32.xlu0 %v7281
        %v7283 = vpop.xlane.xlu0 %7282
        %v7284 = vsel %vm5883, %v7206, 0.0
        %7285 = vadd.xlane.f32.xlu0 %v7284
        %v7286 = vpop.xlane.xlu0 %7285
        %v7287 = vsel %vm5883, %v7207, 0.0
        %7288 = vadd.xlane.f32.xlu0 %v7287
        %v7289 = vpop.xlane.xlu0 %7288
        %v7290 = vsel %vm5883, %v7208, 0.0
        %7291 = vadd.xlane.f32.xlu0 %v7290
        %v7292 = vpop.xlane.xlu0 %7291
        %v7293 = vsel %vm5883, %v7209, 0.0
        %7294 = vadd.xlane.f32.xlu0 %v7293
        %v7295 = vpop.xlane.xlu0 %7294
        %v7296 = vsel %vm5883, %v7210, 0.0
        %7297 = vadd.xlane.f32.xlu0 %v7296
        %v7298 = vpop.xlane.xlu0 %7297
        %v7299 = vsel %vm5883, %v7211, 0.0
        %7300 = vadd.xlane.f32.xlu0 %v7299
        %v7301 = vpop.xlane.xlu0 %7300
        %v7302 = vsel %vm5883, %v7212, 0.0
        %7303 = vadd.xlane.f32.xlu0 %v7302
        %v7304 = vpop.xlane.xlu0 %7303
        %v7305 = vsel %vm5883, %v7213, 0.0
        %7306 = vadd.xlane.f32.xlu0 %v7305
        %v7307 = vpop.xlane.xlu0 %7306
        %v7308 = vsel %vm5883, %v7214, 0.0
        %7309 = vadd.xlane.f32.xlu0 %v7308
        %v7310 = vpop.xlane.xlu0 %7309
        %v7311 = vadd.f32 %v7110, %v7217
        %v7312 = vadd.f32 %v7111, %v7220
        %v7313 = vadd.f32 %v7112, %v7223
        %v7314 = vadd.f32 %v7113, %v7226
        %v7315 = vadd.f32 %v7114, %v7229
        %v7316 = vadd.f32 %v7115, %v7232
        %v7317 = vadd.f32 %v7116, %v7235
        %v7318 = vadd.f32 %v7117, %v7238
        %v7319 = vadd.f32 %v7118, %v7241
        %v7320 = vadd.f32 %v7119, %v7244
        %v7321 = vadd.f32 %v7120, %v7247
        %v7322 = vadd.f32 %v7121, %v7250
        %v7323 = vadd.f32 %v7122, %v7253
        %v7324 = vadd.f32 %v7123, %v7256
        %v7325 = vadd.f32 %v7124, %v7259
        %v7326 = vadd.f32 %v7125, %v7262
        %v7327 = vadd.f32 %v7126, %v7265
        %v7328 = vadd.f32 %v7127, %v7268
        %v7329 = vadd.f32 %v7128, %v7271
        %v7330 = vadd.f32 %v7129, %v7274
        %v7331 = vadd.f32 %v7130, %v7277
        %v7332 = vadd.f32 %v7131, %v7280
        %v7333 = vadd.f32 %v7132, %v7283
        %v7334 = vadd.f32 %v7133, %v7286
        %v7335 = vadd.f32 %v7134, %v7289
        %v7336 = vadd.f32 %v7135, %v7292
        %v7337 = vadd.f32 %v7136, %v7295
        %v7338 = vadd.f32 %v7137, %v7298
        %v7339 = vadd.f32 %v7138, %v7301
        %v7340 = vadd.f32 %v7139, %v7304
        %v7341 = vadd.f32 %v7140, %v7307
        %v7342 = vadd.f32 %v7141, %v7310
        %v7343 = vld [vmem:[%s7142 + $0x1] sm:$0xff]
        %v7344 = vld [vmem:[%s7142 + $0x9] sm:$0xff]
        %v7345 = vld [vmem:[%s7142 + $0x19] sm:$0xff]
        %v7346 = vld [vmem:[%s7142 + $0x21] sm:$0xff]
        %v7347 = vld [vmem:[%s7142 + $0x31] sm:$0xff]
        %v7348 = vld [vmem:[%s7142 + $0x39] sm:$0xff]
        %v7349 = vld [vmem:[%s7142 + $0x49] sm:$0xff]
        %v7350 = vld [vmem:[%s7142 + $0x51] sm:$0xff]
        %v7351 = vld [vmem:[%s7142 + $0x61] sm:$0xff]
        %v7352 = vld [vmem:[%s7142 + $0x69] sm:$0xff]
        %v7353 = vld [vmem:[%s7142 + $0x79] sm:$0xff]
        %v7354 = vld [vmem:[%s7142 + $0x81] sm:$0xff]
        %v7355 = vld [vmem:[%s7142 + $0x91] sm:$0xff]
        %v7356 = vld [vmem:[%s7142 + $0x99] sm:$0xff]
        %v7357 = vld [vmem:[%s7142 + $0xa9] sm:$0xff]
        %v7358 = vld [vmem:[%s7142 + $0xb1] sm:$0xff]
        %v7359 = vld [vmem:[%s7142 + $0xc1] sm:$0xff]
        %v7360 = vld [vmem:[%s7142 + $0xc9] sm:$0xff]
        %v7361 = vld [vmem:[%s7142 + $0xd9] sm:$0xff]
        %v7362 = vld [vmem:[%s7142 + $0xe1] sm:$0xff]
        %v7363 = vld [vmem:[%s7142 + $0xf1] sm:$0xff]
        %v7364 = vld [vmem:[%s7142 + $0xf9] sm:$0xff]
        %v7365 = vld [vmem:[%s7142 + $0x109] sm:$0xff]
        %v7366 = vld [vmem:[%s7142 + $0x111] sm:$0xff]
        %v7367 = vld [vmem:[%s7142 + $0x121] sm:$0xff]
        %v7368 = vld [vmem:[%s7142 + $0x129] sm:$0xff]
        %v7369 = vld [vmem:[%s7142 + $0x139] sm:$0xff]
        %v7370 = vld [vmem:[%s7142 + $0x141] sm:$0xff]
        %v7371 = vld [vmem:[%s7142 + $0x151] sm:$0xff]
        %v7372 = vld [vmem:[%s7142 + $0x159] sm:$0xff]
        %v7373 = vld [vmem:[%s7142 + $0x169] sm:$0xff]
        %v7374 = vld [vmem:[%s7142 + $0x171] sm:$0xff]
        %s7375 = scalar_lea.vmem %s3, 7
        %v7376 = vld [vmem:[%s7375] sm:$0x1]
        %v7378 = vlaneseq
        %v7379 = vshrl.u32 %v7378, 7
        %v7380 = vsub.s32 0, %v7379
        %v7381 = vrot.slane %v7376, %v7380
        %v7383 = vmul.f32 %v7343, %v7381
        %v7384 = vmul.f32 %v7344, %v7381
        %v7385 = vmul.f32 %v7345, %v7381
        %v7386 = vmul.f32 %v7346, %v7381
        %v7387 = vmul.f32 %v7347, %v7381
        %v7388 = vmul.f32 %v7348, %v7381
        %v7389 = vmul.f32 %v7349, %v7381
        %v7390 = vmul.f32 %v7350, %v7381
        %v7391 = vmul.f32 %v7351, %v7381
        %v7392 = vmul.f32 %v7352, %v7381
        %v7393 = vmul.f32 %v7353, %v7381
        %v7394 = vmul.f32 %v7354, %v7381
        %v7395 = vmul.f32 %v7355, %v7381
        %v7396 = vmul.f32 %v7356, %v7381
        %v7397 = vmul.f32 %v7357, %v7381
        %v7398 = vmul.f32 %v7358, %v7381
        %v7399 = vmul.f32 %v7359, %v7381
        %v7400 = vmul.f32 %v7360, %v7381
        %v7401 = vmul.f32 %v7361, %v7381
        %v7402 = vmul.f32 %v7362, %v7381
        %v7403 = vmul.f32 %v7363, %v7381
        %v7404 = vmul.f32 %v7364, %v7381
        %v7405 = vmul.f32 %v7365, %v7381
        %v7406 = vmul.f32 %v7366, %v7381
        %v7407 = vmul.f32 %v7367, %v7381
        %v7408 = vmul.f32 %v7368, %v7381
        %v7409 = vmul.f32 %v7369, %v7381
        %v7410 = vmul.f32 %v7370, %v7381
        %v7411 = vmul.f32 %v7371, %v7381
        %v7412 = vmul.f32 %v7372, %v7381
        %v7413 = vmul.f32 %v7373, %v7381
        %v7414 = vmul.f32 %v7374, %v7381
        %v7415 = vsel %vm5883, %v7383, 0.0
        %7416 = vadd.xlane.f32.xlu0 %v7415
        %v7417 = vpop.xlane.xlu0 %7416
        %v7418 = vsel %vm5883, %v7384, 0.0
        %7419 = vadd.xlane.f32.xlu0 %v7418
        %v7420 = vpop.xlane.xlu0 %7419
        %v7421 = vsel %vm5883, %v7385, 0.0
        %7422 = vadd.xlane.f32.xlu0 %v7421
        %v7423 = vpop.xlane.xlu0 %7422
        %v7424 = vsel %vm5883, %v7386, 0.0
        %7425 = vadd.xlane.f32.xlu0 %v7424
        %v7426 = vpop.xlane.xlu0 %7425
        %v7427 = vsel %vm5883, %v7387, 0.0
        %7428 = vadd.xlane.f32.xlu0 %v7427
        %v7429 = vpop.xlane.xlu0 %7428
        %v7430 = vsel %vm5883, %v7388, 0.0
        %7431 = vadd.xlane.f32.xlu0 %v7430
        %v7432 = vpop.xlane.xlu0 %7431
        %v7433 = vsel %vm5883, %v7389, 0.0
        %7434 = vadd.xlane.f32.xlu0 %v7433
        %v7435 = vpop.xlane.xlu0 %7434
        %v7436 = vsel %vm5883, %v7390, 0.0
        %7437 = vadd.xlane.f32.xlu0 %v7436
        %v7438 = vpop.xlane.xlu0 %7437
        %v7439 = vsel %vm5883, %v7391, 0.0
        %7440 = vadd.xlane.f32.xlu0 %v7439
        %v7441 = vpop.xlane.xlu0 %7440
        %v7442 = vsel %vm5883, %v7392, 0.0
        %7443 = vadd.xlane.f32.xlu0 %v7442
        %v7444 = vpop.xlane.xlu0 %7443
        %v7445 = vsel %vm5883, %v7393, 0.0
        %7446 = vadd.xlane.f32.xlu0 %v7445
        %v7447 = vpop.xlane.xlu0 %7446
        %v7448 = vsel %vm5883, %v7394, 0.0
        %7449 = vadd.xlane.f32.xlu0 %v7448
        %v7450 = vpop.xlane.xlu0 %7449
        %v7451 = vsel %vm5883, %v7395, 0.0
        %7452 = vadd.xlane.f32.xlu0 %v7451
        %v7453 = vpop.xlane.xlu0 %7452
        %v7454 = vsel %vm5883, %v7396, 0.0
        %7455 = vadd.xlane.f32.xlu0 %v7454
        %v7456 = vpop.xlane.xlu0 %7455
        %v7457 = vsel %vm5883, %v7397, 0.0
        %7458 = vadd.xlane.f32.xlu0 %v7457
        %v7459 = vpop.xlane.xlu0 %7458
        %v7460 = vsel %vm5883, %v7398, 0.0
        %7461 = vadd.xlane.f32.xlu0 %v7460
        %v7462 = vpop.xlane.xlu0 %7461
        %v7463 = vsel %vm5883, %v7399, 0.0
        %7464 = vadd.xlane.f32.xlu0 %v7463
        %v7465 = vpop.xlane.xlu0 %7464
        %v7466 = vsel %vm5883, %v7400, 0.0
        %7467 = vadd.xlane.f32.xlu0 %v7466
        %v7468 = vpop.xlane.xlu0 %7467
        %v7469 = vsel %vm5883, %v7401, 0.0
        %7470 = vadd.xlane.f32.xlu0 %v7469
        %v7471 = vpop.xlane.xlu0 %7470
        %v7472 = vsel %vm5883, %v7402, 0.0
        %7473 = vadd.xlane.f32.xlu0 %v7472
        %v7474 = vpop.xlane.xlu0 %7473
        %v7475 = vsel %vm5883, %v7403, 0.0
        %7476 = vadd.xlane.f32.xlu0 %v7475
        %v7477 = vpop.xlane.xlu0 %7476
        %v7478 = vsel %vm5883, %v7404, 0.0
        %7479 = vadd.xlane.f32.xlu0 %v7478
        %v7480 = vpop.xlane.xlu0 %7479
        %v7481 = vsel %vm5883, %v7405, 0.0
        %7482 = vadd.xlane.f32.xlu0 %v7481
        %v7483 = vpop.xlane.xlu0 %7482
        %v7484 = vsel %vm5883, %v7406, 0.0
        %7485 = vadd.xlane.f32.xlu0 %v7484
        %v7486 = vpop.xlane.xlu0 %7485
        %v7487 = vsel %vm5883, %v7407, 0.0
        %7488 = vadd.xlane.f32.xlu0 %v7487
        %v7489 = vpop.xlane.xlu0 %7488
        %v7490 = vsel %vm5883, %v7408, 0.0
        %7491 = vadd.xlane.f32.xlu0 %v7490
        %v7492 = vpop.xlane.xlu0 %7491
        %v7493 = vsel %vm5883, %v7409, 0.0
        %7494 = vadd.xlane.f32.xlu0 %v7493
        %v7495 = vpop.xlane.xlu0 %7494
        %v7496 = vsel %vm5883, %v7410, 0.0
        %7497 = vadd.xlane.f32.xlu0 %v7496
        %v7498 = vpop.xlane.xlu0 %7497
        %v7499 = vsel %vm5883, %v7411, 0.0
        %7500 = vadd.xlane.f32.xlu0 %v7499
        %v7501 = vpop.xlane.xlu0 %7500
        %v7502 = vsel %vm5883, %v7412, 0.0
        %7503 = vadd.xlane.f32.xlu0 %v7502
        %v7504 = vpop.xlane.xlu0 %7503
        %v7505 = vsel %vm5883, %v7413, 0.0
        %7506 = vadd.xlane.f32.xlu0 %v7505
        %v7507 = vpop.xlane.xlu0 %7506
        %v7508 = vsel %vm5883, %v7414, 0.0
        %7509 = vadd.xlane.f32.xlu0 %v7508
        %v7510 = vpop.xlane.xlu0 %7509
        %v7511 = vadd.f32 %v7311, %v7417
        %v7512 = vadd.f32 %v7312, %v7420
        %v7513 = vadd.f32 %v7313, %v7423
        %v7514 = vadd.f32 %v7314, %v7426
        %v7515 = vadd.f32 %v7315, %v7429
        %v7516 = vadd.f32 %v7316, %v7432
        %v7517 = vadd.f32 %v7317, %v7435
        %v7518 = vadd.f32 %v7318, %v7438
        %v7519 = vadd.f32 %v7319, %v7441
        %v7520 = vadd.f32 %v7320, %v7444
        %v7521 = vadd.f32 %v7321, %v7447
        %v7522 = vadd.f32 %v7322, %v7450
        %v7523 = vadd.f32 %v7323, %v7453
        %v7524 = vadd.f32 %v7324, %v7456
        %v7525 = vadd.f32 %v7325, %v7459
        %v7526 = vadd.f32 %v7326, %v7462
        %v7527 = vadd.f32 %v7327, %v7465
        %v7528 = vadd.f32 %v7328, %v7468
        %v7529 = vadd.f32 %v7329, %v7471
        %v7530 = vadd.f32 %v7330, %v7474
        %v7531 = vadd.f32 %v7331, %v7477
        %v7532 = vadd.f32 %v7332, %v7480
        %v7533 = vadd.f32 %v7333, %v7483
        %v7534 = vadd.f32 %v7334, %v7486
        %v7535 = vadd.f32 %v7335, %v7489
        %v7536 = vadd.f32 %v7336, %v7492
        %v7537 = vadd.f32 %v7337, %v7495
        %v7538 = vadd.f32 %v7338, %v7498
        %v7539 = vadd.f32 %v7339, %v7501
        %v7540 = vadd.f32 %v7340, %v7504
        %v7541 = vadd.f32 %v7341, %v7507
        %v7542 = vadd.f32 %v7342, %v7510
        %v7543 = vld [vmem:[%s7142 + $0x2] sm:$0xff]
        %v7544 = vld [vmem:[%s7142 + $0xa] sm:$0xff]
        %v7545 = vld [vmem:[%s7142 + $0x1a] sm:$0xff]
        %v7546 = vld [vmem:[%s7142 + $0x22] sm:$0xff]
        %v7547 = vld [vmem:[%s7142 + $0x32] sm:$0xff]
        %v7548 = vld [vmem:[%s7142 + $0x3a] sm:$0xff]
        %v7549 = vld [vmem:[%s7142 + $0x4a] sm:$0xff]
        %v7550 = vld [vmem:[%s7142 + $0x52] sm:$0xff]
        %v7551 = vld [vmem:[%s7142 + $0x62] sm:$0xff]
        %v7552 = vld [vmem:[%s7142 + $0x6a] sm:$0xff]
        %v7553 = vld [vmem:[%s7142 + $0x7a] sm:$0xff]
        %v7554 = vld [vmem:[%s7142 + $0x82] sm:$0xff]
        %v7555 = vld [vmem:[%s7142 + $0x92] sm:$0xff]
        %v7556 = vld [vmem:[%s7142 + $0x9a] sm:$0xff]
        %v7557 = vld [vmem:[%s7142 + $0xaa] sm:$0xff]
        %v7558 = vld [vmem:[%s7142 + $0xb2] sm:$0xff]
        %v7559 = vld [vmem:[%s7142 + $0xc2] sm:$0xff]
        %v7560 = vld [vmem:[%s7142 + $0xca] sm:$0xff]
        %v7561 = vld [vmem:[%s7142 + $0xda] sm:$0xff]
        %v7562 = vld [vmem:[%s7142 + $0xe2] sm:$0xff]
        %v7563 = vld [vmem:[%s7142 + $0xf2] sm:$0xff]
        %v7564 = vld [vmem:[%s7142 + $0xfa] sm:$0xff]
        %v7565 = vld [vmem:[%s7142 + $0x10a] sm:$0xff]
        %v7566 = vld [vmem:[%s7142 + $0x112] sm:$0xff]
        %v7567 = vld [vmem:[%s7142 + $0x122] sm:$0xff]
        %v7568 = vld [vmem:[%s7142 + $0x12a] sm:$0xff]
        %v7569 = vld [vmem:[%s7142 + $0x13a] sm:$0xff]
        %v7570 = vld [vmem:[%s7142 + $0x142] sm:$0xff]
        %v7571 = vld [vmem:[%s7142 + $0x152] sm:$0xff]
        %v7572 = vld [vmem:[%s7142 + $0x15a] sm:$0xff]
        %v7573 = vld [vmem:[%s7142 + $0x16a] sm:$0xff]
        %v7574 = vld [vmem:[%s7142 + $0x172] sm:$0xff]
        %s7575 = scalar_lea.vmem %s3, 8
        %v7576 = vld [vmem:[%s7575] sm:$0x1]
        %v7578 = vlaneseq
        %v7579 = vshrl.u32 %v7578, 7
        %v7580 = vsub.s32 0, %v7579
        %v7581 = vrot.slane %v7576, %v7580
        %v7583 = vmul.f32 %v7543, %v7581
        %v7584 = vmul.f32 %v7544, %v7581
        %v7585 = vmul.f32 %v7545, %v7581
        %v7586 = vmul.f32 %v7546, %v7581
        %v7587 = vmul.f32 %v7547, %v7581
        %v7588 = vmul.f32 %v7548, %v7581
        %v7589 = vmul.f32 %v7549, %v7581
        %v7590 = vmul.f32 %v7550, %v7581
        %v7591 = vmul.f32 %v7551, %v7581
        %v7592 = vmul.f32 %v7552, %v7581
        %v7593 = vmul.f32 %v7553, %v7581
        %v7594 = vmul.f32 %v7554, %v7581
        %v7595 = vmul.f32 %v7555, %v7581
        %v7596 = vmul.f32 %v7556, %v7581
        %v7597 = vmul.f32 %v7557, %v7581
        %v7598 = vmul.f32 %v7558, %v7581
        %v7599 = vmul.f32 %v7559, %v7581
        %v7600 = vmul.f32 %v7560, %v7581
        %v7601 = vmul.f32 %v7561, %v7581
        %v7602 = vmul.f32 %v7562, %v7581
        %v7603 = vmul.f32 %v7563, %v7581
        %v7604 = vmul.f32 %v7564, %v7581
        %v7605 = vmul.f32 %v7565, %v7581
        %v7606 = vmul.f32 %v7566, %v7581
        %v7607 = vmul.f32 %v7567, %v7581
        %v7608 = vmul.f32 %v7568, %v7581
        %v7609 = vmul.f32 %v7569, %v7581
        %v7610 = vmul.f32 %v7570, %v7581
        %v7611 = vmul.f32 %v7571, %v7581
        %v7612 = vmul.f32 %v7572, %v7581
        %v7613 = vmul.f32 %v7573, %v7581
        %v7614 = vmul.f32 %v7574, %v7581
        %v7615 = vsel %vm5883, %v7583, 0.0
        %7616 = vadd.xlane.f32.xlu0 %v7615
        %v7617 = vpop.xlane.xlu0 %7616
        %v7618 = vsel %vm5883, %v7584, 0.0
        %7619 = vadd.xlane.f32.xlu0 %v7618
        %v7620 = vpop.xlane.xlu0 %7619
        %v7621 = vsel %vm5883, %v7585, 0.0
        %7622 = vadd.xlane.f32.xlu0 %v7621
        %v7623 = vpop.xlane.xlu0 %7622
        %v7624 = vsel %vm5883, %v7586, 0.0
        %7625 = vadd.xlane.f32.xlu0 %v7624
        %v7626 = vpop.xlane.xlu0 %7625
        %v7627 = vsel %vm5883, %v7587, 0.0
        %7628 = vadd.xlane.f32.xlu0 %v7627
        %v7629 = vpop.xlane.xlu0 %7628
        %v7630 = vsel %vm5883, %v7588, 0.0
        %7631 = vadd.xlane.f32.xlu0 %v7630
        %v7632 = vpop.xlane.xlu0 %7631
        %v7633 = vsel %vm5883, %v7589, 0.0
        %7634 = vadd.xlane.f32.xlu0 %v7633
        %v7635 = vpop.xlane.xlu0 %7634
        %v7636 = vsel %vm5883, %v7590, 0.0
        %7637 = vadd.xlane.f32.xlu0 %v7636
        %v7638 = vpop.xlane.xlu0 %7637
        %v7639 = vsel %vm5883, %v7591, 0.0
        %7640 = vadd.xlane.f32.xlu0 %v7639
        %v7641 = vpop.xlane.xlu0 %7640
        %v7642 = vsel %vm5883, %v7592, 0.0
        %7643 = vadd.xlane.f32.xlu0 %v7642
        %v7644 = vpop.xlane.xlu0 %7643
        %v7645 = vsel %vm5883, %v7593, 0.0
        %7646 = vadd.xlane.f32.xlu0 %v7645
        %v7647 = vpop.xlane.xlu0 %7646
        %v7648 = vsel %vm5883, %v7594, 0.0
        %7649 = vadd.xlane.f32.xlu0 %v7648
        %v7650 = vpop.xlane.xlu0 %7649
        %v7651 = vsel %vm5883, %v7595, 0.0
        %7652 = vadd.xlane.f32.xlu0 %v7651
        %v7653 = vpop.xlane.xlu0 %7652
        %v7654 = vsel %vm5883, %v7596, 0.0
        %7655 = vadd.xlane.f32.xlu0 %v7654
        %v7656 = vpop.xlane.xlu0 %7655
        %v7657 = vsel %vm5883, %v7597, 0.0
        %7658 = vadd.xlane.f32.xlu0 %v7657
        %v7659 = vpop.xlane.xlu0 %7658
        %v7660 = vsel %vm5883, %v7598, 0.0
        %7661 = vadd.xlane.f32.xlu0 %v7660
        %v7662 = vpop.xlane.xlu0 %7661
        %v7663 = vsel %vm5883, %v7599, 0.0
        %7664 = vadd.xlane.f32.xlu0 %v7663
        %v7665 = vpop.xlane.xlu0 %7664
        %v7666 = vsel %vm5883, %v7600, 0.0
        %7667 = vadd.xlane.f32.xlu0 %v7666
        %v7668 = vpop.xlane.xlu0 %7667
        %v7669 = vsel %vm5883, %v7601, 0.0
        %7670 = vadd.xlane.f32.xlu0 %v7669
        %v7671 = vpop.xlane.xlu0 %7670
        %v7672 = vsel %vm5883, %v7602, 0.0
        %7673 = vadd.xlane.f32.xlu0 %v7672
        %v7674 = vpop.xlane.xlu0 %7673
        %v7675 = vsel %vm5883, %v7603, 0.0
        %7676 = vadd.xlane.f32.xlu0 %v7675
        %v7677 = vpop.xlane.xlu0 %7676
        %v7678 = vsel %vm5883, %v7604, 0.0
        %7679 = vadd.xlane.f32.xlu0 %v7678
        %v7680 = vpop.xlane.xlu0 %7679
        %v7681 = vsel %vm5883, %v7605, 0.0
        %7682 = vadd.xlane.f32.xlu0 %v7681
        %v7683 = vpop.xlane.xlu0 %7682
        %v7684 = vsel %vm5883, %v7606, 0.0
        %7685 = vadd.xlane.f32.xlu0 %v7684
        %v7686 = vpop.xlane.xlu0 %7685
        %v7687 = vsel %vm5883, %v7607, 0.0
        %7688 = vadd.xlane.f32.xlu0 %v7687
        %v7689 = vpop.xlane.xlu0 %7688
        %v7690 = vsel %vm5883, %v7608, 0.0
        %7691 = vadd.xlane.f32.xlu0 %v7690
        %v7692 = vpop.xlane.xlu0 %7691
        %v7693 = vsel %vm5883, %v7609, 0.0
        %7694 = vadd.xlane.f32.xlu0 %v7693
        %v7695 = vpop.xlane.xlu0 %7694
        %v7696 = vsel %vm5883, %v7610, 0.0
        %7697 = vadd.xlane.f32.xlu0 %v7696
        %v7698 = vpop.xlane.xlu0 %7697
        %v7699 = vsel %vm5883, %v7611, 0.0
        %7700 = vadd.xlane.f32.xlu0 %v7699
        %v7701 = vpop.xlane.xlu0 %7700
        %v7702 = vsel %vm5883, %v7612, 0.0
        %7703 = vadd.xlane.f32.xlu0 %v7702
        %v7704 = vpop.xlane.xlu0 %7703
        %v7705 = vsel %vm5883, %v7613, 0.0
        %7706 = vadd.xlane.f32.xlu0 %v7705
        %v7707 = vpop.xlane.xlu0 %7706
        %v7708 = vsel %vm5883, %v7614, 0.0
        %7709 = vadd.xlane.f32.xlu0 %v7708
        %v7710 = vpop.xlane.xlu0 %7709
        %v7711 = vadd.f32 %v7511, %v7617
        %v7712 = vadd.f32 %v7512, %v7620
        %v7713 = vadd.f32 %v7513, %v7623
        %v7714 = vadd.f32 %v7514, %v7626
        %v7715 = vadd.f32 %v7515, %v7629
        %v7716 = vadd.f32 %v7516, %v7632
        %v7717 = vadd.f32 %v7517, %v7635
        %v7718 = vadd.f32 %v7518, %v7638
        %v7719 = vadd.f32 %v7519, %v7641
        %v7720 = vadd.f32 %v7520, %v7644
        %v7721 = vadd.f32 %v7521, %v7647
        %v7722 = vadd.f32 %v7522, %v7650
        %v7723 = vadd.f32 %v7523, %v7653
        %v7724 = vadd.f32 %v7524, %v7656
        %v7725 = vadd.f32 %v7525, %v7659
        %v7726 = vadd.f32 %v7526, %v7662
        %v7727 = vadd.f32 %v7527, %v7665
        %v7728 = vadd.f32 %v7528, %v7668
        %v7729 = vadd.f32 %v7529, %v7671
        %v7730 = vadd.f32 %v7530, %v7674
        %v7731 = vadd.f32 %v7531, %v7677
        %v7732 = vadd.f32 %v7532, %v7680
        %v7733 = vadd.f32 %v7533, %v7683
        %v7734 = vadd.f32 %v7534, %v7686
        %v7735 = vadd.f32 %v7535, %v7689
        %v7736 = vadd.f32 %v7536, %v7692
        %v7737 = vadd.f32 %v7537, %v7695
        %v7738 = vadd.f32 %v7538, %v7698
        %v7739 = vadd.f32 %v7539, %v7701
        %v7740 = vadd.f32 %v7540, %v7704
        %v7741 = vadd.f32 %v7541, %v7707
        %v7742 = vadd.f32 %v7542, %v7710
        %v7743 = vxor.u32 %v7711, 2147483648
        %v7744 = vxor.u32 %v7712, 2147483648
        %v7745 = vxor.u32 %v7713, 2147483648
        %v7746 = vxor.u32 %v7714, 2147483648
        %v7747 = vxor.u32 %v7715, 2147483648
        %v7748 = vxor.u32 %v7716, 2147483648
        %v7749 = vxor.u32 %v7717, 2147483648
        %v7750 = vxor.u32 %v7718, 2147483648
        %v7751 = vxor.u32 %v7719, 2147483648
        %v7752 = vxor.u32 %v7720, 2147483648
        %v7753 = vxor.u32 %v7721, 2147483648
        %v7754 = vxor.u32 %v7722, 2147483648
        %v7755 = vxor.u32 %v7723, 2147483648
        %v7756 = vxor.u32 %v7724, 2147483648
        %v7757 = vxor.u32 %v7725, 2147483648
        %v7758 = vxor.u32 %v7726, 2147483648
        %v7759 = vxor.u32 %v7727, 2147483648
        %v7760 = vxor.u32 %v7728, 2147483648
        %v7761 = vxor.u32 %v7729, 2147483648
        %v7762 = vxor.u32 %v7730, 2147483648
        %v7763 = vxor.u32 %v7731, 2147483648
        %v7764 = vxor.u32 %v7732, 2147483648
        %v7765 = vxor.u32 %v7733, 2147483648
        %v7766 = vxor.u32 %v7734, 2147483648
        %v7767 = vxor.u32 %v7735, 2147483648
        %v7768 = vxor.u32 %v7736, 2147483648
        %v7769 = vxor.u32 %v7737, 2147483648
        %v7770 = vxor.u32 %v7738, 2147483648
        %v7771 = vxor.u32 %v7739, 2147483648
        %v7772 = vxor.u32 %v7740, 2147483648
        %v7773 = vxor.u32 %v7741, 2147483648
        %v7774 = vxor.u32 %v7742, 2147483648
        %v7775 = vmul.f32 %v7743, 1.442695
        %v7776 = vpow.pop %v7775
        %v7777 = vmul.f32 %v7744, 1.442695
        %v7778 = vpow.pop %v7777
        %v7779 = vmul.f32 %v7745, 1.442695
        %v7780 = vpow.pop %v7779
        %v7781 = vmul.f32 %v7746, 1.442695
        %v7782 = vpow.pop %v7781
        %v7783 = vmul.f32 %v7747, 1.442695
        %v7784 = vpow.pop %v7783
        %v7785 = vmul.f32 %v7748, 1.442695
        %v7786 = vpow.pop %v7785
        %v7787 = vmul.f32 %v7749, 1.442695
        %v7788 = vpow.pop %v7787
        %v7789 = vmul.f32 %v7750, 1.442695
        %v7790 = vpow.pop %v7789
        %v7791 = vmul.f32 %v7751, 1.442695
        %v7792 = vpow.pop %v7791
        %v7793 = vmul.f32 %v7752, 1.442695
        %v7794 = vpow.pop %v7793
        %v7795 = vmul.f32 %v7753, 1.442695
        %v7796 = vpow.pop %v7795
        %v7797 = vmul.f32 %v7754, 1.442695
        %v7798 = vpow.pop %v7797
        %v7799 = vmul.f32 %v7755, 1.442695
        %v7800 = vpow.pop %v7799
        %v7801 = vmul.f32 %v7756, 1.442695
        %v7802 = vpow.pop %v7801
        %v7803 = vmul.f32 %v7757, 1.442695
        %v7804 = vpow.pop %v7803
        %v7805 = vmul.f32 %v7758, 1.442695
        %v7806 = vpow.pop %v7805
        %v7807 = vmul.f32 %v7759, 1.442695
        %v7808 = vpow.pop %v7807
        %v7809 = vmul.f32 %v7760, 1.442695
        %v7810 = vpow.pop %v7809
        %v7811 = vmul.f32 %v7761, 1.442695
        %v7812 = vpow.pop %v7811
        %v7813 = vmul.f32 %v7762, 1.442695
        %v7814 = vpow.pop %v7813
        %v7815 = vmul.f32 %v7763, 1.442695
        %v7816 = vpow.pop %v7815
        %v7817 = vmul.f32 %v7764, 1.442695
        %v7818 = vpow.pop %v7817
        %v7819 = vmul.f32 %v7765, 1.442695
        %v7820 = vpow.pop %v7819
        %v7821 = vmul.f32 %v7766, 1.442695
        %v7822 = vpow.pop %v7821
        %v7823 = vmul.f32 %v7767, 1.442695
        %v7824 = vpow.pop %v7823
        %v7825 = vmul.f32 %v7768, 1.442695
        %v7826 = vpow.pop %v7825
        %v7827 = vmul.f32 %v7769, 1.442695
        %v7828 = vpow.pop %v7827
        %v7829 = vmul.f32 %v7770, 1.442695
        %v7830 = vpow.pop %v7829
        %v7831 = vmul.f32 %v7771, 1.442695
        %v7832 = vpow.pop %v7831
        %v7833 = vmul.f32 %v7772, 1.442695
        %v7834 = vpow.pop %v7833
        %v7835 = vmul.f32 %v7773, 1.442695
        %v7836 = vpow.pop %v7835
        %v7837 = vmul.f32 %v7774, 1.442695
        %v7838 = vpow.pop %v7837
        %v7839 = vadd.f32 %v7776, 1.0
        %v7840 = vadd.f32 %v7778, 1.0
        %v7841 = vadd.f32 %v7780, 1.0
        %v7842 = vadd.f32 %v7782, 1.0
        %v7843 = vadd.f32 %v7784, 1.0
        %v7844 = vadd.f32 %v7786, 1.0
        %v7845 = vadd.f32 %v7788, 1.0
        %v7846 = vadd.f32 %v7790, 1.0
        %v7847 = vadd.f32 %v7792, 1.0
        %v7848 = vadd.f32 %v7794, 1.0
        %v7849 = vadd.f32 %v7796, 1.0
        %v7850 = vadd.f32 %v7798, 1.0
        %v7851 = vadd.f32 %v7800, 1.0
        %v7852 = vadd.f32 %v7802, 1.0
        %v7853 = vadd.f32 %v7804, 1.0
        %v7854 = vadd.f32 %v7806, 1.0
        %v7855 = vadd.f32 %v7808, 1.0
        %v7856 = vadd.f32 %v7810, 1.0
        %v7857 = vadd.f32 %v7812, 1.0
        %v7858 = vadd.f32 %v7814, 1.0
        %v7859 = vadd.f32 %v7816, 1.0
        %v7860 = vadd.f32 %v7818, 1.0
        %v7861 = vadd.f32 %v7820, 1.0
        %v7862 = vadd.f32 %v7822, 1.0
        %v7863 = vadd.f32 %v7824, 1.0
        %v7864 = vadd.f32 %v7826, 1.0
        %v7865 = vadd.f32 %v7828, 1.0
        %v7866 = vadd.f32 %v7830, 1.0
        %v7867 = vadd.f32 %v7832, 1.0
        %v7868 = vadd.f32 %v7834, 1.0
        %v7869 = vadd.f32 %v7836, 1.0
        %v7870 = vadd.f32 %v7838, 1.0
        %v7871 = vrcp.pop %v7839
        %v7872 = vmul.f32 1.0, %v7871
        %v7873 = vrcp.pop %v7840
        %v7874 = vmul.f32 1.0, %v7873
        %v7875 = vrcp.pop %v7841
        %v7876 = vmul.f32 1.0, %v7875
        %v7877 = vrcp.pop %v7842
        %v7878 = vmul.f32 1.0, %v7877
        %v7879 = vrcp.pop %v7843
        %v7880 = vmul.f32 1.0, %v7879
        %v7881 = vrcp.pop %v7844
        %v7882 = vmul.f32 1.0, %v7881
        %v7883 = vrcp.pop %v7845
        %v7884 = vmul.f32 1.0, %v7883
        %v7885 = vrcp.pop %v7846
        %v7886 = vmul.f32 1.0, %v7885
        %v7887 = vrcp.pop %v7847
        %v7888 = vmul.f32 1.0, %v7887
        %v7889 = vrcp.pop %v7848
        %v7890 = vmul.f32 1.0, %v7889
        %v7891 = vrcp.pop %v7849
        %v7892 = vmul.f32 1.0, %v7891
        %v7893 = vrcp.pop %v7850
        %v7894 = vmul.f32 1.0, %v7893
        %v7895 = vrcp.pop %v7851
        %v7896 = vmul.f32 1.0, %v7895
        %v7897 = vrcp.pop %v7852
        %v7898 = vmul.f32 1.0, %v7897
        %v7899 = vrcp.pop %v7853
        %v7900 = vmul.f32 1.0, %v7899
        %v7901 = vrcp.pop %v7854
        %v7902 = vmul.f32 1.0, %v7901
        %v7903 = vrcp.pop %v7855
        %v7904 = vmul.f32 1.0, %v7903
        %v7905 = vrcp.pop %v7856
        %v7906 = vmul.f32 1.0, %v7905
        %v7907 = vrcp.pop %v7857
        %v7908 = vmul.f32 1.0, %v7907
        %v7909 = vrcp.pop %v7858
        %v7910 = vmul.f32 1.0, %v7909
        %v7911 = vrcp.pop %v7859
        %v7912 = vmul.f32 1.0, %v7911
        %v7913 = vrcp.pop %v7860
        %v7914 = vmul.f32 1.0, %v7913
        %v7915 = vrcp.pop %v7861
        %v7916 = vmul.f32 1.0, %v7915
        %v7917 = vrcp.pop %v7862
        %v7918 = vmul.f32 1.0, %v7917
        %v7919 = vrcp.pop %v7863
        %v7920 = vmul.f32 1.0, %v7919
        %v7921 = vrcp.pop %v7864
        %v7922 = vmul.f32 1.0, %v7921
        %v7923 = vrcp.pop %v7865
        %v7924 = vmul.f32 1.0, %v7923
        %v7925 = vrcp.pop %v7866
        %v7926 = vmul.f32 1.0, %v7925
        %v7927 = vrcp.pop %v7867
        %v7928 = vmul.f32 1.0, %v7927
        %v7929 = vrcp.pop %v7868
        %v7930 = vmul.f32 1.0, %v7929
        %v7931 = vrcp.pop %v7869
        %v7932 = vmul.f32 1.0, %v7931
        %v7933 = vrcp.pop %v7870
        %v7934 = vmul.f32 1.0, %v7933
        %v7935 = vmul.f32 %v7872, 0.1156912
        %v7936 = vmul.f32 %v7874, 0.1156912
        %v7937 = vmul.f32 %v7876, 0.1156912
        %v7938 = vmul.f32 %v7878, 0.1156912
        %v7939 = vmul.f32 %v7880, 0.1156912
        %v7940 = vmul.f32 %v7882, 0.1156912
        %v7941 = vmul.f32 %v7884, 0.1156912
        %v7942 = vmul.f32 %v7886, 0.1156912
        %v7943 = vmul.f32 %v7888, 0.1156912
        %v7944 = vmul.f32 %v7890, 0.1156912
        %v7945 = vmul.f32 %v7892, 0.1156912
        %v7946 = vmul.f32 %v7894, 0.1156912
        %v7947 = vmul.f32 %v7896, 0.1156912
        %v7948 = vmul.f32 %v7898, 0.1156912
        %v7949 = vmul.f32 %v7900, 0.1156912
        %v7950 = vmul.f32 %v7902, 0.1156912
        %v7951 = vmul.f32 %v7904, 0.1156912
        %v7952 = vmul.f32 %v7906, 0.1156912
        %v7953 = vmul.f32 %v7908, 0.1156912
        %v7954 = vmul.f32 %v7910, 0.1156912
        %v7955 = vmul.f32 %v7912, 0.1156912
        %v7956 = vmul.f32 %v7914, 0.1156912
        %v7957 = vmul.f32 %v7916, 0.1156912
        %v7958 = vmul.f32 %v7918, 0.1156912
        %v7959 = vmul.f32 %v7920, 0.1156912
        %v7960 = vmul.f32 %v7922, 0.1156912
        %v7961 = vmul.f32 %v7924, 0.1156912
        %v7962 = vmul.f32 %v7926, 0.1156912
        %v7963 = vmul.f32 %v7928, 0.1156912
        %v7964 = vmul.f32 %v7930, 0.1156912
        %v7965 = vmul.f32 %v7932, 0.1156912
        %v7966 = vmul.f32 %v7934, 0.1156912
        %v7999 = vlaneseq
        %v8000 = vand.u32 %v7999, 127
        %v8001 = vlaneseq
        %v8002 = vshrl.u32 %v8001, 7
        %v8003 = vsub.s32 %v8000, %v8002
        %v8004 = vrot.slane %v7935, %v8003
        %v8005 = vadd.s32 %v8000, 4294967288
        %v8006 = vlaneseq
        %v8007 = vshrl.u32 %v8006, 7
        %v8008 = vsub.s32 %v8005, %v8007
        %v8009 = vrot.slane %v7936, %v8008
        %vm8010 = vcmask 130112
        %v8011 = vsel %vm8010, %v8009, %v8004
        %v8012 = vlaneseq
        %v8013 = vshrl.u32 %v8012, 7
        %v8014 = vsub.s32 %v8000, %v8013
        %v8015 = vrot.slane %v7937, %v8014
        %v8016 = vlaneseq
        %v8017 = vshrl.u32 %v8016, 7
        %v8018 = vsub.s32 %v8005, %v8017
        %v8019 = vrot.slane %v7938, %v8018
        %v8020 = vsel %vm8010, %v8019, %v8015
        %v8021 = vlaneseq
        %v8022 = vshrl.u32 %v8021, 7
        %v8023 = vsub.s32 %v8000, %v8022
        %v8024 = vrot.slane %v7939, %v8023
        %v8025 = vlaneseq
        %v8026 = vshrl.u32 %v8025, 7
        %v8027 = vsub.s32 %v8005, %v8026
        %v8028 = vrot.slane %v7940, %v8027
        %v8029 = vsel %vm8010, %v8028, %v8024
        %v8030 = vlaneseq
        %v8031 = vshrl.u32 %v8030, 7
        %v8032 = vsub.s32 %v8000, %v8031
        %v8033 = vrot.slane %v7941, %v8032
        %v8034 = vlaneseq
        %v8035 = vshrl.u32 %v8034, 7
        %v8036 = vsub.s32 %v8005, %v8035
        %v8037 = vrot.slane %v7942, %v8036
        %v8038 = vsel %vm8010, %v8037, %v8033
        %v8039 = vlaneseq
        %v8040 = vshrl.u32 %v8039, 7
        %v8041 = vsub.s32 %v8000, %v8040
        %v8042 = vrot.slane %v7943, %v8041
        %v8043 = vlaneseq
        %v8044 = vshrl.u32 %v8043, 7
        %v8045 = vsub.s32 %v8005, %v8044
        %v8046 = vrot.slane %v7944, %v8045
        %v8047 = vsel %vm8010, %v8046, %v8042
        %v8048 = vlaneseq
        %v8049 = vshrl.u32 %v8048, 7
        %v8050 = vsub.s32 %v8000, %v8049
        %v8051 = vrot.slane %v7945, %v8050
        %v8052 = vlaneseq
        %v8053 = vshrl.u32 %v8052, 7
        %v8054 = vsub.s32 %v8005, %v8053
        %v8055 = vrot.slane %v7946, %v8054
        %v8056 = vsel %vm8010, %v8055, %v8051
        %v8057 = vlaneseq
        %v8058 = vshrl.u32 %v8057, 7
        %v8059 = vsub.s32 %v8000, %v8058
        %v8060 = vrot.slane %v7947, %v8059
        %v8061 = vlaneseq
        %v8062 = vshrl.u32 %v8061, 7
        %v8063 = vsub.s32 %v8005, %v8062
        %v8064 = vrot.slane %v7948, %v8063
        %v8065 = vsel %vm8010, %v8064, %v8060
        %v8066 = vlaneseq
        %v8067 = vshrl.u32 %v8066, 7
        %v8068 = vsub.s32 %v8000, %v8067
        %v8069 = vrot.slane %v7949, %v8068
        %v8070 = vlaneseq
        %v8071 = vshrl.u32 %v8070, 7
        %v8072 = vsub.s32 %v8005, %v8071
        %v8073 = vrot.slane %v7950, %v8072
        %v8074 = vsel %vm8010, %v8073, %v8069
        %v8075 = vlaneseq
        %v8076 = vshrl.u32 %v8075, 7
        %v8077 = vsub.s32 %v8000, %v8076
        %v8078 = vrot.slane %v7951, %v8077
        %v8079 = vlaneseq
        %v8080 = vshrl.u32 %v8079, 7
        %v8081 = vsub.s32 %v8005, %v8080
        %v8082 = vrot.slane %v7952, %v8081
        %v8083 = vsel %vm8010, %v8082, %v8078
        %v8084 = vlaneseq
        %v8085 = vshrl.u32 %v8084, 7
        %v8086 = vsub.s32 %v8000, %v8085
        %v8087 = vrot.slane %v7953, %v8086
        %v8088 = vlaneseq
        %v8089 = vshrl.u32 %v8088, 7
        %v8090 = vsub.s32 %v8005, %v8089
        %v8091 = vrot.slane %v7954, %v8090
        %v8092 = vsel %vm8010, %v8091, %v8087
        %v8093 = vlaneseq
        %v8094 = vshrl.u32 %v8093, 7
        %v8095 = vsub.s32 %v8000, %v8094
        %v8096 = vrot.slane %v7955, %v8095
        %v8097 = vlaneseq
        %v8098 = vshrl.u32 %v8097, 7
        %v8099 = vsub.s32 %v8005, %v8098
        %v8100 = vrot.slane %v7956, %v8099
        %v8101 = vsel %vm8010, %v8100, %v8096
        %v8102 = vlaneseq
        %v8103 = vshrl.u32 %v8102, 7
        %v8104 = vsub.s32 %v8000, %v8103
        %v8105 = vrot.slane %v7957, %v8104
        %v8106 = vlaneseq
        %v8107 = vshrl.u32 %v8106, 7
        %v8108 = vsub.s32 %v8005, %v8107
        %v8109 = vrot.slane %v7958, %v8108
        %v8110 = vsel %vm8010, %v8109, %v8105
        %v8111 = vlaneseq
        %v8112 = vshrl.u32 %v8111, 7
        %v8113 = vsub.s32 %v8000, %v8112
        %v8114 = vrot.slane %v7959, %v8113
        %v8115 = vlaneseq
        %v8116 = vshrl.u32 %v8115, 7
        %v8117 = vsub.s32 %v8005, %v8116
        %v8118 = vrot.slane %v7960, %v8117
        %v8119 = vsel %vm8010, %v8118, %v8114
        %v8120 = vlaneseq
        %v8121 = vshrl.u32 %v8120, 7
        %v8122 = vsub.s32 %v8000, %v8121
        %v8123 = vrot.slane %v7961, %v8122
        %v8124 = vlaneseq
        %v8125 = vshrl.u32 %v8124, 7
        %v8126 = vsub.s32 %v8005, %v8125
        %v8127 = vrot.slane %v7962, %v8126
        %v8128 = vsel %vm8010, %v8127, %v8123
        %v8129 = vlaneseq
        %v8130 = vshrl.u32 %v8129, 7
        %v8131 = vsub.s32 %v8000, %v8130
        %v8132 = vrot.slane %v7963, %v8131
        %v8133 = vlaneseq
        %v8134 = vshrl.u32 %v8133, 7
        %v8135 = vsub.s32 %v8005, %v8134
        %v8136 = vrot.slane %v7964, %v8135
        %v8137 = vsel %vm8010, %v8136, %v8132
        %v8138 = vlaneseq
        %v8139 = vshrl.u32 %v8138, 7
        %v8140 = vsub.s32 %v8000, %v8139
        %v8141 = vrot.slane %v7965, %v8140
        %v8142 = vlaneseq
        %v8143 = vshrl.u32 %v8142, 7
        %v8144 = vsub.s32 %v8005, %v8143
        %v8145 = vrot.slane %v7966, %v8144
        %v8146 = vsel %vm8010, %v8145, %v8141
        %vm8147 = vcmask 1041409
        %v8148 = vsel %vm8147, %v8020, %v8011
        %vm8149 = vcmask 1042434
        %v8150 = vsel %vm8149, %v8029, %v8148
        %vm8151 = vcmask 1043459
        %v8152 = vsel %vm8151, %v8038, %v8150
        %vm8153 = vcmask 1044484
        %v8154 = vsel %vm8153, %v8047, %v8152
        %vm8155 = vcmask 1045509
        %v8156 = vsel %vm8155, %v8056, %v8154
        %vm8157 = vcmask 1046534
        %v8158 = vsel %vm8157, %v8065, %v8156
        %vm8159 = vcmask 1047559
        %v8160 = vsel %vm8159, %v8074, %v8158
        %v8161 = vsel %vm8147, %v8092, %v8083
        %v8162 = vsel %vm8149, %v8101, %v8161
        %v8163 = vsel %vm8151, %v8110, %v8162
        %v8164 = vsel %vm8153, %v8119, %v8163
        %v8165 = vsel %vm8155, %v8128, %v8164
        %v8166 = vsel %vm8157, %v8137, %v8165
        %v8167 = vsel %vm8159, %v8146, %v8166
        %vm8170 = vcmask 130048
        %8171 = vst.msk [vmem:[%s219] sm:$0xff] %vm8170, %v8160
        %8172 = vst.msk [vmem:[%s219 + $0x8] sm:$0xff] %vm8170, %v8167
        %s8173 = sand.u32 %s139, 1
        %s8174 = scalar_lea.sflag [#allocation5], %s8173
        %s8175 = sand.u32 %s139, 1
        %s8176 = smul.addr %s8175, 16
        %s8177 = scalar_lea.vmem [#allocation4], %s8176
        // Predicated region
        $region41: #{tpu_custom_call.1} parent=39 // pred_check
          %p8178 = pneg %p149
        $region42: #{tpu_custom_call.1} parent=39 // pred_check_branch
          %8180 = sbr.rel (%p8178) target = $region44
        $region43: #{tpu_custom_call.1} parent=39 // pred_region
          %s8182 = ssub.s32 256, 256
          %8183 = vsyncadd %s8174, %s8182
          %s8184 = smul.addr %s21, 2
          %s8185 = smul.addr %s8184, 128
          %s8186 = scalar_lea.hbm %s5, %s8185
          %s8187 = sshll.u32 %s8177, 4
          %s8188 = int_to_ptr.vmem [resolvable:$true] %s8187
          %8193 = dma.vmem_to_hbm [thread:$0]  %s8188, 256, %s8186, %s8174, 128, 128, 8
        $region44: #{tpu_custom_call.1} parent=39 // pred_fallthru
          _
      $region40: #{tpu_custom_call.1} parent=5 // pred_fallthru
        _
      %p8194 = scmp.le.s32.totalorder 2, %s16
      // Predicated region
      $region45: #{tpu_custom_call.1} parent=5 // pred_check
        %p8195 = pneg %p8194
      $region46: #{tpu_custom_call.1} parent=5 // pred_check_branch
        %8197 = sbr.rel (%p8195) target = $region48
      $region47: #{tpu_custom_call.1} parent=5 // pred_region
        %s8198 = ssub.s32 %s16, 2
        // Predicated region
        $region49: #{tpu_custom_call.1} parent=47 // pred_check
          %p8199 = pneg %p155
        $region50: #{tpu_custom_call.1} parent=47 // pred_check_branch
          %8201 = sbr.rel (%p8199) target = $region52
        $region51: #{tpu_custom_call.1} parent=47 // pred_region
          %s8202 = sand.u32 %s140, 1
          %s8203 = scalar_lea.sflag [#allocation5], %s8202
          %s8204 = sand.u32 %s140, 1
          %s8205 = smul.addr %s8204, 16
          %s8206 = scalar_lea.vmem [#allocation4], %s8205
          %8207 = dma.done %s8203, 256
        $region52: #{tpu_custom_call.1} parent=47 // pred_fallthru
          _
      $region48: #{tpu_custom_call.1} parent=5 // pred_fallthru
        _
    $region6: #{tpu_custom_call.1} parent=1 // loop_footer
      %s20 = sadd.s32 1, %s16
    $region7: #{tpu_custom_call.1} parent=1 // loop_footer_branch
      %15 = sbr.rel target = $region3
    $region8: #{tpu_custom_call.1} parent=1 // loop_exit
      _
    %8208 = vsyncpa [#allocation5], 1
    %s8209 = scalar_lea.sflag [#allocation5], 1
    %8210 = vsyncpa %s8209, 1

</llo_original>
